<compile_context>
chip_gen: v5e
topology: v5e:2x2
jax: 0.10.0
libtpu: 0.0.40
codegen_flags: <defaults>
</compile_context>

<pallas_src>
import functools

import jax
import jax.numpy as jnp
from jax.experimental import pallas as pl
from jax.experimental.pallas import tpu as pltpu

LANE = 128                       # TPU lane width; all channel dims padded to this
NUM_CLASSES = 8
NUM_ANCHORS = 4                  # anchors per spatial location, per level
BACKBONE_CH = (16, 32, 64)
IMG_CPAD = 32                    # image channels 3 -> 32 so the s2d slab is 128-lane dense
CCLS = NUM_ANCHORS * NUM_CLASSES   # 32
CREG = NUM_ANCHORS * 4             # 16

# 3x3 / stride-2 / pad-1 conv tap k -> (space-to-depth spatial offset, parity slot)
_TAP = ((0, 0), (0, 1), (1, 0))


# -----------------------------------------------------------------------------
# Pallas kernels
# -----------------------------------------------------------------------------
def _conv_kernel(x_ref, w_ref, b_ref, o_ref, *, OH, OW):
    """3x3 stride-2 conv (+bias+ReLU) on a space-to-depth folded slab.
    x_ref: (OH+1, OW+1, 4*Cin_pad) bf16   w_ref: (4, 4*Cin_pad, 128) bf16
    b_ref: (1, 128) f32                   o_ref: (OH, OW, 128) bf16"""
    c4 = x_ref.shape[-1]
    acc = None
    for dr in range(2):              # 4 shifted, unstrided MXU matmuls, f32 acc
        for dc in range(2):
            patch = x_ref[dr:dr + OH, dc:dc + OW, :].reshape(OH * OW, c4)
            part = jnp.dot(patch, w_ref[2 * dr + dc],
                           preferred_element_type=jnp.float32)
            acc = part if acc is None else acc + part
    y = jnp.maximum(acc + b_ref[...], 0.0)
    o_ref[...] = y.reshape(OH, OW, LANE).astype(o_ref.dtype)


def _conv_head_kernel(x_ref, wc_ref, bc_ref, wdw_ref, bdw_ref, wpw_ref, bpw_ref,
                      feat_ref, head_ref, pad_ref, *, OH, OW):
    """Backbone conv fused with BOTH SSDLite heads (cls + reg) for one image.
    x_ref  : (OH+1, OW+1, 4*Cin_pad) bf16   s2d-folded, spatially padded input
    wc_ref : (4, 4*Cin_pad, 128) bf16       conv taps   bc_ref: (1,128) f32
    wdw_ref: (18, 128) f32   dw 3x3 taps (rows 0..8 cls, 9..17 reg)
    bdw_ref: (2, 128)  f32   dw biases      wpw_ref: (2, 128, 128) bf16
    bpw_ref: (1, 128)  f32   pw biases (cls in lanes 0..31, reg in 64..79)
    feat_ref: (OH, OW, 128) bf16            feature map for the next layer
    head_ref: (OH*OW, 128) f32              [cls|..|reg|..] lane-dense packed
    pad_ref : (OH+2, OW+2, 128) f32 VMEM scratch (dw-conv halo)"""
    c4 = x_ref.shape[-1]
    # ---- strided conv in s2d form: 4 shifted unstrided MXU matmuls ----------
    acc = None
    for dr in range(2):
        for dc in range(2):
            patch = x_ref[dr:dr + OH, dc:dc + OW, :].reshape(OH * OW, c4)
            part = jnp.dot(patch, wc_ref[2 * dr + dc],
                           preferred_element_type=jnp.float32)
            acc = part if acc is None else acc + part
    feat = jnp.maximum(acc + bc_ref[...], 0.0).reshape(OH, OW, LANE)   # f32
    feat_ref[...] = feat.astype(feat_ref.dtype)                        # bf16 to HBM

    # ---- SSDLite heads on the in-register feature map -----------------------
    pad_ref[...] = jnp.zeros_like(pad_ref)          # zero halo
    pad_ref[1:OH + 1, 1:OW + 1, :] = feat           # interior (stays in VMEM)
    acc_c = None
    acc_r = None
    for kh in range(3):                             # dw 3x3: each tap loaded ONCE,
        for kw in range(3):                         # feeds two independent FMA chains
            t = kh * 3 + kw
            tap = pad_ref[kh:kh + OH, kw:kw + OW, :]
            pc = tap * wdw_ref[t:t + 1]
            pr = tap * wdw_ref[9 + t:10 + t]
            acc_c = pc if acc_c is None else acc_c + pc
            acc_r = pr if acc_r is None else acc_r + pr
    dw_c = jnp.maximum(acc_c + bdw_ref[0:1], 0.0).reshape(OH * OW, LANE)
    dw_r = jnp.maximum(acc_r + bdw_ref[1:2], 0.0).reshape(OH * OW, LANE)
    # Pointwise 1x1: two 128-wide MXU matmuls summed -> lane-dense packed output
    # (cls weights live in output lanes 0..31, reg weights in 64..79, rest zero).
    head = (jnp.dot(dw_c.astype(jnp.bfloat16), wpw_ref[0],
                    preferred_element_type=jnp.float32)
            + jnp.dot(dw_r.astype(jnp.bfloat16), wpw_ref[1],
                      preferred_element_type=jnp.float32)
            + bpw_ref[...])
    head_ref[...] = head


# -----------------------------------------------------------------------------
# Wrappers around pallas_call
# -----------------------------------------------------------------------------
def conv_s2d(xs, w, b, OH, OW):
    """xs: (N, OH+1, OW+1, 4*Cin_pad) bf16 -> (N, OH, OW, 128) bf16."""
    N, Hs, Ws, C4 = xs.shape
    return pl.pallas_call(
        functools.partial(_conv_kernel, OH=OH, OW=OW),
        out_shape=jax.ShapeDtypeStruct((N, OH, OW, LANE), jnp.bfloat16),
        grid=(N,),   # N=2 parallel steps -> both v7x TensorCores busy
        in_specs=[
            pl.BlockSpec((None, Hs, Ws, C4), lambda n: (n, 0, 0, 0)),
            pl.BlockSpec((4, C4, LANE), lambda n: (0, 0, 0)),
            pl.BlockSpec((1, LANE), lambda n: (0, 0)),
        ],
        out_specs=pl.BlockSpec((None, OH, OW, LANE), lambda n: (n, 0, 0, 0)),
        compiler_params=pltpu.CompilerParams(dimension_semantics=("parallel",)),
    )(xs, w, b)


def conv_s2d_with_heads(xs, wc, bc, head_params, OH, OW):
    """Fused backbone conv + SSDLite (cls & reg) heads for one pyramid level."""
    N, Hs, Ws, C4 = xs.shape
    wdw, bdw, wpw, bpw = head_params
    feat, head = pl.pallas_call(
        functools.partial(_conv_head_kernel, OH=OH, OW=OW),
        out_shape=(jax.ShapeDtypeStruct((N, OH, OW, LANE), jnp.bfloat16),
                   jax.ShapeDtypeStruct((N, OH * OW, LANE), jnp.float32)),
        grid=(N,),
        in_specs=[
            pl.BlockSpec((None, Hs, Ws, C4), lambda n: (n, 0, 0, 0)),
            pl.BlockSpec((4, C4, LANE), lambda n: (0, 0, 0)),
            pl.BlockSpec((1, LANE), lambda n: (0, 0)),
            pl.BlockSpec((18, LANE), lambda n: (0, 0)),
            pl.BlockSpec((2, LANE), lambda n: (0, 0)),
            pl.BlockSpec((2, LANE, LANE), lambda n: (0, 0, 0)),
            pl.BlockSpec((1, LANE), lambda n: (0, 0)),
        ],
        out_specs=(pl.BlockSpec((None, OH, OW, LANE), lambda n: (n, 0, 0, 0)),
                   pl.BlockSpec((None, OH * OW, LANE), lambda n: (n, 0, 0))),
        scratch_shapes=[pltpu.VMEM((OH + 2, OW + 2, LANE), jnp.float32)],
        compiler_params=pltpu.CompilerParams(dimension_semantics=("parallel",)),
    )(xs, wc, bc, wdw, bdw, wpw, bpw)
    return feat, head


# -----------------------------------------------------------------------------
# Layout-only glue (no arithmetic)
# -----------------------------------------------------------------------------
def pad_s2d(x, cpad):
    """Spatial pad-by-1 + 2x2 space-to-depth fold (pure XLA layout glue).
    x: (N, H, W, C) -> (N, (H+2)//2, (W+2)//2, 4*cpad).  The fold turns the
    stride-2 3x3 conv into a stride-1 2x2 conv, so the Pallas kernel only needs
    contiguous slices + 4 MXU matmuls (no im2col, no strided VMEM reads)."""
    N, H, W, C = x.shape
    assert (H + 2) % 2 == 0 and (W + 2) % 2 == 0
    x = jnp.pad(x, ((0, 0), (1, 1), (1, 1), (0, cpad - C)))
    hs, ws = (H + 2) // 2, (W + 2) // 2
    x = x.reshape(N, hs, 2, ws, 2, cpad)
    x = jnp.transpose(x, (0, 1, 3, 2, 4, 5))
    return x.reshape(N, hs, ws, 4 * cpad)


# -----------------------------------------------------------------------------
# One-time parameter packing (zero-padded to lane-dense, s2d weight layout)
# -----------------------------------------------------------------------------
def _pack_conv_weight(w, cin_pad):
    """(3,3,Cin,Cout) f32 -> (4, 4*cin_pad, 128) bf16 in space-to-depth form."""
    _, _, cin, cout = w.shape
    w2 = jnp.zeros((2, 2, 2, 2, cin_pad, LANE), jnp.float32)
    for kh in range(3):
        dr, rp = _TAP[kh]
        for kw in range(3):
            dc, cp = _TAP[kw]
            w2 = w2.at[dr, dc, rp, cp, :cin, :cout].set(w[kh, kw])
    return (w2.reshape(2, 2, 4 * cin_pad, LANE)
              .reshape(4, 4 * cin_pad, LANE).astype(jnp.bfloat16))


def _pack_bias(b):
    return jnp.zeros((1, LANE), jnp.float32).at[0, :b.shape[0]].set(b)


def _pack_head(params, li, c_real):
    wdw = jnp.zeros((18, LANE), jnp.float32)
    wdw = wdw.at[0:9, :c_real].set(params[f"cls{li}_dw_w"].reshape(9, c_real))
    wdw = wdw.at[9:18, :c_real].set(params[f"reg{li}_dw_w"].reshape(9, c_real))
    bdw = jnp.zeros((2, LANE), jnp.float32)
    bdw = bdw.at[0, :c_real].set(params[f"cls{li}_dw_b"])
    bdw = bdw.at[1, :c_real].set(params[f"reg{li}_dw_b"])
    wpw = jnp.zeros((2, LANE, LANE), jnp.float32)
    wpw = wpw.at[0, :c_real, 0:CCLS].set(params[f"cls{li}_pw_w"].reshape(c_real, CCLS))
    wpw = wpw.at[1, :c_real, 64:64 + CREG].set(params[f"reg{li}_pw_w"].reshape(c_real, CREG))
    bpw = jnp.zeros((1, LANE), jnp.float32)
    bpw = bpw.at[0, 0:CCLS].set(params[f"cls{li}_pw_b"])
    bpw = bpw.at[0, 64:64 + CREG].set(params[f"reg{li}_pw_b"])
    return wdw, bdw, wpw.astype(jnp.bfloat16), bpw


def prepare_params(params):
    packed = {}
    cin_pads = (IMG_CPAD, LANE, LANE)
    for li in range(len(BACKBONE_CH)):
        packed[f"bb{li}_w"] = _pack_conv_weight(params[f"bb{li}_w"], cin_pads[li])
        packed[f"bb{li}_b"] = _pack_bias(params[f"bb{li}_b"])
    for li, c in enumerate(BACKBONE_CH[1:]):
        packed[f"head{li}"] = _pack_head(params, li, c)
    return packed


# -----------------------------------------------------------------------------
# SSD detector (synthetic, deterministic parameters)
# -----------------------------------------------------------------------------
def init_params(key):
    scale = 0.05
    p = {}

    def nrm(k, shape):
        return scale * jax.random.normal(k, shape, dtype=jnp.float32)

    keys = iter(jax.random.split(key, 64))
    cin = 3
    for li, cout in enumerate(BACKBONE_CH):          # 3x 3x3 stride-2 convs
        p[f"bb{li}_w"] = nrm(next(keys), (3, 3, cin, cout))
        p[f"bb{li}_b"] = jnp.zeros((cout,), jnp.float32)
        cin = cout
    for li, c in enumerate(BACKBONE_CH[1:]):         # heads on levels 1 and 2
        for head, cout in (("cls", CCLS), ("reg", CREG)):
            p[f"{head}{li}_dw_w"] = nrm(next(keys), (3, 3, c))
            p[f"{head}{li}_dw_b"] = jnp.zeros((c,), jnp.float32)
            p[f"{head}{li}_pw_w"] = nrm(next(keys), (1, 1, c, cout))
            p[f"{head}{li}_pw_b"] = jnp.zeros((cout,), jnp.float32)
    return p


def ssd_detector_forward(packed, images_nchw):
    """images_nchw: (N, 3, H, W) float32 -> (cls_logits, bbox_regression).
    3 Pallas calls total: conv0, conv1+head0 (fused), conv2+head1 (fused)."""
    N, _, H, W = images_nchw.shape
    oh = [H // 2, H // 4, H // 8]
    ow = [W // 2, W // 4, W // 8]

    x = jnp.transpose(images_nchw, (0, 2, 3, 1)).astype(jnp.bfloat16)   # NCHW->NHWC
    feat0 = conv_s2d(pad_s2d(x, IMG_CPAD),
                     packed["bb0_w"], packed["bb0_b"], oh[0], ow[0])
    feat1, head0 = conv_s2d_with_heads(pad_s2d(feat0, LANE),
                                       packed["bb1_w"], packed["bb1_b"],
                                       packed["head0"], oh[1], ow[1])
    _feat2, head1 = conv_s2d_with_heads(pad_s2d(feat1, LANE),
                                        packed["bb2_w"], packed["bb2_b"],
                                        packed["head1"], oh[2], ow[2])

    # Lane-padding slice + anchor-major/class-minor reshape (pure XLA glue).
    cls_all, reg_all = [], []
    for head, hw in ((head0, oh[1] * ow[1]), (head1, oh[2] * ow[2])):
        cls_all.append(head[:, :, :CCLS].reshape(N, hw * NUM_ANCHORS, NUM_CLASSES))
        reg_all.append(head[:, :, 64:64 + CREG].reshape(N, hw * NUM_ANCHORS, 4))
    cls_logits = jnp.concatenate(cls_all, axis=1)        # (N, A_total, num_classes)
    bbox_regression = jnp.concatenate(reg_all, axis=1)   # (N, A_total, 4)
    return cls_logits, bbox_regression


if __name__ == "__main__":
    key = jax.random.PRNGKey(0)
    pkey, xkey = jax.random.split(key)
    params = init_params(pkey)
    packed = prepare_params(params)    # one-time weight repacking (outside jit)

    # Small synthetic batch of images, NCHW like the PyTorch module expects.
    images = jax.random.normal(xkey, (2, 3, 32, 32), dtype=jnp.float32)

    fwd = jax.jit(ssd_detector_forward)
    cls_logits, bbox_regression = fwd(packed, images)
    jax.block_until_ready((cls_logits, bbox_regression))

    # (8*8 + 4*4) locations * 4 anchors = 320 anchors total.
    assert cls_logits.shape == (2, 320, NUM_CLASSES), cls_logits.shape
    assert bbox_regression.shape == (2, 320, 4), bbox_regression.shape
    assert jnp.all(jnp.isfinite(cls_logits)) and jnp.all(jnp.isfinite(bbox_regression))

    print("KERNEL_OK")
</pallas_src>

<mosaic_0001>
module attributes {stable_mosaic.version = 11 : i64} {
  func.func @_conv_kernel(%arg0: i32, %arg1: memref<1x17x17x128xbf16, #tpu.memory_space<vmem>>, %arg2: memref<4x128x128xbf16, #tpu.memory_space<vmem>>, %arg3: memref<1x128xf32, #tpu.memory_space<vmem>>, %arg4: memref<1x16x16x128xbf16, #tpu.memory_space<vmem>>) attributes {dimension_semantics = [#tpu.dimension_semantics<parallel>], iteration_bounds = array<i64: 2>, scalar_prefetch = 0 : i64, scratch_operands = 0 : i64, tpu.core_type = #tpu.core_type<tc>, window_params = [{transform_indices = @transform_0, window_bounds = array<i64: 1, 17, 17, 128>}, {pipeline_mode = #tpu.pipeline_mode<synchronous>, transform_indices = @transform_1, window_bounds = array<i64: 4, 128, 128>}, {pipeline_mode = #tpu.pipeline_mode<synchronous>, transform_indices = @transform_2, window_bounds = array<i64: 1, 128>}, {transform_indices = @transform_3, window_bounds = array<i64: 1, 16, 16, 128>}]} {
    %c0 = arith.constant 0 : index
    %c0_0 = arith.constant 0 : index
    %c0_1 = arith.constant 0 : index
    %c0_2 = arith.constant 0 : index
    %0 = vector.load %arg1[%c0, %c0_0, %c0_1, %c0_2] : memref<1x17x17x128xbf16, #tpu.memory_space<vmem>>, vector<1x16x16x128xbf16>
    %1 = vector.shape_cast %0 : vector<1x16x16x128xbf16> to vector<16x16x128xbf16>
    %2 = vector.shape_cast %1 : vector<16x16x128xbf16> to vector<256x128xbf16>
    %c0_3 = arith.constant 0 : index
    %c0_4 = arith.constant 0 : index
    %c0_5 = arith.constant 0 : index
    %3 = vector.load %arg2[%c0_3, %c0_4, %c0_5] : memref<4x128x128xbf16, #tpu.memory_space<vmem>>, vector<1x128x128xbf16>
    %4 = vector.shape_cast %3 : vector<1x128x128xbf16> to vector<128x128xbf16>
    %cst = arith.constant dense<0.000000e+00> : vector<256x128xf32>
    %5 = tpu.matmul %2, %4, %cst {dimension_numbers = #tpu.dot_dimension_numbers<[1], [0], [0], [1], [0, 0, 1, 1], [], []>} : vector<256x128xbf16>, vector<128x128xbf16>, vector<256x128xf32> -> vector<256x128xf32>
    %c0_6 = arith.constant 0 : index
    %c0_7 = arith.constant 0 : index
    %c1 = arith.constant 1 : index
    %c0_8 = arith.constant 0 : index
    %6 = vector.load %arg1[%c0_6, %c0_7, %c1, %c0_8] : memref<1x17x17x128xbf16, #tpu.memory_space<vmem>>, vector<1x16x16x128xbf16>
    %7 = vector.shape_cast %6 : vector<1x16x16x128xbf16> to vector<16x16x128xbf16>
    %8 = vector.shape_cast %7 : vector<16x16x128xbf16> to vector<256x128xbf16>
    %c1_9 = arith.constant 1 : index
    %c0_10 = arith.constant 0 : index
    %c0_11 = arith.constant 0 : index
    %9 = vector.load %arg2[%c1_9, %c0_10, %c0_11] : memref<4x128x128xbf16, #tpu.memory_space<vmem>>, vector<1x128x128xbf16>
    %10 = vector.shape_cast %9 : vector<1x128x128xbf16> to vector<128x128xbf16>
    %cst_12 = arith.constant dense<0.000000e+00> : vector<256x128xf32>
    %11 = tpu.matmul %8, %10, %cst_12 {dimension_numbers = #tpu.dot_dimension_numbers<[1], [0], [0], [1], [0, 0, 1, 1], [], []>} : vector<256x128xbf16>, vector<128x128xbf16>, vector<256x128xf32> -> vector<256x128xf32>
    %12 = arith.addf %5, %11 : vector<256x128xf32>
    %c0_13 = arith.constant 0 : index
    %c1_14 = arith.constant 1 : index
    %c0_15 = arith.constant 0 : index
    %c0_16 = arith.constant 0 : index
    %13 = vector.load %arg1[%c0_13, %c1_14, %c0_15, %c0_16] : memref<1x17x17x128xbf16, #tpu.memory_space<vmem>>, vector<1x16x16x128xbf16>
    %14 = vector.shape_cast %13 : vector<1x16x16x128xbf16> to vector<16x16x128xbf16>
    %15 = vector.shape_cast %14 : vector<16x16x128xbf16> to vector<256x128xbf16>
    %c2 = arith.constant 2 : index
    %c0_17 = arith.constant 0 : index
    %c0_18 = arith.constant 0 : index
    %16 = vector.load %arg2[%c2, %c0_17, %c0_18] : memref<4x128x128xbf16, #tpu.memory_space<vmem>>, vector<1x128x128xbf16>
    %17 = vector.shape_cast %16 : vector<1x128x128xbf16> to vector<128x128xbf16>
    %cst_19 = arith.constant dense<0.000000e+00> : vector<256x128xf32>
    %18 = tpu.matmul %15, %17, %cst_19 {dimension_numbers = #tpu.dot_dimension_numbers<[1], [0], [0], [1], [0, 0, 1, 1], [], []>} : vector<256x128xbf16>, vector<128x128xbf16>, vector<256x128xf32> -> vector<256x128xf32>
    %19 = arith.addf %12, %18 : vector<256x128xf32>
    %c0_20 = arith.constant 0 : index
    %c1_21 = arith.constant 1 : index
    %c1_22 = arith.constant 1 : index
    %c0_23 = arith.constant 0 : index
    %20 = vector.load %arg1[%c0_20, %c1_21, %c1_22, %c0_23] : memref<1x17x17x128xbf16, #tpu.memory_space<vmem>>, vector<1x16x16x128xbf16>
    %21 = vector.shape_cast %20 : vector<1x16x16x128xbf16> to vector<16x16x128xbf16>
    %22 = vector.shape_cast %21 : vector<16x16x128xbf16> to vector<256x128xbf16>
    %c3 = arith.constant 3 : index
    %c0_24 = arith.constant 0 : index
    %c0_25 = arith.constant 0 : index
    %23 = vector.load %arg2[%c3, %c0_24, %c0_25] : memref<4x128x128xbf16, #tpu.memory_space<vmem>>, vector<1x128x128xbf16>
    %24 = vector.shape_cast %23 : vector<1x128x128xbf16> to vector<128x128xbf16>
    %cst_26 = arith.constant dense<0.000000e+00> : vector<256x128xf32>
    %25 = tpu.matmul %22, %24, %cst_26 {dimension_numbers = #tpu.dot_dimension_numbers<[1], [0], [0], [1], [0, 0, 1, 1], [], []>} : vector<256x128xbf16>, vector<128x128xbf16>, vector<256x128xf32> -> vector<256x128xf32>
    %26 = arith.addf %19, %25 : vector<256x128xf32>
    %c0_27 = arith.constant 0 : index
    %c0_28 = arith.constant 0 : index
    %27 = vector.load %arg3[%c0_27, %c0_28] : memref<1x128xf32, #tpu.memory_space<vmem>>, vector<1x128xf32>
    %28 = vector.broadcast %27 : vector<1x128xf32> to vector<256x128xf32>
    %29 = arith.addf %26, %28 : vector<256x128xf32>
    %cst_29 = arith.constant 0.000000e+00 : f32
    %30 = vector.broadcast %cst_29 : f32 to vector<256x128xf32>
    %31 = arith.maximumf %29, %30 : vector<256x128xf32>
    %32 = vector.shape_cast %31 : vector<256x128xf32> to vector<16x16x128xf32>
    %33 = arith.truncf %32 : vector<16x16x128xf32> to vector<16x16x128xbf16>
    %c0_30 = arith.constant 0 : index
    %c0_31 = arith.constant 0 : index
    %c0_32 = arith.constant 0 : index
    %c0_33 = arith.constant 0 : index
    %34 = vector.load %arg4[%c0_30, %c0_31, %c0_32, %c0_33] : memref<1x16x16x128xbf16, #tpu.memory_space<vmem>>, vector<1x16x16x128xbf16>
    %35 = vector.shape_cast %34 : vector<1x16x16x128xbf16> to vector<16x16x128xbf16>
    %36 = vector.shape_cast %33 : vector<16x16x128xbf16> to vector<1x16x16x128xbf16>
    tpu.vector_store %arg4[%c0_30, %c0_31, %c0_32, %c0_33], %36 {strides = array<i32>} : memref<1x16x16x128xbf16, #tpu.memory_space<vmem>>, vector<1x16x16x128xbf16>,
    return
  }
  func.func @transform_0(%arg0: i32) -> (i32, i32, i32, i32) {
    %c0_i32 = arith.constant 0 : i32
    %c0_i32_0 = arith.constant 0 : i32
    %c0_i32_1 = arith.constant 0 : i32
    %c0_i32_2 = arith.constant 0 : i32
    return %arg0, %c0_i32, %c0_i32_0, %c0_i32_1 : i32, i32, i32, i32
  }
  func.func @transform_1(%arg0: i32) -> (i32, i32, i32) {
    %c0_i32 = arith.constant 0 : i32
    %c0_i32_0 = arith.constant 0 : i32
    %c0_i32_1 = arith.constant 0 : i32
    %c0_i32_2 = arith.constant 0 : i32
    return %c0_i32, %c0_i32_0, %c0_i32_1 : i32, i32, i32
  }
  func.func @transform_2(%arg0: i32) -> (i32, i32) {
    %c0_i32 = arith.constant 0 : i32
    %c0_i32_0 = arith.constant 0 : i32
    %c0_i32_1 = arith.constant 0 : i32
    return %c0_i32, %c0_i32_0 : i32, i32
  }
  func.func @transform_3(%arg0: i32) -> (i32, i32, i32, i32) {
    %c0_i32 = arith.constant 0 : i32
    %c0_i32_0 = arith.constant 0 : i32
    %c0_i32_1 = arith.constant 0 : i32
    %c0_i32_2 = arith.constant 0 : i32
    return %arg0, %c0_i32, %c0_i32_0, %c0_i32_1 : i32, i32, i32, i32
  }
}

module attributes {stable_mosaic.version = 11 : i64} {
  func.func @_conv_head_kernel(%arg0: i32, %arg1: memref<1x9x9x512xbf16, #tpu.memory_space<vmem>>, %arg2: memref<4x512x128xbf16, #tpu.memory_space<vmem>>, %arg3: memref<1x128xf32, #tpu.memory_space<vmem>>, %arg4: memref<18x128xf32, #tpu.memory_space<vmem>>, %arg5: memref<2x128xf32, #tpu.memory_space<vmem>>, %arg6: memref<2x128x128xbf16, #tpu.memory_space<vmem>>, %arg7: memref<1x128xf32, #tpu.memory_space<vmem>>, %arg8: memref<1x8x8x128xbf16, #tpu.memory_space<vmem>>, %arg9: memref<1x64x128xf32, #tpu.memory_space<vmem>>, %arg10: memref<10x10x128xf32, #tpu.memory_space<vmem>>) attributes {dimension_semantics = [#tpu.dimension_semantics<parallel>], iteration_bounds = array<i64: 2>, scalar_prefetch = 0 : i64, scratch_operands = 1 : i64, tpu.core_type = #tpu.core_type<tc>, window_params = [{transform_indices = @transform_0, window_bounds = array<i64: 1, 9, 9, 512>}, {pipeline_mode = #tpu.pipeline_mode<synchronous>, transform_indices = @transform_1, window_bounds = array<i64: 4, 512, 128>}, {pipeline_mode = #tpu.pipeline_mode<synchronous>, transform_indices = @transform_2, window_bounds = array<i64: 1, 128>}, {pipeline_mode = #tpu.pipeline_mode<synchronous>, transform_indices = @transform_3, window_bounds = array<i64: 18, 128>}, {pipeline_mode = #tpu.pipeline_mode<synchronous>, transform_indices = @transform_4, window_bounds = array<i64: 2, 128>}, {pipeline_mode = #tpu.pipeline_mode<synchronous>, transform_indices = @transform_5, window_bounds = array<i64: 2, 128, 128>}, {pipeline_mode = #tpu.pipeline_mode<synchronous>, transform_indices = @transform_6, window_bounds = array<i64: 1, 128>}, {transform_indices = @transform_7, window_bounds = array<i64: 1, 8, 8, 128>}, {transform_indices = @transform_8, window_bounds = array<i64: 1, 64, 128>}]} {
    %c0 = arith.constant 0 : index
    %c0_0 = arith.constant 0 : index
    %c0_1 = arith.constant 0 : index
    %c0_2 = arith.constant 0 : index
    %0 = vector.load %arg1[%c0, %c0_0, %c0_1, %c0_2] : memref<1x9x9x512xbf16, #tpu.memory_space<vmem>>, vector<1x8x8x512xbf16>
    %1 = vector.shape_cast %0 : vector<1x8x8x512xbf16> to vector<8x8x512xbf16>
    %2 = vector.shape_cast %1 : vector<8x8x512xbf16> to vector<64x512xbf16>
    %c0_3 = arith.constant 0 : index
    %c0_4 = arith.constant 0 : index
    %c0_5 = arith.constant 0 : index
    %3 = vector.load %arg2[%c0_3, %c0_4, %c0_5] : memref<4x512x128xbf16, #tpu.memory_space<vmem>>, vector<1x512x128xbf16>
    %4 = vector.shape_cast %3 : vector<1x512x128xbf16> to vector<512x128xbf16>
    %cst = arith.constant dense<0.000000e+00> : vector<64x128xf32>
    %5 = tpu.matmul %2, %4, %cst {dimension_numbers = #tpu.dot_dimension_numbers<[1], [0], [0], [1], [0, 0, 1, 1], [], []>} : vector<64x512xbf16>, vector<512x128xbf16>, vector<64x128xf32> -> vector<64x128xf32>
    %c0_6 = arith.constant 0 : index
    %c0_7 = arith.constant 0 : index
    %c1 = arith.constant 1 : index
    %c0_8 = arith.constant 0 : index
    %6 = vector.load %arg1[%c0_6, %c0_7, %c1, %c0_8] : memref<1x9x9x512xbf16, #tpu.memory_space<vmem>>, vector<1x8x8x512xbf16>
    %7 = vector.shape_cast %6 : vector<1x8x8x512xbf16> to vector<8x8x512xbf16>
    %8 = vector.shape_cast %7 : vector<8x8x512xbf16> to vector<64x512xbf16>
    %c1_9 = arith.constant 1 : index
    %c0_10 = arith.constant 0 : index
    %c0_11 = arith.constant 0 : index
    %9 = vector.load %arg2[%c1_9, %c0_10, %c0_11] : memref<4x512x128xbf16, #tpu.memory_space<vmem>>, vector<1x512x128xbf16>
    %10 = vector.shape_cast %9 : vector<1x512x128xbf16> to vector<512x128xbf16>
    %cst_12 = arith.constant dense<0.000000e+00> : vector<64x128xf32>
    %11 = tpu.matmul %8, %10, %cst_12 {dimension_numbers = #tpu.dot_dimension_numbers<[1], [0], [0], [1], [0, 0, 1, 1], [], []>} : vector<64x512xbf16>, vector<512x128xbf16>, vector<64x128xf32> -> vector<64x128xf32>
    %12 = arith.addf %5, %11 : vector<64x128xf32>
    %c0_13 = arith.constant 0 : index
    %c1_14 = arith.constant 1 : index
    %c0_15 = arith.constant 0 : index
    %c0_16 = arith.constant 0 : index
    %13 = vector.load %arg1[%c0_13, %c1_14, %c0_15, %c0_16] : memref<1x9x9x512xbf16, #tpu.memory_space<vmem>>, vector<1x8x8x512xbf16>
    %14 = vector.shape_cast %13 : vector<1x8x8x512xbf16> to vector<8x8x512xbf16>
    %15 = vector.shape_cast %14 : vector<8x8x512xbf16> to vector<64x512xbf16>
    %c2 = arith.constant 2 : index
    %c0_17 = arith.constant 0 : index
    %c0_18 = arith.constant 0 : index
    %16 = vector.load %arg2[%c2, %c0_17, %c0_18] : memref<4x512x128xbf16, #tpu.memory_space<vmem>>, vector<1x512x128xbf16>
    %17 = vector.shape_cast %16 : vector<1x512x128xbf16> to vector<512x128xbf16>
    %cst_19 = arith.constant dense<0.000000e+00> : vector<64x128xf32>
    %18 = tpu.matmul %15, %17, %cst_19 {dimension_numbers = #tpu.dot_dimension_numbers<[1], [0], [0], [1], [0, 0, 1, 1], [], []>} : vector<64x512xbf16>, vector<512x128xbf16>, vector<64x128xf32> -> vector<64x128xf32>
    %19 = arith.addf %12, %18 : vector<64x128xf32>
    %c0_20 = arith.constant 0 : index
    %c1_21 = arith.constant 1 : index
    %c1_22 = arith.constant 1 : index
    %c0_23 = arith.constant 0 : index
    %20 = vector.load %arg1[%c0_20, %c1_21, %c1_22, %c0_23] : memref<1x9x9x512xbf16, #tpu.memory_space<vmem>>, vector<1x8x8x512xbf16>
    %21 = vector.shape_cast %20 : vector<1x8x8x512xbf16> to vector<8x8x512xbf16>
    %22 = vector.shape_cast %21 : vector<8x8x512xbf16> to vector<64x512xbf16>
    %c3 = arith.constant 3 : index
    %c0_24 = arith.constant 0 : index
    %c0_25 = arith.constant 0 : index
    %23 = vector.load %arg2[%c3, %c0_24, %c0_25] : memref<4x512x128xbf16, #tpu.memory_space<vmem>>, vector<1x512x128xbf16>
    %24 = vector.shape_cast %23 : vector<1x512x128xbf16> to vector<512x128xbf16>
    %cst_26 = arith.constant dense<0.000000e+00> : vector<64x128xf32>
    %25 = tpu.matmul %22, %24, %cst_26 {dimension_numbers = #tpu.dot_dimension_numbers<[1], [0], [0], [1], [0, 0, 1, 1], [], []>} : vector<64x512xbf16>, vector<512x128xbf16>, vector<64x128xf32> -> vector<64x128xf32>
    %26 = arith.addf %19, %25 : vector<64x128xf32>
    %c0_27 = arith.constant 0 : index
    %c0_28 = arith.constant 0 : index
    %27 = vector.load %arg3[%c0_27, %c0_28] : memref<1x128xf32, #tpu.memory_space<vmem>>, vector<1x128xf32>
    %28 = vector.broadcast %27 : vector<1x128xf32> to vector<64x128xf32>
    %29 = arith.addf %26, %28 : vector<64x128xf32>
    %cst_29 = arith.constant 0.000000e+00 : f32
    %30 = vector.broadcast %cst_29 : f32 to vector<64x128xf32>
    %31 = arith.maximumf %29, %30 : vector<64x128xf32>
    %32 = vector.shape_cast %31 : vector<64x128xf32> to vector<8x8x128xf32>
    %33 = arith.truncf %32 : vector<8x8x128xf32> to vector<8x8x128xbf16>
    %c0_30 = arith.constant 0 : index
    %c0_31 = arith.constant 0 : index
    %c0_32 = arith.constant 0 : index
    %c0_33 = arith.constant 0 : index
    %34 = vector.load %arg8[%c0_30, %c0_31, %c0_32, %c0_33] : memref<1x8x8x128xbf16, #tpu.memory_space<vmem>>, vector<1x8x8x128xbf16>
    %35 = vector.shape_cast %34 : vector<1x8x8x128xbf16> to vector<8x8x128xbf16>
    %36 = vector.shape_cast %33 : vector<8x8x128xbf16> to vector<1x8x8x128xbf16>
    tpu.vector_store %arg8[%c0_30, %c0_31, %c0_32, %c0_33], %36 {strides = array<i32>} : memref<1x8x8x128xbf16, #tpu.memory_space<vmem>>, vector<1x8x8x128xbf16>,
    %cst_34 = arith.constant 0.000000e+00 : f32
    %37 = vector.broadcast %cst_34 : f32 to vector<10x10x128xf32>
    %c0_35 = arith.constant 0 : index
    %c0_36 = arith.constant 0 : index
    %c0_37 = arith.constant 0 : index
    %38 = vector.load %arg10[%c0_35, %c0_36, %c0_37] : memref<10x10x128xf32, #tpu.memory_space<vmem>>, vector<10x10x128xf32>
    tpu.vector_store %arg10[%c0_35, %c0_36, %c0_37], %37 {strides = array<i32>} : memref<10x10x128xf32, #tpu.memory_space<vmem>>, vector<10x10x128xf32>,
    %c1_38 = arith.constant 1 : index
    %c1_39 = arith.constant 1 : index
    %c0_40 = arith.constant 0 : index
    %39 = vector.load %arg10[%c1_38, %c1_39, %c0_40] : memref<10x10x128xf32, #tpu.memory_space<vmem>>, vector<8x8x128xf32>
    tpu.vector_store %arg10[%c1_38, %c1_39, %c0_40], %32 {strides = array<i32>} : memref<10x10x128xf32, #tpu.memory_space<vmem>>, vector<8x8x128xf32>,
    %c0_41 = arith.constant 0 : index
    %c0_42 = arith.constant 0 : index
    %c0_43 = arith.constant 0 : index
    %40 = vector.load %arg10[%c0_41, %c0_42, %c0_43] : memref<10x10x128xf32, #tpu.memory_space<vmem>>, vector<8x8x128xf32>
    %c0_44 = arith.constant 0 : index
    %c0_45 = arith.constant 0 : index
    %41 = vector.load %arg4[%c0_44, %c0_45] : memref<18x128xf32, #tpu.memory_space<vmem>>, vector<1x128xf32>
    %42 = vector.shape_cast %41 : vector<1x128xf32> to vector<1x1x128xf32>
    %43 = vector.broadcast %42 : vector<1x1x128xf32> to vector<8x8x128xf32>
    %44 = arith.mulf %40, %43 : vector<8x8x128xf32>
    %c9 = arith.constant 9 : index
    %c0_46 = arith.constant 0 : index
    %45 = vector.load %arg4[%c9, %c0_46] : memref<18x128xf32, #tpu.memory_space<vmem>>, vector<1x128xf32>
    %46 = vector.shape_cast %45 : vector<1x128xf32> to vector<1x1x128xf32>
    %47 = vector.broadcast %46 : vector<1x1x128xf32> to vector<8x8x128xf32>
    %48 = arith.mulf %40, %47 : vector<8x8x128xf32>
    %c0_47 = arith.constant 0 : index
    %c1_48 = arith.constant 1 : index
    %c0_49 = arith.constant 0 : index
    %49 = vector.load %arg10[%c0_47, %c1_48, %c0_49] : memref<10x10x128xf32, #tpu.memory_space<vmem>>, vector<8x8x128xf32>
    %c1_50 = arith.constant 1 : index
    %c0_51 = arith.constant 0 : index
    %50 = vector.load %arg4[%c1_50, %c0_51] : memref<18x128xf32, #tpu.memory_space<vmem>>, vector<1x128xf32>
    %51 = vector.shape_cast %50 : vector<1x128xf32> to vector<1x1x128xf32>
    %52 = vector.broadcast %51 : vector<1x1x128xf32> to vector<8x8x128xf32>
    %53 = arith.mulf %49, %52 : vector<8x8x128xf32>
    %c10 = arith.constant 10 : index
    %c0_52 = arith.constant 0 : index
    %54 = vector.load %arg4[%c10, %c0_52] : memref<18x128xf32, #tpu.memory_space<vmem>>, vector<1x128xf32>
    %55 = vector.shape_cast %54 : vector<1x128xf32> to vector<1x1x128xf32>
    %56 = vector.broadcast %55 : vector<1x1x128xf32> to vector<8x8x128xf32>
    %57 = arith.mulf %49, %56 : vector<8x8x128xf32>
    %58 = arith.addf %44, %53 : vector<8x8x128xf32>
    %59 = arith.addf %48, %57 : vector<8x8x128xf32>
    %c0_53 = arith.constant 0 : index
    %c2_54 = arith.constant 2 : index
    %c0_55 = arith.constant 0 : index
    %60 = vector.load %arg10[%c0_53, %c2_54, %c0_55] : memref<10x10x128xf32, #tpu.memory_space<vmem>>, vector<8x8x128xf32>
    %c2_56 = arith.constant 2 : index
    %c0_57 = arith.constant 0 : index
    %61 = vector.load %arg4[%c2_56, %c0_57] : memref<18x128xf32, #tpu.memory_space<vmem>>, vector<1x128xf32>
    %62 = vector.shape_cast %61 : vector<1x128xf32> to vector<1x1x128xf32>
    %63 = vector.broadcast %62 : vector<1x1x128xf32> to vector<8x8x128xf32>
    %64 = arith.mulf %60, %63 : vector<8x8x128xf32>
    %c11 = arith.constant 11 : index
    %c0_58 = arith.constant 0 : index
    %65 = vector.load %arg4[%c11, %c0_58] : memref<18x128xf32, #tpu.memory_space<vmem>>, vector<1x128xf32>
    %66 = vector.shape_cast %65 : vector<1x128xf32> to vector<1x1x128xf32>
    %67 = vector.broadcast %66 : vector<1x1x128xf32> to vector<8x8x128xf32>
    %68 = arith.mulf %60, %67 : vector<8x8x128xf32>
    %69 = arith.addf %58, %64 : vector<8x8x128xf32>
    %70 = arith.addf %59, %68 : vector<8x8x128xf32>
    %c1_59 = arith.constant 1 : index
    %c0_60 = arith.constant 0 : index
    %c0_61 = arith.constant 0 : index
    %71 = vector.load %arg10[%c1_59, %c0_60, %c0_61] : memref<10x10x128xf32, #tpu.memory_space<vmem>>, vector<8x8x128xf32>
    %c3_62 = arith.constant 3 : index
    %c0_63 = arith.constant 0 : index
    %72 = vector.load %arg4[%c3_62, %c0_63] : memref<18x128xf32, #tpu.memory_space<vmem>>, vector<1x128xf32>
    %73 = vector.shape_cast %72 : vector<1x128xf32> to vector<1x1x128xf32>
    %74 = vector.broadcast %73 : vector<1x1x128xf32> to vector<8x8x128xf32>
    %75 = arith.mulf %71, %74 : vector<8x8x128xf32>
    %c12 = arith.constant 12 : index
    %c0_64 = arith.constant 0 : index
    %76 = vector.load %arg4[%c12, %c0_64] : memref<18x128xf32, #tpu.memory_space<vmem>>, vector<1x128xf32>
    %77 = vector.shape_cast %76 : vector<1x128xf32> to vector<1x1x128xf32>
    %78 = vector.broadcast %77 : vector<1x1x128xf32> to vector<8x8x128xf32>
    %79 = arith.mulf %71, %78 : vector<8x8x128xf32>
    %80 = arith.addf %69, %75 : vector<8x8x128xf32>
    %81 = arith.addf %70, %79 : vector<8x8x128xf32>
    %c1_65 = arith.constant 1 : index
    %c1_66 = arith.constant 1 : index
    %c0_67 = arith.constant 0 : index
    %82 = vector.load %arg10[%c1_65, %c1_66, %c0_67] : memref<10x10x128xf32, #tpu.memory_space<vmem>>, vector<8x8x128xf32>
    %c4 = arith.constant 4 : index
    %c0_68 = arith.constant 0 : index
    %83 = vector.load %arg4[%c4, %c0_68] : memref<18x128xf32, #tpu.memory_space<vmem>>, vector<1x128xf32>
    %84 = vector.shape_cast %83 : vector<1x128xf32> to vector<1x1x128xf32>
    %85 = vector.broadcast %84 : vector<1x1x128xf32> to vector<8x8x128xf32>
    %86 = arith.mulf %82, %85 : vector<8x8x128xf32>
    %c13 = arith.constant 13 : index
    %c0_69 = arith.constant 0 : index
    %87 = vector.load %arg4[%c13, %c0_69] : memref<18x128xf32, #tpu.memory_space<vmem>>, vector<1x128xf32>
    %88 = vector.shape_cast %87 : vector<1x128xf32> to vector<1x1x128xf32>
    %89 = vector.broadcast %88 : vector<1x1x128xf32> to vector<8x8x128xf32>
    %90 = arith.mulf %82, %89 : vector<8x8x128xf32>
    %91 = arith.addf %80, %86 : vector<8x8x128xf32>
    %92 = arith.addf %81, %90 : vector<8x8x128xf32>
    %c1_70 = arith.constant 1 : index
    %c2_71 = arith.constant 2 : index
    %c0_72 = arith.constant 0 : index
    %93 = vector.load %arg10[%c1_70, %c2_71, %c0_72] : memref<10x10x128xf32, #tpu.memory_space<vmem>>, vector<8x8x128xf32>
    %c5 = arith.constant 5 : index
    %c0_73 = arith.constant 0 : index
    %94 = vector.load %arg4[%c5, %c0_73] : memref<18x128xf32, #tpu.memory_space<vmem>>, vector<1x128xf32>
    %95 = vector.shape_cast %94 : vector<1x128xf32> to vector<1x1x128xf32>
    %96 = vector.broadcast %95 : vector<1x1x128xf32> to vector<8x8x128xf32>
    %97 = arith.mulf %93, %96 : vector<8x8x128xf32>
    %c14 = arith.constant 14 : index
    %c0_74 = arith.constant 0 : index
    %98 = vector.load %arg4[%c14, %c0_74] : memref<18x128xf32, #tpu.memory_space<vmem>>, vector<1x128xf32>
    %99 = vector.shape_cast %98 : vector<1x128xf32> to vector<1x1x128xf32>
    %100 = vector.broadcast %99 : vector<1x1x128xf32> to vector<8x8x128xf32>
    %101 = arith.mulf %93, %100 : vector<8x8x128xf32>
    %102 = arith.addf %91, %97 : vector<8x8x128xf32>
    %103 = arith.addf %92, %101 : vector<8x8x128xf32>
    %c2_75 = arith.constant 2 : index
    %c0_76 = arith.constant 0 : index
    %c0_77 = arith.constant 0 : index
    %104 = vector.load %arg10[%c2_75, %c0_76, %c0_77] : memref<10x10x128xf32, #tpu.memory_space<vmem>>, vector<8x8x128xf32>
    %c6 = arith.constant 6 : index
    %c0_78 = arith.constant 0 : index
    %105 = vector.load %arg4[%c6, %c0_78] : memref<18x128xf32, #tpu.memory_space<vmem>>, vector<1x128xf32>
    %106 = vector.shape_cast %105 : vector<1x128xf32> to vector<1x1x128xf32>
    %107 = vector.broadcast %106 : vector<1x1x128xf32> to vector<8x8x128xf32>
    %108 = arith.mulf %104, %107 : vector<8x8x128xf32>
    %c15 = arith.constant 15 : index
    %c0_79 = arith.constant 0 : index
    %109 = vector.load %arg4[%c15, %c0_79] : memref<18x128xf32, #tpu.memory_space<vmem>>, vector<1x128xf32>
    %110 = vector.shape_cast %109 : vector<1x128xf32> to vector<1x1x128xf32>
    %111 = vector.broadcast %110 : vector<1x1x128xf32> to vector<8x8x128xf32>
    %112 = arith.mulf %104, %111 : vector<8x8x128xf32>
    %113 = arith.addf %102, %108 : vector<8x8x128xf32>
    %114 = arith.addf %103, %112 : vector<8x8x128xf32>
    %c2_80 = arith.constant 2 : index
    %c1_81 = arith.constant 1 : index
    %c0_82 = arith.constant 0 : index
    %115 = vector.load %arg10[%c2_80, %c1_81, %c0_82] : memref<10x10x128xf32, #tpu.memory_space<vmem>>, vector<8x8x128xf32>
    %c7 = arith.constant 7 : index
    %c0_83 = arith.constant 0 : index
    %116 = vector.load %arg4[%c7, %c0_83] : memref<18x128xf32, #tpu.memory_space<vmem>>, vector<1x128xf32>
    %117 = vector.shape_cast %116 : vector<1x128xf32> to vector<1x1x128xf32>
    %118 = vector.broadcast %117 : vector<1x1x128xf32> to vector<8x8x128xf32>
    %119 = arith.mulf %115, %118 : vector<8x8x128xf32>
    %c16 = arith.constant 16 : index
    %c0_84 = arith.constant 0 : index
    %120 = vector.load %arg4[%c16, %c0_84] : memref<18x128xf32, #tpu.memory_space<vmem>>, vector<1x128xf32>
    %121 = vector.shape_cast %120 : vector<1x128xf32> to vector<1x1x128xf32>
    %122 = vector.broadcast %121 : vector<1x1x128xf32> to vector<8x8x128xf32>
    %123 = arith.mulf %115, %122 : vector<8x8x128xf32>
    %124 = arith.addf %113, %119 : vector<8x8x128xf32>
    %125 = arith.addf %114, %123 : vector<8x8x128xf32>
    %c2_85 = arith.constant 2 : index
    %c2_86 = arith.constant 2 : index
    %c0_87 = arith.constant 0 : index
    %126 = vector.load %arg10[%c2_85, %c2_86, %c0_87] : memref<10x10x128xf32, #tpu.memory_space<vmem>>, vector<8x8x128xf32>
    %c8 = arith.constant 8 : index
    %c0_88 = arith.constant 0 : index
    %127 = vector.load %arg4[%c8, %c0_88] : memref<18x128xf32, #tpu.memory_space<vmem>>, vector<1x128xf32>
    %128 = vector.shape_cast %127 : vector<1x128xf32> to vector<1x1x128xf32>
    %129 = vector.broadcast %128 : vector<1x1x128xf32> to vector<8x8x128xf32>
    %130 = arith.mulf %126, %129 : vector<8x8x128xf32>
    %c17 = arith.constant 17 : index
    %c0_89 = arith.constant 0 : index
    %131 = vector.load %arg4[%c17, %c0_89] : memref<18x128xf32, #tpu.memory_space<vmem>>, vector<1x128xf32>
    %132 = vector.shape_cast %131 : vector<1x128xf32> to vector<1x1x128xf32>
    %133 = vector.broadcast %132 : vector<1x1x128xf32> to vector<8x8x128xf32>
    %134 = arith.mulf %126, %133 : vector<8x8x128xf32>
    %135 = arith.addf %124, %130 : vector<8x8x128xf32>
    %136 = arith.addf %125, %134 : vector<8x8x128xf32>
    %c0_90 = arith.constant 0 : index
    %c0_91 = arith.constant 0 : index
    %137 = vector.load %arg5[%c0_90, %c0_91] : memref<2x128xf32, #tpu.memory_space<vmem>>, vector<1x128xf32>
    %138 = vector.shape_cast %137 : vector<1x128xf32> to vector<1x1x128xf32>
    %139 = vector.broadcast %138 : vector<1x1x128xf32> to vector<8x8x128xf32>
    %140 = arith.addf %135, %139 : vector<8x8x128xf32>
    %cst_92 = arith.constant 0.000000e+00 : f32
    %141 = vector.broadcast %cst_92 : f32 to vector<8x8x128xf32>
    %142 = arith.maximumf %140, %141 : vector<8x8x128xf32>
    %143 = vector.shape_cast %142 : vector<8x8x128xf32> to vector<64x128xf32>
    %c1_93 = arith.constant 1 : index
    %c0_94 = arith.constant 0 : index
    %144 = vector.load %arg5[%c1_93, %c0_94] : memref<2x128xf32, #tpu.memory_space<vmem>>, vector<1x128xf32>
    %145 = vector.shape_cast %144 : vector<1x128xf32> to vector<1x1x128xf32>
    %146 = vector.broadcast %145 : vector<1x1x128xf32> to vector<8x8x128xf32>
    %147 = arith.addf %136, %146 : vector<8x8x128xf32>
    %cst_95 = arith.constant 0.000000e+00 : f32
    %148 = vector.broadcast %cst_95 : f32 to vector<8x8x128xf32>
    %149 = arith.maximumf %147, %148 : vector<8x8x128xf32>
    %150 = vector.shape_cast %149 : vector<8x8x128xf32> to vector<64x128xf32>
    %151 = arith.truncf %143 : vector<64x128xf32> to vector<64x128xbf16>
    %c0_96 = arith.constant 0 : index
    %c0_97 = arith.constant 0 : index
    %c0_98 = arith.constant 0 : index
    %152 = vector.load %arg6[%c0_96, %c0_97, %c0_98] : memref<2x128x128xbf16, #tpu.memory_space<vmem>>, vector<1x128x128xbf16>
    %153 = vector.shape_cast %152 : vector<1x128x128xbf16> to vector<128x128xbf16>
    %cst_99 = arith.constant dense<0.000000e+00> : vector<64x128xf32>
    %154 = tpu.matmul %151, %153, %cst_99 {dimension_numbers = #tpu.dot_dimension_numbers<[1], [0], [0], [1], [0, 0, 1, 1], [], []>} : vector<64x128xbf16>, vector<128x128xbf16>, vector<64x128xf32> -> vector<64x128xf32>
    %155 = arith.truncf %150 : vector<64x128xf32> to vector<64x128xbf16>
    %c1_100 = arith.constant 1 : index
    %c0_101 = arith.constant 0 : index
    %c0_102 = arith.constant 0 : index
    %156 = vector.load %arg6[%c1_100, %c0_101, %c0_102] : memref<2x128x128xbf16, #tpu.memory_space<vmem>>, vector<1x128x128xbf16>
    %157 = vector.shape_cast %156 : vector<1x128x128xbf16> to vector<128x128xbf16>
    %cst_103 = arith.constant dense<0.000000e+00> : vector<64x128xf32>
    %158 = tpu.matmul %155, %157, %cst_103 {dimension_numbers = #tpu.dot_dimension_numbers<[1], [0], [0], [1], [0, 0, 1, 1], [], []>} : vector<64x128xbf16>, vector<128x128xbf16>, vector<64x128xf32> -> vector<64x128xf32>
    %159 = arith.addf %154, %158 : vector<64x128xf32>
    %c0_104 = arith.constant 0 : index
    %c0_105 = arith.constant 0 : index
    %160 = vector.load %arg7[%c0_104, %c0_105] : memref<1x128xf32, #tpu.memory_space<vmem>>, vector<1x128xf32>
    %161 = vector.broadcast %160 : vector<1x128xf32> to vector<64x128xf32>
    %162 = arith.addf %159, %161 : vector<64x128xf32>
    %c0_106 = arith.constant 0 : index
    %c0_107 = arith.constant 0 : index
    %c0_108 = arith.constant 0 : index
    %163 = vector.load %arg9[%c0_106, %c0_107, %c0_108] : memref<1x64x128xf32, #tpu.memory_space<vmem>>, vector<1x64x128xf32>
    %164 = vector.shape_cast %163 : vector<1x64x128xf32> to vector<64x128xf32>
    %165 = vector.shape_cast %162 : vector<64x128xf32> to vector<1x64x128xf32>
    tpu.vector_store %arg9[%c0_106, %c0_107, %c0_108], %165 {strides = array<i32>} : memref<1x64x128xf32, #tpu.memory_space<vmem>>, vector<1x64x128xf32>,
    return
  }
  func.func @transform_0(%arg0: i32) -> (i32, i32, i32, i32) {
    %c0_i32 = arith.constant 0 : i32
    %c0_i32_0 = arith.constant 0 : i32
    %c0_i32_1 = arith.constant 0 : i32
    %c0_i32_2 = arith.constant 0 : i32
    return %arg0, %c0_i32, %c0_i32_0, %c0_i32_1 : i32, i32, i32, i32
  }
  func.func @transform_1(%arg0: i32) -> (i32, i32, i32) {
    %c0_i32 = arith.constant 0 : i32
    %c0_i32_0 = arith.constant 0 : i32
    %c0_i32_1 = arith.constant 0 : i32
    %c0_i32_2 = arith.constant 0 : i32
    return %c0_i32, %c0_i32_0, %c0_i32_1 : i32, i32, i32
  }
  func.func @transform_2(%arg0: i32) -> (i32, i32) {
    %c0_i32 = arith.constant 0 : i32
    %c0_i32_0 = arith.constant 0 : i32
    %c0_i32_1 = arith.constant 0 : i32
    return %c0_i32, %c0_i32_0 : i32, i32
  }
  func.func @transform_3(%arg0: i32) -> (i32, i32) {
    %c0_i32 = arith.constant 0 : i32
    %c0_i32_0 = arith.constant 0 : i32
    %c0_i32_1 = arith.constant 0 : i32
    return %c0_i32, %c0_i32_0 : i32, i32
  }
  func.func @transform_4(%arg0: i32) -> (i32, i32) {
    %c0_i32 = arith.constant 0 : i32
    %c0_i32_0 = arith.constant 0 : i32
    %c0_i32_1 = arith.constant 0 : i32
    return %c0_i32, %c0_i32_0 : i32, i32
  }
  func.func @transform_5(%arg0: i32) -> (i32, i32, i32) {
    %c0_i32 = arith.constant 0 : i32
    %c0_i32_0 = arith.constant 0 : i32
    %c0_i32_1 = arith.constant 0 : i32
    %c0_i32_2 = arith.constant 0 : i32
    return %c0_i32, %c0_i32_0, %c0_i32_1 : i32, i32, i32
  }
  func.func @transform_6(%arg0: i32) -> (i32, i32) {
    %c0_i32 = arith.constant 0 : i32
    %c0_i32_0 = arith.constant 0 : i32
    %c0_i32_1 = arith.constant 0 : i32
    return %c0_i32, %c0_i32_0 : i32, i32
  }
  func.func @transform_7(%arg0: i32) -> (i32, i32, i32, i32) {
    %c0_i32 = arith.constant 0 : i32
    %c0_i32_0 = arith.constant 0 : i32
    %c0_i32_1 = arith.constant 0 : i32
    %c0_i32_2 = arith.constant 0 : i32
    return %arg0, %c0_i32, %c0_i32_0, %c0_i32_1 : i32, i32, i32, i32
  }
  func.func @transform_8(%arg0: i32) -> (i32, i32, i32) {
    %c0_i32 = arith.constant 0 : i32
    %c0_i32_0 = arith.constant 0 : i32
    %c0_i32_1 = arith.constant 0 : i32
    return %arg0, %c0_i32, %c0_i32_0 : i32, i32, i32
  }
}

module attributes {stable_mosaic.version = 11 : i64} {
  func.func @_conv_head_kernel(%arg0: i32, %arg1: memref<1x5x5x512xbf16, #tpu.memory_space<vmem>>, %arg2: memref<4x512x128xbf16, #tpu.memory_space<vmem>>, %arg3: memref<1x128xf32, #tpu.memory_space<vmem>>, %arg4: memref<18x128xf32, #tpu.memory_space<vmem>>, %arg5: memref<2x128xf32, #tpu.memory_space<vmem>>, %arg6: memref<2x128x128xbf16, #tpu.memory_space<vmem>>, %arg7: memref<1x128xf32, #tpu.memory_space<vmem>>, %arg8: memref<1x4x4x128xbf16, #tpu.memory_space<vmem>>, %arg9: memref<1x16x128xf32, #tpu.memory_space<vmem>>, %arg10: memref<6x6x128xf32, #tpu.memory_space<vmem>>) attributes {dimension_semantics = [#tpu.dimension_semantics<parallel>], iteration_bounds = array<i64: 2>, scalar_prefetch = 0 : i64, scratch_operands = 1 : i64, tpu.core_type = #tpu.core_type<tc>, window_params = [{transform_indices = @transform_0, window_bounds = array<i64: 1, 5, 5, 512>}, {pipeline_mode = #tpu.pipeline_mode<synchronous>, transform_indices = @transform_1, window_bounds = array<i64: 4, 512, 128>}, {pipeline_mode = #tpu.pipeline_mode<synchronous>, transform_indices = @transform_2, window_bounds = array<i64: 1, 128>}, {pipeline_mode = #tpu.pipeline_mode<synchronous>, transform_indices = @transform_3, window_bounds = array<i64: 18, 128>}, {pipeline_mode = #tpu.pipeline_mode<synchronous>, transform_indices = @transform_4, window_bounds = array<i64: 2, 128>}, {pipeline_mode = #tpu.pipeline_mode<synchronous>, transform_indices = @transform_5, window_bounds = array<i64: 2, 128, 128>}, {pipeline_mode = #tpu.pipeline_mode<synchronous>, transform_indices = @transform_6, window_bounds = array<i64: 1, 128>}, {transform_indices = @transform_7, window_bounds = array<i64: 1, 4, 4, 128>}, {transform_indices = @transform_8, window_bounds = array<i64: 1, 16, 128>}]} {
    %c0 = arith.constant 0 : index
    %c0_0 = arith.constant 0 : index
    %c0_1 = arith.constant 0 : index
    %c0_2 = arith.constant 0 : index
    %0 = vector.load %arg1[%c0, %c0_0, %c0_1, %c0_2] : memref<1x5x5x512xbf16, #tpu.memory_space<vmem>>, vector<1x4x4x512xbf16>
    %1 = vector.shape_cast %0 : vector<1x4x4x512xbf16> to vector<4x4x512xbf16>
    %2 = vector.shape_cast %1 : vector<4x4x512xbf16> to vector<16x512xbf16>
    %c0_3 = arith.constant 0 : index
    %c0_4 = arith.constant 0 : index
    %c0_5 = arith.constant 0 : index
    %3 = vector.load %arg2[%c0_3, %c0_4, %c0_5] : memref<4x512x128xbf16, #tpu.memory_space<vmem>>, vector<1x512x128xbf16>
    %4 = vector.shape_cast %3 : vector<1x512x128xbf16> to vector<512x128xbf16>
    %cst = arith.constant dense<0.000000e+00> : vector<16x128xf32>
    %5 = tpu.matmul %2, %4, %cst {dimension_numbers = #tpu.dot_dimension_numbers<[1], [0], [0], [1], [0, 0, 1, 1], [], []>} : vector<16x512xbf16>, vector<512x128xbf16>, vector<16x128xf32> -> vector<16x128xf32>
    %c0_6 = arith.constant 0 : index
    %c0_7 = arith.constant 0 : index
    %c1 = arith.constant 1 : index
    %c0_8 = arith.constant 0 : index
    %6 = vector.load %arg1[%c0_6, %c0_7, %c1, %c0_8] : memref<1x5x5x512xbf16, #tpu.memory_space<vmem>>, vector<1x4x4x512xbf16>
    %7 = vector.shape_cast %6 : vector<1x4x4x512xbf16> to vector<4x4x512xbf16>
    %8 = vector.shape_cast %7 : vector<4x4x512xbf16> to vector<16x512xbf16>
    %c1_9 = arith.constant 1 : index
    %c0_10 = arith.constant 0 : index
    %c0_11 = arith.constant 0 : index
    %9 = vector.load %arg2[%c1_9, %c0_10, %c0_11] : memref<4x512x128xbf16, #tpu.memory_space<vmem>>, vector<1x512x128xbf16>
    %10 = vector.shape_cast %9 : vector<1x512x128xbf16> to vector<512x128xbf16>
    %cst_12 = arith.constant dense<0.000000e+00> : vector<16x128xf32>
    %11 = tpu.matmul %8, %10, %cst_12 {dimension_numbers = #tpu.dot_dimension_numbers<[1], [0], [0], [1], [0, 0, 1, 1], [], []>} : vector<16x512xbf16>, vector<512x128xbf16>, vector<16x128xf32> -> vector<16x128xf32>
    %12 = arith.addf %5, %11 : vector<16x128xf32>
    %c0_13 = arith.constant 0 : index
    %c1_14 = arith.constant 1 : index
    %c0_15 = arith.constant 0 : index
    %c0_16 = arith.constant 0 : index
    %13 = vector.load %arg1[%c0_13, %c1_14, %c0_15, %c0_16] : memref<1x5x5x512xbf16, #tpu.memory_space<vmem>>, vector<1x4x4x512xbf16>
    %14 = vector.shape_cast %13 : vector<1x4x4x512xbf16> to vector<4x4x512xbf16>
    %15 = vector.shape_cast %14 : vector<4x4x512xbf16> to vector<16x512xbf16>
    %c2 = arith.constant 2 : index
    %c0_17 = arith.constant 0 : index
    %c0_18 = arith.constant 0 : index
    %16 = vector.load %arg2[%c2, %c0_17, %c0_18] : memref<4x512x128xbf16, #tpu.memory_space<vmem>>, vector<1x512x128xbf16>
    %17 = vector.shape_cast %16 : vector<1x512x128xbf16> to vector<512x128xbf16>
    %cst_19 = arith.constant dense<0.000000e+00> : vector<16x128xf32>
    %18 = tpu.matmul %15, %17, %cst_19 {dimension_numbers = #tpu.dot_dimension_numbers<[1], [0], [0], [1], [0, 0, 1, 1], [], []>} : vector<16x512xbf16>, vector<512x128xbf16>, vector<16x128xf32> -> vector<16x128xf32>
    %19 = arith.addf %12, %18 : vector<16x128xf32>
    %c0_20 = arith.constant 0 : index
    %c1_21 = arith.constant 1 : index
    %c1_22 = arith.constant 1 : index
    %c0_23 = arith.constant 0 : index
    %20 = vector.load %arg1[%c0_20, %c1_21, %c1_22, %c0_23] : memref<1x5x5x512xbf16, #tpu.memory_space<vmem>>, vector<1x4x4x512xbf16>
    %21 = vector.shape_cast %20 : vector<1x4x4x512xbf16> to vector<4x4x512xbf16>
    %22 = vector.shape_cast %21 : vector<4x4x512xbf16> to vector<16x512xbf16>
    %c3 = arith.constant 3 : index
    %c0_24 = arith.constant 0 : index
    %c0_25 = arith.constant 0 : index
    %23 = vector.load %arg2[%c3, %c0_24, %c0_25] : memref<4x512x128xbf16, #tpu.memory_space<vmem>>, vector<1x512x128xbf16>
    %24 = vector.shape_cast %23 : vector<1x512x128xbf16> to vector<512x128xbf16>
    %cst_26 = arith.constant dense<0.000000e+00> : vector<16x128xf32>
    %25 = tpu.matmul %22, %24, %cst_26 {dimension_numbers = #tpu.dot_dimension_numbers<[1], [0], [0], [1], [0, 0, 1, 1], [], []>} : vector<16x512xbf16>, vector<512x128xbf16>, vector<16x128xf32> -> vector<16x128xf32>
    %26 = arith.addf %19, %25 : vector<16x128xf32>
    %c0_27 = arith.constant 0 : index
    %c0_28 = arith.constant 0 : index
    %27 = vector.load %arg3[%c0_27, %c0_28] : memref<1x128xf32, #tpu.memory_space<vmem>>, vector<1x128xf32>
    %28 = vector.broadcast %27 : vector<1x128xf32> to vector<16x128xf32>
    %29 = arith.addf %26, %28 : vector<16x128xf32>
    %cst_29 = arith.constant 0.000000e+00 : f32
    %30 = vector.broadcast %cst_29 : f32 to vector<16x128xf32>
    %31 = arith.maximumf %29, %30 : vector<16x128xf32>
    %32 = vector.shape_cast %31 : vector<16x128xf32> to vector<4x4x128xf32>
    %33 = arith.truncf %32 : vector<4x4x128xf32> to vector<4x4x128xbf16>
    %c0_30 = arith.constant 0 : index
    %c0_31 = arith.constant 0 : index
    %c0_32 = arith.constant 0 : index
    %c0_33 = arith.constant 0 : index
    %34 = vector.load %arg8[%c0_30, %c0_31, %c0_32, %c0_33] : memref<1x4x4x128xbf16, #tpu.memory_space<vmem>>, vector<1x4x4x128xbf16>
    %35 = vector.shape_cast %34 : vector<1x4x4x128xbf16> to vector<4x4x128xbf16>
    %36 = vector.shape_cast %33 : vector<4x4x128xbf16> to vector<1x4x4x128xbf16>
    tpu.vector_store %arg8[%c0_30, %c0_31, %c0_32, %c0_33], %36 {strides = array<i32>} : memref<1x4x4x128xbf16, #tpu.memory_space<vmem>>, vector<1x4x4x128xbf16>,
    %cst_34 = arith.constant 0.000000e+00 : f32
    %37 = vector.broadcast %cst_34 : f32 to vector<6x6x128xf32>
    %c0_35 = arith.constant 0 : index
    %c0_36 = arith.constant 0 : index
    %c0_37 = arith.constant 0 : index
    %38 = vector.load %arg10[%c0_35, %c0_36, %c0_37] : memref<6x6x128xf32, #tpu.memory_space<vmem>>, vector<6x6x128xf32>
    tpu.vector_store %arg10[%c0_35, %c0_36, %c0_37], %37 {strides = array<i32>} : memref<6x6x128xf32, #tpu.memory_space<vmem>>, vector<6x6x128xf32>,
    %c1_38 = arith.constant 1 : index
    %c1_39 = arith.constant 1 : index
    %c0_40 = arith.constant 0 : index
    %39 = vector.load %arg10[%c1_38, %c1_39, %c0_40] : memref<6x6x128xf32, #tpu.memory_space<vmem>>, vector<4x4x128xf32>
    tpu.vector_store %arg10[%c1_38, %c1_39, %c0_40], %32 {strides = array<i32>} : memref<6x6x128xf32, #tpu.memory_space<vmem>>, vector<4x4x128xf32>,
    %c0_41 = arith.constant 0 : index
    %c0_42 = arith.constant 0 : index
    %c0_43 = arith.constant 0 : index
    %40 = vector.load %arg10[%c0_41, %c0_42, %c0_43] : memref<6x6x128xf32, #tpu.memory_space<vmem>>, vector<4x4x128xf32>
    %c0_44 = arith.constant 0 : index
    %c0_45 = arith.constant 0 : index
    %41 = vector.load %arg4[%c0_44, %c0_45] : memref<18x128xf32, #tpu.memory_space<vmem>>, vector<1x128xf32>
    %42 = vector.shape_cast %41 : vector<1x128xf32> to vector<1x1x128xf32>
    %43 = vector.broadcast %42 : vector<1x1x128xf32> to vector<4x4x128xf32>
    %44 = arith.mulf %40, %43 : vector<4x4x128xf32>
    %c9 = arith.constant 9 : index
    %c0_46 = arith.constant 0 : index
    %45 = vector.load %arg4[%c9, %c0_46] : memref<18x128xf32, #tpu.memory_space<vmem>>, vector<1x128xf32>
    %46 = vector.shape_cast %45 : vector<1x128xf32> to vector<1x1x128xf32>
    %47 = vector.broadcast %46 : vector<1x1x128xf32> to vector<4x4x128xf32>
    %48 = arith.mulf %40, %47 : vector<4x4x128xf32>
    %c0_47 = arith.constant 0 : index
    %c1_48 = arith.constant 1 : index
    %c0_49 = arith.constant 0 : index
    %49 = vector.load %arg10[%c0_47, %c1_48, %c0_49] : memref<6x6x128xf32, #tpu.memory_space<vmem>>, vector<4x4x128xf32>
    %c1_50 = arith.constant 1 : index
    %c0_51 = arith.constant 0 : index
    %50 = vector.load %arg4[%c1_50, %c0_51] : memref<18x128xf32, #tpu.memory_space<vmem>>, vector<1x128xf32>
    %51 = vector.shape_cast %50 : vector<1x128xf32> to vector<1x1x128xf32>
    %52 = vector.broadcast %51 : vector<1x1x128xf32> to vector<4x4x128xf32>
    %53 = arith.mulf %49, %52 : vector<4x4x128xf32>
    %c10 = arith.constant 10 : index
    %c0_52 = arith.constant 0 : index
    %54 = vector.load %arg4[%c10, %c0_52] : memref<18x128xf32, #tpu.memory_space<vmem>>, vector<1x128xf32>
    %55 = vector.shape_cast %54 : vector<1x128xf32> to vector<1x1x128xf32>
    %56 = vector.broadcast %55 : vector<1x1x128xf32> to vector<4x4x128xf32>
    %57 = arith.mulf %49, %56 : vector<4x4x128xf32>
    %58 = arith.addf %44, %53 : vector<4x4x128xf32>
    %59 = arith.addf %48, %57 : vector<4x4x128xf32>
    %c0_53 = arith.constant 0 : index
    %c2_54 = arith.constant 2 : index
    %c0_55 = arith.constant 0 : index
    %60 = vector.load %arg10[%c0_53, %c2_54, %c0_55] : memref<6x6x128xf32, #tpu.memory_space<vmem>>, vector<4x4x128xf32>
    %c2_56 = arith.constant 2 : index
    %c0_57 = arith.constant 0 : index
    %61 = vector.load %arg4[%c2_56, %c0_57] : memref<18x128xf32, #tpu.memory_space<vmem>>, vector<1x128xf32>
    %62 = vector.shape_cast %61 : vector<1x128xf32> to vector<1x1x128xf32>
    %63 = vector.broadcast %62 : vector<1x1x128xf32> to vector<4x4x128xf32>
    %64 = arith.mulf %60, %63 : vector<4x4x128xf32>
    %c11 = arith.constant 11 : index
    %c0_58 = arith.constant 0 : index
    %65 = vector.load %arg4[%c11, %c0_58] : memref<18x128xf32, #tpu.memory_space<vmem>>, vector<1x128xf32>
    %66 = vector.shape_cast %65 : vector<1x128xf32> to vector<1x1x128xf32>
    %67 = vector.broadcast %66 : vector<1x1x128xf32> to vector<4x4x128xf32>
    %68 = arith.mulf %60, %67 : vector<4x4x128xf32>
    %69 = arith.addf %58, %64 : vector<4x4x128xf32>
    %70 = arith.addf %59, %68 : vector<4x4x128xf32>
    %c1_59 = arith.constant 1 : index
    %c0_60 = arith.constant 0 : index
    %c0_61 = arith.constant 0 : index
    %71 = vector.load %arg10[%c1_59, %c0_60, %c0_61] : memref<6x6x128xf32, #tpu.memory_space<vmem>>, vector<4x4x128xf32>
    %c3_62 = arith.constant 3 : index
    %c0_63 = arith.constant 0 : index
    %72 = vector.load %arg4[%c3_62, %c0_63] : memref<18x128xf32, #tpu.memory_space<vmem>>, vector<1x128xf32>
    %73 = vector.shape_cast %72 : vector<1x128xf32> to vector<1x1x128xf32>
    %74 = vector.broadcast %73 : vector<1x1x128xf32> to vector<4x4x128xf32>
    %75 = arith.mulf %71, %74 : vector<4x4x128xf32>
    %c12 = arith.constant 12 : index
    %c0_64 = arith.constant 0 : index
    %76 = vector.load %arg4[%c12, %c0_64] : memref<18x128xf32, #tpu.memory_space<vmem>>, vector<1x128xf32>
    %77 = vector.shape_cast %76 : vector<1x128xf32> to vector<1x1x128xf32>
    %78 = vector.broadcast %77 : vector<1x1x128xf32> to vector<4x4x128xf32>
    %79 = arith.mulf %71, %78 : vector<4x4x128xf32>
    %80 = arith.addf %69, %75 : vector<4x4x128xf32>
    %81 = arith.addf %70, %79 : vector<4x4x128xf32>
    %c1_65 = arith.constant 1 : index
    %c1_66 = arith.constant 1 : index
    %c0_67 = arith.constant 0 : index
    %82 = vector.load %arg10[%c1_65, %c1_66, %c0_67] : memref<6x6x128xf32, #tpu.memory_space<vmem>>, vector<4x4x128xf32>
    %c4 = arith.constant 4 : index
    %c0_68 = arith.constant 0 : index
    %83 = vector.load %arg4[%c4, %c0_68] : memref<18x128xf32, #tpu.memory_space<vmem>>, vector<1x128xf32>
    %84 = vector.shape_cast %83 : vector<1x128xf32> to vector<1x1x128xf32>
    %85 = vector.broadcast %84 : vector<1x1x128xf32> to vector<4x4x128xf32>
    %86 = arith.mulf %82, %85 : vector<4x4x128xf32>
    %c13 = arith.constant 13 : index
    %c0_69 = arith.constant 0 : index
    %87 = vector.load %arg4[%c13, %c0_69] : memref<18x128xf32, #tpu.memory_space<vmem>>, vector<1x128xf32>
    %88 = vector.shape_cast %87 : vector<1x128xf32> to vector<1x1x128xf32>
    %89 = vector.broadcast %88 : vector<1x1x128xf32> to vector<4x4x128xf32>
    %90 = arith.mulf %82, %89 : vector<4x4x128xf32>
    %91 = arith.addf %80, %86 : vector<4x4x128xf32>
    %92 = arith.addf %81, %90 : vector<4x4x128xf32>
    %c1_70 = arith.constant 1 : index
    %c2_71 = arith.constant 2 : index
    %c0_72 = arith.constant 0 : index
    %93 = vector.load %arg10[%c1_70, %c2_71, %c0_72] : memref<6x6x128xf32, #tpu.memory_space<vmem>>, vector<4x4x128xf32>
    %c5 = arith.constant 5 : index
    %c0_73 = arith.constant 0 : index
    %94 = vector.load %arg4[%c5, %c0_73] : memref<18x128xf32, #tpu.memory_space<vmem>>, vector<1x128xf32>
    %95 = vector.shape_cast %94 : vector<1x128xf32> to vector<1x1x128xf32>
    %96 = vector.broadcast %95 : vector<1x1x128xf32> to vector<4x4x128xf32>
    %97 = arith.mulf %93, %96 : vector<4x4x128xf32>
    %c14 = arith.constant 14 : index
    %c0_74 = arith.constant 0 : index
    %98 = vector.load %arg4[%c14, %c0_74] : memref<18x128xf32, #tpu.memory_space<vmem>>, vector<1x128xf32>
    %99 = vector.shape_cast %98 : vector<1x128xf32> to vector<1x1x128xf32>
    %100 = vector.broadcast %99 : vector<1x1x128xf32> to vector<4x4x128xf32>
    %101 = arith.mulf %93, %100 : vector<4x4x128xf32>
    %102 = arith.addf %91, %97 : vector<4x4x128xf32>
    %103 = arith.addf %92, %101 : vector<4x4x128xf32>
    %c2_75 = arith.constant 2 : index
    %c0_76 = arith.constant 0 : index
    %c0_77 = arith.constant 0 : index
    %104 = vector.load %arg10[%c2_75, %c0_76, %c0_77] : memref<6x6x128xf32, #tpu.memory_space<vmem>>, vector<4x4x128xf32>
    %c6 = arith.constant 6 : index
    %c0_78 = arith.constant 0 : index
    %105 = vector.load %arg4[%c6, %c0_78] : memref<18x128xf32, #tpu.memory_space<vmem>>, vector<1x128xf32>
    %106 = vector.shape_cast %105 : vector<1x128xf32> to vector<1x1x128xf32>
    %107 = vector.broadcast %106 : vector<1x1x128xf32> to vector<4x4x128xf32>
    %108 = arith.mulf %104, %107 : vector<4x4x128xf32>
    %c15 = arith.constant 15 : index
    %c0_79 = arith.constant 0 : index
    %109 = vector.load %arg4[%c15, %c0_79] : memref<18x128xf32, #tpu.memory_space<vmem>>, vector<1x128xf32>
    %110 = vector.shape_cast %109 : vector<1x128xf32> to vector<1x1x128xf32>
    %111 = vector.broadcast %110 : vector<1x1x128xf32> to vector<4x4x128xf32>
    %112 = arith.mulf %104, %111 : vector<4x4x128xf32>
    %113 = arith.addf %102, %108 : vector<4x4x128xf32>
    %114 = arith.addf %103, %112 : vector<4x4x128xf32>
    %c2_80 = arith.constant 2 : index
    %c1_81 = arith.constant 1 : index
    %c0_82 = arith.constant 0 : index
    %115 = vector.load %arg10[%c2_80, %c1_81, %c0_82] : memref<6x6x128xf32, #tpu.memory_space<vmem>>, vector<4x4x128xf32>
    %c7 = arith.constant 7 : index
    %c0_83 = arith.constant 0 : index
    %116 = vector.load %arg4[%c7, %c0_83] : memref<18x128xf32, #tpu.memory_space<vmem>>, vector<1x128xf32>
    %117 = vector.shape_cast %116 : vector<1x128xf32> to vector<1x1x128xf32>
    %118 = vector.broadcast %117 : vector<1x1x128xf32> to vector<4x4x128xf32>
    %119 = arith.mulf %115, %118 : vector<4x4x128xf32>
    %c16 = arith.constant 16 : index
    %c0_84 = arith.constant 0 : index
    %120 = vector.load %arg4[%c16, %c0_84] : memref<18x128xf32, #tpu.memory_space<vmem>>, vector<1x128xf32>
    %121 = vector.shape_cast %120 : vector<1x128xf32> to vector<1x1x128xf32>
    %122 = vector.broadcast %121 : vector<1x1x128xf32> to vector<4x4x128xf32>
    %123 = arith.mulf %115, %122 : vector<4x4x128xf32>
    %124 = arith.addf %113, %119 : vector<4x4x128xf32>
    %125 = arith.addf %114, %123 : vector<4x4x128xf32>
    %c2_85 = arith.constant 2 : index
    %c2_86 = arith.constant 2 : index
    %c0_87 = arith.constant 0 : index
    %126 = vector.load %arg10[%c2_85, %c2_86, %c0_87] : memref<6x6x128xf32, #tpu.memory_space<vmem>>, vector<4x4x128xf32>
    %c8 = arith.constant 8 : index
    %c0_88 = arith.constant 0 : index
    %127 = vector.load %arg4[%c8, %c0_88] : memref<18x128xf32, #tpu.memory_space<vmem>>, vector<1x128xf32>
    %128 = vector.shape_cast %127 : vector<1x128xf32> to vector<1x1x128xf32>
    %129 = vector.broadcast %128 : vector<1x1x128xf32> to vector<4x4x128xf32>
    %130 = arith.mulf %126, %129 : vector<4x4x128xf32>
    %c17 = arith.constant 17 : index
    %c0_89 = arith.constant 0 : index
    %131 = vector.load %arg4[%c17, %c0_89] : memref<18x128xf32, #tpu.memory_space<vmem>>, vector<1x128xf32>
    %132 = vector.shape_cast %131 : vector<1x128xf32> to vector<1x1x128xf32>
    %133 = vector.broadcast %132 : vector<1x1x128xf32> to vector<4x4x128xf32>
    %134 = arith.mulf %126, %133 : vector<4x4x128xf32>
    %135 = arith.addf %124, %130 : vector<4x4x128xf32>
    %136 = arith.addf %125, %134 : vector<4x4x128xf32>
    %c0_90 = arith.constant 0 : index
    %c0_91 = arith.constant 0 : index
    %137 = vector.load %arg5[%c0_90, %c0_91] : memref<2x128xf32, #tpu.memory_space<vmem>>, vector<1x128xf32>
    %138 = vector.shape_cast %137 : vector<1x128xf32> to vector<1x1x128xf32>
    %139 = vector.broadcast %138 : vector<1x1x128xf32> to vector<4x4x128xf32>
    %140 = arith.addf %135, %139 : vector<4x4x128xf32>
    %cst_92 = arith.constant 0.000000e+00 : f32
    %141 = vector.broadcast %cst_92 : f32 to vector<4x4x128xf32>
    %142 = arith.maximumf %140, %141 : vector<4x4x128xf32>
    %143 = vector.shape_cast %142 : vector<4x4x128xf32> to vector<16x128xf32>
    %c1_93 = arith.constant 1 : index
    %c0_94 = arith.constant 0 : index
    %144 = vector.load %arg5[%c1_93, %c0_94] : memref<2x128xf32, #tpu.memory_space<vmem>>, vector<1x128xf32>
    %145 = vector.shape_cast %144 : vector<1x128xf32> to vector<1x1x128xf32>
    %146 = vector.broadcast %145 : vector<1x1x128xf32> to vector<4x4x128xf32>
    %147 = arith.addf %136, %146 : vector<4x4x128xf32>
    %cst_95 = arith.constant 0.000000e+00 : f32
    %148 = vector.broadcast %cst_95 : f32 to vector<4x4x128xf32>
    %149 = arith.maximumf %147, %148 : vector<4x4x128xf32>
    %150 = vector.shape_cast %149 : vector<4x4x128xf32> to vector<16x128xf32>
    %151 = arith.truncf %143 : vector<16x128xf32> to vector<16x128xbf16>
    %c0_96 = arith.constant 0 : index
    %c0_97 = arith.constant 0 : index
    %c0_98 = arith.constant 0 : index
    %152 = vector.load %arg6[%c0_96, %c0_97, %c0_98] : memref<2x128x128xbf16, #tpu.memory_space<vmem>>, vector<1x128x128xbf16>
    %153 = vector.shape_cast %152 : vector<1x128x128xbf16> to vector<128x128xbf16>
    %cst_99 = arith.constant dense<0.000000e+00> : vector<16x128xf32>
    %154 = tpu.matmul %151, %153, %cst_99 {dimension_numbers = #tpu.dot_dimension_numbers<[1], [0], [0], [1], [0, 0, 1, 1], [], []>} : vector<16x128xbf16>, vector<128x128xbf16>, vector<16x128xf32> -> vector<16x128xf32>
    %155 = arith.truncf %150 : vector<16x128xf32> to vector<16x128xbf16>
    %c1_100 = arith.constant 1 : index
    %c0_101 = arith.constant 0 : index
    %c0_102 = arith.constant 0 : index
    %156 = vector.load %arg6[%c1_100, %c0_101, %c0_102] : memref<2x128x128xbf16, #tpu.memory_space<vmem>>, vector<1x128x128xbf16>
    %157 = vector.shape_cast %156 : vector<1x128x128xbf16> to vector<128x128xbf16>
    %cst_103 = arith.constant dense<0.000000e+00> : vector<16x128xf32>
    %158 = tpu.matmul %155, %157, %cst_103 {dimension_numbers = #tpu.dot_dimension_numbers<[1], [0], [0], [1], [0, 0, 1, 1], [], []>} : vector<16x128xbf16>, vector<128x128xbf16>, vector<16x128xf32> -> vector<16x128xf32>
    %159 = arith.addf %154, %158 : vector<16x128xf32>
    %c0_104 = arith.constant 0 : index
    %c0_105 = arith.constant 0 : index
    %160 = vector.load %arg7[%c0_104, %c0_105] : memref<1x128xf32, #tpu.memory_space<vmem>>, vector<1x128xf32>
    %161 = vector.broadcast %160 : vector<1x128xf32> to vector<16x128xf32>
    %162 = arith.addf %159, %161 : vector<16x128xf32>
    %c0_106 = arith.constant 0 : index
    %c0_107 = arith.constant 0 : index
    %c0_108 = arith.constant 0 : index
    %163 = vector.load %arg9[%c0_106, %c0_107, %c0_108] : memref<1x16x128xf32, #tpu.memory_space<vmem>>, vector<1x16x128xf32>
    %164 = vector.shape_cast %163 : vector<1x16x128xf32> to vector<16x128xf32>
    %165 = vector.shape_cast %162 : vector<16x128xf32> to vector<1x16x128xf32>
    tpu.vector_store %arg9[%c0_106, %c0_107, %c0_108], %165 {strides = array<i32>} : memref<1x16x128xf32, #tpu.memory_space<vmem>>, vector<1x16x128xf32>,
    return
  }
  func.func @transform_0(%arg0: i32) -> (i32, i32, i32, i32) {
    %c0_i32 = arith.constant 0 : i32
    %c0_i32_0 = arith.constant 0 : i32
    %c0_i32_1 = arith.constant 0 : i32
    %c0_i32_2 = arith.constant 0 : i32
    return %arg0, %c0_i32, %c0_i32_0, %c0_i32_1 : i32, i32, i32, i32
  }
  func.func @transform_1(%arg0: i32) -> (i32, i32, i32) {
    %c0_i32 = arith.constant 0 : i32
    %c0_i32_0 = arith.constant 0 : i32
    %c0_i32_1 = arith.constant 0 : i32
    %c0_i32_2 = arith.constant 0 : i32
    return %c0_i32, %c0_i32_0, %c0_i32_1 : i32, i32, i32
  }
  func.func @transform_2(%arg0: i32) -> (i32, i32) {
    %c0_i32 = arith.constant 0 : i32
    %c0_i32_0 = arith.constant 0 : i32
    %c0_i32_1 = arith.constant 0 : i32
    return %c0_i32, %c0_i32_0 : i32, i32
  }
  func.func @transform_3(%arg0: i32) -> (i32, i32) {
    %c0_i32 = arith.constant 0 : i32
    %c0_i32_0 = arith.constant 0 : i32
    %c0_i32_1 = arith.constant 0 : i32
    return %c0_i32, %c0_i32_0 : i32, i32
  }
  func.func @transform_4(%arg0: i32) -> (i32, i32) {
    %c0_i32 = arith.constant 0 : i32
    %c0_i32_0 = arith.constant 0 : i32
    %c0_i32_1 = arith.constant 0 : i32
    return %c0_i32, %c0_i32_0 : i32, i32
  }
  func.func @transform_5(%arg0: i32) -> (i32, i32, i32) {
    %c0_i32 = arith.constant 0 : i32
    %c0_i32_0 = arith.constant 0 : i32
    %c0_i32_1 = arith.constant 0 : i32
    %c0_i32_2 = arith.constant 0 : i32
    return %c0_i32, %c0_i32_0, %c0_i32_1 : i32, i32, i32
  }
  func.func @transform_6(%arg0: i32) -> (i32, i32) {
    %c0_i32 = arith.constant 0 : i32
    %c0_i32_0 = arith.constant 0 : i32
    %c0_i32_1 = arith.constant 0 : i32
    return %c0_i32, %c0_i32_0 : i32, i32
  }
  func.func @transform_7(%arg0: i32) -> (i32, i32, i32, i32) {
    %c0_i32 = arith.constant 0 : i32
    %c0_i32_0 = arith.constant 0 : i32
    %c0_i32_1 = arith.constant 0 : i32
    %c0_i32_2 = arith.constant 0 : i32
    return %arg0, %c0_i32, %c0_i32_0, %c0_i32_1 : i32, i32, i32, i32
  }
  func.func @transform_8(%arg0: i32) -> (i32, i32, i32) {
    %c0_i32 = arith.constant 0 : i32
    %c0_i32_0 = arith.constant 0 : i32
    %c0_i32_1 = arith.constant 0 : i32
    return %arg0, %c0_i32, %c0_i32_0 : i32, i32, i32
  }
}

</mosaic_0001>

<llo_original>
// kernel: ssd_detector_forward.3
$region0: #{ssd_detector_forward.3}
  #allocation0 [shape = 'u32[]', space=smem, size = 0x4, offset = 0x4, fixed_abs, tag = 'smem constant byte address 0x4 - core index']
  #allocation1 [shape = 'u32[72,128]{1,0:T(1,128)}', space=vmem, size = 0x9000, scoped, tag = 'internal scratch']
  %s0 = inlined_call_operand.vmem [shape: bf16[2,17,17,128], index: 0, kind: input, shape index: {}]
  %s1 = inlined_call_operand.vmem [shape: bf16[4,128,128], index: 1, kind: input, shape index: {}]
  %s2 = inlined_call_operand.vmem [shape: f32[1,128], index: 2, kind: input, shape index: {}]
  %s3 = inlined_call_operand.vmem [shape: bf16[2,16,16,128], index: 3, kind: output, shape index: {}]
  %s4 = sld [smem:[#allocation0]]
  $region45: #{ssd_detector_forward.3} parent=0
    _
  %s6 = ssub.s32 1, %s4
  %s7 = scalar_select 0, %s6, %s4
  loop: start=0, step=1, limit=4
  $region2: #{ssd_detector_forward.3} parent=0 // loop_pre_header
    _
  $region3: #{ssd_detector_forward.3} parent=0 // loop_header
    %s9 = sphi 0, %s13
    %p10 = scmp.ge.s32.totalorder %s9, 4
    %s19 = sphi 0, %s21
    %s22 = sphi 0, %s19
    %s23 = sphi 0, %s22
    %s39 = sphi 0, %s23
    %s43 = sphi 0, %s43
    %s45 = sphi 0, %s43
    %s46 = sphi 0, %s45
    %s60 = sphi 0, %s46
    %s64 = sphi 0, %s64
    %s66 = sphi 0, %s64
    %s67 = sphi 0, %s66
    %s81 = sphi 0, %s67
    %s87 = sphi 0, %s89
    %s90 = sphi 0, %s87
    %s91 = sphi 0, %s90
    %s107 = sphi 0, %s91
  $region4: #{ssd_detector_forward.3} parent=0 // loop_header_branch
    %12 = sbr.rel (%p10) target = $region8
  $region5: #{ssd_detector_forward.3} parent=0 // loop_body
    %s14 = ssub.s32 %s9, 1
    %s15 = ssub.s32 %s9, 2
    %s16 = sadd.s32 %s9, 1
    %s17 = ssub.s32 %s9, %s16
    %p18 = scmp.eq.s32.totalorder %s17, 0
    %s20 = sadd.s32 %s19, 1
    %s21 = scalar_select %p18, %s19, %s20
    %p24 = pneg %p18
    %p25 = scmp.eq.s32.totalorder %s9, 1
    %p26 = por %p24, %p25
    %p27 = scmp.ne.s32.totalorder %s19, %s22
    %p28 = scmp.eq.s32.totalorder %s9, 0
    %p29 = por %p27, %p28
    %p30 = scmp.ne.s32.totalorder %s19, %s22
    %p31 = scmp.eq.s32.totalorder %s14, 1
    %p32 = por %p30, %p31
    %p33 = scmp.ne.s32.totalorder %s22, %s23
    %p34 = scmp.eq.s32.totalorder %s14, 0
    %p35 = por %p33, %p34
    %p36 = scmp.ne.s32.totalorder %s22, %s23
    %p37 = scmp.eq.s32.totalorder %s15, 1
    %p38 = por %p36, %p37
    %p40 = scmp.ne.s32.totalorder %s23, %s39
    %p41 = scmp.eq.s32.totalorder %s15, 0
    %p42 = por %p40, %p41
    %s44 = sadd.s32 %s43, 1
    %p47 = scmp.eq.s32.totalorder %s9, 1
    %p48 = scmp.ne.s32.totalorder %s43, %s45
    %p49 = scmp.eq.s32.totalorder %s9, 0
    %p50 = por %p48, %p49
    %p51 = scmp.ne.s32.totalorder %s43, %s45
    %p52 = scmp.eq.s32.totalorder %s14, 1
    %p53 = por %p51, %p52
    %p54 = scmp.ne.s32.totalorder %s45, %s46
    %p55 = scmp.eq.s32.totalorder %s14, 0
    %p56 = por %p54, %p55
    %p57 = scmp.ne.s32.totalorder %s45, %s46
    %p58 = scmp.eq.s32.totalorder %s15, 1
    %p59 = por %p57, %p58
    %p61 = scmp.ne.s32.totalorder %s46, %s60
    %p62 = scmp.eq.s32.totalorder %s15, 0
    %p63 = por %p61, %p62
    %s65 = sadd.s32 %s64, 1
    %p68 = scmp.eq.s32.totalorder %s9, 1
    %p69 = scmp.ne.s32.totalorder %s64, %s66
    %p70 = scmp.eq.s32.totalorder %s9, 0
    %p71 = por %p69, %p70
    %p72 = scmp.ne.s32.totalorder %s64, %s66
    %p73 = scmp.eq.s32.totalorder %s14, 1
    %p74 = por %p72, %p73
    %p75 = scmp.ne.s32.totalorder %s66, %s67
    %p76 = scmp.eq.s32.totalorder %s14, 0
    %p77 = por %p75, %p76
    %p78 = scmp.ne.s32.totalorder %s66, %s67
    %p79 = scmp.eq.s32.totalorder %s15, 1
    %p80 = por %p78, %p79
    %p82 = scmp.ne.s32.totalorder %s67, %s81
    %p83 = scmp.eq.s32.totalorder %s15, 0
    %p84 = por %p82, %p83
    %s85 = ssub.s32 %s9, %s16
    %p86 = scmp.eq.s32.totalorder %s85, 0
    %s88 = sadd.s32 %s87, 1
    %s89 = scalar_select %p86, %s87, %s88
    %p92 = pneg %p86
    %p93 = scmp.eq.s32.totalorder %s9, 1
    %p94 = por %p92, %p93
    %p95 = scmp.ne.s32.totalorder %s87, %s90
    %p96 = scmp.eq.s32.totalorder %s9, 0
    %p97 = por %p95, %p96
    %p98 = scmp.ne.s32.totalorder %s87, %s90
    %p99 = scmp.eq.s32.totalorder %s14, 1
    %p100 = por %p98, %p99
    %p101 = scmp.ne.s32.totalorder %s90, %s91
    %p102 = scmp.eq.s32.totalorder %s14, 0
    %p103 = por %p101, %p102
    %p104 = scmp.ne.s32.totalorder %s90, %s91
    %p105 = scmp.eq.s32.totalorder %s15, 1
    %p106 = por %p104, %p105
    %p108 = scmp.ne.s32.totalorder %s91, %s107
    %p109 = scmp.eq.s32.totalorder %s15, 0
    %p110 = por %p108, %p109
    %p111 = scmp.le.s32.totalorder 1, %s9
    %p112 = scmp.lt.s32.totalorder %s9, 3
    %p113 = pnand %p111, %p112
    %p114 = pneg %p113
    // Predicated region
    $region9: #{ssd_detector_forward.3} parent=5 // pred_check
      _
    $region10: #{ssd_detector_forward.3} parent=5 // pred_check_branch
      %116 = sbr.rel (%p113) target = $region12
    $region11: #{ssd_detector_forward.3} parent=5 // pred_region
      %s117 = ssub.s32 %s9, 1
      // Predicated region
      $region13: #{ssd_detector_forward.3} parent=11 // pred_check
        %p118 = pneg %p56
      $region14: #{ssd_detector_forward.3} parent=11 // pred_check_branch
        %120 = sbr.rel (%p118) target = $region16
      $region15: #{ssd_detector_forward.3} parent=11 // pred_region
        _
      $region16: #{ssd_detector_forward.3} parent=11 // pred_fallthru
        _
      // Predicated region
      $region17: #{ssd_detector_forward.3} parent=11 // pred_check
        %p121 = pneg %p77
      $region18: #{ssd_detector_forward.3} parent=11 // pred_check_branch
        %123 = sbr.rel (%p121) target = $region20
      $region19: #{ssd_detector_forward.3} parent=11 // pred_region
        _
      $region20: #{ssd_detector_forward.3} parent=11 // pred_fallthru
        _
    $region12: #{ssd_detector_forward.3} parent=5 // pred_fallthru
      _
    %p124 = scmp.lt.s32.totalorder %s9, 2
    // Predicated region
    $region21: #{ssd_detector_forward.3} parent=5 // pred_check
      %p125 = pneg %p124
    $region22: #{ssd_detector_forward.3} parent=5 // pred_check_branch
      %127 = sbr.rel (%p125) target = $region24
    $region23: #{ssd_detector_forward.3} parent=5 // pred_region
      // Predicated region
      $region25: #{ssd_detector_forward.3} parent=23 // pred_check
        %p128 = pneg %p29
      $region26: #{ssd_detector_forward.3} parent=23 // pred_check_branch
        %130 = sbr.rel (%p128) target = $region28
      $region27: #{ssd_detector_forward.3} parent=23 // pred_region
        %p131 = scmp.lt.s32.totalorder %s9, 1
        %s132 = scalar_select %p131, %s9, 1
        %s133 = smul.addr %s132, 51
        %s134 = smul.addr %s133, 4
        %s135 = scalar_lea.vmem %s0, %s134
      $region28: #{ssd_detector_forward.3} parent=23 // pred_fallthru
        _
    $region24: #{ssd_detector_forward.3} parent=5 // pred_fallthru
      _
    %p136 = scmp.le.s32.totalorder 1, %s9
    %p137 = scmp.lt.s32.totalorder %s9, 3
    %p138 = pnand %p136, %p137
    %p139 = pneg %p138
    // Predicated region
    $region29: #{ssd_detector_forward.3} parent=5 // pred_check
      _
    $region30: #{ssd_detector_forward.3} parent=5 // pred_check_branch
      %141 = sbr.rel (%p138) target = $region32
    $region31: #{ssd_detector_forward.3} parent=5 // pred_region
      %s142 = ssub.s32 %s9, 1
      %p143 = scmp.lt.s32.totalorder %s14, 1
      %s144 = scalar_select %p143, %s14, 1
      %s145 = smul.addr %s144, 51
      %s146 = smul.addr %s145, 4
      %s147 = scalar_lea.vmem %s0, %s146
      %p148 = pneg %p35
      %p149 = pneg %p32
      %p150 = pneg %p56
      %p151 = pneg %p53
      %p152 = pneg %p77
      %p153 = pneg %p74
      %p154 = pneg %p103
      %p155 = pneg %p100
      %p156 = scmp.lt.s32.totalorder %s14, 1
      %s157 = scalar_select %p156, %s14, 1
      %s158 = smul.addr %s157, 32
      %s159 = smul.addr %s158, 4
      %s160 = scalar_lea.vmem %s3, %s159
      %p161 = scmp.lt.s32.totalorder %s14, 1
      %s162 = scalar_select %p161, %s14, 1
      %s163 = smul.addr %s162, 51
      %s164 = smul.addr %s163, 4
      %s165 = scalar_lea.vmem %s0, %s164
      %p166 = scmp.lt.s32.totalorder %s14, 1
      %s167 = scalar_select %p166, %s14, 1
      %s168 = smul.addr %s167, 32
      %s169 = smul.addr %s168, 4
      %s170 = scalar_lea.vmem %s3, %s169
      %v171 = vld [vmem:[%s165] sm:$0xf]
      %v172 = vld [vmem:[%s165 + $0x4] sm:$0xf]
      %v173 = vld [vmem:[%s165 + $0xc] sm:$0xf]
      %v174 = vld [vmem:[%s165 + $0x10] sm:$0xf]
      %v175 = vld [vmem:[%s165 + $0x18] sm:$0xf]
      %v176 = vld [vmem:[%s165 + $0x1c] sm:$0xf]
      %v177 = vld [vmem:[%s165 + $0x24] sm:$0xf]
      %v178 = vld [vmem:[%s165 + $0x28] sm:$0xf]
      %v179 = vld [vmem:[%s165 + $0x30] sm:$0xf]
      %v180 = vld [vmem:[%s165 + $0x34] sm:$0xf]
      %v181 = vld [vmem:[%s165 + $0x3c] sm:$0xf]
      %v182 = vld [vmem:[%s165 + $0x40] sm:$0xf]
      %v183 = vld [vmem:[%s165 + $0x48] sm:$0xf]
      %v184 = vld [vmem:[%s165 + $0x4c] sm:$0xf]
      %v185 = vld [vmem:[%s165 + $0x54] sm:$0xf]
      %v186 = vld [vmem:[%s165 + $0x58] sm:$0xf]
      %v187 = vld [vmem:[%s165 + $0x60] sm:$0xf]
      %v188 = vld [vmem:[%s165 + $0x64] sm:$0xf]
      %v189 = vld [vmem:[%s165 + $0x6c] sm:$0xf]
      %v190 = vld [vmem:[%s165 + $0x70] sm:$0xf]
      %v191 = vld [vmem:[%s165 + $0x78] sm:$0xf]
      %v192 = vld [vmem:[%s165 + $0x7c] sm:$0xf]
      %v193 = vld [vmem:[%s165 + $0x84] sm:$0xf]
      %v194 = vld [vmem:[%s165 + $0x88] sm:$0xf]
      %v195 = vld [vmem:[%s165 + $0x90] sm:$0xf]
      %v196 = vld [vmem:[%s165 + $0x94] sm:$0xf]
      %v197 = vld [vmem:[%s165 + $0x9c] sm:$0xf]
      %v198 = vld [vmem:[%s165 + $0xa0] sm:$0xf]
      %v199 = vld [vmem:[%s165 + $0xa8] sm:$0xf]
      %v200 = vld [vmem:[%s165 + $0xac] sm:$0xf]
      %v201 = vld [vmem:[%s165 + $0xb4] sm:$0xf]
      %v202 = vld [vmem:[%s165 + $0xb8] sm:$0xf]
      %v203 = vld [vmem:[%s1] sm:$0xf]
      %v204 = vld [vmem:[%s1 + $0x4] sm:$0xf]
      %v205 = vld [vmem:[%s1 + $0x8] sm:$0xf]
      %v206 = vld [vmem:[%s1 + $0xc] sm:$0xf]
      %v207 = vld [vmem:[%s1 + $0x10] sm:$0xf]
      %v208 = vld [vmem:[%s1 + $0x14] sm:$0xf]
      %v209 = vld [vmem:[%s1 + $0x18] sm:$0xf]
      %v210 = vld [vmem:[%s1 + $0x1c] sm:$0xf]
      %v211 = vld [vmem:[%s1 + $0x20] sm:$0xf]
      %v212 = vld [vmem:[%s1 + $0x24] sm:$0xf]
      %v213 = vld [vmem:[%s1 + $0x28] sm:$0xf]
      %v214 = vld [vmem:[%s1 + $0x2c] sm:$0xf]
      %v215 = vld [vmem:[%s1 + $0x30] sm:$0xf]
      %v216 = vld [vmem:[%s1 + $0x34] sm:$0xf]
      %v217 = vld [vmem:[%s1 + $0x38] sm:$0xf]
      %v218 = vld [vmem:[%s1 + $0x3c] sm:$0xf]
      %v219 = vld [vmem:[%s165 + $0x8] sm:$0x1]
      %v220 = vld [vmem:[%s165 + $0x14] sm:$0x1]
      %v221 = vld [vmem:[%s165 + $0x20] sm:$0x1]
      %v222 = vld [vmem:[%s165 + $0x2c] sm:$0x1]
      %v223 = vld [vmem:[%s165 + $0x38] sm:$0x1]
      %v224 = vld [vmem:[%s165 + $0x44] sm:$0x1]
      %v225 = vld [vmem:[%s165 + $0x50] sm:$0x1]
      %v226 = vld [vmem:[%s165 + $0x5c] sm:$0x1]
      %v227 = vld [vmem:[%s165 + $0x68] sm:$0x1]
      %v228 = vld [vmem:[%s165 + $0x74] sm:$0x1]
      %v229 = vld [vmem:[%s165 + $0x80] sm:$0x1]
      %v230 = vld [vmem:[%s165 + $0x8c] sm:$0x1]
      %v231 = vld [vmem:[%s165 + $0x98] sm:$0x1]
      %v232 = vld [vmem:[%s165 + $0xa4] sm:$0x1]
      %v233 = vld [vmem:[%s165 + $0xb0] sm:$0x1]
      %v234 = vld [vmem:[%s165 + $0xbc] sm:$0x1]
      %vm235 = vsmask.f32 3328
      %vm236 = vsmask.f32 7440
      %vm237 = vmor %vm235, %vm236
      %v239 = vshrl.u32 %v171, 16
      %v241 = vrot.slane %v239, 4
      %v242 = vshll.u32 %v171, 16
      %v244 = vrot.slane %v242, 5
      %v245 = vor.u32 %v241, %v244
      %v246 = vrot.slane %v245, 4
      %v248 = vshll.u32 %v172, 16
      %v250 = vrot.slane %v248, 5
      %v251 = vsel %vm237, %v246, %v250
      %v252 = vshrl.u32 %v172, 16
      %v254 = vrot.slane %v252, 4
      %v255 = vor.u32 %v254, %v250
      %v256 = vrot.slane %v255, 4
      %v258 = vshll.u32 %v219, 16
      %v260 = vrot.slane %v258, 5
      %v261 = vsel %vm237, %v256, %v260
      %v263 = vshrl.u32 %v173, 16
      %v265 = vrot.slane %v263, 4
      %v266 = vshll.u32 %v173, 16
      %v268 = vrot.slane %v266, 5
      %v269 = vor.u32 %v265, %v268
      %v270 = vrot.slane %v269, 4
      %v272 = vshll.u32 %v174, 16
      %v274 = vrot.slane %v272, 5
      %v275 = vsel %vm237, %v270, %v274
      %v276 = vshrl.u32 %v174, 16
      %v278 = vrot.slane %v276, 4
      %v279 = vor.u32 %v278, %v274
      %v280 = vrot.slane %v279, 4
      %v282 = vshll.u32 %v220, 16
      %v284 = vrot.slane %v282, 5
      %v285 = vsel %vm237, %v280, %v284
      %v287 = vshrl.u32 %v175, 16
      %v289 = vrot.slane %v287, 4
      %v290 = vshll.u32 %v175, 16
      %v292 = vrot.slane %v290, 5
      %v293 = vor.u32 %v289, %v292
      %v294 = vrot.slane %v293, 4
      %v296 = vshll.u32 %v176, 16
      %v298 = vrot.slane %v296, 5
      %v299 = vsel %vm237, %v294, %v298
      %v300 = vshrl.u32 %v176, 16
      %v302 = vrot.slane %v300, 4
      %v303 = vor.u32 %v302, %v298
      %v304 = vrot.slane %v303, 4
      %v306 = vshll.u32 %v221, 16
      %v308 = vrot.slane %v306, 5
      %v309 = vsel %vm237, %v304, %v308
      %v311 = vshrl.u32 %v177, 16
      %v313 = vrot.slane %v311, 4
      %v314 = vshll.u32 %v177, 16
      %v316 = vrot.slane %v314, 5
      %v317 = vor.u32 %v313, %v316
      %v318 = vrot.slane %v317, 4
      %v320 = vshll.u32 %v178, 16
      %v322 = vrot.slane %v320, 5
      %v323 = vsel %vm237, %v318, %v322
      %v324 = vshrl.u32 %v178, 16
      %v326 = vrot.slane %v324, 4
      %v327 = vor.u32 %v326, %v322
      %v328 = vrot.slane %v327, 4
      %v330 = vshll.u32 %v222, 16
      %v332 = vrot.slane %v330, 5
      %v333 = vsel %vm237, %v328, %v332
      %v335 = vshrl.u32 %v179, 16
      %v337 = vrot.slane %v335, 4
      %v338 = vshll.u32 %v179, 16
      %v340 = vrot.slane %v338, 5
      %v341 = vor.u32 %v337, %v340
      %v342 = vrot.slane %v341, 4
      %v344 = vshll.u32 %v180, 16
      %v346 = vrot.slane %v344, 5
      %v347 = vsel %vm237, %v342, %v346
      %v348 = vshrl.u32 %v180, 16
      %v350 = vrot.slane %v348, 4
      %v351 = vor.u32 %v350, %v346
      %v352 = vrot.slane %v351, 4
      %v354 = vshll.u32 %v223, 16
      %v356 = vrot.slane %v354, 5
      %v357 = vsel %vm237, %v352, %v356
      %v359 = vshrl.u32 %v181, 16
      %v361 = vrot.slane %v359, 4
      %v362 = vshll.u32 %v181, 16
      %v364 = vrot.slane %v362, 5
      %v365 = vor.u32 %v361, %v364
      %v366 = vrot.slane %v365, 4
      %v368 = vshll.u32 %v182, 16
      %v370 = vrot.slane %v368, 5
      %v371 = vsel %vm237, %v366, %v370
      %v372 = vshrl.u32 %v182, 16
      %v374 = vrot.slane %v372, 4
      %v375 = vor.u32 %v374, %v370
      %v376 = vrot.slane %v375, 4
      %v378 = vshll.u32 %v224, 16
      %v380 = vrot.slane %v378, 5
      %v381 = vsel %vm237, %v376, %v380
      %v383 = vshrl.u32 %v183, 16
      %v385 = vrot.slane %v383, 4
      %v386 = vshll.u32 %v183, 16
      %v388 = vrot.slane %v386, 5
      %v389 = vor.u32 %v385, %v388
      %v390 = vrot.slane %v389, 4
      %v392 = vshll.u32 %v184, 16
      %v394 = vrot.slane %v392, 5
      %v395 = vsel %vm237, %v390, %v394
      %v396 = vshrl.u32 %v184, 16
      %v398 = vrot.slane %v396, 4
      %v399 = vor.u32 %v398, %v394
      %v400 = vrot.slane %v399, 4
      %v402 = vshll.u32 %v225, 16
      %v404 = vrot.slane %v402, 5
      %v405 = vsel %vm237, %v400, %v404
      %v407 = vshrl.u32 %v185, 16
      %v409 = vrot.slane %v407, 4
      %v410 = vshll.u32 %v185, 16
      %v412 = vrot.slane %v410, 5
      %v413 = vor.u32 %v409, %v412
      %v414 = vrot.slane %v413, 4
      %v416 = vshll.u32 %v186, 16
      %v418 = vrot.slane %v416, 5
      %v419 = vsel %vm237, %v414, %v418
      %v420 = vshrl.u32 %v186, 16
      %v422 = vrot.slane %v420, 4
      %v423 = vor.u32 %v422, %v418
      %v424 = vrot.slane %v423, 4
      %v426 = vshll.u32 %v226, 16
      %v428 = vrot.slane %v426, 5
      %v429 = vsel %vm237, %v424, %v428
      %v431 = vshrl.u32 %v187, 16
      %v433 = vrot.slane %v431, 4
      %v434 = vshll.u32 %v187, 16
      %v436 = vrot.slane %v434, 5
      %v437 = vor.u32 %v433, %v436
      %v438 = vrot.slane %v437, 4
      %v440 = vshll.u32 %v188, 16
      %v442 = vrot.slane %v440, 5
      %v443 = vsel %vm237, %v438, %v442
      %v444 = vshrl.u32 %v188, 16
      %v446 = vrot.slane %v444, 4
      %v447 = vor.u32 %v446, %v442
      %v448 = vrot.slane %v447, 4
      %v450 = vshll.u32 %v227, 16
      %v452 = vrot.slane %v450, 5
      %v453 = vsel %vm237, %v448, %v452
      %v455 = vshrl.u32 %v189, 16
      %v457 = vrot.slane %v455, 4
      %v458 = vshll.u32 %v189, 16
      %v460 = vrot.slane %v458, 5
      %v461 = vor.u32 %v457, %v460
      %v462 = vrot.slane %v461, 4
      %v464 = vshll.u32 %v190, 16
      %v466 = vrot.slane %v464, 5
      %v467 = vsel %vm237, %v462, %v466
      %v468 = vshrl.u32 %v190, 16
      %v470 = vrot.slane %v468, 4
      %v471 = vor.u32 %v470, %v466
      %v472 = vrot.slane %v471, 4
      %v474 = vshll.u32 %v228, 16
      %v476 = vrot.slane %v474, 5
      %v477 = vsel %vm237, %v472, %v476
      %v479 = vshrl.u32 %v191, 16
      %v481 = vrot.slane %v479, 4
      %v482 = vshll.u32 %v191, 16
      %v484 = vrot.slane %v482, 5
      %v485 = vor.u32 %v481, %v484
      %v486 = vrot.slane %v485, 4
      %v488 = vshll.u32 %v192, 16
      %v490 = vrot.slane %v488, 5
      %v491 = vsel %vm237, %v486, %v490
      %v492 = vshrl.u32 %v192, 16
      %v494 = vrot.slane %v492, 4
      %v495 = vor.u32 %v494, %v490
      %v496 = vrot.slane %v495, 4
      %v498 = vshll.u32 %v229, 16
      %v500 = vrot.slane %v498, 5
      %v501 = vsel %vm237, %v496, %v500
      %v503 = vshrl.u32 %v193, 16
      %v505 = vrot.slane %v503, 4
      %v506 = vshll.u32 %v193, 16
      %v508 = vrot.slane %v506, 5
      %v509 = vor.u32 %v505, %v508
      %v510 = vrot.slane %v509, 4
      %v512 = vshll.u32 %v194, 16
      %v514 = vrot.slane %v512, 5
      %v515 = vsel %vm237, %v510, %v514
      %v516 = vshrl.u32 %v194, 16
      %v518 = vrot.slane %v516, 4
      %v519 = vor.u32 %v518, %v514
      %v520 = vrot.slane %v519, 4
      %v522 = vshll.u32 %v230, 16
      %v524 = vrot.slane %v522, 5
      %v525 = vsel %vm237, %v520, %v524
      %v527 = vshrl.u32 %v195, 16
      %v529 = vrot.slane %v527, 4
      %v530 = vshll.u32 %v195, 16
      %v532 = vrot.slane %v530, 5
      %v533 = vor.u32 %v529, %v532
      %v534 = vrot.slane %v533, 4
      %v536 = vshll.u32 %v196, 16
      %v538 = vrot.slane %v536, 5
      %v539 = vsel %vm237, %v534, %v538
      %v540 = vshrl.u32 %v196, 16
      %v542 = vrot.slane %v540, 4
      %v543 = vor.u32 %v542, %v538
      %v544 = vrot.slane %v543, 4
      %v546 = vshll.u32 %v231, 16
      %v548 = vrot.slane %v546, 5
      %v549 = vsel %vm237, %v544, %v548
      %v551 = vshrl.u32 %v197, 16
      %v553 = vrot.slane %v551, 4
      %v554 = vshll.u32 %v197, 16
      %v556 = vrot.slane %v554, 5
      %v557 = vor.u32 %v553, %v556
      %v558 = vrot.slane %v557, 4
      %v560 = vshll.u32 %v198, 16
      %v562 = vrot.slane %v560, 5
      %v563 = vsel %vm237, %v558, %v562
      %v564 = vshrl.u32 %v198, 16
      %v566 = vrot.slane %v564, 4
      %v567 = vor.u32 %v566, %v562
      %v568 = vrot.slane %v567, 4
      %v570 = vshll.u32 %v232, 16
      %v572 = vrot.slane %v570, 5
      %v573 = vsel %vm237, %v568, %v572
      %v575 = vshrl.u32 %v199, 16
      %v577 = vrot.slane %v575, 4
      %v578 = vshll.u32 %v199, 16
      %v580 = vrot.slane %v578, 5
      %v581 = vor.u32 %v577, %v580
      %v582 = vrot.slane %v581, 4
      %v584 = vshll.u32 %v200, 16
      %v586 = vrot.slane %v584, 5
      %v587 = vsel %vm237, %v582, %v586
      %v588 = vshrl.u32 %v200, 16
      %v590 = vrot.slane %v588, 4
      %v591 = vor.u32 %v590, %v586
      %v592 = vrot.slane %v591, 4
      %v594 = vshll.u32 %v233, 16
      %v596 = vrot.slane %v594, 5
      %v597 = vsel %vm237, %v592, %v596
      %v599 = vshrl.u32 %v201, 16
      %v601 = vrot.slane %v599, 4
      %v602 = vshll.u32 %v201, 16
      %v604 = vrot.slane %v602, 5
      %v605 = vor.u32 %v601, %v604
      %v606 = vrot.slane %v605, 4
      %v608 = vshll.u32 %v202, 16
      %v610 = vrot.slane %v608, 5
      %v611 = vsel %vm237, %v606, %v610
      %v612 = vshrl.u32 %v202, 16
      %v614 = vrot.slane %v612, 4
      %v615 = vor.u32 %v614, %v610
      %v616 = vrot.slane %v615, 4
      %v618 = vshll.u32 %v234, 16
      %v620 = vrot.slane %v618, 5
      %v621 = vsel %vm237, %v616, %v620
      %s622 = scalar_lea.vmem %s1, 64
      %v623 = vld [vmem:[%s622] sm:$0xf]
      %v624 = vld [vmem:[%s622 + $0x4] sm:$0xf]
      %v625 = vld [vmem:[%s622 + $0x8] sm:$0xf]
      %v626 = vld [vmem:[%s622 + $0xc] sm:$0xf]
      %v627 = vld [vmem:[%s622 + $0x10] sm:$0xf]
      %v628 = vld [vmem:[%s622 + $0x14] sm:$0xf]
      %v629 = vld [vmem:[%s622 + $0x18] sm:$0xf]
      %v630 = vld [vmem:[%s622 + $0x1c] sm:$0xf]
      %v631 = vld [vmem:[%s622 + $0x20] sm:$0xf]
      %v632 = vld [vmem:[%s622 + $0x24] sm:$0xf]
      %v633 = vld [vmem:[%s622 + $0x28] sm:$0xf]
      %v634 = vld [vmem:[%s622 + $0x2c] sm:$0xf]
      %v635 = vld [vmem:[%s622 + $0x30] sm:$0xf]
      %v636 = vld [vmem:[%s622 + $0x34] sm:$0xf]
      %v637 = vld [vmem:[%s622 + $0x38] sm:$0xf]
      %v638 = vld [vmem:[%s622 + $0x3c] sm:$0xf]
      %v639 = vunpack.c.l.b16 %v251
      %v640 = vunpack.c.l.b16 %v261
      %v641 = vunpack.c.l.b16 %v275
      %v642 = vunpack.c.l.b16 %v285
      %v643 = vunpack.c.l.b16 %v299
      %v644 = vunpack.c.l.b16 %v309
      %v645 = vunpack.c.l.b16 %v323
      %v646 = vunpack.c.l.b16 %v333
      %v647 = vunpack.c.l.b16 %v347
      %v648 = vunpack.c.l.b16 %v357
      %v649 = vunpack.c.l.b16 %v371
      %v650 = vunpack.c.l.b16 %v381
      %v651 = vunpack.c.l.b16 %v395
      %v652 = vunpack.c.l.b16 %v405
      %v653 = vunpack.c.l.b16 %v419
      %v654 = vunpack.c.l.b16 %v429
      %v655 = vunpack.c.l.b16 %v443
      %v656 = vunpack.c.l.b16 %v453
      %v657 = vunpack.c.l.b16 %v467
      %v658 = vunpack.c.l.b16 %v477
      %v659 = vunpack.c.l.b16 %v491
      %v660 = vunpack.c.l.b16 %v501
      %v661 = vunpack.c.l.b16 %v515
      %v662 = vunpack.c.l.b16 %v525
      %v663 = vunpack.c.l.b16 %v539
      %v664 = vunpack.c.l.b16 %v549
      %v665 = vunpack.c.l.b16 %v563
      %v666 = vunpack.c.l.b16 %v573
      %v667 = vunpack.c.l.b16 %v587
      %v668 = vunpack.c.l.b16 %v597
      %v669 = vunpack.c.l.b16 %v611
      %v670 = vunpack.c.l.b16 %v621
      %v671 = vpack.c.b16 %v640, %v639
      %v672 = vpack.c.b16 %v642, %v641
      %v673 = vpack.c.b16 %v644, %v643
      %v674 = vpack.c.b16 %v646, %v645
      %v675 = vpack.c.b16 %v648, %v647
      %v676 = vpack.c.b16 %v650, %v649
      %v677 = vpack.c.b16 %v652, %v651
      %v678 = vpack.c.b16 %v654, %v653
      %v679 = vpack.c.b16 %v656, %v655
      %v680 = vpack.c.b16 %v658, %v657
      %v681 = vpack.c.b16 %v660, %v659
      %v682 = vpack.c.b16 %v662, %v661
      %v683 = vpack.c.b16 %v664, %v663
      %v684 = vpack.c.b16 %v666, %v665
      %v685 = vpack.c.b16 %v668, %v667
      %v686 = vpack.c.b16 %v670, %v669
      %v719 = vunpack.c.l.b16 %v623
      %v720 = vunpack.c.l.b16 %v624
      %v721 = vunpack.c.l.b16 %v625
      %v722 = vunpack.c.l.b16 %v626
      %v723 = vunpack.c.l.b16 %v627
      %v724 = vunpack.c.l.b16 %v628
      %v725 = vunpack.c.l.b16 %v629
      %v726 = vunpack.c.l.b16 %v630
      %v727 = vunpack.c.l.b16 %v631
      %v728 = vunpack.c.l.b16 %v632
      %v729 = vunpack.c.l.b16 %v633
      %v730 = vunpack.c.l.b16 %v634
      %v731 = vunpack.c.l.b16 %v635
      %v732 = vunpack.c.l.b16 %v636
      %v733 = vunpack.c.l.b16 %v637
      %v734 = vunpack.c.l.b16 %v638
      %v735 = vpack.c.b16 %v720, %v719
      %v736 = vpack.c.b16 %v722, %v721
      %v737 = vpack.c.b16 %v724, %v723
      %v738 = vpack.c.b16 %v726, %v725
      %v739 = vpack.c.b16 %v728, %v727
      %v740 = vpack.c.b16 %v730, %v729
      %v741 = vpack.c.b16 %v732, %v731
      %v742 = vpack.c.b16 %v734, %v733
      %751 = vmatpush.bf16.msra.mxu0 %v742
      %752 = vmatpush.bf16.msra.mxu0 %v741
      %753 = vmatpush.bf16.msra.mxu0 %v740
      %754 = vmatpush.bf16.msra.mxu0 %v739
      %755 = vmatpush.bf16.msra.mxu0 %v738
      %756 = vmatpush.bf16.msra.mxu0 %v737
      %757 = vmatpush.bf16.msra.mxu0 %v736
      %758 = vmatpush.bf16.msra.mxu0 %v735
      %759 = vmatmul.bf16.gmra.mxu0 %v671
      %v760 = vpop.f32.mrf.mxu0
      %v761 = vadd.f32 0.0, %v760
      %v762 = vpop.f32.mrf.mxu0
      %v763 = vadd.f32 0.0, %v762
      %764 = vmatmul.bf16.gmra.mxu0 %v672
      %v765 = vpop.f32.mrf.mxu0
      %v766 = vadd.f32 0.0, %v765
      %v767 = vpop.f32.mrf.mxu0
      %v768 = vadd.f32 0.0, %v767
      %769 = vmatmul.bf16.gmra.mxu0 %v673
      %v770 = vpop.f32.mrf.mxu0
      %v771 = vadd.f32 0.0, %v770
      %v772 = vpop.f32.mrf.mxu0
      %v773 = vadd.f32 0.0, %v772
      %774 = vmatmul.bf16.gmra.mxu0 %v674
      %v775 = vpop.f32.mrf.mxu0
      %v776 = vadd.f32 0.0, %v775
      %v777 = vpop.f32.mrf.mxu0
      %v778 = vadd.f32 0.0, %v777
      %779 = vmatmul.bf16.gmra.mxu0 %v675
      %v780 = vpop.f32.mrf.mxu0
      %v781 = vadd.f32 0.0, %v780
      %v782 = vpop.f32.mrf.mxu0
      %v783 = vadd.f32 0.0, %v782
      %784 = vmatmul.bf16.gmra.mxu0 %v676
      %v785 = vpop.f32.mrf.mxu0
      %v786 = vadd.f32 0.0, %v785
      %v787 = vpop.f32.mrf.mxu0
      %v788 = vadd.f32 0.0, %v787
      %789 = vmatmul.bf16.gmra.mxu0 %v677
      %v790 = vpop.f32.mrf.mxu0
      %v791 = vadd.f32 0.0, %v790
      %v792 = vpop.f32.mrf.mxu0
      %v793 = vadd.f32 0.0, %v792
      %794 = vmatmul.bf16.gmra.mxu0 %v678
      %v795 = vpop.f32.mrf.mxu0
      %v796 = vadd.f32 0.0, %v795
      %v797 = vpop.f32.mrf.mxu0
      %v798 = vadd.f32 0.0, %v797
      %799 = vmatmul.bf16.gmra.mxu0 %v679
      %v800 = vpop.f32.mrf.mxu0
      %v801 = vadd.f32 0.0, %v800
      %v802 = vpop.f32.mrf.mxu0
      %v803 = vadd.f32 0.0, %v802
      %804 = vmatmul.bf16.gmra.mxu0 %v680
      %v805 = vpop.f32.mrf.mxu0
      %v806 = vadd.f32 0.0, %v805
      %v807 = vpop.f32.mrf.mxu0
      %v808 = vadd.f32 0.0, %v807
      %809 = vmatmul.bf16.gmra.mxu0 %v681
      %v810 = vpop.f32.mrf.mxu0
      %v811 = vadd.f32 0.0, %v810
      %v812 = vpop.f32.mrf.mxu0
      %v813 = vadd.f32 0.0, %v812
      %814 = vmatmul.bf16.gmra.mxu0 %v682
      %v815 = vpop.f32.mrf.mxu0
      %v816 = vadd.f32 0.0, %v815
      %v817 = vpop.f32.mrf.mxu0
      %v818 = vadd.f32 0.0, %v817
      %819 = vmatmul.bf16.gmra.mxu0 %v683
      %v820 = vpop.f32.mrf.mxu0
      %v821 = vadd.f32 0.0, %v820
      %v822 = vpop.f32.mrf.mxu0
      %v823 = vadd.f32 0.0, %v822
      %824 = vmatmul.bf16.gmra.mxu0 %v684
      %v825 = vpop.f32.mrf.mxu0
      %v826 = vadd.f32 0.0, %v825
      %v827 = vpop.f32.mrf.mxu0
      %v828 = vadd.f32 0.0, %v827
      %829 = vmatmul.bf16.gmra.mxu0 %v685
      %v830 = vpop.f32.mrf.mxu0
      %v831 = vadd.f32 0.0, %v830
      %v832 = vpop.f32.mrf.mxu0
      %v833 = vadd.f32 0.0, %v832
      %834 = vmatmul.bf16.gmra.mxu0 %v686
      %v835 = vpop.f32.mrf.mxu0
      %v836 = vadd.f32 0.0, %v835
      %v837 = vpop.f32.mrf.mxu0
      %v838 = vadd.f32 0.0, %v837
      %839 = vdwg.mxu0
      %v872 = vunpack.c.l.b16 %v171
      %v873 = vunpack.c.l.b16 %v172
      %v874 = vunpack.c.l.b16 %v173
      %v875 = vunpack.c.l.b16 %v174
      %v876 = vunpack.c.l.b16 %v175
      %v877 = vunpack.c.l.b16 %v176
      %v878 = vunpack.c.l.b16 %v177
      %v879 = vunpack.c.l.b16 %v178
      %v880 = vunpack.c.l.b16 %v179
      %v881 = vunpack.c.l.b16 %v180
      %v882 = vunpack.c.l.b16 %v181
      %v883 = vunpack.c.l.b16 %v182
      %v884 = vunpack.c.l.b16 %v183
      %v885 = vunpack.c.l.b16 %v184
      %v886 = vunpack.c.l.b16 %v185
      %v887 = vunpack.c.l.b16 %v186
      %v888 = vunpack.c.l.b16 %v187
      %v889 = vunpack.c.l.b16 %v188
      %v890 = vunpack.c.l.b16 %v189
      %v891 = vunpack.c.l.b16 %v190
      %v892 = vunpack.c.l.b16 %v191
      %v893 = vunpack.c.l.b16 %v192
      %v894 = vunpack.c.l.b16 %v193
      %v895 = vunpack.c.l.b16 %v194
      %v896 = vunpack.c.l.b16 %v195
      %v897 = vunpack.c.l.b16 %v196
      %v898 = vunpack.c.l.b16 %v197
      %v899 = vunpack.c.l.b16 %v198
      %v900 = vunpack.c.l.b16 %v199
      %v901 = vunpack.c.l.b16 %v200
      %v902 = vunpack.c.l.b16 %v201
      %v903 = vunpack.c.l.b16 %v202
      %v904 = vpack.c.b16 %v873, %v872
      %v905 = vpack.c.b16 %v875, %v874
      %v906 = vpack.c.b16 %v877, %v876
      %v907 = vpack.c.b16 %v879, %v878
      %v908 = vpack.c.b16 %v881, %v880
      %v909 = vpack.c.b16 %v883, %v882
      %v910 = vpack.c.b16 %v885, %v884
      %v911 = vpack.c.b16 %v887, %v886
      %v912 = vpack.c.b16 %v889, %v888
      %v913 = vpack.c.b16 %v891, %v890
      %v914 = vpack.c.b16 %v893, %v892
      %v915 = vpack.c.b16 %v895, %v894
      %v916 = vpack.c.b16 %v897, %v896
      %v917 = vpack.c.b16 %v899, %v898
      %v918 = vpack.c.b16 %v901, %v900
      %v919 = vpack.c.b16 %v903, %v902
      %v952 = vunpack.c.l.b16 %v203
      %v953 = vunpack.c.l.b16 %v204
      %v954 = vunpack.c.l.b16 %v205
      %v955 = vunpack.c.l.b16 %v206
      %v956 = vunpack.c.l.b16 %v207
      %v957 = vunpack.c.l.b16 %v208
      %v958 = vunpack.c.l.b16 %v209
      %v959 = vunpack.c.l.b16 %v210
      %v960 = vunpack.c.l.b16 %v211
      %v961 = vunpack.c.l.b16 %v212
      %v962 = vunpack.c.l.b16 %v213
      %v963 = vunpack.c.l.b16 %v214
      %v964 = vunpack.c.l.b16 %v215
      %v965 = vunpack.c.l.b16 %v216
      %v966 = vunpack.c.l.b16 %v217
      %v967 = vunpack.c.l.b16 %v218
      %v968 = vpack.c.b16 %v953, %v952
      %v969 = vpack.c.b16 %v955, %v954
      %v970 = vpack.c.b16 %v957, %v956
      %v971 = vpack.c.b16 %v959, %v958
      %v972 = vpack.c.b16 %v961, %v960
      %v973 = vpack.c.b16 %v963, %v962
      %v974 = vpack.c.b16 %v965, %v964
      %v975 = vpack.c.b16 %v967, %v966
      %984 = vmatpush.bf16.msra.mxu0 %v975
      %985 = vmatpush.bf16.msra.mxu0 %v974
      %986 = vmatpush.bf16.msra.mxu0 %v973
      %987 = vmatpush.bf16.msra.mxu0 %v972
      %988 = vmatpush.bf16.msra.mxu0 %v971
      %989 = vmatpush.bf16.msra.mxu0 %v970
      %990 = vmatpush.bf16.msra.mxu0 %v969
      %991 = vmatpush.bf16.msra.mxu0 %v968
      %992 = vmatmul.bf16.gmra.mxu0 %v904
      %v993 = vpop.f32.mrf.mxu0
      %v994 = vadd.f32 %v761, %v993
      %v995 = vpop.f32.mrf.mxu0
      %v996 = vadd.f32 %v763, %v995
      %997 = vmatmul.bf16.gmra.mxu0 %v905
      %v998 = vpop.f32.mrf.mxu0
      %v999 = vadd.f32 %v766, %v998
      %v1000 = vpop.f32.mrf.mxu0
      %v1001 = vadd.f32 %v768, %v1000
      %1002 = vmatmul.bf16.gmra.mxu0 %v906
      %v1003 = vpop.f32.mrf.mxu0
      %v1004 = vadd.f32 %v771, %v1003
      %v1005 = vpop.f32.mrf.mxu0
      %v1006 = vadd.f32 %v773, %v1005
      %1007 = vmatmul.bf16.gmra.mxu0 %v907
      %v1008 = vpop.f32.mrf.mxu0
      %v1009 = vadd.f32 %v776, %v1008
      %v1010 = vpop.f32.mrf.mxu0
      %v1011 = vadd.f32 %v778, %v1010
      %1012 = vmatmul.bf16.gmra.mxu0 %v908
      %v1013 = vpop.f32.mrf.mxu0
      %v1014 = vadd.f32 %v781, %v1013
      %v1015 = vpop.f32.mrf.mxu0
      %v1016 = vadd.f32 %v783, %v1015
      %1017 = vmatmul.bf16.gmra.mxu0 %v909
      %v1018 = vpop.f32.mrf.mxu0
      %v1019 = vadd.f32 %v786, %v1018
      %v1020 = vpop.f32.mrf.mxu0
      %v1021 = vadd.f32 %v788, %v1020
      %1022 = vmatmul.bf16.gmra.mxu0 %v910
      %v1023 = vpop.f32.mrf.mxu0
      %v1024 = vadd.f32 %v791, %v1023
      %v1025 = vpop.f32.mrf.mxu0
      %v1026 = vadd.f32 %v793, %v1025
      %1027 = vmatmul.bf16.gmra.mxu0 %v911
      %v1028 = vpop.f32.mrf.mxu0
      %v1029 = vadd.f32 %v796, %v1028
      %v1030 = vpop.f32.mrf.mxu0
      %v1031 = vadd.f32 %v798, %v1030
      %1032 = vmatmul.bf16.gmra.mxu0 %v912
      %v1033 = vpop.f32.mrf.mxu0
      %v1034 = vadd.f32 %v801, %v1033
      %v1035 = vpop.f32.mrf.mxu0
      %v1036 = vadd.f32 %v803, %v1035
      %1037 = vmatmul.bf16.gmra.mxu0 %v913
      %v1038 = vpop.f32.mrf.mxu0
      %v1039 = vadd.f32 %v806, %v1038
      %v1040 = vpop.f32.mrf.mxu0
      %v1041 = vadd.f32 %v808, %v1040
      %1042 = vmatmul.bf16.gmra.mxu0 %v914
      %v1043 = vpop.f32.mrf.mxu0
      %v1044 = vadd.f32 %v811, %v1043
      %v1045 = vpop.f32.mrf.mxu0
      %v1046 = vadd.f32 %v813, %v1045
      %1047 = vmatmul.bf16.gmra.mxu0 %v915
      %v1048 = vpop.f32.mrf.mxu0
      %v1049 = vadd.f32 %v816, %v1048
      %v1050 = vpop.f32.mrf.mxu0
      %v1051 = vadd.f32 %v818, %v1050
      %1052 = vmatmul.bf16.gmra.mxu0 %v916
      %v1053 = vpop.f32.mrf.mxu0
      %v1054 = vadd.f32 %v821, %v1053
      %v1055 = vpop.f32.mrf.mxu0
      %v1056 = vadd.f32 %v823, %v1055
      %1057 = vmatmul.bf16.gmra.mxu0 %v917
      %v1058 = vpop.f32.mrf.mxu0
      %v1059 = vadd.f32 %v826, %v1058
      %v1060 = vpop.f32.mrf.mxu0
      %v1061 = vadd.f32 %v828, %v1060
      %1062 = vmatmul.bf16.gmra.mxu0 %v918
      %v1063 = vpop.f32.mrf.mxu0
      %v1064 = vadd.f32 %v831, %v1063
      %v1065 = vpop.f32.mrf.mxu0
      %v1066 = vadd.f32 %v833, %v1065
      %1067 = vmatmul.bf16.gmra.mxu0 %v919
      %v1068 = vpop.f32.mrf.mxu0
      %v1069 = vadd.f32 %v836, %v1068
      %v1070 = vpop.f32.mrf.mxu0
      %v1071 = vadd.f32 %v838, %v1070
      %1072 = vdwg.mxu0
      %s1073 = scalar_lea.vmem %s165, 12
      %v1074 = vld [vmem:[%s1073] sm:$0xf]
      %v1075 = vld [vmem:[%s1073 + $0x4] sm:$0xf]
      %v1076 = vld [vmem:[%s1073 + $0xc] sm:$0xf]
      %v1077 = vld [vmem:[%s1073 + $0x10] sm:$0xf]
      %v1078 = vld [vmem:[%s1073 + $0x18] sm:$0xf]
      %v1079 = vld [vmem:[%s1073 + $0x1c] sm:$0xf]
      %v1080 = vld [vmem:[%s1073 + $0x24] sm:$0xf]
      %v1081 = vld [vmem:[%s1073 + $0x28] sm:$0xf]
      %v1082 = vld [vmem:[%s1073 + $0x30] sm:$0xf]
      %v1083 = vld [vmem:[%s1073 + $0x34] sm:$0xf]
      %v1084 = vld [vmem:[%s1073 + $0x3c] sm:$0xf]
      %v1085 = vld [vmem:[%s1073 + $0x40] sm:$0xf]
      %v1086 = vld [vmem:[%s1073 + $0x48] sm:$0xf]
      %v1087 = vld [vmem:[%s1073 + $0x4c] sm:$0xf]
      %v1088 = vld [vmem:[%s1073 + $0x54] sm:$0xf]
      %v1089 = vld [vmem:[%s1073 + $0x58] sm:$0xf]
      %v1090 = vld [vmem:[%s1073 + $0x60] sm:$0xf]
      %v1091 = vld [vmem:[%s1073 + $0x64] sm:$0xf]
      %v1092 = vld [vmem:[%s1073 + $0x6c] sm:$0xf]
      %v1093 = vld [vmem:[%s1073 + $0x70] sm:$0xf]
      %v1094 = vld [vmem:[%s1073 + $0x78] sm:$0xf]
      %v1095 = vld [vmem:[%s1073 + $0x7c] sm:$0xf]
      %v1096 = vld [vmem:[%s1073 + $0x84] sm:$0xf]
      %v1097 = vld [vmem:[%s1073 + $0x88] sm:$0xf]
      %v1098 = vld [vmem:[%s1073 + $0x90] sm:$0xf]
      %v1099 = vld [vmem:[%s1073 + $0x94] sm:$0xf]
      %v1100 = vld [vmem:[%s1073 + $0x9c] sm:$0xf]
      %v1101 = vld [vmem:[%s1073 + $0xa0] sm:$0xf]
      %v1102 = vld [vmem:[%s1073 + $0xa8] sm:$0xf]
      %v1103 = vld [vmem:[%s1073 + $0xac] sm:$0xf]
      %v1104 = vld [vmem:[%s1073 + $0xb4] sm:$0xf]
      %v1105 = vld [vmem:[%s1073 + $0xb8] sm:$0xf]
      %s1106 = scalar_lea.vmem %s1, 128
      %v1107 = vld [vmem:[%s1106] sm:$0xf]
      %v1108 = vld [vmem:[%s1106 + $0x4] sm:$0xf]
      %v1109 = vld [vmem:[%s1106 + $0x8] sm:$0xf]
      %v1110 = vld [vmem:[%s1106 + $0xc] sm:$0xf]
      %v1111 = vld [vmem:[%s1106 + $0x10] sm:$0xf]
      %v1112 = vld [vmem:[%s1106 + $0x14] sm:$0xf]
      %v1113 = vld [vmem:[%s1106 + $0x18] sm:$0xf]
      %v1114 = vld [vmem:[%s1106 + $0x1c] sm:$0xf]
      %v1115 = vld [vmem:[%s1106 + $0x20] sm:$0xf]
      %v1116 = vld [vmem:[%s1106 + $0x24] sm:$0xf]
      %v1117 = vld [vmem:[%s1106 + $0x28] sm:$0xf]
      %v1118 = vld [vmem:[%s1106 + $0x2c] sm:$0xf]
      %v1119 = vld [vmem:[%s1106 + $0x30] sm:$0xf]
      %v1120 = vld [vmem:[%s1106 + $0x34] sm:$0xf]
      %v1121 = vld [vmem:[%s1106 + $0x38] sm:$0xf]
      %v1122 = vld [vmem:[%s1106 + $0x3c] sm:$0xf]
      %v1155 = vunpack.c.l.b16 %v1074
      %v1156 = vunpack.c.l.b16 %v1075
      %v1157 = vunpack.c.l.b16 %v1076
      %v1158 = vunpack.c.l.b16 %v1077
      %v1159 = vunpack.c.l.b16 %v1078
      %v1160 = vunpack.c.l.b16 %v1079
      %v1161 = vunpack.c.l.b16 %v1080
      %v1162 = vunpack.c.l.b16 %v1081
      %v1163 = vunpack.c.l.b16 %v1082
      %v1164 = vunpack.c.l.b16 %v1083
      %v1165 = vunpack.c.l.b16 %v1084
      %v1166 = vunpack.c.l.b16 %v1085
      %v1167 = vunpack.c.l.b16 %v1086
      %v1168 = vunpack.c.l.b16 %v1087
      %v1169 = vunpack.c.l.b16 %v1088
      %v1170 = vunpack.c.l.b16 %v1089
      %v1171 = vunpack.c.l.b16 %v1090
      %v1172 = vunpack.c.l.b16 %v1091
      %v1173 = vunpack.c.l.b16 %v1092
      %v1174 = vunpack.c.l.b16 %v1093
      %v1175 = vunpack.c.l.b16 %v1094
      %v1176 = vunpack.c.l.b16 %v1095
      %v1177 = vunpack.c.l.b16 %v1096
      %v1178 = vunpack.c.l.b16 %v1097
      %v1179 = vunpack.c.l.b16 %v1098
      %v1180 = vunpack.c.l.b16 %v1099
      %v1181 = vunpack.c.l.b16 %v1100
      %v1182 = vunpack.c.l.b16 %v1101
      %v1183 = vunpack.c.l.b16 %v1102
      %v1184 = vunpack.c.l.b16 %v1103
      %v1185 = vunpack.c.l.b16 %v1104
      %v1186 = vunpack.c.l.b16 %v1105
      %v1187 = vpack.c.b16 %v1156, %v1155
      %v1188 = vpack.c.b16 %v1158, %v1157
      %v1189 = vpack.c.b16 %v1160, %v1159
      %v1190 = vpack.c.b16 %v1162, %v1161
      %v1191 = vpack.c.b16 %v1164, %v1163
      %v1192 = vpack.c.b16 %v1166, %v1165
      %v1193 = vpack.c.b16 %v1168, %v1167
      %v1194 = vpack.c.b16 %v1170, %v1169
      %v1195 = vpack.c.b16 %v1172, %v1171
      %v1196 = vpack.c.b16 %v1174, %v1173
      %v1197 = vpack.c.b16 %v1176, %v1175
      %v1198 = vpack.c.b16 %v1178, %v1177
      %v1199 = vpack.c.b16 %v1180, %v1179
      %v1200 = vpack.c.b16 %v1182, %v1181
      %v1201 = vpack.c.b16 %v1184, %v1183
      %v1202 = vpack.c.b16 %v1186, %v1185
      %v1235 = vunpack.c.l.b16 %v1107
      %v1236 = vunpack.c.l.b16 %v1108
      %v1237 = vunpack.c.l.b16 %v1109
      %v1238 = vunpack.c.l.b16 %v1110
      %v1239 = vunpack.c.l.b16 %v1111
      %v1240 = vunpack.c.l.b16 %v1112
      %v1241 = vunpack.c.l.b16 %v1113
      %v1242 = vunpack.c.l.b16 %v1114
      %v1243 = vunpack.c.l.b16 %v1115
      %v1244 = vunpack.c.l.b16 %v1116
      %v1245 = vunpack.c.l.b16 %v1117
      %v1246 = vunpack.c.l.b16 %v1118
      %v1247 = vunpack.c.l.b16 %v1119
      %v1248 = vunpack.c.l.b16 %v1120
      %v1249 = vunpack.c.l.b16 %v1121
      %v1250 = vunpack.c.l.b16 %v1122
      %v1251 = vpack.c.b16 %v1236, %v1235
      %v1252 = vpack.c.b16 %v1238, %v1237
      %v1253 = vpack.c.b16 %v1240, %v1239
      %v1254 = vpack.c.b16 %v1242, %v1241
      %v1255 = vpack.c.b16 %v1244, %v1243
      %v1256 = vpack.c.b16 %v1246, %v1245
      %v1257 = vpack.c.b16 %v1248, %v1247
      %v1258 = vpack.c.b16 %v1250, %v1249
      %1267 = vmatpush.bf16.msra.mxu0 %v1258
      %1268 = vmatpush.bf16.msra.mxu0 %v1257
      %1269 = vmatpush.bf16.msra.mxu0 %v1256
      %1270 = vmatpush.bf16.msra.mxu0 %v1255
      %1271 = vmatpush.bf16.msra.mxu0 %v1254
      %1272 = vmatpush.bf16.msra.mxu0 %v1253
      %1273 = vmatpush.bf16.msra.mxu0 %v1252
      %1274 = vmatpush.bf16.msra.mxu0 %v1251
      %1275 = vmatmul.bf16.gmra.mxu0 %v1187
      %v1276 = vpop.f32.mrf.mxu0
      %v1277 = vadd.f32 0.0, %v1276
      %v1278 = vpop.f32.mrf.mxu0
      %v1279 = vadd.f32 0.0, %v1278
      %1280 = vmatmul.bf16.gmra.mxu0 %v1188
      %v1281 = vpop.f32.mrf.mxu0
      %v1282 = vadd.f32 0.0, %v1281
      %v1283 = vpop.f32.mrf.mxu0
      %v1284 = vadd.f32 0.0, %v1283
      %1285 = vmatmul.bf16.gmra.mxu0 %v1189
      %v1286 = vpop.f32.mrf.mxu0
      %v1287 = vadd.f32 0.0, %v1286
      %v1288 = vpop.f32.mrf.mxu0
      %v1289 = vadd.f32 0.0, %v1288
      %1290 = vmatmul.bf16.gmra.mxu0 %v1190
      %v1291 = vpop.f32.mrf.mxu0
      %v1292 = vadd.f32 0.0, %v1291
      %v1293 = vpop.f32.mrf.mxu0
      %v1294 = vadd.f32 0.0, %v1293
      %1295 = vmatmul.bf16.gmra.mxu0 %v1191
      %v1296 = vpop.f32.mrf.mxu0
      %v1297 = vadd.f32 0.0, %v1296
      %v1298 = vpop.f32.mrf.mxu0
      %v1299 = vadd.f32 0.0, %v1298
      %1300 = vmatmul.bf16.gmra.mxu0 %v1192
      %v1301 = vpop.f32.mrf.mxu0
      %v1302 = vadd.f32 0.0, %v1301
      %v1303 = vpop.f32.mrf.mxu0
      %v1304 = vadd.f32 0.0, %v1303
      %1305 = vmatmul.bf16.gmra.mxu0 %v1193
      %v1306 = vpop.f32.mrf.mxu0
      %v1307 = vadd.f32 0.0, %v1306
      %v1308 = vpop.f32.mrf.mxu0
      %v1309 = vadd.f32 0.0, %v1308
      %1310 = vmatmul.bf16.gmra.mxu0 %v1194
      %v1311 = vpop.f32.mrf.mxu0
      %v1312 = vadd.f32 0.0, %v1311
      %v1313 = vpop.f32.mrf.mxu0
      %v1314 = vadd.f32 0.0, %v1313
      %1315 = vmatmul.bf16.gmra.mxu0 %v1195
      %v1316 = vpop.f32.mrf.mxu0
      %v1317 = vadd.f32 0.0, %v1316
      %v1318 = vpop.f32.mrf.mxu0
      %v1319 = vadd.f32 0.0, %v1318
      %1320 = vmatmul.bf16.gmra.mxu0 %v1196
      %v1321 = vpop.f32.mrf.mxu0
      %v1322 = vadd.f32 0.0, %v1321
      %v1323 = vpop.f32.mrf.mxu0
      %v1324 = vadd.f32 0.0, %v1323
      %1325 = vmatmul.bf16.gmra.mxu0 %v1197
      %v1326 = vpop.f32.mrf.mxu0
      %v1327 = vadd.f32 0.0, %v1326
      %v1328 = vpop.f32.mrf.mxu0
      %v1329 = vadd.f32 0.0, %v1328
      %1330 = vmatmul.bf16.gmra.mxu0 %v1198
      %v1331 = vpop.f32.mrf.mxu0
      %v1332 = vadd.f32 0.0, %v1331
      %v1333 = vpop.f32.mrf.mxu0
      %v1334 = vadd.f32 0.0, %v1333
      %1335 = vmatmul.bf16.gmra.mxu0 %v1199
      %v1336 = vpop.f32.mrf.mxu0
      %v1337 = vadd.f32 0.0, %v1336
      %v1338 = vpop.f32.mrf.mxu0
      %v1339 = vadd.f32 0.0, %v1338
      %1340 = vmatmul.bf16.gmra.mxu0 %v1200
      %v1341 = vpop.f32.mrf.mxu0
      %v1342 = vadd.f32 0.0, %v1341
      %v1343 = vpop.f32.mrf.mxu0
      %v1344 = vadd.f32 0.0, %v1343
      %1345 = vmatmul.bf16.gmra.mxu0 %v1201
      %v1346 = vpop.f32.mrf.mxu0
      %v1347 = vadd.f32 0.0, %v1346
      %v1348 = vpop.f32.mrf.mxu0
      %v1349 = vadd.f32 0.0, %v1348
      %1350 = vmatmul.bf16.gmra.mxu0 %v1202
      %v1351 = vpop.f32.mrf.mxu0
      %v1352 = vadd.f32 0.0, %v1351
      %v1353 = vpop.f32.mrf.mxu0
      %v1354 = vadd.f32 0.0, %v1353
      %1355 = vdwg.mxu0
      %v1356 = vadd.f32 %v994, %v1277
      %v1357 = vadd.f32 %v996, %v1279
      %v1358 = vadd.f32 %v999, %v1282
      %v1359 = vadd.f32 %v1001, %v1284
      %v1360 = vadd.f32 %v1004, %v1287
      %v1361 = vadd.f32 %v1006, %v1289
      %v1362 = vadd.f32 %v1009, %v1292
      %v1363 = vadd.f32 %v1011, %v1294
      %v1364 = vadd.f32 %v1014, %v1297
      %v1365 = vadd.f32 %v1016, %v1299
      %v1366 = vadd.f32 %v1019, %v1302
      %v1367 = vadd.f32 %v1021, %v1304
      %v1368 = vadd.f32 %v1024, %v1307
      %v1369 = vadd.f32 %v1026, %v1309
      %v1370 = vadd.f32 %v1029, %v1312
      %v1371 = vadd.f32 %v1031, %v1314
      %v1372 = vadd.f32 %v1034, %v1317
      %v1373 = vadd.f32 %v1036, %v1319
      %v1374 = vadd.f32 %v1039, %v1322
      %v1375 = vadd.f32 %v1041, %v1324
      %v1376 = vadd.f32 %v1044, %v1327
      %v1377 = vadd.f32 %v1046, %v1329
      %v1378 = vadd.f32 %v1049, %v1332
      %v1379 = vadd.f32 %v1051, %v1334
      %v1380 = vadd.f32 %v1054, %v1337
      %v1381 = vadd.f32 %v1056, %v1339
      %v1382 = vadd.f32 %v1059, %v1342
      %v1383 = vadd.f32 %v1061, %v1344
      %v1384 = vadd.f32 %v1064, %v1347
      %v1385 = vadd.f32 %v1066, %v1349
      %v1386 = vadd.f32 %v1069, %v1352
      %v1387 = vadd.f32 %v1071, %v1354
      %v1388 = vld [vmem:[%s1073] sm:$0xf]
      %v1389 = vld [vmem:[%s1073 + $0x4] sm:$0xf]
      %v1390 = vld [vmem:[%s1073 + $0x8] sm:$0x1]
      %v1391 = vld [vmem:[%s1073 + $0xc] sm:$0xf]
      %v1392 = vld [vmem:[%s1073 + $0x10] sm:$0xf]
      %v1393 = vld [vmem:[%s1073 + $0x14] sm:$0x1]
      %v1394 = vld [vmem:[%s1073 + $0x18] sm:$0xf]
      %v1395 = vld [vmem:[%s1073 + $0x1c] sm:$0xf]
      %v1396 = vld [vmem:[%s1073 + $0x20] sm:$0x1]
      %v1397 = vld [vmem:[%s1073 + $0x24] sm:$0xf]
      %v1398 = vld [vmem:[%s1073 + $0x28] sm:$0xf]
      %v1399 = vld [vmem:[%s1073 + $0x2c] sm:$0x1]
      %v1400 = vld [vmem:[%s1073 + $0x30] sm:$0xf]
      %v1401 = vld [vmem:[%s1073 + $0x34] sm:$0xf]
      %v1402 = vld [vmem:[%s1073 + $0x38] sm:$0x1]
      %v1403 = vld [vmem:[%s1073 + $0x3c] sm:$0xf]
      %v1404 = vld [vmem:[%s1073 + $0x40] sm:$0xf]
      %v1405 = vld [vmem:[%s1073 + $0x44] sm:$0x1]
      %v1406 = vld [vmem:[%s1073 + $0x48] sm:$0xf]
      %v1407 = vld [vmem:[%s1073 + $0x4c] sm:$0xf]
      %v1408 = vld [vmem:[%s1073 + $0x50] sm:$0x1]
      %v1409 = vld [vmem:[%s1073 + $0x54] sm:$0xf]
      %v1410 = vld [vmem:[%s1073 + $0x58] sm:$0xf]
      %v1411 = vld [vmem:[%s1073 + $0x5c] sm:$0x1]
      %v1412 = vld [vmem:[%s1073 + $0x60] sm:$0xf]
      %v1413 = vld [vmem:[%s1073 + $0x64] sm:$0xf]
      %v1414 = vld [vmem:[%s1073 + $0x68] sm:$0x1]
      %v1415 = vld [vmem:[%s1073 + $0x6c] sm:$0xf]
      %v1416 = vld [vmem:[%s1073 + $0x70] sm:$0xf]
      %v1417 = vld [vmem:[%s1073 + $0x74] sm:$0x1]
      %v1418 = vld [vmem:[%s1073 + $0x78] sm:$0xf]
      %v1419 = vld [vmem:[%s1073 + $0x7c] sm:$0xf]
      %v1420 = vld [vmem:[%s1073 + $0x80] sm:$0x1]
      %v1421 = vld [vmem:[%s1073 + $0x84] sm:$0xf]
      %v1422 = vld [vmem:[%s1073 + $0x88] sm:$0xf]
      %v1423 = vld [vmem:[%s1073 + $0x8c] sm:$0x1]
      %v1424 = vld [vmem:[%s1073 + $0x90] sm:$0xf]
      %v1425 = vld [vmem:[%s1073 + $0x94] sm:$0xf]
      %v1426 = vld [vmem:[%s1073 + $0x98] sm:$0x1]
      %v1427 = vld [vmem:[%s1073 + $0x9c] sm:$0xf]
      %v1428 = vld [vmem:[%s1073 + $0xa0] sm:$0xf]
      %v1429 = vld [vmem:[%s1073 + $0xa4] sm:$0x1]
      %v1430 = vld [vmem:[%s1073 + $0xa8] sm:$0xf]
      %v1431 = vld [vmem:[%s1073 + $0xac] sm:$0xf]
      %v1432 = vld [vmem:[%s1073 + $0xb0] sm:$0x1]
      %v1433 = vld [vmem:[%s1073 + $0xb4] sm:$0xf]
      %v1434 = vld [vmem:[%s1073 + $0xb8] sm:$0xf]
      %v1435 = vld [vmem:[%s1073 + $0xbc] sm:$0x1]
      %v1437 = vshrl.u32 %v1388, 16
      %v1439 = vrot.slane %v1437, 4
      %v1440 = vshll.u32 %v1388, 16
      %v1442 = vrot.slane %v1440, 5
      %v1443 = vor.u32 %v1439, %v1442
      %v1444 = vrot.slane %v1443, 4
      %v1446 = vshll.u32 %v1389, 16
      %v1448 = vrot.slane %v1446, 5
      %v1449 = vsel %vm237, %v1444, %v1448
      %v1450 = vshrl.u32 %v1389, 16
      %v1452 = vrot.slane %v1450, 4
      %v1453 = vor.u32 %v1452, %v1448
      %v1454 = vrot.slane %v1453, 4
      %v1456 = vshll.u32 %v1390, 16
      %v1458 = vrot.slane %v1456, 5
      %v1459 = vsel %vm237, %v1454, %v1458
      %v1461 = vshrl.u32 %v1391, 16
      %v1463 = vrot.slane %v1461, 4
      %v1464 = vshll.u32 %v1391, 16
      %v1466 = vrot.slane %v1464, 5
      %v1467 = vor.u32 %v1463, %v1466
      %v1468 = vrot.slane %v1467, 4
      %v1470 = vshll.u32 %v1392, 16
      %v1472 = vrot.slane %v1470, 5
      %v1473 = vsel %vm237, %v1468, %v1472
      %v1474 = vshrl.u32 %v1392, 16
      %v1476 = vrot.slane %v1474, 4
      %v1477 = vor.u32 %v1476, %v1472
      %v1478 = vrot.slane %v1477, 4
      %v1480 = vshll.u32 %v1393, 16
      %v1482 = vrot.slane %v1480, 5
      %v1483 = vsel %vm237, %v1478, %v1482
      %v1485 = vshrl.u32 %v1394, 16
      %v1487 = vrot.slane %v1485, 4
      %v1488 = vshll.u32 %v1394, 16
      %v1490 = vrot.slane %v1488, 5
      %v1491 = vor.u32 %v1487, %v1490
      %v1492 = vrot.slane %v1491, 4
      %v1494 = vshll.u32 %v1395, 16
      %v1496 = vrot.slane %v1494, 5
      %v1497 = vsel %vm237, %v1492, %v1496
      %v1498 = vshrl.u32 %v1395, 16
      %v1500 = vrot.slane %v1498, 4
      %v1501 = vor.u32 %v1500, %v1496
      %v1502 = vrot.slane %v1501, 4
      %v1504 = vshll.u32 %v1396, 16
      %v1506 = vrot.slane %v1504, 5
      %v1507 = vsel %vm237, %v1502, %v1506
      %v1509 = vshrl.u32 %v1397, 16
      %v1511 = vrot.slane %v1509, 4
      %v1512 = vshll.u32 %v1397, 16
      %v1514 = vrot.slane %v1512, 5
      %v1515 = vor.u32 %v1511, %v1514
      %v1516 = vrot.slane %v1515, 4
      %v1518 = vshll.u32 %v1398, 16
      %v1520 = vrot.slane %v1518, 5
      %v1521 = vsel %vm237, %v1516, %v1520
      %v1522 = vshrl.u32 %v1398, 16
      %v1524 = vrot.slane %v1522, 4
      %v1525 = vor.u32 %v1524, %v1520
      %v1526 = vrot.slane %v1525, 4
      %v1528 = vshll.u32 %v1399, 16
      %v1530 = vrot.slane %v1528, 5
      %v1531 = vsel %vm237, %v1526, %v1530
      %v1533 = vshrl.u32 %v1400, 16
      %v1535 = vrot.slane %v1533, 4
      %v1536 = vshll.u32 %v1400, 16
      %v1538 = vrot.slane %v1536, 5
      %v1539 = vor.u32 %v1535, %v1538
      %v1540 = vrot.slane %v1539, 4
      %v1542 = vshll.u32 %v1401, 16
      %v1544 = vrot.slane %v1542, 5
      %v1545 = vsel %vm237, %v1540, %v1544
      %v1546 = vshrl.u32 %v1401, 16
      %v1548 = vrot.slane %v1546, 4
      %v1549 = vor.u32 %v1548, %v1544
      %v1550 = vrot.slane %v1549, 4
      %v1552 = vshll.u32 %v1402, 16
      %v1554 = vrot.slane %v1552, 5
      %v1555 = vsel %vm237, %v1550, %v1554
      %v1557 = vshrl.u32 %v1403, 16
      %v1559 = vrot.slane %v1557, 4
      %v1560 = vshll.u32 %v1403, 16
      %v1562 = vrot.slane %v1560, 5
      %v1563 = vor.u32 %v1559, %v1562
      %v1564 = vrot.slane %v1563, 4
      %v1566 = vshll.u32 %v1404, 16
      %v1568 = vrot.slane %v1566, 5
      %v1569 = vsel %vm237, %v1564, %v1568
      %v1570 = vshrl.u32 %v1404, 16
      %v1572 = vrot.slane %v1570, 4
      %v1573 = vor.u32 %v1572, %v1568
      %v1574 = vrot.slane %v1573, 4
      %v1576 = vshll.u32 %v1405, 16
      %v1578 = vrot.slane %v1576, 5
      %v1579 = vsel %vm237, %v1574, %v1578
      %v1581 = vshrl.u32 %v1406, 16
      %v1583 = vrot.slane %v1581, 4
      %v1584 = vshll.u32 %v1406, 16
      %v1586 = vrot.slane %v1584, 5
      %v1587 = vor.u32 %v1583, %v1586
      %v1588 = vrot.slane %v1587, 4
      %v1590 = vshll.u32 %v1407, 16
      %v1592 = vrot.slane %v1590, 5
      %v1593 = vsel %vm237, %v1588, %v1592
      %v1594 = vshrl.u32 %v1407, 16
      %v1596 = vrot.slane %v1594, 4
      %v1597 = vor.u32 %v1596, %v1592
      %v1598 = vrot.slane %v1597, 4
      %v1600 = vshll.u32 %v1408, 16
      %v1602 = vrot.slane %v1600, 5
      %v1603 = vsel %vm237, %v1598, %v1602
      %v1605 = vshrl.u32 %v1409, 16
      %v1607 = vrot.slane %v1605, 4
      %v1608 = vshll.u32 %v1409, 16
      %v1610 = vrot.slane %v1608, 5
      %v1611 = vor.u32 %v1607, %v1610
      %v1612 = vrot.slane %v1611, 4
      %v1614 = vshll.u32 %v1410, 16
      %v1616 = vrot.slane %v1614, 5
      %v1617 = vsel %vm237, %v1612, %v1616
      %v1618 = vshrl.u32 %v1410, 16
      %v1620 = vrot.slane %v1618, 4
      %v1621 = vor.u32 %v1620, %v1616
      %v1622 = vrot.slane %v1621, 4
      %v1624 = vshll.u32 %v1411, 16
      %v1626 = vrot.slane %v1624, 5
      %v1627 = vsel %vm237, %v1622, %v1626
      %v1629 = vshrl.u32 %v1412, 16
      %v1631 = vrot.slane %v1629, 4
      %v1632 = vshll.u32 %v1412, 16
      %v1634 = vrot.slane %v1632, 5
      %v1635 = vor.u32 %v1631, %v1634
      %v1636 = vrot.slane %v1635, 4
      %v1638 = vshll.u32 %v1413, 16
      %v1640 = vrot.slane %v1638, 5
      %v1641 = vsel %vm237, %v1636, %v1640
      %v1642 = vshrl.u32 %v1413, 16
      %v1644 = vrot.slane %v1642, 4
      %v1645 = vor.u32 %v1644, %v1640
      %v1646 = vrot.slane %v1645, 4
      %v1648 = vshll.u32 %v1414, 16
      %v1650 = vrot.slane %v1648, 5
      %v1651 = vsel %vm237, %v1646, %v1650
      %v1653 = vshrl.u32 %v1415, 16
      %v1655 = vrot.slane %v1653, 4
      %v1656 = vshll.u32 %v1415, 16
      %v1658 = vrot.slane %v1656, 5
      %v1659 = vor.u32 %v1655, %v1658
      %v1660 = vrot.slane %v1659, 4
      %v1662 = vshll.u32 %v1416, 16
      %v1664 = vrot.slane %v1662, 5
      %v1665 = vsel %vm237, %v1660, %v1664
      %v1666 = vshrl.u32 %v1416, 16
      %v1668 = vrot.slane %v1666, 4
      %v1669 = vor.u32 %v1668, %v1664
      %v1670 = vrot.slane %v1669, 4
      %v1672 = vshll.u32 %v1417, 16
      %v1674 = vrot.slane %v1672, 5
      %v1675 = vsel %vm237, %v1670, %v1674
      %v1677 = vshrl.u32 %v1418, 16
      %v1679 = vrot.slane %v1677, 4
      %v1680 = vshll.u32 %v1418, 16
      %v1682 = vrot.slane %v1680, 5
      %v1683 = vor.u32 %v1679, %v1682
      %v1684 = vrot.slane %v1683, 4
      %v1686 = vshll.u32 %v1419, 16
      %v1688 = vrot.slane %v1686, 5
      %v1689 = vsel %vm237, %v1684, %v1688
      %v1690 = vshrl.u32 %v1419, 16
      %v1692 = vrot.slane %v1690, 4
      %v1693 = vor.u32 %v1692, %v1688
      %v1694 = vrot.slane %v1693, 4
      %v1696 = vshll.u32 %v1420, 16
      %v1698 = vrot.slane %v1696, 5
      %v1699 = vsel %vm237, %v1694, %v1698
      %v1701 = vshrl.u32 %v1421, 16
      %v1703 = vrot.slane %v1701, 4
      %v1704 = vshll.u32 %v1421, 16
      %v1706 = vrot.slane %v1704, 5
      %v1707 = vor.u32 %v1703, %v1706
      %v1708 = vrot.slane %v1707, 4
      %v1710 = vshll.u32 %v1422, 16
      %v1712 = vrot.slane %v1710, 5
      %v1713 = vsel %vm237, %v1708, %v1712
      %v1714 = vshrl.u32 %v1422, 16
      %v1716 = vrot.slane %v1714, 4
      %v1717 = vor.u32 %v1716, %v1712
      %v1718 = vrot.slane %v1717, 4
      %v1720 = vshll.u32 %v1423, 16
      %v1722 = vrot.slane %v1720, 5
      %v1723 = vsel %vm237, %v1718, %v1722
      %v1725 = vshrl.u32 %v1424, 16
      %v1727 = vrot.slane %v1725, 4
      %v1728 = vshll.u32 %v1424, 16
      %v1730 = vrot.slane %v1728, 5
      %v1731 = vor.u32 %v1727, %v1730
      %v1732 = vrot.slane %v1731, 4
      %v1734 = vshll.u32 %v1425, 16
      %v1736 = vrot.slane %v1734, 5
      %v1737 = vsel %vm237, %v1732, %v1736
      %v1738 = vshrl.u32 %v1425, 16
      %v1740 = vrot.slane %v1738, 4
      %v1741 = vor.u32 %v1740, %v1736
      %v1742 = vrot.slane %v1741, 4
      %v1744 = vshll.u32 %v1426, 16
      %v1746 = vrot.slane %v1744, 5
      %v1747 = vsel %vm237, %v1742, %v1746
      %v1749 = vshrl.u32 %v1427, 16
      %v1751 = vrot.slane %v1749, 4
      %v1752 = vshll.u32 %v1427, 16
      %v1754 = vrot.slane %v1752, 5
      %v1755 = vor.u32 %v1751, %v1754
      %v1756 = vrot.slane %v1755, 4
      %v1758 = vshll.u32 %v1428, 16
      %v1760 = vrot.slane %v1758, 5
      %v1761 = vsel %vm237, %v1756, %v1760
      %v1762 = vshrl.u32 %v1428, 16
      %v1764 = vrot.slane %v1762, 4
      %v1765 = vor.u32 %v1764, %v1760
      %v1766 = vrot.slane %v1765, 4
      %v1768 = vshll.u32 %v1429, 16
      %v1770 = vrot.slane %v1768, 5
      %v1771 = vsel %vm237, %v1766, %v1770
      %v1773 = vshrl.u32 %v1430, 16
      %v1775 = vrot.slane %v1773, 4
      %v1776 = vshll.u32 %v1430, 16
      %v1778 = vrot.slane %v1776, 5
      %v1779 = vor.u32 %v1775, %v1778
      %v1780 = vrot.slane %v1779, 4
      %v1782 = vshll.u32 %v1431, 16
      %v1784 = vrot.slane %v1782, 5
      %v1785 = vsel %vm237, %v1780, %v1784
      %v1786 = vshrl.u32 %v1431, 16
      %v1788 = vrot.slane %v1786, 4
      %v1789 = vor.u32 %v1788, %v1784
      %v1790 = vrot.slane %v1789, 4
      %v1792 = vshll.u32 %v1432, 16
      %v1794 = vrot.slane %v1792, 5
      %v1795 = vsel %vm237, %v1790, %v1794
      %v1797 = vshrl.u32 %v1433, 16
      %v1799 = vrot.slane %v1797, 4
      %v1800 = vshll.u32 %v1433, 16
      %v1802 = vrot.slane %v1800, 5
      %v1803 = vor.u32 %v1799, %v1802
      %v1804 = vrot.slane %v1803, 4
      %v1806 = vshll.u32 %v1434, 16
      %v1808 = vrot.slane %v1806, 5
      %v1809 = vsel %vm237, %v1804, %v1808
      %v1810 = vshrl.u32 %v1434, 16
      %v1812 = vrot.slane %v1810, 4
      %v1813 = vor.u32 %v1812, %v1808
      %v1814 = vrot.slane %v1813, 4
      %v1816 = vshll.u32 %v1435, 16
      %v1818 = vrot.slane %v1816, 5
      %v1819 = vsel %vm237, %v1814, %v1818
      %s1820 = scalar_lea.vmem %s1, 192
      %v1821 = vld [vmem:[%s1820] sm:$0xf]
      %v1822 = vld [vmem:[%s1820 + $0x4] sm:$0xf]
      %v1823 = vld [vmem:[%s1820 + $0x8] sm:$0xf]
      %v1824 = vld [vmem:[%s1820 + $0xc] sm:$0xf]
      %v1825 = vld [vmem:[%s1820 + $0x10] sm:$0xf]
      %v1826 = vld [vmem:[%s1820 + $0x14] sm:$0xf]
      %v1827 = vld [vmem:[%s1820 + $0x18] sm:$0xf]
      %v1828 = vld [vmem:[%s1820 + $0x1c] sm:$0xf]
      %v1829 = vld [vmem:[%s1820 + $0x20] sm:$0xf]
      %v1830 = vld [vmem:[%s1820 + $0x24] sm:$0xf]
      %v1831 = vld [vmem:[%s1820 + $0x28] sm:$0xf]
      %v1832 = vld [vmem:[%s1820 + $0x2c] sm:$0xf]
      %v1833 = vld [vmem:[%s1820 + $0x30] sm:$0xf]
      %v1834 = vld [vmem:[%s1820 + $0x34] sm:$0xf]
      %v1835 = vld [vmem:[%s1820 + $0x38] sm:$0xf]
      %v1836 = vld [vmem:[%s1820 + $0x3c] sm:$0xf]
      %v1837 = vunpack.c.l.b16 %v1449
      %v1838 = vunpack.c.l.b16 %v1459
      %v1839 = vunpack.c.l.b16 %v1473
      %v1840 = vunpack.c.l.b16 %v1483
      %v1841 = vunpack.c.l.b16 %v1497
      %v1842 = vunpack.c.l.b16 %v1507
      %v1843 = vunpack.c.l.b16 %v1521
      %v1844 = vunpack.c.l.b16 %v1531
      %v1845 = vunpack.c.l.b16 %v1545
      %v1846 = vunpack.c.l.b16 %v1555
      %v1847 = vunpack.c.l.b16 %v1569
      %v1848 = vunpack.c.l.b16 %v1579
      %v1849 = vunpack.c.l.b16 %v1593
      %v1850 = vunpack.c.l.b16 %v1603
      %v1851 = vunpack.c.l.b16 %v1617
      %v1852 = vunpack.c.l.b16 %v1627
      %v1853 = vunpack.c.l.b16 %v1641
      %v1854 = vunpack.c.l.b16 %v1651
      %v1855 = vunpack.c.l.b16 %v1665
      %v1856 = vunpack.c.l.b16 %v1675
      %v1857 = vunpack.c.l.b16 %v1689
      %v1858 = vunpack.c.l.b16 %v1699
      %v1859 = vunpack.c.l.b16 %v1713
      %v1860 = vunpack.c.l.b16 %v1723
      %v1861 = vunpack.c.l.b16 %v1737
      %v1862 = vunpack.c.l.b16 %v1747
      %v1863 = vunpack.c.l.b16 %v1761
      %v1864 = vunpack.c.l.b16 %v1771
      %v1865 = vunpack.c.l.b16 %v1785
      %v1866 = vunpack.c.l.b16 %v1795
      %v1867 = vunpack.c.l.b16 %v1809
      %v1868 = vunpack.c.l.b16 %v1819
      %v1869 = vpack.c.b16 %v1838, %v1837
      %v1870 = vpack.c.b16 %v1840, %v1839
      %v1871 = vpack.c.b16 %v1842, %v1841
      %v1872 = vpack.c.b16 %v1844, %v1843
      %v1873 = vpack.c.b16 %v1846, %v1845
      %v1874 = vpack.c.b16 %v1848, %v1847
      %v1875 = vpack.c.b16 %v1850, %v1849
      %v1876 = vpack.c.b16 %v1852, %v1851
      %v1877 = vpack.c.b16 %v1854, %v1853
      %v1878 = vpack.c.b16 %v1856, %v1855
      %v1879 = vpack.c.b16 %v1858, %v1857
      %v1880 = vpack.c.b16 %v1860, %v1859
      %v1881 = vpack.c.b16 %v1862, %v1861
      %v1882 = vpack.c.b16 %v1864, %v1863
      %v1883 = vpack.c.b16 %v1866, %v1865
      %v1884 = vpack.c.b16 %v1868, %v1867
      %v1917 = vunpack.c.l.b16 %v1821
      %v1918 = vunpack.c.l.b16 %v1822
      %v1919 = vunpack.c.l.b16 %v1823
      %v1920 = vunpack.c.l.b16 %v1824
      %v1921 = vunpack.c.l.b16 %v1825
      %v1922 = vunpack.c.l.b16 %v1826
      %v1923 = vunpack.c.l.b16 %v1827
      %v1924 = vunpack.c.l.b16 %v1828
      %v1925 = vunpack.c.l.b16 %v1829
      %v1926 = vunpack.c.l.b16 %v1830
      %v1927 = vunpack.c.l.b16 %v1831
      %v1928 = vunpack.c.l.b16 %v1832
      %v1929 = vunpack.c.l.b16 %v1833
      %v1930 = vunpack.c.l.b16 %v1834
      %v1931 = vunpack.c.l.b16 %v1835
      %v1932 = vunpack.c.l.b16 %v1836
      %v1933 = vpack.c.b16 %v1918, %v1917
      %v1934 = vpack.c.b16 %v1920, %v1919
      %v1935 = vpack.c.b16 %v1922, %v1921
      %v1936 = vpack.c.b16 %v1924, %v1923
      %v1937 = vpack.c.b16 %v1926, %v1925
      %v1938 = vpack.c.b16 %v1928, %v1927
      %v1939 = vpack.c.b16 %v1930, %v1929
      %v1940 = vpack.c.b16 %v1932, %v1931
      %1949 = vmatpush.bf16.msra.mxu0 %v1940
      %1950 = vmatpush.bf16.msra.mxu0 %v1939
      %1951 = vmatpush.bf16.msra.mxu0 %v1938
      %1952 = vmatpush.bf16.msra.mxu0 %v1937
      %1953 = vmatpush.bf16.msra.mxu0 %v1936
      %1954 = vmatpush.bf16.msra.mxu0 %v1935
      %1955 = vmatpush.bf16.msra.mxu0 %v1934
      %1956 = vmatpush.bf16.msra.mxu0 %v1933
      %1957 = vmatmul.bf16.gmra.mxu0 %v1869
      %v1958 = vpop.f32.mrf.mxu0
      %v1959 = vadd.f32 0.0, %v1958
      %v1960 = vpop.f32.mrf.mxu0
      %v1961 = vadd.f32 0.0, %v1960
      %1962 = vmatmul.bf16.gmra.mxu0 %v1870
      %v1963 = vpop.f32.mrf.mxu0
      %v1964 = vadd.f32 0.0, %v1963
      %v1965 = vpop.f32.mrf.mxu0
      %v1966 = vadd.f32 0.0, %v1965
      %1967 = vmatmul.bf16.gmra.mxu0 %v1871
      %v1968 = vpop.f32.mrf.mxu0
      %v1969 = vadd.f32 0.0, %v1968
      %v1970 = vpop.f32.mrf.mxu0
      %v1971 = vadd.f32 0.0, %v1970
      %1972 = vmatmul.bf16.gmra.mxu0 %v1872
      %v1973 = vpop.f32.mrf.mxu0
      %v1974 = vadd.f32 0.0, %v1973
      %v1975 = vpop.f32.mrf.mxu0
      %v1976 = vadd.f32 0.0, %v1975
      %1977 = vmatmul.bf16.gmra.mxu0 %v1873
      %v1978 = vpop.f32.mrf.mxu0
      %v1979 = vadd.f32 0.0, %v1978
      %v1980 = vpop.f32.mrf.mxu0
      %v1981 = vadd.f32 0.0, %v1980
      %1982 = vmatmul.bf16.gmra.mxu0 %v1874
      %v1983 = vpop.f32.mrf.mxu0
      %v1984 = vadd.f32 0.0, %v1983
      %v1985 = vpop.f32.mrf.mxu0
      %v1986 = vadd.f32 0.0, %v1985
      %1987 = vmatmul.bf16.gmra.mxu0 %v1875
      %v1988 = vpop.f32.mrf.mxu0
      %v1989 = vadd.f32 0.0, %v1988
      %v1990 = vpop.f32.mrf.mxu0
      %v1991 = vadd.f32 0.0, %v1990
      %1992 = vmatmul.bf16.gmra.mxu0 %v1876
      %v1993 = vpop.f32.mrf.mxu0
      %v1994 = vadd.f32 0.0, %v1993
      %v1995 = vpop.f32.mrf.mxu0
      %v1996 = vadd.f32 0.0, %v1995
      %1997 = vmatmul.bf16.gmra.mxu0 %v1877
      %v1998 = vpop.f32.mrf.mxu0
      %v1999 = vadd.f32 0.0, %v1998
      %v2000 = vpop.f32.mrf.mxu0
      %v2001 = vadd.f32 0.0, %v2000
      %2002 = vmatmul.bf16.gmra.mxu0 %v1878
      %v2003 = vpop.f32.mrf.mxu0
      %v2004 = vadd.f32 0.0, %v2003
      %v2005 = vpop.f32.mrf.mxu0
      %v2006 = vadd.f32 0.0, %v2005
      %2007 = vmatmul.bf16.gmra.mxu0 %v1879
      %v2008 = vpop.f32.mrf.mxu0
      %v2009 = vadd.f32 0.0, %v2008
      %v2010 = vpop.f32.mrf.mxu0
      %v2011 = vadd.f32 0.0, %v2010
      %2012 = vmatmul.bf16.gmra.mxu0 %v1880
      %v2013 = vpop.f32.mrf.mxu0
      %v2014 = vadd.f32 0.0, %v2013
      %v2015 = vpop.f32.mrf.mxu0
      %v2016 = vadd.f32 0.0, %v2015
      %2017 = vmatmul.bf16.gmra.mxu0 %v1881
      %v2018 = vpop.f32.mrf.mxu0
      %v2019 = vadd.f32 0.0, %v2018
      %v2020 = vpop.f32.mrf.mxu0
      %v2021 = vadd.f32 0.0, %v2020
      %2022 = vmatmul.bf16.gmra.mxu0 %v1882
      %v2023 = vpop.f32.mrf.mxu0
      %v2024 = vadd.f32 0.0, %v2023
      %v2025 = vpop.f32.mrf.mxu0
      %v2026 = vadd.f32 0.0, %v2025
      %2027 = vmatmul.bf16.gmra.mxu0 %v1883
      %v2028 = vpop.f32.mrf.mxu0
      %v2029 = vadd.f32 0.0, %v2028
      %v2030 = vpop.f32.mrf.mxu0
      %v2031 = vadd.f32 0.0, %v2030
      %2032 = vmatmul.bf16.gmra.mxu0 %v1884
      %v2033 = vpop.f32.mrf.mxu0
      %v2034 = vadd.f32 0.0, %v2033
      %v2035 = vpop.f32.mrf.mxu0
      %v2036 = vadd.f32 0.0, %v2035
      %2037 = vdwg.mxu0
      %v2038 = vadd.f32 %v1356, %v1959
      %v2039 = vadd.f32 %v1357, %v1961
      %v2040 = vadd.f32 %v1358, %v1964
      %v2041 = vadd.f32 %v1359, %v1966
      %v2042 = vadd.f32 %v1360, %v1969
      %v2043 = vadd.f32 %v1361, %v1971
      %v2044 = vadd.f32 %v1362, %v1974
      %v2045 = vadd.f32 %v1363, %v1976
      %v2046 = vadd.f32 %v1364, %v1979
      %v2047 = vadd.f32 %v1365, %v1981
      %v2048 = vadd.f32 %v1366, %v1984
      %v2049 = vadd.f32 %v1367, %v1986
      %v2050 = vadd.f32 %v1368, %v1989
      %v2051 = vadd.f32 %v1369, %v1991
      %v2052 = vadd.f32 %v1370, %v1994
      %v2053 = vadd.f32 %v1371, %v1996
      %v2054 = vadd.f32 %v1372, %v1999
      %v2055 = vadd.f32 %v1373, %v2001
      %v2056 = vadd.f32 %v1374, %v2004
      %v2057 = vadd.f32 %v1375, %v2006
      %v2058 = vadd.f32 %v1376, %v2009
      %v2059 = vadd.f32 %v1377, %v2011
      %v2060 = vadd.f32 %v1378, %v2014
      %v2061 = vadd.f32 %v1379, %v2016
      %v2062 = vadd.f32 %v1380, %v2019
      %v2063 = vadd.f32 %v1381, %v2021
      %v2064 = vadd.f32 %v1382, %v2024
      %v2065 = vadd.f32 %v1383, %v2026
      %v2066 = vadd.f32 %v1384, %v2029
      %v2067 = vadd.f32 %v1385, %v2031
      %v2068 = vadd.f32 %v1386, %v2034
      %v2069 = vadd.f32 %v1387, %v2036
      %v2070 = vld [vmem:[%s2] sm:$0x1]
      %v2072 = vperm.slane %v2070, 0
      %v2074 = vadd.f32 %v2038, %v2072
      %v2075 = vadd.f32 %v2039, %v2072
      %v2076 = vadd.f32 %v2040, %v2072
      %v2077 = vadd.f32 %v2041, %v2072
      %v2078 = vadd.f32 %v2042, %v2072
      %v2079 = vadd.f32 %v2043, %v2072
      %v2080 = vadd.f32 %v2044, %v2072
      %v2081 = vadd.f32 %v2045, %v2072
      %v2082 = vadd.f32 %v2046, %v2072
      %v2083 = vadd.f32 %v2047, %v2072
      %v2084 = vadd.f32 %v2048, %v2072
      %v2085 = vadd.f32 %v2049, %v2072
      %v2086 = vadd.f32 %v2050, %v2072
      %v2087 = vadd.f32 %v2051, %v2072
      %v2088 = vadd.f32 %v2052, %v2072
      %v2089 = vadd.f32 %v2053, %v2072
      %v2090 = vadd.f32 %v2054, %v2072
      %v2091 = vadd.f32 %v2055, %v2072
      %v2092 = vadd.f32 %v2056, %v2072
      %v2093 = vadd.f32 %v2057, %v2072
      %v2094 = vadd.f32 %v2058, %v2072
      %v2095 = vadd.f32 %v2059, %v2072
      %v2096 = vadd.f32 %v2060, %v2072
      %v2097 = vadd.f32 %v2061, %v2072
      %v2098 = vadd.f32 %v2062, %v2072
      %v2099 = vadd.f32 %v2063, %v2072
      %v2100 = vadd.f32 %v2064, %v2072
      %v2101 = vadd.f32 %v2065, %v2072
      %v2102 = vadd.f32 %v2066, %v2072
      %v2103 = vadd.f32 %v2067, %v2072
      %v2104 = vadd.f32 %v2068, %v2072
      %v2105 = vadd.f32 %v2069, %v2072
      %v2106 = vmax.f32 %v2074, 0.0
      %v2107 = vmax.f32 %v2075, 0.0
      %v2108 = vmax.f32 %v2076, 0.0
      %v2109 = vmax.f32 %v2077, 0.0
      %v2110 = vmax.f32 %v2078, 0.0
      %v2111 = vmax.f32 %v2079, 0.0
      %v2112 = vmax.f32 %v2080, 0.0
      %v2113 = vmax.f32 %v2081, 0.0
      %v2114 = vmax.f32 %v2082, 0.0
      %v2115 = vmax.f32 %v2083, 0.0
      %v2116 = vmax.f32 %v2084, 0.0
      %v2117 = vmax.f32 %v2085, 0.0
      %v2118 = vmax.f32 %v2086, 0.0
      %v2119 = vmax.f32 %v2087, 0.0
      %v2120 = vmax.f32 %v2088, 0.0
      %v2121 = vmax.f32 %v2089, 0.0
      %v2122 = vmax.f32 %v2090, 0.0
      %v2123 = vmax.f32 %v2091, 0.0
      %v2124 = vmax.f32 %v2092, 0.0
      %v2125 = vmax.f32 %v2093, 0.0
      %v2126 = vmax.f32 %v2094, 0.0
      %v2127 = vmax.f32 %v2095, 0.0
      %v2128 = vmax.f32 %v2096, 0.0
      %v2129 = vmax.f32 %v2097, 0.0
      %v2130 = vmax.f32 %v2098, 0.0
      %v2131 = vmax.f32 %v2099, 0.0
      %v2132 = vmax.f32 %v2100, 0.0
      %v2133 = vmax.f32 %v2101, 0.0
      %v2134 = vmax.f32 %v2102, 0.0
      %v2135 = vmax.f32 %v2103, 0.0
      %v2136 = vmax.f32 %v2104, 0.0
      %v2137 = vmax.f32 %v2105, 0.0
      %v2138 = vpack.c.bf16 %v2106, %v2106
      %v2139 = vpack.c.bf16 %v2107, %v2107
      %v2140 = vpack.c.bf16 %v2108, %v2108
      %v2141 = vpack.c.bf16 %v2109, %v2109
      %v2142 = vpack.c.bf16 %v2110, %v2110
      %v2143 = vpack.c.bf16 %v2111, %v2111
      %v2144 = vpack.c.bf16 %v2112, %v2112
      %v2145 = vpack.c.bf16 %v2113, %v2113
      %v2146 = vpack.c.bf16 %v2114, %v2114
      %v2147 = vpack.c.bf16 %v2115, %v2115
      %v2148 = vpack.c.bf16 %v2116, %v2116
      %v2149 = vpack.c.bf16 %v2117, %v2117
      %v2150 = vpack.c.bf16 %v2118, %v2118
      %v2151 = vpack.c.bf16 %v2119, %v2119
      %v2152 = vpack.c.bf16 %v2120, %v2120
      %v2153 = vpack.c.bf16 %v2121, %v2121
      %v2154 = vpack.c.bf16 %v2122, %v2122
      %v2155 = vpack.c.bf16 %v2123, %v2123
      %v2156 = vpack.c.bf16 %v2124, %v2124
      %v2157 = vpack.c.bf16 %v2125, %v2125
      %v2158 = vpack.c.bf16 %v2126, %v2126
      %v2159 = vpack.c.bf16 %v2127, %v2127
      %v2160 = vpack.c.bf16 %v2128, %v2128
      %v2161 = vpack.c.bf16 %v2129, %v2129
      %v2162 = vpack.c.bf16 %v2130, %v2130
      %v2163 = vpack.c.bf16 %v2131, %v2131
      %v2164 = vpack.c.bf16 %v2132, %v2132
      %v2165 = vpack.c.bf16 %v2133, %v2133
      %v2166 = vpack.c.bf16 %v2134, %v2134
      %v2167 = vpack.c.bf16 %v2135, %v2135
      %v2168 = vpack.c.bf16 %v2136, %v2136
      %v2169 = vpack.c.bf16 %v2137, %v2137
      %2170 = vst [vmem:[%s170] sm:$0xf] %v2138
      %2171 = vst [vmem:[%s170 + $0x4] sm:$0xf] %v2139
      %2172 = vst [vmem:[%s170 + $0x8] sm:$0xf] %v2140
      %2173 = vst [vmem:[%s170 + $0xc] sm:$0xf] %v2141
      %2174 = vst [vmem:[%s170 + $0x10] sm:$0xf] %v2142
      %2175 = vst [vmem:[%s170 + $0x14] sm:$0xf] %v2143
      %2176 = vst [vmem:[%s170 + $0x18] sm:$0xf] %v2144
      %2177 = vst [vmem:[%s170 + $0x1c] sm:$0xf] %v2145
      %2178 = vst [vmem:[%s170 + $0x20] sm:$0xf] %v2146
      %2179 = vst [vmem:[%s170 + $0x24] sm:$0xf] %v2147
      %2180 = vst [vmem:[%s170 + $0x28] sm:$0xf] %v2148
      %2181 = vst [vmem:[%s170 + $0x2c] sm:$0xf] %v2149
      %2182 = vst [vmem:[%s170 + $0x30] sm:$0xf] %v2150
      %2183 = vst [vmem:[%s170 + $0x34] sm:$0xf] %v2151
      %2184 = vst [vmem:[%s170 + $0x38] sm:$0xf] %v2152
      %2185 = vst [vmem:[%s170 + $0x3c] sm:$0xf] %v2153
      %2186 = vst [vmem:[%s170 + $0x40] sm:$0xf] %v2154
      %2187 = vst [vmem:[%s170 + $0x44] sm:$0xf] %v2155
      %2188 = vst [vmem:[%s170 + $0x48] sm:$0xf] %v2156
      %2189 = vst [vmem:[%s170 + $0x4c] sm:$0xf] %v2157
      %2190 = vst [vmem:[%s170 + $0x50] sm:$0xf] %v2158
      %2191 = vst [vmem:[%s170 + $0x54] sm:$0xf] %v2159
      %2192 = vst [vmem:[%s170 + $0x58] sm:$0xf] %v2160
      %2193 = vst [vmem:[%s170 + $0x5c] sm:$0xf] %v2161
      %2194 = vst [vmem:[%s170 + $0x60] sm:$0xf] %v2162
      %2195 = vst [vmem:[%s170 + $0x64] sm:$0xf] %v2163
      %2196 = vst [vmem:[%s170 + $0x68] sm:$0xf] %v2164
      %2197 = vst [vmem:[%s170 + $0x6c] sm:$0xf] %v2165
      %2198 = vst [vmem:[%s170 + $0x70] sm:$0xf] %v2166
      %2199 = vst [vmem:[%s170 + $0x74] sm:$0xf] %v2167
      %2200 = vst [vmem:[%s170 + $0x78] sm:$0xf] %v2168
      %2201 = vst [vmem:[%s170 + $0x7c] sm:$0xf] %v2169
      %p2202 = scmp.lt.s32.totalorder %s14, 1
      %s2203 = scalar_select %p2202, %s14, 1
      %s2204 = smul.addr %s2203, 32
      %s2205 = smul.addr %s2204, 4
      %s2206 = scalar_lea.vmem %s3, %s2205
      // Predicated region
      $region33: #{ssd_detector_forward.3} parent=31 // pred_check
        %p2207 = pneg %p100
      $region34: #{ssd_detector_forward.3} parent=31 // pred_check_branch
        %2209 = sbr.rel (%p2207) target = $region36
      $region35: #{ssd_detector_forward.3} parent=31 // pred_region
        _
      $region36: #{ssd_detector_forward.3} parent=31 // pred_fallthru
        _
    $region32: #{ssd_detector_forward.3} parent=5 // pred_fallthru
      _
    %p2210 = scmp.le.s32.totalorder 2, %s9
    // Predicated region
    $region37: #{ssd_detector_forward.3} parent=5 // pred_check
      %p2211 = pneg %p2210
    $region38: #{ssd_detector_forward.3} parent=5 // pred_check_branch
      %2213 = sbr.rel (%p2211) target = $region40
    $region39: #{ssd_detector_forward.3} parent=5 // pred_region
      %s2214 = ssub.s32 %s9, 2
      // Predicated region
      $region41: #{ssd_detector_forward.3} parent=39 // pred_check
        %p2215 = pneg %p106
      $region42: #{ssd_detector_forward.3} parent=39 // pred_check_branch
        %2217 = sbr.rel (%p2215) target = $region44
      $region43: #{ssd_detector_forward.3} parent=39 // pred_region
        %p2218 = scmp.lt.s32.totalorder %s15, 1
        %s2219 = scalar_select %p2218, %s15, 1
        %s2220 = smul.addr %s2219, 32
        %s2221 = smul.addr %s2220, 4
        %s2222 = scalar_lea.vmem %s3, %s2221
      $region44: #{ssd_detector_forward.3} parent=39 // pred_fallthru
        _
    $region40: #{ssd_detector_forward.3} parent=5 // pred_fallthru
      _
  $region6: #{ssd_detector_forward.3} parent=0 // loop_footer
    %s13 = sadd.s32 1, %s9
  $region7: #{ssd_detector_forward.3} parent=0 // loop_footer_branch
    %8 = sbr.rel target = $region3
  $region8: #{ssd_detector_forward.3} parent=0 // loop_exit
    _

// kernel: ssd_detector_forward.4
$region0: #{ssd_detector_forward.4}
  #allocation0 [shape = 'u32[]', space=smem, size = 0x4, offset = 0x4, fixed_abs, tag = 'smem constant byte address 0x4 - core index']
  #allocation1 [shape = 'u32[72,128]{1,0:T(1,128)}', space=vmem, size = 0x9000, scoped, tag = 'internal scratch']
  #allocation2 [shape = 'f32[10,10,128]{2,1,0:T(8,128)}', space=vmem, size = 0x14000, scoped, tag = 'scratch operand']
  %s0 = inlined_call_operand.vmem [shape: bf16[2,9,9,512], index: 0, kind: input, shape index: {}]
  %s1 = inlined_call_operand.vmem [shape: bf16[4,512,128], index: 1, kind: input, shape index: {}]
  %s2 = inlined_call_operand.vmem [shape: f32[1,128], index: 2, kind: input, shape index: {}]
  %s3 = inlined_call_operand.vmem [shape: f32[18,128], index: 3, kind: input, shape index: {}]
  %s4 = inlined_call_operand.vmem [shape: f32[2,128], index: 4, kind: input, shape index: {}]
  %s5 = inlined_call_operand.vmem [shape: bf16[2,128,128], index: 5, kind: input, shape index: {}]
  %s6 = inlined_call_operand.vmem [shape: f32[1,128], index: 6, kind: input, shape index: {}]
  %s7 = inlined_call_operand.vmem [shape: bf16[2,8,8,128], index: 7, kind: output, shape index: {0}]
  %s8 = inlined_call_operand.vmem [shape: f32[2,64,128], index: 8, kind: output, shape index: {1}]
  %9 = xla_tuple %s7, %s8
  %s10 = sld [smem:[#allocation0]]
  $region69: #{ssd_detector_forward.4} parent=0
    _
  %s12 = ssub.s32 1, %s10
  %s13 = scalar_select 0, %s12, %s10
  loop: start=0, step=1, limit=4
  $region2: #{ssd_detector_forward.4} parent=0 // loop_pre_header
    _
  $region3: #{ssd_detector_forward.4} parent=0 // loop_header
    %s15 = sphi 0, %s19
    %p16 = scmp.ge.s32.totalorder %s15, 4
    %s25 = sphi 0, %s27
    %s28 = sphi 0, %s25
    %s29 = sphi 0, %s28
    %s45 = sphi 0, %s29
    %s49 = sphi 0, %s49
    %s51 = sphi 0, %s49
    %s52 = sphi 0, %s51
    %s66 = sphi 0, %s52
    %s70 = sphi 0, %s70
    %s72 = sphi 0, %s70
    %s73 = sphi 0, %s72
    %s87 = sphi 0, %s73
    %s91 = sphi 0, %s91
    %s93 = sphi 0, %s91
    %s94 = sphi 0, %s93
    %s108 = sphi 0, %s94
    %s112 = sphi 0, %s112
    %s114 = sphi 0, %s112
    %s115 = sphi 0, %s114
    %s129 = sphi 0, %s115
    %s133 = sphi 0, %s133
    %s135 = sphi 0, %s133
    %s136 = sphi 0, %s135
    %s150 = sphi 0, %s136
    %s154 = sphi 0, %s154
    %s156 = sphi 0, %s154
    %s157 = sphi 0, %s156
    %s171 = sphi 0, %s157
    %s177 = sphi 0, %s179
    %s180 = sphi 0, %s177
    %s181 = sphi 0, %s180
    %s197 = sphi 0, %s181
    %s203 = sphi 0, %s205
    %s206 = sphi 0, %s203
    %s207 = sphi 0, %s206
    %s223 = sphi 0, %s207
  $region4: #{ssd_detector_forward.4} parent=0 // loop_header_branch
    %18 = sbr.rel (%p16) target = $region8
  $region5: #{ssd_detector_forward.4} parent=0 // loop_body
    %s20 = ssub.s32 %s15, 1
    %s21 = ssub.s32 %s15, 2
    %s22 = sadd.s32 %s15, 1
    %s23 = ssub.s32 %s15, %s22
    %p24 = scmp.eq.s32.totalorder %s23, 0
    %s26 = sadd.s32 %s25, 1
    %s27 = scalar_select %p24, %s25, %s26
    %p30 = pneg %p24
    %p31 = scmp.eq.s32.totalorder %s15, 1
    %p32 = por %p30, %p31
    %p33 = scmp.ne.s32.totalorder %s25, %s28
    %p34 = scmp.eq.s32.totalorder %s15, 0
    %p35 = por %p33, %p34
    %p36 = scmp.ne.s32.totalorder %s25, %s28
    %p37 = scmp.eq.s32.totalorder %s20, 1
    %p38 = por %p36, %p37
    %p39 = scmp.ne.s32.totalorder %s28, %s29
    %p40 = scmp.eq.s32.totalorder %s20, 0
    %p41 = por %p39, %p40
    %p42 = scmp.ne.s32.totalorder %s28, %s29
    %p43 = scmp.eq.s32.totalorder %s21, 1
    %p44 = por %p42, %p43
    %p46 = scmp.ne.s32.totalorder %s29, %s45
    %p47 = scmp.eq.s32.totalorder %s21, 0
    %p48 = por %p46, %p47
    %s50 = sadd.s32 %s49, 1
    %p53 = scmp.eq.s32.totalorder %s15, 1
    %p54 = scmp.ne.s32.totalorder %s49, %s51
    %p55 = scmp.eq.s32.totalorder %s15, 0
    %p56 = por %p54, %p55
    %p57 = scmp.ne.s32.totalorder %s49, %s51
    %p58 = scmp.eq.s32.totalorder %s20, 1
    %p59 = por %p57, %p58
    %p60 = scmp.ne.s32.totalorder %s51, %s52
    %p61 = scmp.eq.s32.totalorder %s20, 0
    %p62 = por %p60, %p61
    %p63 = scmp.ne.s32.totalorder %s51, %s52
    %p64 = scmp.eq.s32.totalorder %s21, 1
    %p65 = por %p63, %p64
    %p67 = scmp.ne.s32.totalorder %s52, %s66
    %p68 = scmp.eq.s32.totalorder %s21, 0
    %p69 = por %p67, %p68
    %s71 = sadd.s32 %s70, 1
    %p74 = scmp.eq.s32.totalorder %s15, 1
    %p75 = scmp.ne.s32.totalorder %s70, %s72
    %p76 = scmp.eq.s32.totalorder %s15, 0
    %p77 = por %p75, %p76
    %p78 = scmp.ne.s32.totalorder %s70, %s72
    %p79 = scmp.eq.s32.totalorder %s20, 1
    %p80 = por %p78, %p79
    %p81 = scmp.ne.s32.totalorder %s72, %s73
    %p82 = scmp.eq.s32.totalorder %s20, 0
    %p83 = por %p81, %p82
    %p84 = scmp.ne.s32.totalorder %s72, %s73
    %p85 = scmp.eq.s32.totalorder %s21, 1
    %p86 = por %p84, %p85
    %p88 = scmp.ne.s32.totalorder %s73, %s87
    %p89 = scmp.eq.s32.totalorder %s21, 0
    %p90 = por %p88, %p89
    %s92 = sadd.s32 %s91, 1
    %p95 = scmp.eq.s32.totalorder %s15, 1
    %p96 = scmp.ne.s32.totalorder %s91, %s93
    %p97 = scmp.eq.s32.totalorder %s15, 0
    %p98 = por %p96, %p97
    %p99 = scmp.ne.s32.totalorder %s91, %s93
    %p100 = scmp.eq.s32.totalorder %s20, 1
    %p101 = por %p99, %p100
    %p102 = scmp.ne.s32.totalorder %s93, %s94
    %p103 = scmp.eq.s32.totalorder %s20, 0
    %p104 = por %p102, %p103
    %p105 = scmp.ne.s32.totalorder %s93, %s94
    %p106 = scmp.eq.s32.totalorder %s21, 1
    %p107 = por %p105, %p106
    %p109 = scmp.ne.s32.totalorder %s94, %s108
    %p110 = scmp.eq.s32.totalorder %s21, 0
    %p111 = por %p109, %p110
    %s113 = sadd.s32 %s112, 1
    %p116 = scmp.eq.s32.totalorder %s15, 1
    %p117 = scmp.ne.s32.totalorder %s112, %s114
    %p118 = scmp.eq.s32.totalorder %s15, 0
    %p119 = por %p117, %p118
    %p120 = scmp.ne.s32.totalorder %s112, %s114
    %p121 = scmp.eq.s32.totalorder %s20, 1
    %p122 = por %p120, %p121
    %p123 = scmp.ne.s32.totalorder %s114, %s115
    %p124 = scmp.eq.s32.totalorder %s20, 0
    %p125 = por %p123, %p124
    %p126 = scmp.ne.s32.totalorder %s114, %s115
    %p127 = scmp.eq.s32.totalorder %s21, 1
    %p128 = por %p126, %p127
    %p130 = scmp.ne.s32.totalorder %s115, %s129
    %p131 = scmp.eq.s32.totalorder %s21, 0
    %p132 = por %p130, %p131
    %s134 = sadd.s32 %s133, 1
    %p137 = scmp.eq.s32.totalorder %s15, 1
    %p138 = scmp.ne.s32.totalorder %s133, %s135
    %p139 = scmp.eq.s32.totalorder %s15, 0
    %p140 = por %p138, %p139
    %p141 = scmp.ne.s32.totalorder %s133, %s135
    %p142 = scmp.eq.s32.totalorder %s20, 1
    %p143 = por %p141, %p142
    %p144 = scmp.ne.s32.totalorder %s135, %s136
    %p145 = scmp.eq.s32.totalorder %s20, 0
    %p146 = por %p144, %p145
    %p147 = scmp.ne.s32.totalorder %s135, %s136
    %p148 = scmp.eq.s32.totalorder %s21, 1
    %p149 = por %p147, %p148
    %p151 = scmp.ne.s32.totalorder %s136, %s150
    %p152 = scmp.eq.s32.totalorder %s21, 0
    %p153 = por %p151, %p152
    %s155 = sadd.s32 %s154, 1
    %p158 = scmp.eq.s32.totalorder %s15, 1
    %p159 = scmp.ne.s32.totalorder %s154, %s156
    %p160 = scmp.eq.s32.totalorder %s15, 0
    %p161 = por %p159, %p160
    %p162 = scmp.ne.s32.totalorder %s154, %s156
    %p163 = scmp.eq.s32.totalorder %s20, 1
    %p164 = por %p162, %p163
    %p165 = scmp.ne.s32.totalorder %s156, %s157
    %p166 = scmp.eq.s32.totalorder %s20, 0
    %p167 = por %p165, %p166
    %p168 = scmp.ne.s32.totalorder %s156, %s157
    %p169 = scmp.eq.s32.totalorder %s21, 1
    %p170 = por %p168, %p169
    %p172 = scmp.ne.s32.totalorder %s157, %s171
    %p173 = scmp.eq.s32.totalorder %s21, 0
    %p174 = por %p172, %p173
    %s175 = ssub.s32 %s15, %s22
    %p176 = scmp.eq.s32.totalorder %s175, 0
    %s178 = sadd.s32 %s177, 1
    %s179 = scalar_select %p176, %s177, %s178
    %p182 = pneg %p176
    %p183 = scmp.eq.s32.totalorder %s15, 1
    %p184 = por %p182, %p183
    %p185 = scmp.ne.s32.totalorder %s177, %s180
    %p186 = scmp.eq.s32.totalorder %s15, 0
    %p187 = por %p185, %p186
    %p188 = scmp.ne.s32.totalorder %s177, %s180
    %p189 = scmp.eq.s32.totalorder %s20, 1
    %p190 = por %p188, %p189
    %p191 = scmp.ne.s32.totalorder %s180, %s181
    %p192 = scmp.eq.s32.totalorder %s20, 0
    %p193 = por %p191, %p192
    %p194 = scmp.ne.s32.totalorder %s180, %s181
    %p195 = scmp.eq.s32.totalorder %s21, 1
    %p196 = por %p194, %p195
    %p198 = scmp.ne.s32.totalorder %s181, %s197
    %p199 = scmp.eq.s32.totalorder %s21, 0
    %p200 = por %p198, %p199
    %s201 = ssub.s32 %s15, %s22
    %p202 = scmp.eq.s32.totalorder %s201, 0
    %s204 = sadd.s32 %s203, 1
    %s205 = scalar_select %p202, %s203, %s204
    %p208 = pneg %p202
    %p209 = scmp.eq.s32.totalorder %s15, 1
    %p210 = por %p208, %p209
    %p211 = scmp.ne.s32.totalorder %s203, %s206
    %p212 = scmp.eq.s32.totalorder %s15, 0
    %p213 = por %p211, %p212
    %p214 = scmp.ne.s32.totalorder %s203, %s206
    %p215 = scmp.eq.s32.totalorder %s20, 1
    %p216 = por %p214, %p215
    %p217 = scmp.ne.s32.totalorder %s206, %s207
    %p218 = scmp.eq.s32.totalorder %s20, 0
    %p219 = por %p217, %p218
    %p220 = scmp.ne.s32.totalorder %s206, %s207
    %p221 = scmp.eq.s32.totalorder %s21, 1
    %p222 = por %p220, %p221
    %p224 = scmp.ne.s32.totalorder %s207, %s223
    %p225 = scmp.eq.s32.totalorder %s21, 0
    %p226 = por %p224, %p225
    %p227 = scmp.le.s32.totalorder 1, %s15
    %p228 = scmp.lt.s32.totalorder %s15, 3
    %p229 = pnand %p227, %p228
    %p230 = pneg %p229
    // Predicated region
    $region9: #{ssd_detector_forward.4} parent=5 // pred_check
      _
    $region10: #{ssd_detector_forward.4} parent=5 // pred_check_branch
      %232 = sbr.rel (%p229) target = $region12
    $region11: #{ssd_detector_forward.4} parent=5 // pred_region
      %s233 = ssub.s32 %s15, 1
      // Predicated region
      $region13: #{ssd_detector_forward.4} parent=11 // pred_check
        %p234 = pneg %p62
      $region14: #{ssd_detector_forward.4} parent=11 // pred_check_branch
        %236 = sbr.rel (%p234) target = $region16
      $region15: #{ssd_detector_forward.4} parent=11 // pred_region
        _
      $region16: #{ssd_detector_forward.4} parent=11 // pred_fallthru
        _
      // Predicated region
      $region17: #{ssd_detector_forward.4} parent=11 // pred_check
        %p237 = pneg %p83
      $region18: #{ssd_detector_forward.4} parent=11 // pred_check_branch
        %239 = sbr.rel (%p237) target = $region20
      $region19: #{ssd_detector_forward.4} parent=11 // pred_region
        _
      $region20: #{ssd_detector_forward.4} parent=11 // pred_fallthru
        _
      // Predicated region
      $region21: #{ssd_detector_forward.4} parent=11 // pred_check
        %p240 = pneg %p104
      $region22: #{ssd_detector_forward.4} parent=11 // pred_check_branch
        %242 = sbr.rel (%p240) target = $region24
      $region23: #{ssd_detector_forward.4} parent=11 // pred_region
        _
      $region24: #{ssd_detector_forward.4} parent=11 // pred_fallthru
        _
      // Predicated region
      $region25: #{ssd_detector_forward.4} parent=11 // pred_check
        %p243 = pneg %p125
      $region26: #{ssd_detector_forward.4} parent=11 // pred_check_branch
        %245 = sbr.rel (%p243) target = $region28
      $region27: #{ssd_detector_forward.4} parent=11 // pred_region
        _
      $region28: #{ssd_detector_forward.4} parent=11 // pred_fallthru
        _
      // Predicated region
      $region29: #{ssd_detector_forward.4} parent=11 // pred_check
        %p246 = pneg %p146
      $region30: #{ssd_detector_forward.4} parent=11 // pred_check_branch
        %248 = sbr.rel (%p246) target = $region32
      $region31: #{ssd_detector_forward.4} parent=11 // pred_region
        _
      $region32: #{ssd_detector_forward.4} parent=11 // pred_fallthru
        _
      // Predicated region
      $region33: #{ssd_detector_forward.4} parent=11 // pred_check
        %p249 = pneg %p167
      $region34: #{ssd_detector_forward.4} parent=11 // pred_check_branch
        %251 = sbr.rel (%p249) target = $region36
      $region35: #{ssd_detector_forward.4} parent=11 // pred_region
        _
      $region36: #{ssd_detector_forward.4} parent=11 // pred_fallthru
        _
    $region12: #{ssd_detector_forward.4} parent=5 // pred_fallthru
      _
    %p252 = scmp.lt.s32.totalorder %s15, 2
    // Predicated region
    $region37: #{ssd_detector_forward.4} parent=5 // pred_check
      %p253 = pneg %p252
    $region38: #{ssd_detector_forward.4} parent=5 // pred_check_branch
      %255 = sbr.rel (%p253) target = $region40
    $region39: #{ssd_detector_forward.4} parent=5 // pred_region
      // Predicated region
      $region41: #{ssd_detector_forward.4} parent=39 // pred_check
        %p256 = pneg %p35
      $region42: #{ssd_detector_forward.4} parent=39 // pred_check_branch
        %258 = sbr.rel (%p256) target = $region44
      $region43: #{ssd_detector_forward.4} parent=39 // pred_region
        %p259 = scmp.lt.s32.totalorder %s15, 1
        %s260 = scalar_select %p259, %s15, 1
        %s261 = smul.addr %s260, 72
        %s262 = smul.addr %s261, 4
        %s263 = scalar_lea.vmem %s0, %s262
      $region44: #{ssd_detector_forward.4} parent=39 // pred_fallthru
        _
    $region40: #{ssd_detector_forward.4} parent=5 // pred_fallthru
      _
    %p264 = scmp.le.s32.totalorder 1, %s15
    %p265 = scmp.lt.s32.totalorder %s15, 3
    %p266 = pnand %p264, %p265
    %p267 = pneg %p266
    // Predicated region
    $region45: #{ssd_detector_forward.4} parent=5 // pred_check
      _
    $region46: #{ssd_detector_forward.4} parent=5 // pred_check_branch
      %269 = sbr.rel (%p266) target = $region48
    $region47: #{ssd_detector_forward.4} parent=5 // pred_region
      %s270 = ssub.s32 %s15, 1
      %p271 = scmp.lt.s32.totalorder %s20, 1
      %s272 = scalar_select %p271, %s20, 1
      %s273 = smul.addr %s272, 72
      %s274 = smul.addr %s273, 4
      %s275 = scalar_lea.vmem %s0, %s274
      %p276 = pneg %p41
      %p277 = pneg %p38
      %p278 = pneg %p62
      %p279 = pneg %p59
      %p280 = pneg %p83
      %p281 = pneg %p80
      %p282 = pneg %p104
      %p283 = pneg %p101
      %p284 = pneg %p125
      %p285 = pneg %p122
      %p286 = pneg %p146
      %p287 = pneg %p143
      %p288 = pneg %p167
      %p289 = pneg %p164
      %p290 = pneg %p193
      %p291 = pneg %p190
      %p292 = scmp.lt.s32.totalorder %s20, 1
      %s293 = scalar_select %p292, %s20, 1
      %s294 = smul.addr %s293, 8
      %s295 = smul.addr %s294, 4
      %s296 = scalar_lea.vmem %s7, %s295
      %p297 = pneg %p219
      %p298 = pneg %p216
      %p299 = scmp.lt.s32.totalorder %s20, 1
      %s300 = scalar_select %p299, %s20, 1
      %s301 = smul.addr %s300, 8
      %s302 = smul.addr %s301, 8
      %s303 = scalar_lea.vmem %s8, %s302
      %p304 = scmp.lt.s32.totalorder %s20, 1
      %s305 = scalar_select %p304, %s20, 1
      %s306 = smul.addr %s305, 72
      %s307 = smul.addr %s306, 4
      %s308 = scalar_lea.vmem %s0, %s307
      %p309 = scmp.lt.s32.totalorder %s20, 1
      %s310 = scalar_select %p309, %s20, 1
      %s311 = smul.addr %s310, 8
      %s312 = smul.addr %s311, 4
      %s313 = scalar_lea.vmem %s7, %s312
      %p314 = scmp.lt.s32.totalorder %s20, 1
      %s315 = scalar_select %p314, %s20, 1
      %s316 = smul.addr %s315, 8
      %s317 = smul.addr %s316, 8
      %s318 = scalar_lea.vmem %s8, %s317
      %v319 = vld [vmem:[%s308] sm:$0xff]
      %v320 = vld [vmem:[%s308 + $0x8] sm:$0xff]
      %v321 = vld [vmem:[%s308 + $0x20] sm:$0xff]
      %v322 = vld [vmem:[%s308 + $0x28] sm:$0xff]
      %v323 = vld [vmem:[%s308 + $0x40] sm:$0xff]
      %v324 = vld [vmem:[%s308 + $0x48] sm:$0xff]
      %v325 = vld [vmem:[%s308 + $0x60] sm:$0xff]
      %v326 = vld [vmem:[%s308 + $0x68] sm:$0xff]
      %v327 = vld [vmem:[%s308 + $0x80] sm:$0xff]
      %v328 = vld [vmem:[%s308 + $0x88] sm:$0xff]
      %v329 = vld [vmem:[%s308 + $0xa0] sm:$0xff]
      %v330 = vld [vmem:[%s308 + $0xa8] sm:$0xff]
      %v331 = vld [vmem:[%s308 + $0xc0] sm:$0xff]
      %v332 = vld [vmem:[%s308 + $0xc8] sm:$0xff]
      %v333 = vld [vmem:[%s308 + $0xe0] sm:$0xff]
      %v334 = vld [vmem:[%s308 + $0xe8] sm:$0xff]
      %v335 = vld [vmem:[%s1] sm:$0xf]
      %v336 = vld [vmem:[%s1 + $0x4] sm:$0xf]
      %v337 = vld [vmem:[%s1 + $0x8] sm:$0xf]
      %v338 = vld [vmem:[%s1 + $0xc] sm:$0xf]
      %v339 = vld [vmem:[%s1 + $0x10] sm:$0xf]
      %v340 = vld [vmem:[%s1 + $0x14] sm:$0xf]
      %v341 = vld [vmem:[%s1 + $0x18] sm:$0xf]
      %v342 = vld [vmem:[%s1 + $0x1c] sm:$0xf]
      %v343 = vld [vmem:[%s1 + $0x20] sm:$0xf]
      %v344 = vld [vmem:[%s1 + $0x24] sm:$0xf]
      %v345 = vld [vmem:[%s1 + $0x28] sm:$0xf]
      %v346 = vld [vmem:[%s1 + $0x2c] sm:$0xf]
      %v347 = vld [vmem:[%s1 + $0x30] sm:$0xf]
      %v348 = vld [vmem:[%s1 + $0x34] sm:$0xf]
      %v349 = vld [vmem:[%s1 + $0x38] sm:$0xf]
      %v350 = vld [vmem:[%s1 + $0x3c] sm:$0xf]
      %v351 = vld [vmem:[%s1 + $0x40] sm:$0xf]
      %v352 = vld [vmem:[%s1 + $0x44] sm:$0xf]
      %v353 = vld [vmem:[%s1 + $0x48] sm:$0xf]
      %v354 = vld [vmem:[%s1 + $0x4c] sm:$0xf]
      %v355 = vld [vmem:[%s1 + $0x50] sm:$0xf]
      %v356 = vld [vmem:[%s1 + $0x54] sm:$0xf]
      %v357 = vld [vmem:[%s1 + $0x58] sm:$0xf]
      %v358 = vld [vmem:[%s1 + $0x5c] sm:$0xf]
      %v359 = vld [vmem:[%s1 + $0x60] sm:$0xf]
      %v360 = vld [vmem:[%s1 + $0x64] sm:$0xf]
      %v361 = vld [vmem:[%s1 + $0x68] sm:$0xf]
      %v362 = vld [vmem:[%s1 + $0x6c] sm:$0xf]
      %v363 = vld [vmem:[%s1 + $0x70] sm:$0xf]
      %v364 = vld [vmem:[%s1 + $0x74] sm:$0xf]
      %v365 = vld [vmem:[%s1 + $0x78] sm:$0xf]
      %v366 = vld [vmem:[%s1 + $0x7c] sm:$0xf]
      %v367 = vld [vmem:[%s1 + $0x80] sm:$0xf]
      %v368 = vld [vmem:[%s1 + $0x84] sm:$0xf]
      %v369 = vld [vmem:[%s1 + $0x88] sm:$0xf]
      %v370 = vld [vmem:[%s1 + $0x8c] sm:$0xf]
      %v371 = vld [vmem:[%s1 + $0x90] sm:$0xf]
      %v372 = vld [vmem:[%s1 + $0x94] sm:$0xf]
      %v373 = vld [vmem:[%s1 + $0x98] sm:$0xf]
      %v374 = vld [vmem:[%s1 + $0x9c] sm:$0xf]
      %v375 = vld [vmem:[%s1 + $0xa0] sm:$0xf]
      %v376 = vld [vmem:[%s1 + $0xa4] sm:$0xf]
      %v377 = vld [vmem:[%s1 + $0xa8] sm:$0xf]
      %v378 = vld [vmem:[%s1 + $0xac] sm:$0xf]
      %v379 = vld [vmem:[%s1 + $0xb0] sm:$0xf]
      %v380 = vld [vmem:[%s1 + $0xb4] sm:$0xf]
      %v381 = vld [vmem:[%s1 + $0xb8] sm:$0xf]
      %v382 = vld [vmem:[%s1 + $0xbc] sm:$0xf]
      %v383 = vld [vmem:[%s1 + $0xc0] sm:$0xf]
      %v384 = vld [vmem:[%s1 + $0xc4] sm:$0xf]
      %v385 = vld [vmem:[%s1 + $0xc8] sm:$0xf]
      %v386 = vld [vmem:[%s1 + $0xcc] sm:$0xf]
      %v387 = vld [vmem:[%s1 + $0xd0] sm:$0xf]
      %v388 = vld [vmem:[%s1 + $0xd4] sm:$0xf]
      %v389 = vld [vmem:[%s1 + $0xd8] sm:$0xf]
      %v390 = vld [vmem:[%s1 + $0xdc] sm:$0xf]
      %v391 = vld [vmem:[%s1 + $0xe0] sm:$0xf]
      %v392 = vld [vmem:[%s1 + $0xe4] sm:$0xf]
      %v393 = vld [vmem:[%s1 + $0xe8] sm:$0xf]
      %v394 = vld [vmem:[%s1 + $0xec] sm:$0xf]
      %v395 = vld [vmem:[%s1 + $0xf0] sm:$0xf]
      %v396 = vld [vmem:[%s1 + $0xf4] sm:$0xf]
      %v397 = vld [vmem:[%s1 + $0xf8] sm:$0xf]
      %v398 = vld [vmem:[%s1 + $0xfc] sm:$0xf]
      %v399 = vld [vmem:[%s308 + $0x10] sm:$0x11]
      %v400 = vld [vmem:[%s308 + $0x18] sm:$0x11]
      %v401 = vld [vmem:[%s308 + $0x30] sm:$0x11]
      %v402 = vld [vmem:[%s308 + $0x38] sm:$0x11]
      %v403 = vld [vmem:[%s308 + $0x50] sm:$0x11]
      %v404 = vld [vmem:[%s308 + $0x58] sm:$0x11]
      %v405 = vld [vmem:[%s308 + $0x70] sm:$0x11]
      %v406 = vld [vmem:[%s308 + $0x78] sm:$0x11]
      %v407 = vld [vmem:[%s308 + $0x90] sm:$0x11]
      %v408 = vld [vmem:[%s308 + $0x98] sm:$0x11]
      %v409 = vld [vmem:[%s308 + $0xb0] sm:$0x11]
      %v410 = vld [vmem:[%s308 + $0xb8] sm:$0x11]
      %v411 = vld [vmem:[%s308 + $0xd0] sm:$0x11]
      %v412 = vld [vmem:[%s308 + $0xd8] sm:$0x11]
      %v413 = vld [vmem:[%s308 + $0xf0] sm:$0x11]
      %v414 = vld [vmem:[%s308 + $0xf8] sm:$0x11]
      %vm415 = vsmask.f32 3328
      %vm416 = vsmask.f32 7440
      %vm417 = vmor %vm415, %vm416
      %v419 = vshrl.u32 %v319, 16
      %v421 = vrot.slane %v419, 4
      %v422 = vshll.u32 %v319, 16
      %v424 = vrot.slane %v422, 5
      %v425 = vor.u32 %v421, %v424
      %v426 = vrot.slane %v425, 4
      %v428 = vshll.u32 %v399, 16
      %v430 = vrot.slane %v428, 5
      %v431 = vsel %vm417, %v426, %v430
      %v433 = vshrl.u32 %v320, 16
      %v435 = vrot.slane %v433, 4
      %v436 = vshll.u32 %v320, 16
      %v438 = vrot.slane %v436, 5
      %v439 = vor.u32 %v435, %v438
      %v440 = vrot.slane %v439, 4
      %v442 = vshll.u32 %v400, 16
      %v444 = vrot.slane %v442, 5
      %v445 = vsel %vm417, %v440, %v444
      %v447 = vshrl.u32 %v321, 16
      %v449 = vrot.slane %v447, 4
      %v450 = vshll.u32 %v321, 16
      %v452 = vrot.slane %v450, 5
      %v453 = vor.u32 %v449, %v452
      %v454 = vrot.slane %v453, 4
      %v456 = vshll.u32 %v401, 16
      %v458 = vrot.slane %v456, 5
      %v459 = vsel %vm417, %v454, %v458
      %v461 = vshrl.u32 %v322, 16
      %v463 = vrot.slane %v461, 4
      %v464 = vshll.u32 %v322, 16
      %v466 = vrot.slane %v464, 5
      %v467 = vor.u32 %v463, %v466
      %v468 = vrot.slane %v467, 4
      %v470 = vshll.u32 %v402, 16
      %v472 = vrot.slane %v470, 5
      %v473 = vsel %vm417, %v468, %v472
      %v475 = vshrl.u32 %v323, 16
      %v477 = vrot.slane %v475, 4
      %v478 = vshll.u32 %v323, 16
      %v480 = vrot.slane %v478, 5
      %v481 = vor.u32 %v477, %v480
      %v482 = vrot.slane %v481, 4
      %v484 = vshll.u32 %v403, 16
      %v486 = vrot.slane %v484, 5
      %v487 = vsel %vm417, %v482, %v486
      %v489 = vshrl.u32 %v324, 16
      %v491 = vrot.slane %v489, 4
      %v492 = vshll.u32 %v324, 16
      %v494 = vrot.slane %v492, 5
      %v495 = vor.u32 %v491, %v494
      %v496 = vrot.slane %v495, 4
      %v498 = vshll.u32 %v404, 16
      %v500 = vrot.slane %v498, 5
      %v501 = vsel %vm417, %v496, %v500
      %v503 = vshrl.u32 %v325, 16
      %v505 = vrot.slane %v503, 4
      %v506 = vshll.u32 %v325, 16
      %v508 = vrot.slane %v506, 5
      %v509 = vor.u32 %v505, %v508
      %v510 = vrot.slane %v509, 4
      %v512 = vshll.u32 %v405, 16
      %v514 = vrot.slane %v512, 5
      %v515 = vsel %vm417, %v510, %v514
      %v517 = vshrl.u32 %v326, 16
      %v519 = vrot.slane %v517, 4
      %v520 = vshll.u32 %v326, 16
      %v522 = vrot.slane %v520, 5
      %v523 = vor.u32 %v519, %v522
      %v524 = vrot.slane %v523, 4
      %v526 = vshll.u32 %v406, 16
      %v528 = vrot.slane %v526, 5
      %v529 = vsel %vm417, %v524, %v528
      %v531 = vshrl.u32 %v327, 16
      %v533 = vrot.slane %v531, 4
      %v534 = vshll.u32 %v327, 16
      %v536 = vrot.slane %v534, 5
      %v537 = vor.u32 %v533, %v536
      %v538 = vrot.slane %v537, 4
      %v540 = vshll.u32 %v407, 16
      %v542 = vrot.slane %v540, 5
      %v543 = vsel %vm417, %v538, %v542
      %v545 = vshrl.u32 %v328, 16
      %v547 = vrot.slane %v545, 4
      %v548 = vshll.u32 %v328, 16
      %v550 = vrot.slane %v548, 5
      %v551 = vor.u32 %v547, %v550
      %v552 = vrot.slane %v551, 4
      %v554 = vshll.u32 %v408, 16
      %v556 = vrot.slane %v554, 5
      %v557 = vsel %vm417, %v552, %v556
      %v559 = vshrl.u32 %v329, 16
      %v561 = vrot.slane %v559, 4
      %v562 = vshll.u32 %v329, 16
      %v564 = vrot.slane %v562, 5
      %v565 = vor.u32 %v561, %v564
      %v566 = vrot.slane %v565, 4
      %v568 = vshll.u32 %v409, 16
      %v570 = vrot.slane %v568, 5
      %v571 = vsel %vm417, %v566, %v570
      %v573 = vshrl.u32 %v330, 16
      %v575 = vrot.slane %v573, 4
      %v576 = vshll.u32 %v330, 16
      %v578 = vrot.slane %v576, 5
      %v579 = vor.u32 %v575, %v578
      %v580 = vrot.slane %v579, 4
      %v582 = vshll.u32 %v410, 16
      %v584 = vrot.slane %v582, 5
      %v585 = vsel %vm417, %v580, %v584
      %v587 = vshrl.u32 %v331, 16
      %v589 = vrot.slane %v587, 4
      %v590 = vshll.u32 %v331, 16
      %v592 = vrot.slane %v590, 5
      %v593 = vor.u32 %v589, %v592
      %v594 = vrot.slane %v593, 4
      %v596 = vshll.u32 %v411, 16
      %v598 = vrot.slane %v596, 5
      %v599 = vsel %vm417, %v594, %v598
      %v601 = vshrl.u32 %v332, 16
      %v603 = vrot.slane %v601, 4
      %v604 = vshll.u32 %v332, 16
      %v606 = vrot.slane %v604, 5
      %v607 = vor.u32 %v603, %v606
      %v608 = vrot.slane %v607, 4
      %v610 = vshll.u32 %v412, 16
      %v612 = vrot.slane %v610, 5
      %v613 = vsel %vm417, %v608, %v612
      %v615 = vshrl.u32 %v333, 16
      %v617 = vrot.slane %v615, 4
      %v618 = vshll.u32 %v333, 16
      %v620 = vrot.slane %v618, 5
      %v621 = vor.u32 %v617, %v620
      %v622 = vrot.slane %v621, 4
      %v624 = vshll.u32 %v413, 16
      %v626 = vrot.slane %v624, 5
      %v627 = vsel %vm417, %v622, %v626
      %v629 = vshrl.u32 %v334, 16
      %v631 = vrot.slane %v629, 4
      %v632 = vshll.u32 %v334, 16
      %v634 = vrot.slane %v632, 5
      %v635 = vor.u32 %v631, %v634
      %v636 = vrot.slane %v635, 4
      %v638 = vshll.u32 %v414, 16
      %v640 = vrot.slane %v638, 5
      %v641 = vsel %vm417, %v636, %v640
      %s642 = scalar_lea.vmem %s1, 256
      %v643 = vld [vmem:[%s642] sm:$0xf]
      %v644 = vld [vmem:[%s642 + $0x4] sm:$0xf]
      %v645 = vld [vmem:[%s642 + $0x8] sm:$0xf]
      %v646 = vld [vmem:[%s642 + $0xc] sm:$0xf]
      %v647 = vld [vmem:[%s642 + $0x10] sm:$0xf]
      %v648 = vld [vmem:[%s642 + $0x14] sm:$0xf]
      %v649 = vld [vmem:[%s642 + $0x18] sm:$0xf]
      %v650 = vld [vmem:[%s642 + $0x1c] sm:$0xf]
      %v651 = vld [vmem:[%s642 + $0x20] sm:$0xf]
      %v652 = vld [vmem:[%s642 + $0x24] sm:$0xf]
      %v653 = vld [vmem:[%s642 + $0x28] sm:$0xf]
      %v654 = vld [vmem:[%s642 + $0x2c] sm:$0xf]
      %v655 = vld [vmem:[%s642 + $0x30] sm:$0xf]
      %v656 = vld [vmem:[%s642 + $0x34] sm:$0xf]
      %v657 = vld [vmem:[%s642 + $0x38] sm:$0xf]
      %v658 = vld [vmem:[%s642 + $0x3c] sm:$0xf]
      %v659 = vld [vmem:[%s642 + $0x40] sm:$0xf]
      %v660 = vld [vmem:[%s642 + $0x44] sm:$0xf]
      %v661 = vld [vmem:[%s642 + $0x48] sm:$0xf]
      %v662 = vld [vmem:[%s642 + $0x4c] sm:$0xf]
      %v663 = vld [vmem:[%s642 + $0x50] sm:$0xf]
      %v664 = vld [vmem:[%s642 + $0x54] sm:$0xf]
      %v665 = vld [vmem:[%s642 + $0x58] sm:$0xf]
      %v666 = vld [vmem:[%s642 + $0x5c] sm:$0xf]
      %v667 = vld [vmem:[%s642 + $0x60] sm:$0xf]
      %v668 = vld [vmem:[%s642 + $0x64] sm:$0xf]
      %v669 = vld [vmem:[%s642 + $0x68] sm:$0xf]
      %v670 = vld [vmem:[%s642 + $0x6c] sm:$0xf]
      %v671 = vld [vmem:[%s642 + $0x70] sm:$0xf]
      %v672 = vld [vmem:[%s642 + $0x74] sm:$0xf]
      %v673 = vld [vmem:[%s642 + $0x78] sm:$0xf]
      %v674 = vld [vmem:[%s642 + $0x7c] sm:$0xf]
      %v675 = vld [vmem:[%s642 + $0x80] sm:$0xf]
      %v676 = vld [vmem:[%s642 + $0x84] sm:$0xf]
      %v677 = vld [vmem:[%s642 + $0x88] sm:$0xf]
      %v678 = vld [vmem:[%s642 + $0x8c] sm:$0xf]
      %v679 = vld [vmem:[%s642 + $0x90] sm:$0xf]
      %v680 = vld [vmem:[%s642 + $0x94] sm:$0xf]
      %v681 = vld [vmem:[%s642 + $0x98] sm:$0xf]
      %v682 = vld [vmem:[%s642 + $0x9c] sm:$0xf]
      %v683 = vld [vmem:[%s642 + $0xa0] sm:$0xf]
      %v684 = vld [vmem:[%s642 + $0xa4] sm:$0xf]
      %v685 = vld [vmem:[%s642 + $0xa8] sm:$0xf]
      %v686 = vld [vmem:[%s642 + $0xac] sm:$0xf]
      %v687 = vld [vmem:[%s642 + $0xb0] sm:$0xf]
      %v688 = vld [vmem:[%s642 + $0xb4] sm:$0xf]
      %v689 = vld [vmem:[%s642 + $0xb8] sm:$0xf]
      %v690 = vld [vmem:[%s642 + $0xbc] sm:$0xf]
      %v691 = vld [vmem:[%s642 + $0xc0] sm:$0xf]
      %v692 = vld [vmem:[%s642 + $0xc4] sm:$0xf]
      %v693 = vld [vmem:[%s642 + $0xc8] sm:$0xf]
      %v694 = vld [vmem:[%s642 + $0xcc] sm:$0xf]
      %v695 = vld [vmem:[%s642 + $0xd0] sm:$0xf]
      %v696 = vld [vmem:[%s642 + $0xd4] sm:$0xf]
      %v697 = vld [vmem:[%s642 + $0xd8] sm:$0xf]
      %v698 = vld [vmem:[%s642 + $0xdc] sm:$0xf]
      %v699 = vld [vmem:[%s642 + $0xe0] sm:$0xf]
      %v700 = vld [vmem:[%s642 + $0xe4] sm:$0xf]
      %v701 = vld [vmem:[%s642 + $0xe8] sm:$0xf]
      %v702 = vld [vmem:[%s642 + $0xec] sm:$0xf]
      %v703 = vld [vmem:[%s642 + $0xf0] sm:$0xf]
      %v704 = vld [vmem:[%s642 + $0xf4] sm:$0xf]
      %v705 = vld [vmem:[%s642 + $0xf8] sm:$0xf]
      %v706 = vld [vmem:[%s642 + $0xfc] sm:$0xf]
      %v707 = vunpack.c.l.b16 %v431
      %v708 = vunpack.c.h.b16 %v431
      %v709 = vunpack.c.l.b16 %v445
      %v710 = vunpack.c.h.b16 %v445
      %v711 = vunpack.c.l.b16 %v459
      %v712 = vunpack.c.h.b16 %v459
      %v713 = vunpack.c.l.b16 %v473
      %v714 = vunpack.c.h.b16 %v473
      %v715 = vunpack.c.l.b16 %v487
      %v716 = vunpack.c.h.b16 %v487
      %v717 = vunpack.c.l.b16 %v501
      %v718 = vunpack.c.h.b16 %v501
      %v719 = vunpack.c.l.b16 %v515
      %v720 = vunpack.c.h.b16 %v515
      %v721 = vunpack.c.l.b16 %v529
      %v722 = vunpack.c.h.b16 %v529
      %v723 = vunpack.c.l.b16 %v543
      %v724 = vunpack.c.h.b16 %v543
      %v725 = vunpack.c.l.b16 %v557
      %v726 = vunpack.c.h.b16 %v557
      %v727 = vunpack.c.l.b16 %v571
      %v728 = vunpack.c.h.b16 %v571
      %v729 = vunpack.c.l.b16 %v585
      %v730 = vunpack.c.h.b16 %v585
      %v731 = vunpack.c.l.b16 %v599
      %v732 = vunpack.c.h.b16 %v599
      %v733 = vunpack.c.l.b16 %v613
      %v734 = vunpack.c.h.b16 %v613
      %v735 = vunpack.c.l.b16 %v627
      %v736 = vunpack.c.h.b16 %v627
      %v737 = vunpack.c.l.b16 %v641
      %v738 = vunpack.c.h.b16 %v641
      %v739 = vpack.c.b16 %v711, %v707
      %v740 = vpack.c.b16 %v712, %v708
      %v741 = vpack.c.b16 %v713, %v709
      %v742 = vpack.c.b16 %v714, %v710
      %v743 = vpack.c.b16 %v719, %v715
      %v744 = vpack.c.b16 %v720, %v716
      %v745 = vpack.c.b16 %v721, %v717
      %v746 = vpack.c.b16 %v722, %v718
      %v747 = vpack.c.b16 %v727, %v723
      %v748 = vpack.c.b16 %v728, %v724
      %v749 = vpack.c.b16 %v729, %v725
      %v750 = vpack.c.b16 %v730, %v726
      %v751 = vpack.c.b16 %v735, %v731
      %v752 = vpack.c.b16 %v736, %v732
      %v753 = vpack.c.b16 %v737, %v733
      %v754 = vpack.c.b16 %v738, %v734
      %v835 = vunpack.c.l.b16 %v643
      %v836 = vunpack.c.l.b16 %v644
      %v837 = vunpack.c.l.b16 %v645
      %v838 = vunpack.c.l.b16 %v646
      %v839 = vunpack.c.l.b16 %v647
      %v840 = vunpack.c.l.b16 %v648
      %v841 = vunpack.c.l.b16 %v649
      %v842 = vunpack.c.l.b16 %v650
      %v843 = vunpack.c.l.b16 %v651
      %v844 = vunpack.c.l.b16 %v652
      %v845 = vunpack.c.l.b16 %v653
      %v846 = vunpack.c.l.b16 %v654
      %v847 = vunpack.c.l.b16 %v655
      %v848 = vunpack.c.l.b16 %v656
      %v849 = vunpack.c.l.b16 %v657
      %v850 = vunpack.c.l.b16 %v658
      %v851 = vunpack.c.l.b16 %v659
      %v852 = vunpack.c.l.b16 %v660
      %v853 = vunpack.c.l.b16 %v661
      %v854 = vunpack.c.l.b16 %v662
      %v855 = vunpack.c.l.b16 %v663
      %v856 = vunpack.c.l.b16 %v664
      %v857 = vunpack.c.l.b16 %v665
      %v858 = vunpack.c.l.b16 %v666
      %v859 = vunpack.c.l.b16 %v667
      %v860 = vunpack.c.l.b16 %v668
      %v861 = vunpack.c.l.b16 %v669
      %v862 = vunpack.c.l.b16 %v670
      %v863 = vunpack.c.l.b16 %v671
      %v864 = vunpack.c.l.b16 %v672
      %v865 = vunpack.c.l.b16 %v673
      %v866 = vunpack.c.l.b16 %v674
      %v867 = vunpack.c.l.b16 %v675
      %v868 = vunpack.c.l.b16 %v676
      %v869 = vunpack.c.l.b16 %v677
      %v870 = vunpack.c.l.b16 %v678
      %v871 = vunpack.c.l.b16 %v679
      %v872 = vunpack.c.l.b16 %v680
      %v873 = vunpack.c.l.b16 %v681
      %v874 = vunpack.c.l.b16 %v682
      %v875 = vunpack.c.l.b16 %v683
      %v876 = vunpack.c.l.b16 %v684
      %v877 = vunpack.c.l.b16 %v685
      %v878 = vunpack.c.l.b16 %v686
      %v879 = vunpack.c.l.b16 %v687
      %v880 = vunpack.c.l.b16 %v688
      %v881 = vunpack.c.l.b16 %v689
      %v882 = vunpack.c.l.b16 %v690
      %v883 = vunpack.c.l.b16 %v691
      %v884 = vunpack.c.l.b16 %v692
      %v885 = vunpack.c.l.b16 %v693
      %v886 = vunpack.c.l.b16 %v694
      %v887 = vunpack.c.l.b16 %v695
      %v888 = vunpack.c.l.b16 %v696
      %v889 = vunpack.c.l.b16 %v697
      %v890 = vunpack.c.l.b16 %v698
      %v891 = vunpack.c.l.b16 %v699
      %v892 = vunpack.c.l.b16 %v700
      %v893 = vunpack.c.l.b16 %v701
      %v894 = vunpack.c.l.b16 %v702
      %v895 = vunpack.c.l.b16 %v703
      %v896 = vunpack.c.l.b16 %v704
      %v897 = vunpack.c.l.b16 %v705
      %v898 = vunpack.c.l.b16 %v706
      %v899 = vpack.c.b16 %v836, %v835
      %v900 = vpack.c.b16 %v838, %v837
      %v901 = vpack.c.b16 %v840, %v839
      %v902 = vpack.c.b16 %v842, %v841
      %v903 = vpack.c.b16 %v844, %v843
      %v904 = vpack.c.b16 %v846, %v845
      %v905 = vpack.c.b16 %v848, %v847
      %v906 = vpack.c.b16 %v850, %v849
      %v907 = vpack.c.b16 %v852, %v851
      %v908 = vpack.c.b16 %v854, %v853
      %v909 = vpack.c.b16 %v856, %v855
      %v910 = vpack.c.b16 %v858, %v857
      %v911 = vpack.c.b16 %v860, %v859
      %v912 = vpack.c.b16 %v862, %v861
      %v913 = vpack.c.b16 %v864, %v863
      %v914 = vpack.c.b16 %v866, %v865
      %v915 = vpack.c.b16 %v868, %v867
      %v916 = vpack.c.b16 %v870, %v869
      %v917 = vpack.c.b16 %v872, %v871
      %v918 = vpack.c.b16 %v874, %v873
      %v919 = vpack.c.b16 %v876, %v875
      %v920 = vpack.c.b16 %v878, %v877
      %v921 = vpack.c.b16 %v880, %v879
      %v922 = vpack.c.b16 %v882, %v881
      %v923 = vpack.c.b16 %v884, %v883
      %v924 = vpack.c.b16 %v886, %v885
      %v925 = vpack.c.b16 %v888, %v887
      %v926 = vpack.c.b16 %v890, %v889
      %v927 = vpack.c.b16 %v892, %v891
      %v928 = vpack.c.b16 %v894, %v893
      %v929 = vpack.c.b16 %v896, %v895
      %v930 = vpack.c.b16 %v898, %v897
      %963 = vmatpush.bf16.msra.mxu0 %v906
      %964 = vmatpush.bf16.msra.mxu0 %v905
      %965 = vmatpush.bf16.msra.mxu0 %v904
      %966 = vmatpush.bf16.msra.mxu0 %v903
      %967 = vmatpush.bf16.msra.mxu0 %v902
      %968 = vmatpush.bf16.msra.mxu0 %v901
      %969 = vmatpush.bf16.msra.mxu0 %v900
      %970 = vmatpush.bf16.msra.mxu0 %v899
      %971 = vmatmul.bf16.gmra.mxu0 %v739
      %v972 = vpop.f32.mrf.mxu0
      %v973 = vadd.f32 0.0, %v972
      %v974 = vpop.f32.mrf.mxu0
      %v975 = vadd.f32 0.0, %v974
      %976 = vmatmul.bf16.gmra.mxu0 %v743
      %v977 = vpop.f32.mrf.mxu0
      %v978 = vadd.f32 0.0, %v977
      %v979 = vpop.f32.mrf.mxu0
      %v980 = vadd.f32 0.0, %v979
      %981 = vmatmul.bf16.gmra.mxu0 %v747
      %v982 = vpop.f32.mrf.mxu0
      %v983 = vadd.f32 0.0, %v982
      %v984 = vpop.f32.mrf.mxu0
      %v985 = vadd.f32 0.0, %v984
      %986 = vmatmul.bf16.gmra.mxu0 %v751
      %v987 = vpop.f32.mrf.mxu0
      %v988 = vadd.f32 0.0, %v987
      %v989 = vpop.f32.mrf.mxu0
      %v990 = vadd.f32 0.0, %v989
      %991 = vdwg.mxu0
      %992 = vmatpush.bf16.msra.mxu0 %v914
      %993 = vmatpush.bf16.msra.mxu0 %v913
      %994 = vmatpush.bf16.msra.mxu0 %v912
      %995 = vmatpush.bf16.msra.mxu0 %v911
      %996 = vmatpush.bf16.msra.mxu0 %v910
      %997 = vmatpush.bf16.msra.mxu0 %v909
      %998 = vmatpush.bf16.msra.mxu0 %v908
      %999 = vmatpush.bf16.msra.mxu0 %v907
      %1000 = vmatmul.bf16.gmra.mxu0 %v740
      %v1001 = vpop.f32.mrf.mxu0
      %v1002 = vadd.f32 %v973, %v1001
      %v1003 = vpop.f32.mrf.mxu0
      %v1004 = vadd.f32 %v975, %v1003
      %1005 = vmatmul.bf16.gmra.mxu0 %v744
      %v1006 = vpop.f32.mrf.mxu0
      %v1007 = vadd.f32 %v978, %v1006
      %v1008 = vpop.f32.mrf.mxu0
      %v1009 = vadd.f32 %v980, %v1008
      %1010 = vmatmul.bf16.gmra.mxu0 %v748
      %v1011 = vpop.f32.mrf.mxu0
      %v1012 = vadd.f32 %v983, %v1011
      %v1013 = vpop.f32.mrf.mxu0
      %v1014 = vadd.f32 %v985, %v1013
      %1015 = vmatmul.bf16.gmra.mxu0 %v752
      %v1016 = vpop.f32.mrf.mxu0
      %v1017 = vadd.f32 %v988, %v1016
      %v1018 = vpop.f32.mrf.mxu0
      %v1019 = vadd.f32 %v990, %v1018
      %1020 = vdwg.mxu0
      %1021 = vmatpush.bf16.msra.mxu0 %v922
      %1022 = vmatpush.bf16.msra.mxu0 %v921
      %1023 = vmatpush.bf16.msra.mxu0 %v920
      %1024 = vmatpush.bf16.msra.mxu0 %v919
      %1025 = vmatpush.bf16.msra.mxu0 %v918
      %1026 = vmatpush.bf16.msra.mxu0 %v917
      %1027 = vmatpush.bf16.msra.mxu0 %v916
      %1028 = vmatpush.bf16.msra.mxu0 %v915
      %1029 = vmatmul.bf16.gmra.mxu0 %v741
      %v1030 = vpop.f32.mrf.mxu0
      %v1031 = vadd.f32 %v1002, %v1030
      %v1032 = vpop.f32.mrf.mxu0
      %v1033 = vadd.f32 %v1004, %v1032
      %1034 = vmatmul.bf16.gmra.mxu0 %v745
      %v1035 = vpop.f32.mrf.mxu0
      %v1036 = vadd.f32 %v1007, %v1035
      %v1037 = vpop.f32.mrf.mxu0
      %v1038 = vadd.f32 %v1009, %v1037
      %1039 = vmatmul.bf16.gmra.mxu0 %v749
      %v1040 = vpop.f32.mrf.mxu0
      %v1041 = vadd.f32 %v1012, %v1040
      %v1042 = vpop.f32.mrf.mxu0
      %v1043 = vadd.f32 %v1014, %v1042
      %1044 = vmatmul.bf16.gmra.mxu0 %v753
      %v1045 = vpop.f32.mrf.mxu0
      %v1046 = vadd.f32 %v1017, %v1045
      %v1047 = vpop.f32.mrf.mxu0
      %v1048 = vadd.f32 %v1019, %v1047
      %1049 = vdwg.mxu0
      %1050 = vmatpush.bf16.msra.mxu0 %v930
      %1051 = vmatpush.bf16.msra.mxu0 %v929
      %1052 = vmatpush.bf16.msra.mxu0 %v928
      %1053 = vmatpush.bf16.msra.mxu0 %v927
      %1054 = vmatpush.bf16.msra.mxu0 %v926
      %1055 = vmatpush.bf16.msra.mxu0 %v925
      %1056 = vmatpush.bf16.msra.mxu0 %v924
      %1057 = vmatpush.bf16.msra.mxu0 %v923
      %1058 = vmatmul.bf16.gmra.mxu0 %v742
      %v1059 = vpop.f32.mrf.mxu0
      %v1060 = vadd.f32 %v1031, %v1059
      %v1061 = vpop.f32.mrf.mxu0
      %v1062 = vadd.f32 %v1033, %v1061
      %1063 = vmatmul.bf16.gmra.mxu0 %v746
      %v1064 = vpop.f32.mrf.mxu0
      %v1065 = vadd.f32 %v1036, %v1064
      %v1066 = vpop.f32.mrf.mxu0
      %v1067 = vadd.f32 %v1038, %v1066
      %1068 = vmatmul.bf16.gmra.mxu0 %v750
      %v1069 = vpop.f32.mrf.mxu0
      %v1070 = vadd.f32 %v1041, %v1069
      %v1071 = vpop.f32.mrf.mxu0
      %v1072 = vadd.f32 %v1043, %v1071
      %1073 = vmatmul.bf16.gmra.mxu0 %v754
      %v1074 = vpop.f32.mrf.mxu0
      %v1075 = vadd.f32 %v1046, %v1074
      %v1076 = vpop.f32.mrf.mxu0
      %v1077 = vadd.f32 %v1048, %v1076
      %1078 = vdwg.mxu0
      %v1095 = vunpack.c.l.b16 %v319
      %v1096 = vunpack.c.h.b16 %v319
      %v1097 = vunpack.c.l.b16 %v320
      %v1098 = vunpack.c.h.b16 %v320
      %v1099 = vunpack.c.l.b16 %v321
      %v1100 = vunpack.c.h.b16 %v321
      %v1101 = vunpack.c.l.b16 %v322
      %v1102 = vunpack.c.h.b16 %v322
      %v1103 = vunpack.c.l.b16 %v323
      %v1104 = vunpack.c.h.b16 %v323
      %v1105 = vunpack.c.l.b16 %v324
      %v1106 = vunpack.c.h.b16 %v324
      %v1107 = vunpack.c.l.b16 %v325
      %v1108 = vunpack.c.h.b16 %v325
      %v1109 = vunpack.c.l.b16 %v326
      %v1110 = vunpack.c.h.b16 %v326
      %v1111 = vunpack.c.l.b16 %v327
      %v1112 = vunpack.c.h.b16 %v327
      %v1113 = vunpack.c.l.b16 %v328
      %v1114 = vunpack.c.h.b16 %v328
      %v1115 = vunpack.c.l.b16 %v329
      %v1116 = vunpack.c.h.b16 %v329
      %v1117 = vunpack.c.l.b16 %v330
      %v1118 = vunpack.c.h.b16 %v330
      %v1119 = vunpack.c.l.b16 %v331
      %v1120 = vunpack.c.h.b16 %v331
      %v1121 = vunpack.c.l.b16 %v332
      %v1122 = vunpack.c.h.b16 %v332
      %v1123 = vunpack.c.l.b16 %v333
      %v1124 = vunpack.c.h.b16 %v333
      %v1125 = vunpack.c.l.b16 %v334
      %v1126 = vunpack.c.h.b16 %v334
      %v1127 = vpack.c.b16 %v1099, %v1095
      %v1128 = vpack.c.b16 %v1100, %v1096
      %v1129 = vpack.c.b16 %v1101, %v1097
      %v1130 = vpack.c.b16 %v1102, %v1098
      %v1131 = vpack.c.b16 %v1107, %v1103
      %v1132 = vpack.c.b16 %v1108, %v1104
      %v1133 = vpack.c.b16 %v1109, %v1105
      %v1134 = vpack.c.b16 %v1110, %v1106
      %v1135 = vpack.c.b16 %v1115, %v1111
      %v1136 = vpack.c.b16 %v1116, %v1112
      %v1137 = vpack.c.b16 %v1117, %v1113
      %v1138 = vpack.c.b16 %v1118, %v1114
      %v1139 = vpack.c.b16 %v1123, %v1119
      %v1140 = vpack.c.b16 %v1124, %v1120
      %v1141 = vpack.c.b16 %v1125, %v1121
      %v1142 = vpack.c.b16 %v1126, %v1122
      %v1223 = vunpack.c.l.b16 %v335
      %v1224 = vunpack.c.l.b16 %v336
      %v1225 = vunpack.c.l.b16 %v337
      %v1226 = vunpack.c.l.b16 %v338
      %v1227 = vunpack.c.l.b16 %v339
      %v1228 = vunpack.c.l.b16 %v340
      %v1229 = vunpack.c.l.b16 %v341
      %v1230 = vunpack.c.l.b16 %v342
      %v1231 = vunpack.c.l.b16 %v343
      %v1232 = vunpack.c.l.b16 %v344
      %v1233 = vunpack.c.l.b16 %v345
      %v1234 = vunpack.c.l.b16 %v346
      %v1235 = vunpack.c.l.b16 %v347
      %v1236 = vunpack.c.l.b16 %v348
      %v1237 = vunpack.c.l.b16 %v349
      %v1238 = vunpack.c.l.b16 %v350
      %v1239 = vunpack.c.l.b16 %v351
      %v1240 = vunpack.c.l.b16 %v352
      %v1241 = vunpack.c.l.b16 %v353
      %v1242 = vunpack.c.l.b16 %v354
      %v1243 = vunpack.c.l.b16 %v355
      %v1244 = vunpack.c.l.b16 %v356
      %v1245 = vunpack.c.l.b16 %v357
      %v1246 = vunpack.c.l.b16 %v358
      %v1247 = vunpack.c.l.b16 %v359
      %v1248 = vunpack.c.l.b16 %v360
      %v1249 = vunpack.c.l.b16 %v361
      %v1250 = vunpack.c.l.b16 %v362
      %v1251 = vunpack.c.l.b16 %v363
      %v1252 = vunpack.c.l.b16 %v364
      %v1253 = vunpack.c.l.b16 %v365
      %v1254 = vunpack.c.l.b16 %v366
      %v1255 = vunpack.c.l.b16 %v367
      %v1256 = vunpack.c.l.b16 %v368
      %v1257 = vunpack.c.l.b16 %v369
      %v1258 = vunpack.c.l.b16 %v370
      %v1259 = vunpack.c.l.b16 %v371
      %v1260 = vunpack.c.l.b16 %v372
      %v1261 = vunpack.c.l.b16 %v373
      %v1262 = vunpack.c.l.b16 %v374
      %v1263 = vunpack.c.l.b16 %v375
      %v1264 = vunpack.c.l.b16 %v376
      %v1265 = vunpack.c.l.b16 %v377
      %v1266 = vunpack.c.l.b16 %v378
      %v1267 = vunpack.c.l.b16 %v379
      %v1268 = vunpack.c.l.b16 %v380
      %v1269 = vunpack.c.l.b16 %v381
      %v1270 = vunpack.c.l.b16 %v382
      %v1271 = vunpack.c.l.b16 %v383
      %v1272 = vunpack.c.l.b16 %v384
      %v1273 = vunpack.c.l.b16 %v385
      %v1274 = vunpack.c.l.b16 %v386
      %v1275 = vunpack.c.l.b16 %v387
      %v1276 = vunpack.c.l.b16 %v388
      %v1277 = vunpack.c.l.b16 %v389
      %v1278 = vunpack.c.l.b16 %v390
      %v1279 = vunpack.c.l.b16 %v391
      %v1280 = vunpack.c.l.b16 %v392
      %v1281 = vunpack.c.l.b16 %v393
      %v1282 = vunpack.c.l.b16 %v394
      %v1283 = vunpack.c.l.b16 %v395
      %v1284 = vunpack.c.l.b16 %v396
      %v1285 = vunpack.c.l.b16 %v397
      %v1286 = vunpack.c.l.b16 %v398
      %v1287 = vpack.c.b16 %v1224, %v1223
      %v1288 = vpack.c.b16 %v1226, %v1225
      %v1289 = vpack.c.b16 %v1228, %v1227
      %v1290 = vpack.c.b16 %v1230, %v1229
      %v1291 = vpack.c.b16 %v1232, %v1231
      %v1292 = vpack.c.b16 %v1234, %v1233
      %v1293 = vpack.c.b16 %v1236, %v1235
      %v1294 = vpack.c.b16 %v1238, %v1237
      %v1295 = vpack.c.b16 %v1240, %v1239
      %v1296 = vpack.c.b16 %v1242, %v1241
      %v1297 = vpack.c.b16 %v1244, %v1243
      %v1298 = vpack.c.b16 %v1246, %v1245
      %v1299 = vpack.c.b16 %v1248, %v1247
      %v1300 = vpack.c.b16 %v1250, %v1249
      %v1301 = vpack.c.b16 %v1252, %v1251
      %v1302 = vpack.c.b16 %v1254, %v1253
      %v1303 = vpack.c.b16 %v1256, %v1255
      %v1304 = vpack.c.b16 %v1258, %v1257
      %v1305 = vpack.c.b16 %v1260, %v1259
      %v1306 = vpack.c.b16 %v1262, %v1261
      %v1307 = vpack.c.b16 %v1264, %v1263
      %v1308 = vpack.c.b16 %v1266, %v1265
      %v1309 = vpack.c.b16 %v1268, %v1267
      %v1310 = vpack.c.b16 %v1270, %v1269
      %v1311 = vpack.c.b16 %v1272, %v1271
      %v1312 = vpack.c.b16 %v1274, %v1273
      %v1313 = vpack.c.b16 %v1276, %v1275
      %v1314 = vpack.c.b16 %v1278, %v1277
      %v1315 = vpack.c.b16 %v1280, %v1279
      %v1316 = vpack.c.b16 %v1282, %v1281
      %v1317 = vpack.c.b16 %v1284, %v1283
      %v1318 = vpack.c.b16 %v1286, %v1285
      %1351 = vmatpush.bf16.msra.mxu0 %v1294
      %1352 = vmatpush.bf16.msra.mxu0 %v1293
      %1353 = vmatpush.bf16.msra.mxu0 %v1292
      %1354 = vmatpush.bf16.msra.mxu0 %v1291
      %1355 = vmatpush.bf16.msra.mxu0 %v1290
      %1356 = vmatpush.bf16.msra.mxu0 %v1289
      %1357 = vmatpush.bf16.msra.mxu0 %v1288
      %1358 = vmatpush.bf16.msra.mxu0 %v1287
      %1359 = vmatmul.bf16.gmra.mxu0 %v1127
      %v1360 = vpop.f32.mrf.mxu0
      %v1361 = vadd.f32 %v1060, %v1360
      %v1362 = vpop.f32.mrf.mxu0
      %v1363 = vadd.f32 %v1062, %v1362
      %1364 = vmatmul.bf16.gmra.mxu0 %v1131
      %v1365 = vpop.f32.mrf.mxu0
      %v1366 = vadd.f32 %v1065, %v1365
      %v1367 = vpop.f32.mrf.mxu0
      %v1368 = vadd.f32 %v1067, %v1367
      %1369 = vmatmul.bf16.gmra.mxu0 %v1135
      %v1370 = vpop.f32.mrf.mxu0
      %v1371 = vadd.f32 %v1070, %v1370
      %v1372 = vpop.f32.mrf.mxu0
      %v1373 = vadd.f32 %v1072, %v1372
      %1374 = vmatmul.bf16.gmra.mxu0 %v1139
      %v1375 = vpop.f32.mrf.mxu0
      %v1376 = vadd.f32 %v1075, %v1375
      %v1377 = vpop.f32.mrf.mxu0
      %v1378 = vadd.f32 %v1077, %v1377
      %1379 = vdwg.mxu0
      %1380 = vmatpush.bf16.msra.mxu0 %v1302
      %1381 = vmatpush.bf16.msra.mxu0 %v1301
      %1382 = vmatpush.bf16.msra.mxu0 %v1300
      %1383 = vmatpush.bf16.msra.mxu0 %v1299
      %1384 = vmatpush.bf16.msra.mxu0 %v1298
      %1385 = vmatpush.bf16.msra.mxu0 %v1297
      %1386 = vmatpush.bf16.msra.mxu0 %v1296
      %1387 = vmatpush.bf16.msra.mxu0 %v1295
      %1388 = vmatmul.bf16.gmra.mxu0 %v1128
      %v1389 = vpop.f32.mrf.mxu0
      %v1390 = vadd.f32 %v1361, %v1389
      %v1391 = vpop.f32.mrf.mxu0
      %v1392 = vadd.f32 %v1363, %v1391
      %1393 = vmatmul.bf16.gmra.mxu0 %v1132
      %v1394 = vpop.f32.mrf.mxu0
      %v1395 = vadd.f32 %v1366, %v1394
      %v1396 = vpop.f32.mrf.mxu0
      %v1397 = vadd.f32 %v1368, %v1396
      %1398 = vmatmul.bf16.gmra.mxu0 %v1136
      %v1399 = vpop.f32.mrf.mxu0
      %v1400 = vadd.f32 %v1371, %v1399
      %v1401 = vpop.f32.mrf.mxu0
      %v1402 = vadd.f32 %v1373, %v1401
      %1403 = vmatmul.bf16.gmra.mxu0 %v1140
      %v1404 = vpop.f32.mrf.mxu0
      %v1405 = vadd.f32 %v1376, %v1404
      %v1406 = vpop.f32.mrf.mxu0
      %v1407 = vadd.f32 %v1378, %v1406
      %1408 = vdwg.mxu0
      %1409 = vmatpush.bf16.msra.mxu0 %v1310
      %1410 = vmatpush.bf16.msra.mxu0 %v1309
      %1411 = vmatpush.bf16.msra.mxu0 %v1308
      %1412 = vmatpush.bf16.msra.mxu0 %v1307
      %1413 = vmatpush.bf16.msra.mxu0 %v1306
      %1414 = vmatpush.bf16.msra.mxu0 %v1305
      %1415 = vmatpush.bf16.msra.mxu0 %v1304
      %1416 = vmatpush.bf16.msra.mxu0 %v1303
      %1417 = vmatmul.bf16.gmra.mxu0 %v1129
      %v1418 = vpop.f32.mrf.mxu0
      %v1419 = vadd.f32 %v1390, %v1418
      %v1420 = vpop.f32.mrf.mxu0
      %v1421 = vadd.f32 %v1392, %v1420
      %1422 = vmatmul.bf16.gmra.mxu0 %v1133
      %v1423 = vpop.f32.mrf.mxu0
      %v1424 = vadd.f32 %v1395, %v1423
      %v1425 = vpop.f32.mrf.mxu0
      %v1426 = vadd.f32 %v1397, %v1425
      %1427 = vmatmul.bf16.gmra.mxu0 %v1137
      %v1428 = vpop.f32.mrf.mxu0
      %v1429 = vadd.f32 %v1400, %v1428
      %v1430 = vpop.f32.mrf.mxu0
      %v1431 = vadd.f32 %v1402, %v1430
      %1432 = vmatmul.bf16.gmra.mxu0 %v1141
      %v1433 = vpop.f32.mrf.mxu0
      %v1434 = vadd.f32 %v1405, %v1433
      %v1435 = vpop.f32.mrf.mxu0
      %v1436 = vadd.f32 %v1407, %v1435
      %1437 = vdwg.mxu0
      %1438 = vmatpush.bf16.msra.mxu0 %v1318
      %1439 = vmatpush.bf16.msra.mxu0 %v1317
      %1440 = vmatpush.bf16.msra.mxu0 %v1316
      %1441 = vmatpush.bf16.msra.mxu0 %v1315
      %1442 = vmatpush.bf16.msra.mxu0 %v1314
      %1443 = vmatpush.bf16.msra.mxu0 %v1313
      %1444 = vmatpush.bf16.msra.mxu0 %v1312
      %1445 = vmatpush.bf16.msra.mxu0 %v1311
      %1446 = vmatmul.bf16.gmra.mxu0 %v1130
      %v1447 = vpop.f32.mrf.mxu0
      %v1448 = vadd.f32 %v1419, %v1447
      %v1449 = vpop.f32.mrf.mxu0
      %v1450 = vadd.f32 %v1421, %v1449
      %1451 = vmatmul.bf16.gmra.mxu0 %v1134
      %v1452 = vpop.f32.mrf.mxu0
      %v1453 = vadd.f32 %v1424, %v1452
      %v1454 = vpop.f32.mrf.mxu0
      %v1455 = vadd.f32 %v1426, %v1454
      %1456 = vmatmul.bf16.gmra.mxu0 %v1138
      %v1457 = vpop.f32.mrf.mxu0
      %v1458 = vadd.f32 %v1429, %v1457
      %v1459 = vpop.f32.mrf.mxu0
      %v1460 = vadd.f32 %v1431, %v1459
      %1461 = vmatmul.bf16.gmra.mxu0 %v1142
      %v1462 = vpop.f32.mrf.mxu0
      %v1463 = vadd.f32 %v1434, %v1462
      %v1464 = vpop.f32.mrf.mxu0
      %v1465 = vadd.f32 %v1436, %v1464
      %1466 = vdwg.mxu0
      %s1467 = scalar_lea.vmem %s308, 32
      %v1468 = vld [vmem:[%s1467] sm:$0xff]
      %v1469 = vld [vmem:[%s1467 + $0x8] sm:$0xff]
      %v1470 = vld [vmem:[%s1467 + $0x20] sm:$0xff]
      %v1471 = vld [vmem:[%s1467 + $0x28] sm:$0xff]
      %v1472 = vld [vmem:[%s1467 + $0x40] sm:$0xff]
      %v1473 = vld [vmem:[%s1467 + $0x48] sm:$0xff]
      %v1474 = vld [vmem:[%s1467 + $0x60] sm:$0xff]
      %v1475 = vld [vmem:[%s1467 + $0x68] sm:$0xff]
      %v1476 = vld [vmem:[%s1467 + $0x80] sm:$0xff]
      %v1477 = vld [vmem:[%s1467 + $0x88] sm:$0xff]
      %v1478 = vld [vmem:[%s1467 + $0xa0] sm:$0xff]
      %v1479 = vld [vmem:[%s1467 + $0xa8] sm:$0xff]
      %v1480 = vld [vmem:[%s1467 + $0xc0] sm:$0xff]
      %v1481 = vld [vmem:[%s1467 + $0xc8] sm:$0xff]
      %v1482 = vld [vmem:[%s1467 + $0xe0] sm:$0xff]
      %v1483 = vld [vmem:[%s1467 + $0xe8] sm:$0xff]
      %s1484 = scalar_lea.vmem %s1, 512
      %v1485 = vld [vmem:[%s1484] sm:$0xf]
      %v1486 = vld [vmem:[%s1484 + $0x4] sm:$0xf]
      %v1487 = vld [vmem:[%s1484 + $0x8] sm:$0xf]
      %v1488 = vld [vmem:[%s1484 + $0xc] sm:$0xf]
      %v1489 = vld [vmem:[%s1484 + $0x10] sm:$0xf]
      %v1490 = vld [vmem:[%s1484 + $0x14] sm:$0xf]
      %v1491 = vld [vmem:[%s1484 + $0x18] sm:$0xf]
      %v1492 = vld [vmem:[%s1484 + $0x1c] sm:$0xf]
      %v1493 = vld [vmem:[%s1484 + $0x20] sm:$0xf]
      %v1494 = vld [vmem:[%s1484 + $0x24] sm:$0xf]
      %v1495 = vld [vmem:[%s1484 + $0x28] sm:$0xf]
      %v1496 = vld [vmem:[%s1484 + $0x2c] sm:$0xf]
      %v1497 = vld [vmem:[%s1484 + $0x30] sm:$0xf]
      %v1498 = vld [vmem:[%s1484 + $0x34] sm:$0xf]
      %v1499 = vld [vmem:[%s1484 + $0x38] sm:$0xf]
      %v1500 = vld [vmem:[%s1484 + $0x3c] sm:$0xf]
      %v1501 = vld [vmem:[%s1484 + $0x40] sm:$0xf]
      %v1502 = vld [vmem:[%s1484 + $0x44] sm:$0xf]
      %v1503 = vld [vmem:[%s1484 + $0x48] sm:$0xf]
      %v1504 = vld [vmem:[%s1484 + $0x4c] sm:$0xf]
      %v1505 = vld [vmem:[%s1484 + $0x50] sm:$0xf]
      %v1506 = vld [vmem:[%s1484 + $0x54] sm:$0xf]
      %v1507 = vld [vmem:[%s1484 + $0x58] sm:$0xf]
      %v1508 = vld [vmem:[%s1484 + $0x5c] sm:$0xf]
      %v1509 = vld [vmem:[%s1484 + $0x60] sm:$0xf]
      %v1510 = vld [vmem:[%s1484 + $0x64] sm:$0xf]
      %v1511 = vld [vmem:[%s1484 + $0x68] sm:$0xf]
      %v1512 = vld [vmem:[%s1484 + $0x6c] sm:$0xf]
      %v1513 = vld [vmem:[%s1484 + $0x70] sm:$0xf]
      %v1514 = vld [vmem:[%s1484 + $0x74] sm:$0xf]
      %v1515 = vld [vmem:[%s1484 + $0x78] sm:$0xf]
      %v1516 = vld [vmem:[%s1484 + $0x7c] sm:$0xf]
      %v1517 = vld [vmem:[%s1484 + $0x80] sm:$0xf]
      %v1518 = vld [vmem:[%s1484 + $0x84] sm:$0xf]
      %v1519 = vld [vmem:[%s1484 + $0x88] sm:$0xf]
      %v1520 = vld [vmem:[%s1484 + $0x8c] sm:$0xf]
      %v1521 = vld [vmem:[%s1484 + $0x90] sm:$0xf]
      %v1522 = vld [vmem:[%s1484 + $0x94] sm:$0xf]
      %v1523 = vld [vmem:[%s1484 + $0x98] sm:$0xf]
      %v1524 = vld [vmem:[%s1484 + $0x9c] sm:$0xf]
      %v1525 = vld [vmem:[%s1484 + $0xa0] sm:$0xf]
      %v1526 = vld [vmem:[%s1484 + $0xa4] sm:$0xf]
      %v1527 = vld [vmem:[%s1484 + $0xa8] sm:$0xf]
      %v1528 = vld [vmem:[%s1484 + $0xac] sm:$0xf]
      %v1529 = vld [vmem:[%s1484 + $0xb0] sm:$0xf]
      %v1530 = vld [vmem:[%s1484 + $0xb4] sm:$0xf]
      %v1531 = vld [vmem:[%s1484 + $0xb8] sm:$0xf]
      %v1532 = vld [vmem:[%s1484 + $0xbc] sm:$0xf]
      %v1533 = vld [vmem:[%s1484 + $0xc0] sm:$0xf]
      %v1534 = vld [vmem:[%s1484 + $0xc4] sm:$0xf]
      %v1535 = vld [vmem:[%s1484 + $0xc8] sm:$0xf]
      %v1536 = vld [vmem:[%s1484 + $0xcc] sm:$0xf]
      %v1537 = vld [vmem:[%s1484 + $0xd0] sm:$0xf]
      %v1538 = vld [vmem:[%s1484 + $0xd4] sm:$0xf]
      %v1539 = vld [vmem:[%s1484 + $0xd8] sm:$0xf]
      %v1540 = vld [vmem:[%s1484 + $0xdc] sm:$0xf]
      %v1541 = vld [vmem:[%s1484 + $0xe0] sm:$0xf]
      %v1542 = vld [vmem:[%s1484 + $0xe4] sm:$0xf]
      %v1543 = vld [vmem:[%s1484 + $0xe8] sm:$0xf]
      %v1544 = vld [vmem:[%s1484 + $0xec] sm:$0xf]
      %v1545 = vld [vmem:[%s1484 + $0xf0] sm:$0xf]
      %v1546 = vld [vmem:[%s1484 + $0xf4] sm:$0xf]
      %v1547 = vld [vmem:[%s1484 + $0xf8] sm:$0xf]
      %v1548 = vld [vmem:[%s1484 + $0xfc] sm:$0xf]
      %v1565 = vunpack.c.l.b16 %v1468
      %v1566 = vunpack.c.h.b16 %v1468
      %v1567 = vunpack.c.l.b16 %v1469
      %v1568 = vunpack.c.h.b16 %v1469
      %v1569 = vunpack.c.l.b16 %v1470
      %v1570 = vunpack.c.h.b16 %v1470
      %v1571 = vunpack.c.l.b16 %v1471
      %v1572 = vunpack.c.h.b16 %v1471
      %v1573 = vunpack.c.l.b16 %v1472
      %v1574 = vunpack.c.h.b16 %v1472
      %v1575 = vunpack.c.l.b16 %v1473
      %v1576 = vunpack.c.h.b16 %v1473
      %v1577 = vunpack.c.l.b16 %v1474
      %v1578 = vunpack.c.h.b16 %v1474
      %v1579 = vunpack.c.l.b16 %v1475
      %v1580 = vunpack.c.h.b16 %v1475
      %v1581 = vunpack.c.l.b16 %v1476
      %v1582 = vunpack.c.h.b16 %v1476
      %v1583 = vunpack.c.l.b16 %v1477
      %v1584 = vunpack.c.h.b16 %v1477
      %v1585 = vunpack.c.l.b16 %v1478
      %v1586 = vunpack.c.h.b16 %v1478
      %v1587 = vunpack.c.l.b16 %v1479
      %v1588 = vunpack.c.h.b16 %v1479
      %v1589 = vunpack.c.l.b16 %v1480
      %v1590 = vunpack.c.h.b16 %v1480
      %v1591 = vunpack.c.l.b16 %v1481
      %v1592 = vunpack.c.h.b16 %v1481
      %v1593 = vunpack.c.l.b16 %v1482
      %v1594 = vunpack.c.h.b16 %v1482
      %v1595 = vunpack.c.l.b16 %v1483
      %v1596 = vunpack.c.h.b16 %v1483
      %v1597 = vpack.c.b16 %v1569, %v1565
      %v1598 = vpack.c.b16 %v1570, %v1566
      %v1599 = vpack.c.b16 %v1571, %v1567
      %v1600 = vpack.c.b16 %v1572, %v1568
      %v1601 = vpack.c.b16 %v1577, %v1573
      %v1602 = vpack.c.b16 %v1578, %v1574
      %v1603 = vpack.c.b16 %v1579, %v1575
      %v1604 = vpack.c.b16 %v1580, %v1576
      %v1605 = vpack.c.b16 %v1585, %v1581
      %v1606 = vpack.c.b16 %v1586, %v1582
      %v1607 = vpack.c.b16 %v1587, %v1583
      %v1608 = vpack.c.b16 %v1588, %v1584
      %v1609 = vpack.c.b16 %v1593, %v1589
      %v1610 = vpack.c.b16 %v1594, %v1590
      %v1611 = vpack.c.b16 %v1595, %v1591
      %v1612 = vpack.c.b16 %v1596, %v1592
      %v1693 = vunpack.c.l.b16 %v1485
      %v1694 = vunpack.c.l.b16 %v1486
      %v1695 = vunpack.c.l.b16 %v1487
      %v1696 = vunpack.c.l.b16 %v1488
      %v1697 = vunpack.c.l.b16 %v1489
      %v1698 = vunpack.c.l.b16 %v1490
      %v1699 = vunpack.c.l.b16 %v1491
      %v1700 = vunpack.c.l.b16 %v1492
      %v1701 = vunpack.c.l.b16 %v1493
      %v1702 = vunpack.c.l.b16 %v1494
      %v1703 = vunpack.c.l.b16 %v1495
      %v1704 = vunpack.c.l.b16 %v1496
      %v1705 = vunpack.c.l.b16 %v1497
      %v1706 = vunpack.c.l.b16 %v1498
      %v1707 = vunpack.c.l.b16 %v1499
      %v1708 = vunpack.c.l.b16 %v1500
      %v1709 = vunpack.c.l.b16 %v1501
      %v1710 = vunpack.c.l.b16 %v1502
      %v1711 = vunpack.c.l.b16 %v1503
      %v1712 = vunpack.c.l.b16 %v1504
      %v1713 = vunpack.c.l.b16 %v1505
      %v1714 = vunpack.c.l.b16 %v1506
      %v1715 = vunpack.c.l.b16 %v1507
      %v1716 = vunpack.c.l.b16 %v1508
      %v1717 = vunpack.c.l.b16 %v1509
      %v1718 = vunpack.c.l.b16 %v1510
      %v1719 = vunpack.c.l.b16 %v1511
      %v1720 = vunpack.c.l.b16 %v1512
      %v1721 = vunpack.c.l.b16 %v1513
      %v1722 = vunpack.c.l.b16 %v1514
      %v1723 = vunpack.c.l.b16 %v1515
      %v1724 = vunpack.c.l.b16 %v1516
      %v1725 = vunpack.c.l.b16 %v1517
      %v1726 = vunpack.c.l.b16 %v1518
      %v1727 = vunpack.c.l.b16 %v1519
      %v1728 = vunpack.c.l.b16 %v1520
      %v1729 = vunpack.c.l.b16 %v1521
      %v1730 = vunpack.c.l.b16 %v1522
      %v1731 = vunpack.c.l.b16 %v1523
      %v1732 = vunpack.c.l.b16 %v1524
      %v1733 = vunpack.c.l.b16 %v1525
      %v1734 = vunpack.c.l.b16 %v1526
      %v1735 = vunpack.c.l.b16 %v1527
      %v1736 = vunpack.c.l.b16 %v1528
      %v1737 = vunpack.c.l.b16 %v1529
      %v1738 = vunpack.c.l.b16 %v1530
      %v1739 = vunpack.c.l.b16 %v1531
      %v1740 = vunpack.c.l.b16 %v1532
      %v1741 = vunpack.c.l.b16 %v1533
      %v1742 = vunpack.c.l.b16 %v1534
      %v1743 = vunpack.c.l.b16 %v1535
      %v1744 = vunpack.c.l.b16 %v1536
      %v1745 = vunpack.c.l.b16 %v1537
      %v1746 = vunpack.c.l.b16 %v1538
      %v1747 = vunpack.c.l.b16 %v1539
      %v1748 = vunpack.c.l.b16 %v1540
      %v1749 = vunpack.c.l.b16 %v1541
      %v1750 = vunpack.c.l.b16 %v1542
      %v1751 = vunpack.c.l.b16 %v1543
      %v1752 = vunpack.c.l.b16 %v1544
      %v1753 = vunpack.c.l.b16 %v1545
      %v1754 = vunpack.c.l.b16 %v1546
      %v1755 = vunpack.c.l.b16 %v1547
      %v1756 = vunpack.c.l.b16 %v1548
      %v1757 = vpack.c.b16 %v1694, %v1693
      %v1758 = vpack.c.b16 %v1696, %v1695
      %v1759 = vpack.c.b16 %v1698, %v1697
      %v1760 = vpack.c.b16 %v1700, %v1699
      %v1761 = vpack.c.b16 %v1702, %v1701
      %v1762 = vpack.c.b16 %v1704, %v1703
      %v1763 = vpack.c.b16 %v1706, %v1705
      %v1764 = vpack.c.b16 %v1708, %v1707
      %v1765 = vpack.c.b16 %v1710, %v1709
      %v1766 = vpack.c.b16 %v1712, %v1711
      %v1767 = vpack.c.b16 %v1714, %v1713
      %v1768 = vpack.c.b16 %v1716, %v1715
      %v1769 = vpack.c.b16 %v1718, %v1717
      %v1770 = vpack.c.b16 %v1720, %v1719
      %v1771 = vpack.c.b16 %v1722, %v1721
      %v1772 = vpack.c.b16 %v1724, %v1723
      %v1773 = vpack.c.b16 %v1726, %v1725
      %v1774 = vpack.c.b16 %v1728, %v1727
      %v1775 = vpack.c.b16 %v1730, %v1729
      %v1776 = vpack.c.b16 %v1732, %v1731
      %v1777 = vpack.c.b16 %v1734, %v1733
      %v1778 = vpack.c.b16 %v1736, %v1735
      %v1779 = vpack.c.b16 %v1738, %v1737
      %v1780 = vpack.c.b16 %v1740, %v1739
      %v1781 = vpack.c.b16 %v1742, %v1741
      %v1782 = vpack.c.b16 %v1744, %v1743
      %v1783 = vpack.c.b16 %v1746, %v1745
      %v1784 = vpack.c.b16 %v1748, %v1747
      %v1785 = vpack.c.b16 %v1750, %v1749
      %v1786 = vpack.c.b16 %v1752, %v1751
      %v1787 = vpack.c.b16 %v1754, %v1753
      %v1788 = vpack.c.b16 %v1756, %v1755
      %1821 = vmatpush.bf16.msra.mxu0 %v1764
      %1822 = vmatpush.bf16.msra.mxu0 %v1763
      %1823 = vmatpush.bf16.msra.mxu0 %v1762
      %1824 = vmatpush.bf16.msra.mxu0 %v1761
      %1825 = vmatpush.bf16.msra.mxu0 %v1760
      %1826 = vmatpush.bf16.msra.mxu0 %v1759
      %1827 = vmatpush.bf16.msra.mxu0 %v1758
      %1828 = vmatpush.bf16.msra.mxu0 %v1757
      %1829 = vmatmul.bf16.gmra.mxu0 %v1597
      %v1830 = vpop.f32.mrf.mxu0
      %v1831 = vadd.f32 0.0, %v1830
      %v1832 = vpop.f32.mrf.mxu0
      %v1833 = vadd.f32 0.0, %v1832
      %1834 = vmatmul.bf16.gmra.mxu0 %v1601
      %v1835 = vpop.f32.mrf.mxu0
      %v1836 = vadd.f32 0.0, %v1835
      %v1837 = vpop.f32.mrf.mxu0
      %v1838 = vadd.f32 0.0, %v1837
      %1839 = vmatmul.bf16.gmra.mxu0 %v1605
      %v1840 = vpop.f32.mrf.mxu0
      %v1841 = vadd.f32 0.0, %v1840
      %v1842 = vpop.f32.mrf.mxu0
      %v1843 = vadd.f32 0.0, %v1842
      %1844 = vmatmul.bf16.gmra.mxu0 %v1609
      %v1845 = vpop.f32.mrf.mxu0
      %v1846 = vadd.f32 0.0, %v1845
      %v1847 = vpop.f32.mrf.mxu0
      %v1848 = vadd.f32 0.0, %v1847
      %1849 = vdwg.mxu0
      %1850 = vmatpush.bf16.msra.mxu0 %v1772
      %1851 = vmatpush.bf16.msra.mxu0 %v1771
      %1852 = vmatpush.bf16.msra.mxu0 %v1770
      %1853 = vmatpush.bf16.msra.mxu0 %v1769
      %1854 = vmatpush.bf16.msra.mxu0 %v1768
      %1855 = vmatpush.bf16.msra.mxu0 %v1767
      %1856 = vmatpush.bf16.msra.mxu0 %v1766
      %1857 = vmatpush.bf16.msra.mxu0 %v1765
      %1858 = vmatmul.bf16.gmra.mxu0 %v1598
      %v1859 = vpop.f32.mrf.mxu0
      %v1860 = vadd.f32 %v1831, %v1859
      %v1861 = vpop.f32.mrf.mxu0
      %v1862 = vadd.f32 %v1833, %v1861
      %1863 = vmatmul.bf16.gmra.mxu0 %v1602
      %v1864 = vpop.f32.mrf.mxu0
      %v1865 = vadd.f32 %v1836, %v1864
      %v1866 = vpop.f32.mrf.mxu0
      %v1867 = vadd.f32 %v1838, %v1866
      %1868 = vmatmul.bf16.gmra.mxu0 %v1606
      %v1869 = vpop.f32.mrf.mxu0
      %v1870 = vadd.f32 %v1841, %v1869
      %v1871 = vpop.f32.mrf.mxu0
      %v1872 = vadd.f32 %v1843, %v1871
      %1873 = vmatmul.bf16.gmra.mxu0 %v1610
      %v1874 = vpop.f32.mrf.mxu0
      %v1875 = vadd.f32 %v1846, %v1874
      %v1876 = vpop.f32.mrf.mxu0
      %v1877 = vadd.f32 %v1848, %v1876
      %1878 = vdwg.mxu0
      %1879 = vmatpush.bf16.msra.mxu0 %v1780
      %1880 = vmatpush.bf16.msra.mxu0 %v1779
      %1881 = vmatpush.bf16.msra.mxu0 %v1778
      %1882 = vmatpush.bf16.msra.mxu0 %v1777
      %1883 = vmatpush.bf16.msra.mxu0 %v1776
      %1884 = vmatpush.bf16.msra.mxu0 %v1775
      %1885 = vmatpush.bf16.msra.mxu0 %v1774
      %1886 = vmatpush.bf16.msra.mxu0 %v1773
      %1887 = vmatmul.bf16.gmra.mxu0 %v1599
      %v1888 = vpop.f32.mrf.mxu0
      %v1889 = vadd.f32 %v1860, %v1888
      %v1890 = vpop.f32.mrf.mxu0
      %v1891 = vadd.f32 %v1862, %v1890
      %1892 = vmatmul.bf16.gmra.mxu0 %v1603
      %v1893 = vpop.f32.mrf.mxu0
      %v1894 = vadd.f32 %v1865, %v1893
      %v1895 = vpop.f32.mrf.mxu0
      %v1896 = vadd.f32 %v1867, %v1895
      %1897 = vmatmul.bf16.gmra.mxu0 %v1607
      %v1898 = vpop.f32.mrf.mxu0
      %v1899 = vadd.f32 %v1870, %v1898
      %v1900 = vpop.f32.mrf.mxu0
      %v1901 = vadd.f32 %v1872, %v1900
      %1902 = vmatmul.bf16.gmra.mxu0 %v1611
      %v1903 = vpop.f32.mrf.mxu0
      %v1904 = vadd.f32 %v1875, %v1903
      %v1905 = vpop.f32.mrf.mxu0
      %v1906 = vadd.f32 %v1877, %v1905
      %1907 = vdwg.mxu0
      %1908 = vmatpush.bf16.msra.mxu0 %v1788
      %1909 = vmatpush.bf16.msra.mxu0 %v1787
      %1910 = vmatpush.bf16.msra.mxu0 %v1786
      %1911 = vmatpush.bf16.msra.mxu0 %v1785
      %1912 = vmatpush.bf16.msra.mxu0 %v1784
      %1913 = vmatpush.bf16.msra.mxu0 %v1783
      %1914 = vmatpush.bf16.msra.mxu0 %v1782
      %1915 = vmatpush.bf16.msra.mxu0 %v1781
      %1916 = vmatmul.bf16.gmra.mxu0 %v1600
      %v1917 = vpop.f32.mrf.mxu0
      %v1918 = vadd.f32 %v1889, %v1917
      %v1919 = vpop.f32.mrf.mxu0
      %v1920 = vadd.f32 %v1891, %v1919
      %1921 = vmatmul.bf16.gmra.mxu0 %v1604
      %v1922 = vpop.f32.mrf.mxu0
      %v1923 = vadd.f32 %v1894, %v1922
      %v1924 = vpop.f32.mrf.mxu0
      %v1925 = vadd.f32 %v1896, %v1924
      %1926 = vmatmul.bf16.gmra.mxu0 %v1608
      %v1927 = vpop.f32.mrf.mxu0
      %v1928 = vadd.f32 %v1899, %v1927
      %v1929 = vpop.f32.mrf.mxu0
      %v1930 = vadd.f32 %v1901, %v1929
      %1931 = vmatmul.bf16.gmra.mxu0 %v1612
      %v1932 = vpop.f32.mrf.mxu0
      %v1933 = vadd.f32 %v1904, %v1932
      %v1934 = vpop.f32.mrf.mxu0
      %v1935 = vadd.f32 %v1906, %v1934
      %1936 = vdwg.mxu0
      %v1937 = vadd.f32 %v1448, %v1918
      %v1938 = vadd.f32 %v1450, %v1920
      %v1939 = vadd.f32 %v1453, %v1923
      %v1940 = vadd.f32 %v1455, %v1925
      %v1941 = vadd.f32 %v1458, %v1928
      %v1942 = vadd.f32 %v1460, %v1930
      %v1943 = vadd.f32 %v1463, %v1933
      %v1944 = vadd.f32 %v1465, %v1935
      %v1945 = vld [vmem:[%s1467] sm:$0xff]
      %v1946 = vld [vmem:[%s1467 + $0x8] sm:$0xff]
      %v1947 = vld [vmem:[%s1467 + $0x10] sm:$0x11]
      %v1948 = vld [vmem:[%s1467 + $0x18] sm:$0x11]
      %v1949 = vld [vmem:[%s1467 + $0x20] sm:$0xff]
      %v1950 = vld [vmem:[%s1467 + $0x28] sm:$0xff]
      %v1951 = vld [vmem:[%s1467 + $0x30] sm:$0x11]
      %v1952 = vld [vmem:[%s1467 + $0x38] sm:$0x11]
      %v1953 = vld [vmem:[%s1467 + $0x40] sm:$0xff]
      %v1954 = vld [vmem:[%s1467 + $0x48] sm:$0xff]
      %v1955 = vld [vmem:[%s1467 + $0x50] sm:$0x11]
      %v1956 = vld [vmem:[%s1467 + $0x58] sm:$0x11]
      %v1957 = vld [vmem:[%s1467 + $0x60] sm:$0xff]
      %v1958 = vld [vmem:[%s1467 + $0x68] sm:$0xff]
      %v1959 = vld [vmem:[%s1467 + $0x70] sm:$0x11]
      %v1960 = vld [vmem:[%s1467 + $0x78] sm:$0x11]
      %v1961 = vld [vmem:[%s1467 + $0x80] sm:$0xff]
      %v1962 = vld [vmem:[%s1467 + $0x88] sm:$0xff]
      %v1963 = vld [vmem:[%s1467 + $0x90] sm:$0x11]
      %v1964 = vld [vmem:[%s1467 + $0x98] sm:$0x11]
      %v1965 = vld [vmem:[%s1467 + $0xa0] sm:$0xff]
      %v1966 = vld [vmem:[%s1467 + $0xa8] sm:$0xff]
      %v1967 = vld [vmem:[%s1467 + $0xb0] sm:$0x11]
      %v1968 = vld [vmem:[%s1467 + $0xb8] sm:$0x11]
      %v1969 = vld [vmem:[%s1467 + $0xc0] sm:$0xff]
      %v1970 = vld [vmem:[%s1467 + $0xc8] sm:$0xff]
      %v1971 = vld [vmem:[%s1467 + $0xd0] sm:$0x11]
      %v1972 = vld [vmem:[%s1467 + $0xd8] sm:$0x11]
      %v1973 = vld [vmem:[%s1467 + $0xe0] sm:$0xff]
      %v1974 = vld [vmem:[%s1467 + $0xe8] sm:$0xff]
      %v1975 = vld [vmem:[%s1467 + $0xf0] sm:$0x11]
      %v1976 = vld [vmem:[%s1467 + $0xf8] sm:$0x11]
      %v1978 = vshrl.u32 %v1945, 16
      %v1980 = vrot.slane %v1978, 4
      %v1981 = vshll.u32 %v1945, 16
      %v1983 = vrot.slane %v1981, 5
      %v1984 = vor.u32 %v1980, %v1983
      %v1985 = vrot.slane %v1984, 4
      %v1987 = vshll.u32 %v1947, 16
      %v1989 = vrot.slane %v1987, 5
      %v1990 = vsel %vm417, %v1985, %v1989
      %v1992 = vshrl.u32 %v1946, 16
      %v1994 = vrot.slane %v1992, 4
      %v1995 = vshll.u32 %v1946, 16
      %v1997 = vrot.slane %v1995, 5
      %v1998 = vor.u32 %v1994, %v1997
      %v1999 = vrot.slane %v1998, 4
      %v2001 = vshll.u32 %v1948, 16
      %v2003 = vrot.slane %v2001, 5
      %v2004 = vsel %vm417, %v1999, %v2003
      %v2006 = vshrl.u32 %v1949, 16
      %v2008 = vrot.slane %v2006, 4
      %v2009 = vshll.u32 %v1949, 16
      %v2011 = vrot.slane %v2009, 5
      %v2012 = vor.u32 %v2008, %v2011
      %v2013 = vrot.slane %v2012, 4
      %v2015 = vshll.u32 %v1951, 16
      %v2017 = vrot.slane %v2015, 5
      %v2018 = vsel %vm417, %v2013, %v2017
      %v2020 = vshrl.u32 %v1950, 16
      %v2022 = vrot.slane %v2020, 4
      %v2023 = vshll.u32 %v1950, 16
      %v2025 = vrot.slane %v2023, 5
      %v2026 = vor.u32 %v2022, %v2025
      %v2027 = vrot.slane %v2026, 4
      %v2029 = vshll.u32 %v1952, 16
      %v2031 = vrot.slane %v2029, 5
      %v2032 = vsel %vm417, %v2027, %v2031
      %v2034 = vshrl.u32 %v1953, 16
      %v2036 = vrot.slane %v2034, 4
      %v2037 = vshll.u32 %v1953, 16
      %v2039 = vrot.slane %v2037, 5
      %v2040 = vor.u32 %v2036, %v2039
      %v2041 = vrot.slane %v2040, 4
      %v2043 = vshll.u32 %v1955, 16
      %v2045 = vrot.slane %v2043, 5
      %v2046 = vsel %vm417, %v2041, %v2045
      %v2048 = vshrl.u32 %v1954, 16
      %v2050 = vrot.slane %v2048, 4
      %v2051 = vshll.u32 %v1954, 16
      %v2053 = vrot.slane %v2051, 5
      %v2054 = vor.u32 %v2050, %v2053
      %v2055 = vrot.slane %v2054, 4
      %v2057 = vshll.u32 %v1956, 16
      %v2059 = vrot.slane %v2057, 5
      %v2060 = vsel %vm417, %v2055, %v2059
      %v2062 = vshrl.u32 %v1957, 16
      %v2064 = vrot.slane %v2062, 4
      %v2065 = vshll.u32 %v1957, 16
      %v2067 = vrot.slane %v2065, 5
      %v2068 = vor.u32 %v2064, %v2067
      %v2069 = vrot.slane %v2068, 4
      %v2071 = vshll.u32 %v1959, 16
      %v2073 = vrot.slane %v2071, 5
      %v2074 = vsel %vm417, %v2069, %v2073
      %v2076 = vshrl.u32 %v1958, 16
      %v2078 = vrot.slane %v2076, 4
      %v2079 = vshll.u32 %v1958, 16
      %v2081 = vrot.slane %v2079, 5
      %v2082 = vor.u32 %v2078, %v2081
      %v2083 = vrot.slane %v2082, 4
      %v2085 = vshll.u32 %v1960, 16
      %v2087 = vrot.slane %v2085, 5
      %v2088 = vsel %vm417, %v2083, %v2087
      %v2090 = vshrl.u32 %v1961, 16
      %v2092 = vrot.slane %v2090, 4
      %v2093 = vshll.u32 %v1961, 16
      %v2095 = vrot.slane %v2093, 5
      %v2096 = vor.u32 %v2092, %v2095
      %v2097 = vrot.slane %v2096, 4
      %v2099 = vshll.u32 %v1963, 16
      %v2101 = vrot.slane %v2099, 5
      %v2102 = vsel %vm417, %v2097, %v2101
      %v2104 = vshrl.u32 %v1962, 16
      %v2106 = vrot.slane %v2104, 4
      %v2107 = vshll.u32 %v1962, 16
      %v2109 = vrot.slane %v2107, 5
      %v2110 = vor.u32 %v2106, %v2109
      %v2111 = vrot.slane %v2110, 4
      %v2113 = vshll.u32 %v1964, 16
      %v2115 = vrot.slane %v2113, 5
      %v2116 = vsel %vm417, %v2111, %v2115
      %v2118 = vshrl.u32 %v1965, 16
      %v2120 = vrot.slane %v2118, 4
      %v2121 = vshll.u32 %v1965, 16
      %v2123 = vrot.slane %v2121, 5
      %v2124 = vor.u32 %v2120, %v2123
      %v2125 = vrot.slane %v2124, 4
      %v2127 = vshll.u32 %v1967, 16
      %v2129 = vrot.slane %v2127, 5
      %v2130 = vsel %vm417, %v2125, %v2129
      %v2132 = vshrl.u32 %v1966, 16
      %v2134 = vrot.slane %v2132, 4
      %v2135 = vshll.u32 %v1966, 16
      %v2137 = vrot.slane %v2135, 5
      %v2138 = vor.u32 %v2134, %v2137
      %v2139 = vrot.slane %v2138, 4
      %v2141 = vshll.u32 %v1968, 16
      %v2143 = vrot.slane %v2141, 5
      %v2144 = vsel %vm417, %v2139, %v2143
      %v2146 = vshrl.u32 %v1969, 16
      %v2148 = vrot.slane %v2146, 4
      %v2149 = vshll.u32 %v1969, 16
      %v2151 = vrot.slane %v2149, 5
      %v2152 = vor.u32 %v2148, %v2151
      %v2153 = vrot.slane %v2152, 4
      %v2155 = vshll.u32 %v1971, 16
      %v2157 = vrot.slane %v2155, 5
      %v2158 = vsel %vm417, %v2153, %v2157
      %v2160 = vshrl.u32 %v1970, 16
      %v2162 = vrot.slane %v2160, 4
      %v2163 = vshll.u32 %v1970, 16
      %v2165 = vrot.slane %v2163, 5
      %v2166 = vor.u32 %v2162, %v2165
      %v2167 = vrot.slane %v2166, 4
      %v2169 = vshll.u32 %v1972, 16
      %v2171 = vrot.slane %v2169, 5
      %v2172 = vsel %vm417, %v2167, %v2171
      %v2174 = vshrl.u32 %v1973, 16
      %v2176 = vrot.slane %v2174, 4
      %v2177 = vshll.u32 %v1973, 16
      %v2179 = vrot.slane %v2177, 5
      %v2180 = vor.u32 %v2176, %v2179
      %v2181 = vrot.slane %v2180, 4
      %v2183 = vshll.u32 %v1975, 16
      %v2185 = vrot.slane %v2183, 5
      %v2186 = vsel %vm417, %v2181, %v2185
      %v2188 = vshrl.u32 %v1974, 16
      %v2190 = vrot.slane %v2188, 4
      %v2191 = vshll.u32 %v1974, 16
      %v2193 = vrot.slane %v2191, 5
      %v2194 = vor.u32 %v2190, %v2193
      %v2195 = vrot.slane %v2194, 4
      %v2197 = vshll.u32 %v1976, 16
      %v2199 = vrot.slane %v2197, 5
      %v2200 = vsel %vm417, %v2195, %v2199
      %s2201 = scalar_lea.vmem %s1, 768
      %v2202 = vld [vmem:[%s2201] sm:$0xf]
      %v2203 = vld [vmem:[%s2201 + $0x4] sm:$0xf]
      %v2204 = vld [vmem:[%s2201 + $0x8] sm:$0xf]
      %v2205 = vld [vmem:[%s2201 + $0xc] sm:$0xf]
      %v2206 = vld [vmem:[%s2201 + $0x10] sm:$0xf]
      %v2207 = vld [vmem:[%s2201 + $0x14] sm:$0xf]
      %v2208 = vld [vmem:[%s2201 + $0x18] sm:$0xf]
      %v2209 = vld [vmem:[%s2201 + $0x1c] sm:$0xf]
      %v2210 = vld [vmem:[%s2201 + $0x20] sm:$0xf]
      %v2211 = vld [vmem:[%s2201 + $0x24] sm:$0xf]
      %v2212 = vld [vmem:[%s2201 + $0x28] sm:$0xf]
      %v2213 = vld [vmem:[%s2201 + $0x2c] sm:$0xf]
      %v2214 = vld [vmem:[%s2201 + $0x30] sm:$0xf]
      %v2215 = vld [vmem:[%s2201 + $0x34] sm:$0xf]
      %v2216 = vld [vmem:[%s2201 + $0x38] sm:$0xf]
      %v2217 = vld [vmem:[%s2201 + $0x3c] sm:$0xf]
      %v2218 = vld [vmem:[%s2201 + $0x40] sm:$0xf]
      %v2219 = vld [vmem:[%s2201 + $0x44] sm:$0xf]
      %v2220 = vld [vmem:[%s2201 + $0x48] sm:$0xf]
      %v2221 = vld [vmem:[%s2201 + $0x4c] sm:$0xf]
      %v2222 = vld [vmem:[%s2201 + $0x50] sm:$0xf]
      %v2223 = vld [vmem:[%s2201 + $0x54] sm:$0xf]
      %v2224 = vld [vmem:[%s2201 + $0x58] sm:$0xf]
      %v2225 = vld [vmem:[%s2201 + $0x5c] sm:$0xf]
      %v2226 = vld [vmem:[%s2201 + $0x60] sm:$0xf]
      %v2227 = vld [vmem:[%s2201 + $0x64] sm:$0xf]
      %v2228 = vld [vmem:[%s2201 + $0x68] sm:$0xf]
      %v2229 = vld [vmem:[%s2201 + $0x6c] sm:$0xf]
      %v2230 = vld [vmem:[%s2201 + $0x70] sm:$0xf]
      %v2231 = vld [vmem:[%s2201 + $0x74] sm:$0xf]
      %v2232 = vld [vmem:[%s2201 + $0x78] sm:$0xf]
      %v2233 = vld [vmem:[%s2201 + $0x7c] sm:$0xf]
      %v2234 = vld [vmem:[%s2201 + $0x80] sm:$0xf]
      %v2235 = vld [vmem:[%s2201 + $0x84] sm:$0xf]
      %v2236 = vld [vmem:[%s2201 + $0x88] sm:$0xf]
      %v2237 = vld [vmem:[%s2201 + $0x8c] sm:$0xf]
      %v2238 = vld [vmem:[%s2201 + $0x90] sm:$0xf]
      %v2239 = vld [vmem:[%s2201 + $0x94] sm:$0xf]
      %v2240 = vld [vmem:[%s2201 + $0x98] sm:$0xf]
      %v2241 = vld [vmem:[%s2201 + $0x9c] sm:$0xf]
      %v2242 = vld [vmem:[%s2201 + $0xa0] sm:$0xf]
      %v2243 = vld [vmem:[%s2201 + $0xa4] sm:$0xf]
      %v2244 = vld [vmem:[%s2201 + $0xa8] sm:$0xf]
      %v2245 = vld [vmem:[%s2201 + $0xac] sm:$0xf]
      %v2246 = vld [vmem:[%s2201 + $0xb0] sm:$0xf]
      %v2247 = vld [vmem:[%s2201 + $0xb4] sm:$0xf]
      %v2248 = vld [vmem:[%s2201 + $0xb8] sm:$0xf]
      %v2249 = vld [vmem:[%s2201 + $0xbc] sm:$0xf]
      %v2250 = vld [vmem:[%s2201 + $0xc0] sm:$0xf]
      %v2251 = vld [vmem:[%s2201 + $0xc4] sm:$0xf]
      %v2252 = vld [vmem:[%s2201 + $0xc8] sm:$0xf]
      %v2253 = vld [vmem:[%s2201 + $0xcc] sm:$0xf]
      %v2254 = vld [vmem:[%s2201 + $0xd0] sm:$0xf]
      %v2255 = vld [vmem:[%s2201 + $0xd4] sm:$0xf]
      %v2256 = vld [vmem:[%s2201 + $0xd8] sm:$0xf]
      %v2257 = vld [vmem:[%s2201 + $0xdc] sm:$0xf]
      %v2258 = vld [vmem:[%s2201 + $0xe0] sm:$0xf]
      %v2259 = vld [vmem:[%s2201 + $0xe4] sm:$0xf]
      %v2260 = vld [vmem:[%s2201 + $0xe8] sm:$0xf]
      %v2261 = vld [vmem:[%s2201 + $0xec] sm:$0xf]
      %v2262 = vld [vmem:[%s2201 + $0xf0] sm:$0xf]
      %v2263 = vld [vmem:[%s2201 + $0xf4] sm:$0xf]
      %v2264 = vld [vmem:[%s2201 + $0xf8] sm:$0xf]
      %v2265 = vld [vmem:[%s2201 + $0xfc] sm:$0xf]
      %v2266 = vunpack.c.l.b16 %v1990
      %v2267 = vunpack.c.h.b16 %v1990
      %v2268 = vunpack.c.l.b16 %v2004
      %v2269 = vunpack.c.h.b16 %v2004
      %v2270 = vunpack.c.l.b16 %v2018
      %v2271 = vunpack.c.h.b16 %v2018
      %v2272 = vunpack.c.l.b16 %v2032
      %v2273 = vunpack.c.h.b16 %v2032
      %v2274 = vunpack.c.l.b16 %v2046
      %v2275 = vunpack.c.h.b16 %v2046
      %v2276 = vunpack.c.l.b16 %v2060
      %v2277 = vunpack.c.h.b16 %v2060
      %v2278 = vunpack.c.l.b16 %v2074
      %v2279 = vunpack.c.h.b16 %v2074
      %v2280 = vunpack.c.l.b16 %v2088
      %v2281 = vunpack.c.h.b16 %v2088
      %v2282 = vunpack.c.l.b16 %v2102
      %v2283 = vunpack.c.h.b16 %v2102
      %v2284 = vunpack.c.l.b16 %v2116
      %v2285 = vunpack.c.h.b16 %v2116
      %v2286 = vunpack.c.l.b16 %v2130
      %v2287 = vunpack.c.h.b16 %v2130
      %v2288 = vunpack.c.l.b16 %v2144
      %v2289 = vunpack.c.h.b16 %v2144
      %v2290 = vunpack.c.l.b16 %v2158
      %v2291 = vunpack.c.h.b16 %v2158
      %v2292 = vunpack.c.l.b16 %v2172
      %v2293 = vunpack.c.h.b16 %v2172
      %v2294 = vunpack.c.l.b16 %v2186
      %v2295 = vunpack.c.h.b16 %v2186
      %v2296 = vunpack.c.l.b16 %v2200
      %v2297 = vunpack.c.h.b16 %v2200
      %v2298 = vpack.c.b16 %v2270, %v2266
      %v2299 = vpack.c.b16 %v2271, %v2267
      %v2300 = vpack.c.b16 %v2272, %v2268
      %v2301 = vpack.c.b16 %v2273, %v2269
      %v2302 = vpack.c.b16 %v2278, %v2274
      %v2303 = vpack.c.b16 %v2279, %v2275
      %v2304 = vpack.c.b16 %v2280, %v2276
      %v2305 = vpack.c.b16 %v2281, %v2277
      %v2306 = vpack.c.b16 %v2286, %v2282
      %v2307 = vpack.c.b16 %v2287, %v2283
      %v2308 = vpack.c.b16 %v2288, %v2284
      %v2309 = vpack.c.b16 %v2289, %v2285
      %v2310 = vpack.c.b16 %v2294, %v2290
      %v2311 = vpack.c.b16 %v2295, %v2291
      %v2312 = vpack.c.b16 %v2296, %v2292
      %v2313 = vpack.c.b16 %v2297, %v2293
      %v2394 = vunpack.c.l.b16 %v2202
      %v2395 = vunpack.c.l.b16 %v2203
      %v2396 = vunpack.c.l.b16 %v2204
      %v2397 = vunpack.c.l.b16 %v2205
      %v2398 = vunpack.c.l.b16 %v2206
      %v2399 = vunpack.c.l.b16 %v2207
      %v2400 = vunpack.c.l.b16 %v2208
      %v2401 = vunpack.c.l.b16 %v2209
      %v2402 = vunpack.c.l.b16 %v2210
      %v2403 = vunpack.c.l.b16 %v2211
      %v2404 = vunpack.c.l.b16 %v2212
      %v2405 = vunpack.c.l.b16 %v2213
      %v2406 = vunpack.c.l.b16 %v2214
      %v2407 = vunpack.c.l.b16 %v2215
      %v2408 = vunpack.c.l.b16 %v2216
      %v2409 = vunpack.c.l.b16 %v2217
      %v2410 = vunpack.c.l.b16 %v2218
      %v2411 = vunpack.c.l.b16 %v2219
      %v2412 = vunpack.c.l.b16 %v2220
      %v2413 = vunpack.c.l.b16 %v2221
      %v2414 = vunpack.c.l.b16 %v2222
      %v2415 = vunpack.c.l.b16 %v2223
      %v2416 = vunpack.c.l.b16 %v2224
      %v2417 = vunpack.c.l.b16 %v2225
      %v2418 = vunpack.c.l.b16 %v2226
      %v2419 = vunpack.c.l.b16 %v2227
      %v2420 = vunpack.c.l.b16 %v2228
      %v2421 = vunpack.c.l.b16 %v2229
      %v2422 = vunpack.c.l.b16 %v2230
      %v2423 = vunpack.c.l.b16 %v2231
      %v2424 = vunpack.c.l.b16 %v2232
      %v2425 = vunpack.c.l.b16 %v2233
      %v2426 = vunpack.c.l.b16 %v2234
      %v2427 = vunpack.c.l.b16 %v2235
      %v2428 = vunpack.c.l.b16 %v2236
      %v2429 = vunpack.c.l.b16 %v2237
      %v2430 = vunpack.c.l.b16 %v2238
      %v2431 = vunpack.c.l.b16 %v2239
      %v2432 = vunpack.c.l.b16 %v2240
      %v2433 = vunpack.c.l.b16 %v2241
      %v2434 = vunpack.c.l.b16 %v2242
      %v2435 = vunpack.c.l.b16 %v2243
      %v2436 = vunpack.c.l.b16 %v2244
      %v2437 = vunpack.c.l.b16 %v2245
      %v2438 = vunpack.c.l.b16 %v2246
      %v2439 = vunpack.c.l.b16 %v2247
      %v2440 = vunpack.c.l.b16 %v2248
      %v2441 = vunpack.c.l.b16 %v2249
      %v2442 = vunpack.c.l.b16 %v2250
      %v2443 = vunpack.c.l.b16 %v2251
      %v2444 = vunpack.c.l.b16 %v2252
      %v2445 = vunpack.c.l.b16 %v2253
      %v2446 = vunpack.c.l.b16 %v2254
      %v2447 = vunpack.c.l.b16 %v2255
      %v2448 = vunpack.c.l.b16 %v2256
      %v2449 = vunpack.c.l.b16 %v2257
      %v2450 = vunpack.c.l.b16 %v2258
      %v2451 = vunpack.c.l.b16 %v2259
      %v2452 = vunpack.c.l.b16 %v2260
      %v2453 = vunpack.c.l.b16 %v2261
      %v2454 = vunpack.c.l.b16 %v2262
      %v2455 = vunpack.c.l.b16 %v2263
      %v2456 = vunpack.c.l.b16 %v2264
      %v2457 = vunpack.c.l.b16 %v2265
      %v2458 = vpack.c.b16 %v2395, %v2394
      %v2459 = vpack.c.b16 %v2397, %v2396
      %v2460 = vpack.c.b16 %v2399, %v2398
      %v2461 = vpack.c.b16 %v2401, %v2400
      %v2462 = vpack.c.b16 %v2403, %v2402
      %v2463 = vpack.c.b16 %v2405, %v2404
      %v2464 = vpack.c.b16 %v2407, %v2406
      %v2465 = vpack.c.b16 %v2409, %v2408
      %v2466 = vpack.c.b16 %v2411, %v2410
      %v2467 = vpack.c.b16 %v2413, %v2412
      %v2468 = vpack.c.b16 %v2415, %v2414
      %v2469 = vpack.c.b16 %v2417, %v2416
      %v2470 = vpack.c.b16 %v2419, %v2418
      %v2471 = vpack.c.b16 %v2421, %v2420
      %v2472 = vpack.c.b16 %v2423, %v2422
      %v2473 = vpack.c.b16 %v2425, %v2424
      %v2474 = vpack.c.b16 %v2427, %v2426
      %v2475 = vpack.c.b16 %v2429, %v2428
      %v2476 = vpack.c.b16 %v2431, %v2430
      %v2477 = vpack.c.b16 %v2433, %v2432
      %v2478 = vpack.c.b16 %v2435, %v2434
      %v2479 = vpack.c.b16 %v2437, %v2436
      %v2480 = vpack.c.b16 %v2439, %v2438
      %v2481 = vpack.c.b16 %v2441, %v2440
      %v2482 = vpack.c.b16 %v2443, %v2442
      %v2483 = vpack.c.b16 %v2445, %v2444
      %v2484 = vpack.c.b16 %v2447, %v2446
      %v2485 = vpack.c.b16 %v2449, %v2448
      %v2486 = vpack.c.b16 %v2451, %v2450
      %v2487 = vpack.c.b16 %v2453, %v2452
      %v2488 = vpack.c.b16 %v2455, %v2454
      %v2489 = vpack.c.b16 %v2457, %v2456
      %2522 = vmatpush.bf16.msra.mxu0 %v2465
      %2523 = vmatpush.bf16.msra.mxu0 %v2464
      %2524 = vmatpush.bf16.msra.mxu0 %v2463
      %2525 = vmatpush.bf16.msra.mxu0 %v2462
      %2526 = vmatpush.bf16.msra.mxu0 %v2461
      %2527 = vmatpush.bf16.msra.mxu0 %v2460
      %2528 = vmatpush.bf16.msra.mxu0 %v2459
      %2529 = vmatpush.bf16.msra.mxu0 %v2458
      %2530 = vmatmul.bf16.gmra.mxu0 %v2298
      %v2531 = vpop.f32.mrf.mxu0
      %v2532 = vadd.f32 0.0, %v2531
      %v2533 = vpop.f32.mrf.mxu0
      %v2534 = vadd.f32 0.0, %v2533
      %2535 = vmatmul.bf16.gmra.mxu0 %v2302
      %v2536 = vpop.f32.mrf.mxu0
      %v2537 = vadd.f32 0.0, %v2536
      %v2538 = vpop.f32.mrf.mxu0
      %v2539 = vadd.f32 0.0, %v2538
      %2540 = vmatmul.bf16.gmra.mxu0 %v2306
      %v2541 = vpop.f32.mrf.mxu0
      %v2542 = vadd.f32 0.0, %v2541
      %v2543 = vpop.f32.mrf.mxu0
      %v2544 = vadd.f32 0.0, %v2543
      %2545 = vmatmul.bf16.gmra.mxu0 %v2310
      %v2546 = vpop.f32.mrf.mxu0
      %v2547 = vadd.f32 0.0, %v2546
      %v2548 = vpop.f32.mrf.mxu0
      %v2549 = vadd.f32 0.0, %v2548
      %2550 = vdwg.mxu0
      %2551 = vmatpush.bf16.msra.mxu0 %v2473
      %2552 = vmatpush.bf16.msra.mxu0 %v2472
      %2553 = vmatpush.bf16.msra.mxu0 %v2471
      %2554 = vmatpush.bf16.msra.mxu0 %v2470
      %2555 = vmatpush.bf16.msra.mxu0 %v2469
      %2556 = vmatpush.bf16.msra.mxu0 %v2468
      %2557 = vmatpush.bf16.msra.mxu0 %v2467
      %2558 = vmatpush.bf16.msra.mxu0 %v2466
      %2559 = vmatmul.bf16.gmra.mxu0 %v2299
      %v2560 = vpop.f32.mrf.mxu0
      %v2561 = vadd.f32 %v2532, %v2560
      %v2562 = vpop.f32.mrf.mxu0
      %v2563 = vadd.f32 %v2534, %v2562
      %2564 = vmatmul.bf16.gmra.mxu0 %v2303
      %v2565 = vpop.f32.mrf.mxu0
      %v2566 = vadd.f32 %v2537, %v2565
      %v2567 = vpop.f32.mrf.mxu0
      %v2568 = vadd.f32 %v2539, %v2567
      %2569 = vmatmul.bf16.gmra.mxu0 %v2307
      %v2570 = vpop.f32.mrf.mxu0
      %v2571 = vadd.f32 %v2542, %v2570
      %v2572 = vpop.f32.mrf.mxu0
      %v2573 = vadd.f32 %v2544, %v2572
      %2574 = vmatmul.bf16.gmra.mxu0 %v2311
      %v2575 = vpop.f32.mrf.mxu0
      %v2576 = vadd.f32 %v2547, %v2575
      %v2577 = vpop.f32.mrf.mxu0
      %v2578 = vadd.f32 %v2549, %v2577
      %2579 = vdwg.mxu0
      %2580 = vmatpush.bf16.msra.mxu0 %v2481
      %2581 = vmatpush.bf16.msra.mxu0 %v2480
      %2582 = vmatpush.bf16.msra.mxu0 %v2479
      %2583 = vmatpush.bf16.msra.mxu0 %v2478
      %2584 = vmatpush.bf16.msra.mxu0 %v2477
      %2585 = vmatpush.bf16.msra.mxu0 %v2476
      %2586 = vmatpush.bf16.msra.mxu0 %v2475
      %2587 = vmatpush.bf16.msra.mxu0 %v2474
      %2588 = vmatmul.bf16.gmra.mxu0 %v2300
      %v2589 = vpop.f32.mrf.mxu0
      %v2590 = vadd.f32 %v2561, %v2589
      %v2591 = vpop.f32.mrf.mxu0
      %v2592 = vadd.f32 %v2563, %v2591
      %2593 = vmatmul.bf16.gmra.mxu0 %v2304
      %v2594 = vpop.f32.mrf.mxu0
      %v2595 = vadd.f32 %v2566, %v2594
      %v2596 = vpop.f32.mrf.mxu0
      %v2597 = vadd.f32 %v2568, %v2596
      %2598 = vmatmul.bf16.gmra.mxu0 %v2308
      %v2599 = vpop.f32.mrf.mxu0
      %v2600 = vadd.f32 %v2571, %v2599
      %v2601 = vpop.f32.mrf.mxu0
      %v2602 = vadd.f32 %v2573, %v2601
      %2603 = vmatmul.bf16.gmra.mxu0 %v2312
      %v2604 = vpop.f32.mrf.mxu0
      %v2605 = vadd.f32 %v2576, %v2604
      %v2606 = vpop.f32.mrf.mxu0
      %v2607 = vadd.f32 %v2578, %v2606
      %2608 = vdwg.mxu0
      %2609 = vmatpush.bf16.msra.mxu0 %v2489
      %2610 = vmatpush.bf16.msra.mxu0 %v2488
      %2611 = vmatpush.bf16.msra.mxu0 %v2487
      %2612 = vmatpush.bf16.msra.mxu0 %v2486
      %2613 = vmatpush.bf16.msra.mxu0 %v2485
      %2614 = vmatpush.bf16.msra.mxu0 %v2484
      %2615 = vmatpush.bf16.msra.mxu0 %v2483
      %2616 = vmatpush.bf16.msra.mxu0 %v2482
      %2617 = vmatmul.bf16.gmra.mxu0 %v2301
      %v2618 = vpop.f32.mrf.mxu0
      %v2619 = vadd.f32 %v2590, %v2618
      %v2620 = vpop.f32.mrf.mxu0
      %v2621 = vadd.f32 %v2592, %v2620
      %2622 = vmatmul.bf16.gmra.mxu0 %v2305
      %v2623 = vpop.f32.mrf.mxu0
      %v2624 = vadd.f32 %v2595, %v2623
      %v2625 = vpop.f32.mrf.mxu0
      %v2626 = vadd.f32 %v2597, %v2625
      %2627 = vmatmul.bf16.gmra.mxu0 %v2309
      %v2628 = vpop.f32.mrf.mxu0
      %v2629 = vadd.f32 %v2600, %v2628
      %v2630 = vpop.f32.mrf.mxu0
      %v2631 = vadd.f32 %v2602, %v2630
      %2632 = vmatmul.bf16.gmra.mxu0 %v2313
      %v2633 = vpop.f32.mrf.mxu0
      %v2634 = vadd.f32 %v2605, %v2633
      %v2635 = vpop.f32.mrf.mxu0
      %v2636 = vadd.f32 %v2607, %v2635
      %2637 = vdwg.mxu0
      %v2638 = vadd.f32 %v1937, %v2619
      %v2639 = vadd.f32 %v1938, %v2621
      %v2640 = vadd.f32 %v1939, %v2624
      %v2641 = vadd.f32 %v1940, %v2626
      %v2642 = vadd.f32 %v1941, %v2629
      %v2643 = vadd.f32 %v1942, %v2631
      %v2644 = vadd.f32 %v1943, %v2634
      %v2645 = vadd.f32 %v1944, %v2636
      %v2646 = vld [vmem:[%s2] sm:$0x1]
      %v2648 = vperm.slane %v2646, 0
      %v2650 = vadd.f32 %v2638, %v2648
      %v2651 = vadd.f32 %v2639, %v2648
      %v2652 = vadd.f32 %v2640, %v2648
      %v2653 = vadd.f32 %v2641, %v2648
      %v2654 = vadd.f32 %v2642, %v2648
      %v2655 = vadd.f32 %v2643, %v2648
      %v2656 = vadd.f32 %v2644, %v2648
      %v2657 = vadd.f32 %v2645, %v2648
      %v2658 = vmax.f32 %v2650, 0.0
      %v2659 = vmax.f32 %v2651, 0.0
      %v2660 = vmax.f32 %v2652, 0.0
      %v2661 = vmax.f32 %v2653, 0.0
      %v2662 = vmax.f32 %v2654, 0.0
      %v2663 = vmax.f32 %v2655, 0.0
      %v2664 = vmax.f32 %v2656, 0.0
      %v2665 = vmax.f32 %v2657, 0.0
      %v2666 = vpack.c.bf16 %v2658, %v2658
      %v2667 = vpack.c.bf16 %v2659, %v2659
      %v2668 = vpack.c.bf16 %v2660, %v2660
      %v2669 = vpack.c.bf16 %v2661, %v2661
      %v2670 = vpack.c.bf16 %v2662, %v2662
      %v2671 = vpack.c.bf16 %v2663, %v2663
      %v2672 = vpack.c.bf16 %v2664, %v2664
      %v2673 = vpack.c.bf16 %v2665, %v2665
      %2674 = vst [vmem:[%s313] sm:$0xf] %v2666
      %2675 = vst [vmem:[%s313 + $0x4] sm:$0xf] %v2667
      %2676 = vst [vmem:[%s313 + $0x8] sm:$0xf] %v2668
      %2677 = vst [vmem:[%s313 + $0xc] sm:$0xf] %v2669
      %2678 = vst [vmem:[%s313 + $0x10] sm:$0xf] %v2670
      %2679 = vst [vmem:[%s313 + $0x14] sm:$0xf] %v2671
      %2680 = vst [vmem:[%s313 + $0x18] sm:$0xf] %v2672
      %2681 = vst [vmem:[%s313 + $0x1c] sm:$0xf] %v2673
      %2682 = vst [vmem:[#allocation2] sm:$0xff] 0.0
      %2683 = vst [vmem:[#allocation2 + $0x8] sm:$0x3] 0.0
      %2684 = vst [vmem:[#allocation2 + $0x10] sm:$0xff] 0.0
      %2685 = vst [vmem:[#allocation2 + $0x18] sm:$0x3] 0.0
      %2686 = vst [vmem:[#allocation2 + $0x20] sm:$0xff] 0.0
      %2687 = vst [vmem:[#allocation2 + $0x28] sm:$0x3] 0.0
      %2688 = vst [vmem:[#allocation2 + $0x30] sm:$0xff] 0.0
      %2689 = vst [vmem:[#allocation2 + $0x38] sm:$0x3] 0.0
      %2690 = vst [vmem:[#allocation2 + $0x40] sm:$0xff] 0.0
      %2691 = vst [vmem:[#allocation2 + $0x48] sm:$0x3] 0.0
      %2692 = vst [vmem:[#allocation2 + $0x50] sm:$0xff] 0.0
      %2693 = vst [vmem:[#allocation2 + $0x58] sm:$0x3] 0.0
      %2694 = vst [vmem:[#allocation2 + $0x60] sm:$0xff] 0.0
      %2695 = vst [vmem:[#allocation2 + $0x68] sm:$0x3] 0.0
      %2696 = vst [vmem:[#allocation2 + $0x70] sm:$0xff] 0.0
      %2697 = vst [vmem:[#allocation2 + $0x78] sm:$0x3] 0.0
      %2698 = vst [vmem:[#allocation2 + $0x80] sm:$0xff] 0.0
      %2699 = vst [vmem:[#allocation2 + $0x88] sm:$0x3] 0.0
      %2700 = vst [vmem:[#allocation2 + $0x90] sm:$0xff] 0.0
      %2701 = vst [vmem:[#allocation2 + $0x98] sm:$0x3] 0.0
      %s2702 = scalar_lea.vmem [#allocation2], 16
      %2703 = vst [vmem:[%s2702 + $0x1] sm:$0xff] %v2658
      %2704 = vst [vmem:[%s2702 + $0x11] sm:$0xff] %v2659
      %2705 = vst [vmem:[%s2702 + $0x21] sm:$0xff] %v2660
      %2706 = vst [vmem:[%s2702 + $0x31] sm:$0xff] %v2661
      %2707 = vst [vmem:[%s2702 + $0x41] sm:$0xff] %v2662
      %2708 = vst [vmem:[%s2702 + $0x51] sm:$0xff] %v2663
      %2709 = vst [vmem:[%s2702 + $0x61] sm:$0xff] %v2664
      %2710 = vst [vmem:[%s2702 + $0x71] sm:$0xff] %v2665
      %v2711 = vld [vmem:[#allocation2] sm:$0xff]
      %v2712 = vld [vmem:[#allocation2 + $0x10] sm:$0xff]
      %v2713 = vld [vmem:[#allocation2 + $0x20] sm:$0xff]
      %v2714 = vld [vmem:[#allocation2 + $0x30] sm:$0xff]
      %v2715 = vld [vmem:[#allocation2 + $0x40] sm:$0xff]
      %v2716 = vld [vmem:[#allocation2 + $0x50] sm:$0xff]
      %v2717 = vld [vmem:[#allocation2 + $0x60] sm:$0xff]
      %v2718 = vld [vmem:[#allocation2 + $0x70] sm:$0xff]
      %v2719 = vld [vmem:[%s3] sm:$0x1]
      %v2720 = vperm.slane %v2719, 0
      %v2721 = vmul.f32 %v2711, %v2720
      %v2722 = vmul.f32 %v2712, %v2720
      %v2723 = vmul.f32 %v2713, %v2720
      %v2724 = vmul.f32 %v2714, %v2720
      %v2725 = vmul.f32 %v2715, %v2720
      %v2726 = vmul.f32 %v2716, %v2720
      %v2727 = vmul.f32 %v2717, %v2720
      %v2728 = vmul.f32 %v2718, %v2720
      %v2729 = vld [vmem:[%s3 + $0x9] sm:$0x1]
      %v2730 = vperm.slane %v2729, 0
      %v2731 = vmul.f32 %v2711, %v2730
      %v2732 = vmul.f32 %v2712, %v2730
      %v2733 = vmul.f32 %v2713, %v2730
      %v2734 = vmul.f32 %v2714, %v2730
      %v2735 = vmul.f32 %v2715, %v2730
      %v2736 = vmul.f32 %v2716, %v2730
      %v2737 = vmul.f32 %v2717, %v2730
      %v2738 = vmul.f32 %v2718, %v2730
      %v2739 = vld [vmem:[#allocation2 + $0x1] sm:$0xff]
      %v2740 = vld [vmem:[#allocation2 + $0x11] sm:$0xff]
      %v2741 = vld [vmem:[#allocation2 + $0x21] sm:$0xff]
      %v2742 = vld [vmem:[#allocation2 + $0x31] sm:$0xff]
      %v2743 = vld [vmem:[#allocation2 + $0x41] sm:$0xff]
      %v2744 = vld [vmem:[#allocation2 + $0x51] sm:$0xff]
      %v2745 = vld [vmem:[#allocation2 + $0x61] sm:$0xff]
      %v2746 = vld [vmem:[#allocation2 + $0x71] sm:$0xff]
      %v2747 = vld [vmem:[%s3 + $0x1] sm:$0x1]
      %v2748 = vperm.slane %v2747, 0
      %v2749 = vmul.f32 %v2739, %v2748
      %v2750 = vmul.f32 %v2740, %v2748
      %v2751 = vmul.f32 %v2741, %v2748
      %v2752 = vmul.f32 %v2742, %v2748
      %v2753 = vmul.f32 %v2743, %v2748
      %v2754 = vmul.f32 %v2744, %v2748
      %v2755 = vmul.f32 %v2745, %v2748
      %v2756 = vmul.f32 %v2746, %v2748
      %v2757 = vld [vmem:[%s3 + $0xa] sm:$0x1]
      %v2758 = vperm.slane %v2757, 0
      %v2759 = vmul.f32 %v2739, %v2758
      %v2760 = vmul.f32 %v2740, %v2758
      %v2761 = vmul.f32 %v2741, %v2758
      %v2762 = vmul.f32 %v2742, %v2758
      %v2763 = vmul.f32 %v2743, %v2758
      %v2764 = vmul.f32 %v2744, %v2758
      %v2765 = vmul.f32 %v2745, %v2758
      %v2766 = vmul.f32 %v2746, %v2758
      %v2767 = vadd.f32 %v2721, %v2749
      %v2768 = vadd.f32 %v2722, %v2750
      %v2769 = vadd.f32 %v2723, %v2751
      %v2770 = vadd.f32 %v2724, %v2752
      %v2771 = vadd.f32 %v2725, %v2753
      %v2772 = vadd.f32 %v2726, %v2754
      %v2773 = vadd.f32 %v2727, %v2755
      %v2774 = vadd.f32 %v2728, %v2756
      %v2775 = vadd.f32 %v2731, %v2759
      %v2776 = vadd.f32 %v2732, %v2760
      %v2777 = vadd.f32 %v2733, %v2761
      %v2778 = vadd.f32 %v2734, %v2762
      %v2779 = vadd.f32 %v2735, %v2763
      %v2780 = vadd.f32 %v2736, %v2764
      %v2781 = vadd.f32 %v2737, %v2765
      %v2782 = vadd.f32 %v2738, %v2766
      %v2783 = vld [vmem:[#allocation2 + $0x2] sm:$0xff]
      %v2784 = vld [vmem:[#allocation2 + $0x12] sm:$0xff]
      %v2785 = vld [vmem:[#allocation2 + $0x22] sm:$0xff]
      %v2786 = vld [vmem:[#allocation2 + $0x32] sm:$0xff]
      %v2787 = vld [vmem:[#allocation2 + $0x42] sm:$0xff]
      %v2788 = vld [vmem:[#allocation2 + $0x52] sm:$0xff]
      %v2789 = vld [vmem:[#allocation2 + $0x62] sm:$0xff]
      %v2790 = vld [vmem:[#allocation2 + $0x72] sm:$0xff]
      %v2791 = vld [vmem:[%s3 + $0x2] sm:$0x1]
      %v2792 = vperm.slane %v2791, 0
      %v2793 = vmul.f32 %v2783, %v2792
      %v2794 = vmul.f32 %v2784, %v2792
      %v2795 = vmul.f32 %v2785, %v2792
      %v2796 = vmul.f32 %v2786, %v2792
      %v2797 = vmul.f32 %v2787, %v2792
      %v2798 = vmul.f32 %v2788, %v2792
      %v2799 = vmul.f32 %v2789, %v2792
      %v2800 = vmul.f32 %v2790, %v2792
      %v2801 = vld [vmem:[%s3 + $0xb] sm:$0x1]
      %v2802 = vperm.slane %v2801, 0
      %v2803 = vmul.f32 %v2783, %v2802
      %v2804 = vmul.f32 %v2784, %v2802
      %v2805 = vmul.f32 %v2785, %v2802
      %v2806 = vmul.f32 %v2786, %v2802
      %v2807 = vmul.f32 %v2787, %v2802
      %v2808 = vmul.f32 %v2788, %v2802
      %v2809 = vmul.f32 %v2789, %v2802
      %v2810 = vmul.f32 %v2790, %v2802
      %v2811 = vadd.f32 %v2767, %v2793
      %v2812 = vadd.f32 %v2768, %v2794
      %v2813 = vadd.f32 %v2769, %v2795
      %v2814 = vadd.f32 %v2770, %v2796
      %v2815 = vadd.f32 %v2771, %v2797
      %v2816 = vadd.f32 %v2772, %v2798
      %v2817 = vadd.f32 %v2773, %v2799
      %v2818 = vadd.f32 %v2774, %v2800
      %v2819 = vadd.f32 %v2775, %v2803
      %v2820 = vadd.f32 %v2776, %v2804
      %v2821 = vadd.f32 %v2777, %v2805
      %v2822 = vadd.f32 %v2778, %v2806
      %v2823 = vadd.f32 %v2779, %v2807
      %v2824 = vadd.f32 %v2780, %v2808
      %v2825 = vadd.f32 %v2781, %v2809
      %v2826 = vadd.f32 %v2782, %v2810
      %v2827 = vld [vmem:[%s2702] sm:$0xff]
      %v2828 = vld [vmem:[%s2702 + $0x10] sm:$0xff]
      %v2829 = vld [vmem:[%s2702 + $0x20] sm:$0xff]
      %v2830 = vld [vmem:[%s2702 + $0x30] sm:$0xff]
      %v2831 = vld [vmem:[%s2702 + $0x40] sm:$0xff]
      %v2832 = vld [vmem:[%s2702 + $0x50] sm:$0xff]
      %v2833 = vld [vmem:[%s2702 + $0x60] sm:$0xff]
      %v2834 = vld [vmem:[%s2702 + $0x70] sm:$0xff]
      %v2835 = vld [vmem:[%s3 + $0x3] sm:$0x1]
      %v2836 = vperm.slane %v2835, 0
      %v2837 = vmul.f32 %v2827, %v2836
      %v2838 = vmul.f32 %v2828, %v2836
      %v2839 = vmul.f32 %v2829, %v2836
      %v2840 = vmul.f32 %v2830, %v2836
      %v2841 = vmul.f32 %v2831, %v2836
      %v2842 = vmul.f32 %v2832, %v2836
      %v2843 = vmul.f32 %v2833, %v2836
      %v2844 = vmul.f32 %v2834, %v2836
      %v2845 = vld [vmem:[%s3 + $0xc] sm:$0x1]
      %v2846 = vperm.slane %v2845, 0
      %v2847 = vmul.f32 %v2827, %v2846
      %v2848 = vmul.f32 %v2828, %v2846
      %v2849 = vmul.f32 %v2829, %v2846
      %v2850 = vmul.f32 %v2830, %v2846
      %v2851 = vmul.f32 %v2831, %v2846
      %v2852 = vmul.f32 %v2832, %v2846
      %v2853 = vmul.f32 %v2833, %v2846
      %v2854 = vmul.f32 %v2834, %v2846
      %v2855 = vadd.f32 %v2811, %v2837
      %v2856 = vadd.f32 %v2812, %v2838
      %v2857 = vadd.f32 %v2813, %v2839
      %v2858 = vadd.f32 %v2814, %v2840
      %v2859 = vadd.f32 %v2815, %v2841
      %v2860 = vadd.f32 %v2816, %v2842
      %v2861 = vadd.f32 %v2817, %v2843
      %v2862 = vadd.f32 %v2818, %v2844
      %v2863 = vadd.f32 %v2819, %v2847
      %v2864 = vadd.f32 %v2820, %v2848
      %v2865 = vadd.f32 %v2821, %v2849
      %v2866 = vadd.f32 %v2822, %v2850
      %v2867 = vadd.f32 %v2823, %v2851
      %v2868 = vadd.f32 %v2824, %v2852
      %v2869 = vadd.f32 %v2825, %v2853
      %v2870 = vadd.f32 %v2826, %v2854
      %v2871 = vld [vmem:[%s2702 + $0x1] sm:$0xff]
      %v2872 = vld [vmem:[%s2702 + $0x11] sm:$0xff]
      %v2873 = vld [vmem:[%s2702 + $0x21] sm:$0xff]
      %v2874 = vld [vmem:[%s2702 + $0x31] sm:$0xff]
      %v2875 = vld [vmem:[%s2702 + $0x41] sm:$0xff]
      %v2876 = vld [vmem:[%s2702 + $0x51] sm:$0xff]
      %v2877 = vld [vmem:[%s2702 + $0x61] sm:$0xff]
      %v2878 = vld [vmem:[%s2702 + $0x71] sm:$0xff]
      %v2879 = vld [vmem:[%s3 + $0x4] sm:$0x1]
      %v2880 = vperm.slane %v2879, 0
      %v2881 = vmul.f32 %v2871, %v2880
      %v2882 = vmul.f32 %v2872, %v2880
      %v2883 = vmul.f32 %v2873, %v2880
      %v2884 = vmul.f32 %v2874, %v2880
      %v2885 = vmul.f32 %v2875, %v2880
      %v2886 = vmul.f32 %v2876, %v2880
      %v2887 = vmul.f32 %v2877, %v2880
      %v2888 = vmul.f32 %v2878, %v2880
      %v2889 = vld [vmem:[%s3 + $0xd] sm:$0x1]
      %v2890 = vperm.slane %v2889, 0
      %v2891 = vmul.f32 %v2871, %v2890
      %v2892 = vmul.f32 %v2872, %v2890
      %v2893 = vmul.f32 %v2873, %v2890
      %v2894 = vmul.f32 %v2874, %v2890
      %v2895 = vmul.f32 %v2875, %v2890
      %v2896 = vmul.f32 %v2876, %v2890
      %v2897 = vmul.f32 %v2877, %v2890
      %v2898 = vmul.f32 %v2878, %v2890
      %v2899 = vadd.f32 %v2855, %v2881
      %v2900 = vadd.f32 %v2856, %v2882
      %v2901 = vadd.f32 %v2857, %v2883
      %v2902 = vadd.f32 %v2858, %v2884
      %v2903 = vadd.f32 %v2859, %v2885
      %v2904 = vadd.f32 %v2860, %v2886
      %v2905 = vadd.f32 %v2861, %v2887
      %v2906 = vadd.f32 %v2862, %v2888
      %v2907 = vadd.f32 %v2863, %v2891
      %v2908 = vadd.f32 %v2864, %v2892
      %v2909 = vadd.f32 %v2865, %v2893
      %v2910 = vadd.f32 %v2866, %v2894
      %v2911 = vadd.f32 %v2867, %v2895
      %v2912 = vadd.f32 %v2868, %v2896
      %v2913 = vadd.f32 %v2869, %v2897
      %v2914 = vadd.f32 %v2870, %v2898
      %v2915 = vld [vmem:[%s2702 + $0x2] sm:$0xff]
      %v2916 = vld [vmem:[%s2702 + $0x12] sm:$0xff]
      %v2917 = vld [vmem:[%s2702 + $0x22] sm:$0xff]
      %v2918 = vld [vmem:[%s2702 + $0x32] sm:$0xff]
      %v2919 = vld [vmem:[%s2702 + $0x42] sm:$0xff]
      %v2920 = vld [vmem:[%s2702 + $0x52] sm:$0xff]
      %v2921 = vld [vmem:[%s2702 + $0x62] sm:$0xff]
      %v2922 = vld [vmem:[%s2702 + $0x72] sm:$0xff]
      %v2923 = vld [vmem:[%s3 + $0x5] sm:$0x1]
      %v2924 = vperm.slane %v2923, 0
      %v2925 = vmul.f32 %v2915, %v2924
      %v2926 = vmul.f32 %v2916, %v2924
      %v2927 = vmul.f32 %v2917, %v2924
      %v2928 = vmul.f32 %v2918, %v2924
      %v2929 = vmul.f32 %v2919, %v2924
      %v2930 = vmul.f32 %v2920, %v2924
      %v2931 = vmul.f32 %v2921, %v2924
      %v2932 = vmul.f32 %v2922, %v2924
      %v2933 = vld [vmem:[%s3 + $0xe] sm:$0x1]
      %v2934 = vperm.slane %v2933, 0
      %v2935 = vmul.f32 %v2915, %v2934
      %v2936 = vmul.f32 %v2916, %v2934
      %v2937 = vmul.f32 %v2917, %v2934
      %v2938 = vmul.f32 %v2918, %v2934
      %v2939 = vmul.f32 %v2919, %v2934
      %v2940 = vmul.f32 %v2920, %v2934
      %v2941 = vmul.f32 %v2921, %v2934
      %v2942 = vmul.f32 %v2922, %v2934
      %v2943 = vadd.f32 %v2899, %v2925
      %v2944 = vadd.f32 %v2900, %v2926
      %v2945 = vadd.f32 %v2901, %v2927
      %v2946 = vadd.f32 %v2902, %v2928
      %v2947 = vadd.f32 %v2903, %v2929
      %v2948 = vadd.f32 %v2904, %v2930
      %v2949 = vadd.f32 %v2905, %v2931
      %v2950 = vadd.f32 %v2906, %v2932
      %v2951 = vadd.f32 %v2907, %v2935
      %v2952 = vadd.f32 %v2908, %v2936
      %v2953 = vadd.f32 %v2909, %v2937
      %v2954 = vadd.f32 %v2910, %v2938
      %v2955 = vadd.f32 %v2911, %v2939
      %v2956 = vadd.f32 %v2912, %v2940
      %v2957 = vadd.f32 %v2913, %v2941
      %v2958 = vadd.f32 %v2914, %v2942
      %s2959 = scalar_lea.vmem [#allocation2], 32
      %v2960 = vld [vmem:[%s2959] sm:$0xff]
      %v2961 = vld [vmem:[%s2959 + $0x10] sm:$0xff]
      %v2962 = vld [vmem:[%s2959 + $0x20] sm:$0xff]
      %v2963 = vld [vmem:[%s2959 + $0x30] sm:$0xff]
      %v2964 = vld [vmem:[%s2959 + $0x40] sm:$0xff]
      %v2965 = vld [vmem:[%s2959 + $0x50] sm:$0xff]
      %v2966 = vld [vmem:[%s2959 + $0x60] sm:$0xff]
      %v2967 = vld [vmem:[%s2959 + $0x70] sm:$0xff]
      %v2968 = vld [vmem:[%s3 + $0x6] sm:$0x1]
      %v2969 = vperm.slane %v2968, 0
      %v2970 = vmul.f32 %v2960, %v2969
      %v2971 = vmul.f32 %v2961, %v2969
      %v2972 = vmul.f32 %v2962, %v2969
      %v2973 = vmul.f32 %v2963, %v2969
      %v2974 = vmul.f32 %v2964, %v2969
      %v2975 = vmul.f32 %v2965, %v2969
      %v2976 = vmul.f32 %v2966, %v2969
      %v2977 = vmul.f32 %v2967, %v2969
      %v2978 = vld [vmem:[%s3 + $0xf] sm:$0x1]
      %v2979 = vperm.slane %v2978, 0
      %v2980 = vmul.f32 %v2960, %v2979
      %v2981 = vmul.f32 %v2961, %v2979
      %v2982 = vmul.f32 %v2962, %v2979
      %v2983 = vmul.f32 %v2963, %v2979
      %v2984 = vmul.f32 %v2964, %v2979
      %v2985 = vmul.f32 %v2965, %v2979
      %v2986 = vmul.f32 %v2966, %v2979
      %v2987 = vmul.f32 %v2967, %v2979
      %v2988 = vadd.f32 %v2943, %v2970
      %v2989 = vadd.f32 %v2944, %v2971
      %v2990 = vadd.f32 %v2945, %v2972
      %v2991 = vadd.f32 %v2946, %v2973
      %v2992 = vadd.f32 %v2947, %v2974
      %v2993 = vadd.f32 %v2948, %v2975
      %v2994 = vadd.f32 %v2949, %v2976
      %v2995 = vadd.f32 %v2950, %v2977
      %v2996 = vadd.f32 %v2951, %v2980
      %v2997 = vadd.f32 %v2952, %v2981
      %v2998 = vadd.f32 %v2953, %v2982
      %v2999 = vadd.f32 %v2954, %v2983
      %v3000 = vadd.f32 %v2955, %v2984
      %v3001 = vadd.f32 %v2956, %v2985
      %v3002 = vadd.f32 %v2957, %v2986
      %v3003 = vadd.f32 %v2958, %v2987
      %v3004 = vld [vmem:[%s2959 + $0x1] sm:$0xff]
      %v3005 = vld [vmem:[%s2959 + $0x11] sm:$0xff]
      %v3006 = vld [vmem:[%s2959 + $0x21] sm:$0xff]
      %v3007 = vld [vmem:[%s2959 + $0x31] sm:$0xff]
      %v3008 = vld [vmem:[%s2959 + $0x41] sm:$0xff]
      %v3009 = vld [vmem:[%s2959 + $0x51] sm:$0xff]
      %v3010 = vld [vmem:[%s2959 + $0x61] sm:$0xff]
      %v3011 = vld [vmem:[%s2959 + $0x71] sm:$0xff]
      %v3012 = vld [vmem:[%s3 + $0x7] sm:$0x1]
      %v3013 = vperm.slane %v3012, 0
      %v3014 = vmul.f32 %v3004, %v3013
      %v3015 = vmul.f32 %v3005, %v3013
      %v3016 = vmul.f32 %v3006, %v3013
      %v3017 = vmul.f32 %v3007, %v3013
      %v3018 = vmul.f32 %v3008, %v3013
      %v3019 = vmul.f32 %v3009, %v3013
      %v3020 = vmul.f32 %v3010, %v3013
      %v3021 = vmul.f32 %v3011, %v3013
      %v3022 = vld [vmem:[%s3 + $0x10] sm:$0x1]
      %v3023 = vperm.slane %v3022, 0
      %v3024 = vmul.f32 %v3004, %v3023
      %v3025 = vmul.f32 %v3005, %v3023
      %v3026 = vmul.f32 %v3006, %v3023
      %v3027 = vmul.f32 %v3007, %v3023
      %v3028 = vmul.f32 %v3008, %v3023
      %v3029 = vmul.f32 %v3009, %v3023
      %v3030 = vmul.f32 %v3010, %v3023
      %v3031 = vmul.f32 %v3011, %v3023
      %v3032 = vadd.f32 %v2988, %v3014
      %v3033 = vadd.f32 %v2989, %v3015
      %v3034 = vadd.f32 %v2990, %v3016
      %v3035 = vadd.f32 %v2991, %v3017
      %v3036 = vadd.f32 %v2992, %v3018
      %v3037 = vadd.f32 %v2993, %v3019
      %v3038 = vadd.f32 %v2994, %v3020
      %v3039 = vadd.f32 %v2995, %v3021
      %v3040 = vadd.f32 %v2996, %v3024
      %v3041 = vadd.f32 %v2997, %v3025
      %v3042 = vadd.f32 %v2998, %v3026
      %v3043 = vadd.f32 %v2999, %v3027
      %v3044 = vadd.f32 %v3000, %v3028
      %v3045 = vadd.f32 %v3001, %v3029
      %v3046 = vadd.f32 %v3002, %v3030
      %v3047 = vadd.f32 %v3003, %v3031
      %v3048 = vld [vmem:[%s2959 + $0x2] sm:$0xff]
      %v3049 = vld [vmem:[%s2959 + $0x12] sm:$0xff]
      %v3050 = vld [vmem:[%s2959 + $0x22] sm:$0xff]
      %v3051 = vld [vmem:[%s2959 + $0x32] sm:$0xff]
      %v3052 = vld [vmem:[%s2959 + $0x42] sm:$0xff]
      %v3053 = vld [vmem:[%s2959 + $0x52] sm:$0xff]
      %v3054 = vld [vmem:[%s2959 + $0x62] sm:$0xff]
      %v3055 = vld [vmem:[%s2959 + $0x72] sm:$0xff]
      %v3056 = vld [vmem:[%s3 + $0x8] sm:$0x1]
      %v3057 = vperm.slane %v3056, 0
      %v3058 = vmul.f32 %v3048, %v3057
      %v3059 = vmul.f32 %v3049, %v3057
      %v3060 = vmul.f32 %v3050, %v3057
      %v3061 = vmul.f32 %v3051, %v3057
      %v3062 = vmul.f32 %v3052, %v3057
      %v3063 = vmul.f32 %v3053, %v3057
      %v3064 = vmul.f32 %v3054, %v3057
      %v3065 = vmul.f32 %v3055, %v3057
      %v3066 = vld [vmem:[%s3 + $0x11] sm:$0x1]
      %v3067 = vperm.slane %v3066, 0
      %v3068 = vmul.f32 %v3048, %v3067
      %v3069 = vmul.f32 %v3049, %v3067
      %v3070 = vmul.f32 %v3050, %v3067
      %v3071 = vmul.f32 %v3051, %v3067
      %v3072 = vmul.f32 %v3052, %v3067
      %v3073 = vmul.f32 %v3053, %v3067
      %v3074 = vmul.f32 %v3054, %v3067
      %v3075 = vmul.f32 %v3055, %v3067
      %v3076 = vadd.f32 %v3032, %v3058
      %v3077 = vadd.f32 %v3033, %v3059
      %v3078 = vadd.f32 %v3034, %v3060
      %v3079 = vadd.f32 %v3035, %v3061
      %v3080 = vadd.f32 %v3036, %v3062
      %v3081 = vadd.f32 %v3037, %v3063
      %v3082 = vadd.f32 %v3038, %v3064
      %v3083 = vadd.f32 %v3039, %v3065
      %v3084 = vadd.f32 %v3040, %v3068
      %v3085 = vadd.f32 %v3041, %v3069
      %v3086 = vadd.f32 %v3042, %v3070
      %v3087 = vadd.f32 %v3043, %v3071
      %v3088 = vadd.f32 %v3044, %v3072
      %v3089 = vadd.f32 %v3045, %v3073
      %v3090 = vadd.f32 %v3046, %v3074
      %v3091 = vadd.f32 %v3047, %v3075
      %v3092 = vld [vmem:[%s4] sm:$0x1]
      %v3093 = vperm.slane %v3092, 0
      %v3094 = vadd.f32 %v3076, %v3093
      %v3095 = vadd.f32 %v3077, %v3093
      %v3096 = vadd.f32 %v3078, %v3093
      %v3097 = vadd.f32 %v3079, %v3093
      %v3098 = vadd.f32 %v3080, %v3093
      %v3099 = vadd.f32 %v3081, %v3093
      %v3100 = vadd.f32 %v3082, %v3093
      %v3101 = vadd.f32 %v3083, %v3093
      %v3102 = vmax.f32 %v3094, 0.0
      %v3103 = vmax.f32 %v3095, 0.0
      %v3104 = vmax.f32 %v3096, 0.0
      %v3105 = vmax.f32 %v3097, 0.0
      %v3106 = vmax.f32 %v3098, 0.0
      %v3107 = vmax.f32 %v3099, 0.0
      %v3108 = vmax.f32 %v3100, 0.0
      %v3109 = vmax.f32 %v3101, 0.0
      %v3110 = vld [vmem:[%s4 + $0x1] sm:$0x1]
      %v3111 = vperm.slane %v3110, 0
      %v3112 = vadd.f32 %v3084, %v3111
      %v3113 = vadd.f32 %v3085, %v3111
      %v3114 = vadd.f32 %v3086, %v3111
      %v3115 = vadd.f32 %v3087, %v3111
      %v3116 = vadd.f32 %v3088, %v3111
      %v3117 = vadd.f32 %v3089, %v3111
      %v3118 = vadd.f32 %v3090, %v3111
      %v3119 = vadd.f32 %v3091, %v3111
      %v3120 = vmax.f32 %v3112, 0.0
      %v3121 = vmax.f32 %v3113, 0.0
      %v3122 = vmax.f32 %v3114, 0.0
      %v3123 = vmax.f32 %v3115, 0.0
      %v3124 = vmax.f32 %v3116, 0.0
      %v3125 = vmax.f32 %v3117, 0.0
      %v3126 = vmax.f32 %v3118, 0.0
      %v3127 = vmax.f32 %v3119, 0.0
      %v3128 = vpack.c.bf16 %v3103, %v3102
      %v3129 = vpack.c.bf16 %v3105, %v3104
      %v3130 = vpack.c.bf16 %v3107, %v3106
      %v3131 = vpack.c.bf16 %v3109, %v3108
      %v3132 = vld [vmem:[%s5] sm:$0xf]
      %v3133 = vld [vmem:[%s5 + $0x4] sm:$0xf]
      %v3134 = vld [vmem:[%s5 + $0x8] sm:$0xf]
      %v3135 = vld [vmem:[%s5 + $0xc] sm:$0xf]
      %v3136 = vld [vmem:[%s5 + $0x10] sm:$0xf]
      %v3137 = vld [vmem:[%s5 + $0x14] sm:$0xf]
      %v3138 = vld [vmem:[%s5 + $0x18] sm:$0xf]
      %v3139 = vld [vmem:[%s5 + $0x1c] sm:$0xf]
      %v3140 = vld [vmem:[%s5 + $0x20] sm:$0xf]
      %v3141 = vld [vmem:[%s5 + $0x24] sm:$0xf]
      %v3142 = vld [vmem:[%s5 + $0x28] sm:$0xf]
      %v3143 = vld [vmem:[%s5 + $0x2c] sm:$0xf]
      %v3144 = vld [vmem:[%s5 + $0x30] sm:$0xf]
      %v3145 = vld [vmem:[%s5 + $0x34] sm:$0xf]
      %v3146 = vld [vmem:[%s5 + $0x38] sm:$0xf]
      %v3147 = vld [vmem:[%s5 + $0x3c] sm:$0xf]
      %v3148 = vpack.c.bf16 %v3121, %v3120
      %v3149 = vpack.c.bf16 %v3123, %v3122
      %v3150 = vpack.c.bf16 %v3125, %v3124
      %v3151 = vpack.c.bf16 %v3127, %v3126
      %s3152 = scalar_lea.vmem %s5, 64
      %v3153 = vld [vmem:[%s3152] sm:$0xf]
      %v3154 = vld [vmem:[%s3152 + $0x4] sm:$0xf]
      %v3155 = vld [vmem:[%s3152 + $0x8] sm:$0xf]
      %v3156 = vld [vmem:[%s3152 + $0xc] sm:$0xf]
      %v3157 = vld [vmem:[%s3152 + $0x10] sm:$0xf]
      %v3158 = vld [vmem:[%s3152 + $0x14] sm:$0xf]
      %v3159 = vld [vmem:[%s3152 + $0x18] sm:$0xf]
      %v3160 = vld [vmem:[%s3152 + $0x1c] sm:$0xf]
      %v3161 = vld [vmem:[%s3152 + $0x20] sm:$0xf]
      %v3162 = vld [vmem:[%s3152 + $0x24] sm:$0xf]
      %v3163 = vld [vmem:[%s3152 + $0x28] sm:$0xf]
      %v3164 = vld [vmem:[%s3152 + $0x2c] sm:$0xf]
      %v3165 = vld [vmem:[%s3152 + $0x30] sm:$0xf]
      %v3166 = vld [vmem:[%s3152 + $0x34] sm:$0xf]
      %v3167 = vld [vmem:[%s3152 + $0x38] sm:$0xf]
      %v3168 = vld [vmem:[%s3152 + $0x3c] sm:$0xf]
      %v3185 = vunpack.c.l.b16 %v3153
      %v3186 = vunpack.c.l.b16 %v3154
      %v3187 = vunpack.c.l.b16 %v3155
      %v3188 = vunpack.c.l.b16 %v3156
      %v3189 = vunpack.c.l.b16 %v3157
      %v3190 = vunpack.c.l.b16 %v3158
      %v3191 = vunpack.c.l.b16 %v3159
      %v3192 = vunpack.c.l.b16 %v3160
      %v3193 = vunpack.c.l.b16 %v3161
      %v3194 = vunpack.c.l.b16 %v3162
      %v3195 = vunpack.c.l.b16 %v3163
      %v3196 = vunpack.c.l.b16 %v3164
      %v3197 = vunpack.c.l.b16 %v3165
      %v3198 = vunpack.c.l.b16 %v3166
      %v3199 = vunpack.c.l.b16 %v3167
      %v3200 = vunpack.c.l.b16 %v3168
      %v3201 = vpack.c.b16 %v3186, %v3185
      %v3202 = vpack.c.b16 %v3188, %v3187
      %v3203 = vpack.c.b16 %v3190, %v3189
      %v3204 = vpack.c.b16 %v3192, %v3191
      %v3205 = vpack.c.b16 %v3194, %v3193
      %v3206 = vpack.c.b16 %v3196, %v3195
      %v3207 = vpack.c.b16 %v3198, %v3197
      %v3208 = vpack.c.b16 %v3200, %v3199
      %3217 = vmatpush.bf16.msra.mxu0 %v3208
      %3218 = vmatpush.bf16.msra.mxu0 %v3207
      %3219 = vmatpush.bf16.msra.mxu0 %v3206
      %3220 = vmatpush.bf16.msra.mxu0 %v3205
      %3221 = vmatpush.bf16.msra.mxu0 %v3204
      %3222 = vmatpush.bf16.msra.mxu0 %v3203
      %3223 = vmatpush.bf16.msra.mxu0 %v3202
      %3224 = vmatpush.bf16.msra.mxu0 %v3201
      %3225 = vmatmul.bf16.gmra.mxu0 %v3148
      %v3226 = vpop.f32.mrf.mxu0
      %v3227 = vadd.f32 0.0, %v3226
      %v3228 = vpop.f32.mrf.mxu0
      %v3229 = vadd.f32 0.0, %v3228
      %3230 = vmatmul.bf16.gmra.mxu0 %v3149
      %v3231 = vpop.f32.mrf.mxu0
      %v3232 = vadd.f32 0.0, %v3231
      %v3233 = vpop.f32.mrf.mxu0
      %v3234 = vadd.f32 0.0, %v3233
      %3235 = vmatmul.bf16.gmra.mxu0 %v3150
      %v3236 = vpop.f32.mrf.mxu0
      %v3237 = vadd.f32 0.0, %v3236
      %v3238 = vpop.f32.mrf.mxu0
      %v3239 = vadd.f32 0.0, %v3238
      %3240 = vmatmul.bf16.gmra.mxu0 %v3151
      %v3241 = vpop.f32.mrf.mxu0
      %v3242 = vadd.f32 0.0, %v3241
      %v3243 = vpop.f32.mrf.mxu0
      %v3244 = vadd.f32 0.0, %v3243
      %3245 = vdwg.mxu0
      %v3262 = vunpack.c.l.b16 %v3132
      %v3263 = vunpack.c.l.b16 %v3133
      %v3264 = vunpack.c.l.b16 %v3134
      %v3265 = vunpack.c.l.b16 %v3135
      %v3266 = vunpack.c.l.b16 %v3136
      %v3267 = vunpack.c.l.b16 %v3137
      %v3268 = vunpack.c.l.b16 %v3138
      %v3269 = vunpack.c.l.b16 %v3139
      %v3270 = vunpack.c.l.b16 %v3140
      %v3271 = vunpack.c.l.b16 %v3141
      %v3272 = vunpack.c.l.b16 %v3142
      %v3273 = vunpack.c.l.b16 %v3143
      %v3274 = vunpack.c.l.b16 %v3144
      %v3275 = vunpack.c.l.b16 %v3145
      %v3276 = vunpack.c.l.b16 %v3146
      %v3277 = vunpack.c.l.b16 %v3147
      %v3278 = vpack.c.b16 %v3263, %v3262
      %v3279 = vpack.c.b16 %v3265, %v3264
      %v3280 = vpack.c.b16 %v3267, %v3266
      %v3281 = vpack.c.b16 %v3269, %v3268
      %v3282 = vpack.c.b16 %v3271, %v3270
      %v3283 = vpack.c.b16 %v3273, %v3272
      %v3284 = vpack.c.b16 %v3275, %v3274
      %v3285 = vpack.c.b16 %v3277, %v3276
      %3294 = vmatpush.bf16.msra.mxu0 %v3285
      %3295 = vmatpush.bf16.msra.mxu0 %v3284
      %3296 = vmatpush.bf16.msra.mxu0 %v3283
      %3297 = vmatpush.bf16.msra.mxu0 %v3282
      %3298 = vmatpush.bf16.msra.mxu0 %v3281
      %3299 = vmatpush.bf16.msra.mxu0 %v3280
      %3300 = vmatpush.bf16.msra.mxu0 %v3279
      %3301 = vmatpush.bf16.msra.mxu0 %v3278
      %3302 = vmatmul.bf16.gmra.mxu0 %v3128
      %v3303 = vpop.f32.mrf.mxu0
      %v3304 = vadd.f32 %v3227, %v3303
      %v3305 = vpop.f32.mrf.mxu0
      %v3306 = vadd.f32 %v3229, %v3305
      %3307 = vmatmul.bf16.gmra.mxu0 %v3129
      %v3308 = vpop.f32.mrf.mxu0
      %v3309 = vadd.f32 %v3232, %v3308
      %v3310 = vpop.f32.mrf.mxu0
      %v3311 = vadd.f32 %v3234, %v3310
      %3312 = vmatmul.bf16.gmra.mxu0 %v3130
      %v3313 = vpop.f32.mrf.mxu0
      %v3314 = vadd.f32 %v3237, %v3313
      %v3315 = vpop.f32.mrf.mxu0
      %v3316 = vadd.f32 %v3239, %v3315
      %3317 = vmatmul.bf16.gmra.mxu0 %v3131
      %v3318 = vpop.f32.mrf.mxu0
      %v3319 = vadd.f32 %v3242, %v3318
      %v3320 = vpop.f32.mrf.mxu0
      %v3321 = vadd.f32 %v3244, %v3320
      %3322 = vdwg.mxu0
      %v3323 = vld [vmem:[%s6] sm:$0x1]
      %v3325 = vperm.slane %v3323, 0
      %v3327 = vadd.f32 %v3304, %v3325
      %v3328 = vadd.f32 %v3306, %v3325
      %v3329 = vadd.f32 %v3309, %v3325
      %v3330 = vadd.f32 %v3311, %v3325
      %v3331 = vadd.f32 %v3314, %v3325
      %v3332 = vadd.f32 %v3316, %v3325
      %v3333 = vadd.f32 %v3319, %v3325
      %v3334 = vadd.f32 %v3321, %v3325
      %3335 = vst [vmem:[%s318] sm:$0xff] %v3327
      %3336 = vst [vmem:[%s318 + $0x8] sm:$0xff] %v3328
      %3337 = vst [vmem:[%s318 + $0x10] sm:$0xff] %v3329
      %3338 = vst [vmem:[%s318 + $0x18] sm:$0xff] %v3330
      %3339 = vst [vmem:[%s318 + $0x20] sm:$0xff] %v3331
      %3340 = vst [vmem:[%s318 + $0x28] sm:$0xff] %v3332
      %3341 = vst [vmem:[%s318 + $0x30] sm:$0xff] %v3333
      %3342 = vst [vmem:[%s318 + $0x38] sm:$0xff] %v3334
      %p3343 = scmp.lt.s32.totalorder %s20, 1
      %s3344 = scalar_select %p3343, %s20, 1
      %s3345 = smul.addr %s3344, 8
      %s3346 = smul.addr %s3345, 4
      %s3347 = scalar_lea.vmem %s7, %s3346
      %p3348 = scmp.lt.s32.totalorder %s20, 1
      %s3349 = scalar_select %p3348, %s20, 1
      %s3350 = smul.addr %s3349, 8
      %s3351 = smul.addr %s3350, 8
      %s3352 = scalar_lea.vmem %s8, %s3351
      // Predicated region
      $region49: #{ssd_detector_forward.4} parent=47 // pred_check
        %p3353 = pneg %p190
      $region50: #{ssd_detector_forward.4} parent=47 // pred_check_branch
        %3355 = sbr.rel (%p3353) target = $region52
      $region51: #{ssd_detector_forward.4} parent=47 // pred_region
        _
      $region52: #{ssd_detector_forward.4} parent=47 // pred_fallthru
        _
      // Predicated region
      $region53: #{ssd_detector_forward.4} parent=47 // pred_check
        %p3356 = pneg %p216
      $region54: #{ssd_detector_forward.4} parent=47 // pred_check_branch
        %3358 = sbr.rel (%p3356) target = $region56
      $region55: #{ssd_detector_forward.4} parent=47 // pred_region
        _
      $region56: #{ssd_detector_forward.4} parent=47 // pred_fallthru
        _
    $region48: #{ssd_detector_forward.4} parent=5 // pred_fallthru
      _
    %p3359 = scmp.le.s32.totalorder 2, %s15
    // Predicated region
    $region57: #{ssd_detector_forward.4} parent=5 // pred_check
      %p3360 = pneg %p3359
    $region58: #{ssd_detector_forward.4} parent=5 // pred_check_branch
      %3362 = sbr.rel (%p3360) target = $region60
    $region59: #{ssd_detector_forward.4} parent=5 // pred_region
      %s3363 = ssub.s32 %s15, 2
      // Predicated region
      $region61: #{ssd_detector_forward.4} parent=59 // pred_check
        %p3364 = pneg %p196
      $region62: #{ssd_detector_forward.4} parent=59 // pred_check_branch
        %3366 = sbr.rel (%p3364) target = $region64
      $region63: #{ssd_detector_forward.4} parent=59 // pred_region
        %p3367 = scmp.lt.s32.totalorder %s21, 1
        %s3368 = scalar_select %p3367, %s21, 1
        %s3369 = smul.addr %s3368, 8
        %s3370 = smul.addr %s3369, 4
        %s3371 = scalar_lea.vmem %s7, %s3370
      $region64: #{ssd_detector_forward.4} parent=59 // pred_fallthru
        _
      // Predicated region
      $region65: #{ssd_detector_forward.4} parent=59 // pred_check
        %p3372 = pneg %p222
      $region66: #{ssd_detector_forward.4} parent=59 // pred_check_branch
        %3374 = sbr.rel (%p3372) target = $region68
      $region67: #{ssd_detector_forward.4} parent=59 // pred_region
        %p3375 = scmp.lt.s32.totalorder %s21, 1
        %s3376 = scalar_select %p3375, %s21, 1
        %s3377 = smul.addr %s3376, 8
        %s3378 = smul.addr %s3377, 8
        %s3379 = scalar_lea.vmem %s8, %s3378
      $region68: #{ssd_detector_forward.4} parent=59 // pred_fallthru
        _
    $region60: #{ssd_detector_forward.4} parent=5 // pred_fallthru
      _
  $region6: #{ssd_detector_forward.4} parent=0 // loop_footer
    %s19 = sadd.s32 1, %s15
  $region7: #{ssd_detector_forward.4} parent=0 // loop_footer_branch
    %14 = sbr.rel target = $region3
  $region8: #{ssd_detector_forward.4} parent=0 // loop_exit
    _

// kernel: ssd_detector_forward.5
$region0: #{ssd_detector_forward.5}
  #allocation0 [shape = 'u32[]', space=smem, size = 0x4, offset = 0x4, fixed_abs, tag = 'smem constant byte address 0x4 - core index']
  #allocation1 [shape = 'u32[72,128]{1,0:T(1,128)}', space=vmem, size = 0x9000, scoped, tag = 'internal scratch']
  #allocation2 [shape = 'f32[6,6,128]{2,1,0:T(8,128)}', space=vmem, size = 0x6000, scoped, tag = 'scratch operand']
  %s0 = inlined_call_operand.vmem [shape: bf16[2,5,5,512], index: 0, kind: input, shape index: {}]
  %s1 = inlined_call_operand.vmem [shape: bf16[4,512,128], index: 1, kind: input, shape index: {}]
  %s2 = inlined_call_operand.vmem [shape: f32[1,128], index: 2, kind: input, shape index: {}]
  %s3 = inlined_call_operand.vmem [shape: f32[18,128], index: 3, kind: input, shape index: {}]
  %s4 = inlined_call_operand.vmem [shape: f32[2,128], index: 4, kind: input, shape index: {}]
  %s5 = inlined_call_operand.vmem [shape: bf16[2,128,128], index: 5, kind: input, shape index: {}]
  %s6 = inlined_call_operand.vmem [shape: f32[1,128], index: 6, kind: input, shape index: {}]
  %s7 = inlined_call_operand.hbm [shape: bf16[2,4,4,128], index: 7, kind: output, shape index: {0}]
  %s8 = inlined_call_operand.vmem [shape: f32[2,16,128], index: 8, kind: output, shape index: {1}]
  %9 = xla_tuple %s7, %s8
  %s10 = sld [smem:[#allocation0]]
  $region69: #{ssd_detector_forward.5} parent=0
    _
  %s12 = ssub.s32 1, %s10
  %s13 = scalar_select 0, %s12, %s10
  $region1: #{ssd_detector_forward.5} parent=0
    #allocation3 [shape = 'u8[8192]{0}', space=vmem, size = 0x2000, scoped, tag = 'output window, operand 0']
    #allocation4 [shape = 's32[2]{0}', space=sflag, size = 0x8, scoped, tag = 'scoped memory for ssd_detector_forward.5']
    %14 = vsyncpa [#allocation4], 0
    %s15 = scalar_lea.sflag [#allocation4], 1
    %16 = vsyncpa %s15, 0
    loop: start=0, step=1, limit=4
    $region2: #{ssd_detector_forward.5} parent=1 // loop_pre_header
      _
    $region3: #{ssd_detector_forward.5} parent=1 // loop_header
      %s18 = sphi 0, %s22
      %p19 = scmp.ge.s32.totalorder %s18, 4
      %s28 = sphi 0, %s30
      %s31 = sphi 0, %s28
      %s32 = sphi 0, %s31
      %s48 = sphi 0, %s32
      %s52 = sphi 0, %s52
      %s54 = sphi 0, %s52
      %s55 = sphi 0, %s54
      %s69 = sphi 0, %s55
      %s73 = sphi 0, %s73
      %s75 = sphi 0, %s73
      %s76 = sphi 0, %s75
      %s90 = sphi 0, %s76
      %s94 = sphi 0, %s94
      %s96 = sphi 0, %s94
      %s97 = sphi 0, %s96
      %s111 = sphi 0, %s97
      %s115 = sphi 0, %s115
      %s117 = sphi 0, %s115
      %s118 = sphi 0, %s117
      %s132 = sphi 0, %s118
      %s136 = sphi 0, %s136
      %s138 = sphi 0, %s136
      %s139 = sphi 0, %s138
      %s153 = sphi 0, %s139
      %s157 = sphi 0, %s157
      %s159 = sphi 0, %s157
      %s160 = sphi 0, %s159
      %s174 = sphi 0, %s160
      %s180 = sphi 0, %s182
      %s183 = sphi 0, %s180
      %s184 = sphi 0, %s183
      %s200 = sphi 0, %s184
      %s206 = sphi 0, %s208
      %s209 = sphi 0, %s206
      %s210 = sphi 0, %s209
      %s226 = sphi 0, %s210
    $region4: #{ssd_detector_forward.5} parent=1 // loop_header_branch
      %21 = sbr.rel (%p19) target = $region8
    $region5: #{ssd_detector_forward.5} parent=1 // loop_body
      %s23 = ssub.s32 %s18, 1
      %s24 = ssub.s32 %s18, 2
      %s25 = sadd.s32 %s18, 1
      %s26 = ssub.s32 %s18, %s25
      %p27 = scmp.eq.s32.totalorder %s26, 0
      %s29 = sadd.s32 %s28, 1
      %s30 = scalar_select %p27, %s28, %s29
      %p33 = pneg %p27
      %p34 = scmp.eq.s32.totalorder %s18, 1
      %p35 = por %p33, %p34
      %p36 = scmp.ne.s32.totalorder %s28, %s31
      %p37 = scmp.eq.s32.totalorder %s18, 0
      %p38 = por %p36, %p37
      %p39 = scmp.ne.s32.totalorder %s28, %s31
      %p40 = scmp.eq.s32.totalorder %s23, 1
      %p41 = por %p39, %p40
      %p42 = scmp.ne.s32.totalorder %s31, %s32
      %p43 = scmp.eq.s32.totalorder %s23, 0
      %p44 = por %p42, %p43
      %p45 = scmp.ne.s32.totalorder %s31, %s32
      %p46 = scmp.eq.s32.totalorder %s24, 1
      %p47 = por %p45, %p46
      %p49 = scmp.ne.s32.totalorder %s32, %s48
      %p50 = scmp.eq.s32.totalorder %s24, 0
      %p51 = por %p49, %p50
      %s53 = sadd.s32 %s52, 1
      %p56 = scmp.eq.s32.totalorder %s18, 1
      %p57 = scmp.ne.s32.totalorder %s52, %s54
      %p58 = scmp.eq.s32.totalorder %s18, 0
      %p59 = por %p57, %p58
      %p60 = scmp.ne.s32.totalorder %s52, %s54
      %p61 = scmp.eq.s32.totalorder %s23, 1
      %p62 = por %p60, %p61
      %p63 = scmp.ne.s32.totalorder %s54, %s55
      %p64 = scmp.eq.s32.totalorder %s23, 0
      %p65 = por %p63, %p64
      %p66 = scmp.ne.s32.totalorder %s54, %s55
      %p67 = scmp.eq.s32.totalorder %s24, 1
      %p68 = por %p66, %p67
      %p70 = scmp.ne.s32.totalorder %s55, %s69
      %p71 = scmp.eq.s32.totalorder %s24, 0
      %p72 = por %p70, %p71
      %s74 = sadd.s32 %s73, 1
      %p77 = scmp.eq.s32.totalorder %s18, 1
      %p78 = scmp.ne.s32.totalorder %s73, %s75
      %p79 = scmp.eq.s32.totalorder %s18, 0
      %p80 = por %p78, %p79
      %p81 = scmp.ne.s32.totalorder %s73, %s75
      %p82 = scmp.eq.s32.totalorder %s23, 1
      %p83 = por %p81, %p82
      %p84 = scmp.ne.s32.totalorder %s75, %s76
      %p85 = scmp.eq.s32.totalorder %s23, 0
      %p86 = por %p84, %p85
      %p87 = scmp.ne.s32.totalorder %s75, %s76
      %p88 = scmp.eq.s32.totalorder %s24, 1
      %p89 = por %p87, %p88
      %p91 = scmp.ne.s32.totalorder %s76, %s90
      %p92 = scmp.eq.s32.totalorder %s24, 0
      %p93 = por %p91, %p92
      %s95 = sadd.s32 %s94, 1
      %p98 = scmp.eq.s32.totalorder %s18, 1
      %p99 = scmp.ne.s32.totalorder %s94, %s96
      %p100 = scmp.eq.s32.totalorder %s18, 0
      %p101 = por %p99, %p100
      %p102 = scmp.ne.s32.totalorder %s94, %s96
      %p103 = scmp.eq.s32.totalorder %s23, 1
      %p104 = por %p102, %p103
      %p105 = scmp.ne.s32.totalorder %s96, %s97
      %p106 = scmp.eq.s32.totalorder %s23, 0
      %p107 = por %p105, %p106
      %p108 = scmp.ne.s32.totalorder %s96, %s97
      %p109 = scmp.eq.s32.totalorder %s24, 1
      %p110 = por %p108, %p109
      %p112 = scmp.ne.s32.totalorder %s97, %s111
      %p113 = scmp.eq.s32.totalorder %s24, 0
      %p114 = por %p112, %p113
      %s116 = sadd.s32 %s115, 1
      %p119 = scmp.eq.s32.totalorder %s18, 1
      %p120 = scmp.ne.s32.totalorder %s115, %s117
      %p121 = scmp.eq.s32.totalorder %s18, 0
      %p122 = por %p120, %p121
      %p123 = scmp.ne.s32.totalorder %s115, %s117
      %p124 = scmp.eq.s32.totalorder %s23, 1
      %p125 = por %p123, %p124
      %p126 = scmp.ne.s32.totalorder %s117, %s118
      %p127 = scmp.eq.s32.totalorder %s23, 0
      %p128 = por %p126, %p127
      %p129 = scmp.ne.s32.totalorder %s117, %s118
      %p130 = scmp.eq.s32.totalorder %s24, 1
      %p131 = por %p129, %p130
      %p133 = scmp.ne.s32.totalorder %s118, %s132
      %p134 = scmp.eq.s32.totalorder %s24, 0
      %p135 = por %p133, %p134
      %s137 = sadd.s32 %s136, 1
      %p140 = scmp.eq.s32.totalorder %s18, 1
      %p141 = scmp.ne.s32.totalorder %s136, %s138
      %p142 = scmp.eq.s32.totalorder %s18, 0
      %p143 = por %p141, %p142
      %p144 = scmp.ne.s32.totalorder %s136, %s138
      %p145 = scmp.eq.s32.totalorder %s23, 1
      %p146 = por %p144, %p145
      %p147 = scmp.ne.s32.totalorder %s138, %s139
      %p148 = scmp.eq.s32.totalorder %s23, 0
      %p149 = por %p147, %p148
      %p150 = scmp.ne.s32.totalorder %s138, %s139
      %p151 = scmp.eq.s32.totalorder %s24, 1
      %p152 = por %p150, %p151
      %p154 = scmp.ne.s32.totalorder %s139, %s153
      %p155 = scmp.eq.s32.totalorder %s24, 0
      %p156 = por %p154, %p155
      %s158 = sadd.s32 %s157, 1
      %p161 = scmp.eq.s32.totalorder %s18, 1
      %p162 = scmp.ne.s32.totalorder %s157, %s159
      %p163 = scmp.eq.s32.totalorder %s18, 0
      %p164 = por %p162, %p163
      %p165 = scmp.ne.s32.totalorder %s157, %s159
      %p166 = scmp.eq.s32.totalorder %s23, 1
      %p167 = por %p165, %p166
      %p168 = scmp.ne.s32.totalorder %s159, %s160
      %p169 = scmp.eq.s32.totalorder %s23, 0
      %p170 = por %p168, %p169
      %p171 = scmp.ne.s32.totalorder %s159, %s160
      %p172 = scmp.eq.s32.totalorder %s24, 1
      %p173 = por %p171, %p172
      %p175 = scmp.ne.s32.totalorder %s160, %s174
      %p176 = scmp.eq.s32.totalorder %s24, 0
      %p177 = por %p175, %p176
      %s178 = ssub.s32 %s18, %s25
      %p179 = scmp.eq.s32.totalorder %s178, 0
      %s181 = sadd.s32 %s180, 1
      %s182 = scalar_select %p179, %s180, %s181
      %p185 = pneg %p179
      %p186 = scmp.eq.s32.totalorder %s18, 1
      %p187 = por %p185, %p186
      %p188 = scmp.ne.s32.totalorder %s180, %s183
      %p189 = scmp.eq.s32.totalorder %s18, 0
      %p190 = por %p188, %p189
      %p191 = scmp.ne.s32.totalorder %s180, %s183
      %p192 = scmp.eq.s32.totalorder %s23, 1
      %p193 = por %p191, %p192
      %p194 = scmp.ne.s32.totalorder %s183, %s184
      %p195 = scmp.eq.s32.totalorder %s23, 0
      %p196 = por %p194, %p195
      %p197 = scmp.ne.s32.totalorder %s183, %s184
      %p198 = scmp.eq.s32.totalorder %s24, 1
      %p199 = por %p197, %p198
      %p201 = scmp.ne.s32.totalorder %s184, %s200
      %p202 = scmp.eq.s32.totalorder %s24, 0
      %p203 = por %p201, %p202
      %s204 = ssub.s32 %s18, %s25
      %p205 = scmp.eq.s32.totalorder %s204, 0
      %s207 = sadd.s32 %s206, 1
      %s208 = scalar_select %p205, %s206, %s207
      %p211 = pneg %p205
      %p212 = scmp.eq.s32.totalorder %s18, 1
      %p213 = por %p211, %p212
      %p214 = scmp.ne.s32.totalorder %s206, %s209
      %p215 = scmp.eq.s32.totalorder %s18, 0
      %p216 = por %p214, %p215
      %p217 = scmp.ne.s32.totalorder %s206, %s209
      %p218 = scmp.eq.s32.totalorder %s23, 1
      %p219 = por %p217, %p218
      %p220 = scmp.ne.s32.totalorder %s209, %s210
      %p221 = scmp.eq.s32.totalorder %s23, 0
      %p222 = por %p220, %p221
      %p223 = scmp.ne.s32.totalorder %s209, %s210
      %p224 = scmp.eq.s32.totalorder %s24, 1
      %p225 = por %p223, %p224
      %p227 = scmp.ne.s32.totalorder %s210, %s226
      %p228 = scmp.eq.s32.totalorder %s24, 0
      %p229 = por %p227, %p228
      %p230 = scmp.le.s32.totalorder 1, %s18
      %p231 = scmp.lt.s32.totalorder %s18, 3
      %p232 = pnand %p230, %p231
      %p233 = pneg %p232
      // Predicated region
      $region9: #{ssd_detector_forward.5} parent=5 // pred_check
        _
      $region10: #{ssd_detector_forward.5} parent=5 // pred_check_branch
        %235 = sbr.rel (%p232) target = $region12
      $region11: #{ssd_detector_forward.5} parent=5 // pred_region
        %s236 = ssub.s32 %s18, 1
        // Predicated region
        $region13: #{ssd_detector_forward.5} parent=11 // pred_check
          %p237 = pneg %p65
        $region14: #{ssd_detector_forward.5} parent=11 // pred_check_branch
          %239 = sbr.rel (%p237) target = $region16
        $region15: #{ssd_detector_forward.5} parent=11 // pred_region
          _
        $region16: #{ssd_detector_forward.5} parent=11 // pred_fallthru
          _
        // Predicated region
        $region17: #{ssd_detector_forward.5} parent=11 // pred_check
          %p240 = pneg %p86
        $region18: #{ssd_detector_forward.5} parent=11 // pred_check_branch
          %242 = sbr.rel (%p240) target = $region20
        $region19: #{ssd_detector_forward.5} parent=11 // pred_region
          _
        $region20: #{ssd_detector_forward.5} parent=11 // pred_fallthru
          _
        // Predicated region
        $region21: #{ssd_detector_forward.5} parent=11 // pred_check
          %p243 = pneg %p107
        $region22: #{ssd_detector_forward.5} parent=11 // pred_check_branch
          %245 = sbr.rel (%p243) target = $region24
        $region23: #{ssd_detector_forward.5} parent=11 // pred_region
          _
        $region24: #{ssd_detector_forward.5} parent=11 // pred_fallthru
          _
        // Predicated region
        $region25: #{ssd_detector_forward.5} parent=11 // pred_check
          %p246 = pneg %p128
        $region26: #{ssd_detector_forward.5} parent=11 // pred_check_branch
          %248 = sbr.rel (%p246) target = $region28
        $region27: #{ssd_detector_forward.5} parent=11 // pred_region
          _
        $region28: #{ssd_detector_forward.5} parent=11 // pred_fallthru
          _
        // Predicated region
        $region29: #{ssd_detector_forward.5} parent=11 // pred_check
          %p249 = pneg %p149
        $region30: #{ssd_detector_forward.5} parent=11 // pred_check_branch
          %251 = sbr.rel (%p249) target = $region32
        $region31: #{ssd_detector_forward.5} parent=11 // pred_region
          _
        $region32: #{ssd_detector_forward.5} parent=11 // pred_fallthru
          _
        // Predicated region
        $region33: #{ssd_detector_forward.5} parent=11 // pred_check
          %p252 = pneg %p170
        $region34: #{ssd_detector_forward.5} parent=11 // pred_check_branch
          %254 = sbr.rel (%p252) target = $region36
        $region35: #{ssd_detector_forward.5} parent=11 // pred_region
          _
        $region36: #{ssd_detector_forward.5} parent=11 // pred_fallthru
          _
      $region12: #{ssd_detector_forward.5} parent=5 // pred_fallthru
        _
      %p255 = scmp.lt.s32.totalorder %s18, 2
      // Predicated region
      $region37: #{ssd_detector_forward.5} parent=5 // pred_check
        %p256 = pneg %p255
      $region38: #{ssd_detector_forward.5} parent=5 // pred_check_branch
        %258 = sbr.rel (%p256) target = $region40
      $region39: #{ssd_detector_forward.5} parent=5 // pred_region
        // Predicated region
        $region41: #{ssd_detector_forward.5} parent=39 // pred_check
          %p259 = pneg %p38
        $region42: #{ssd_detector_forward.5} parent=39 // pred_check_branch
          %261 = sbr.rel (%p259) target = $region44
        $region43: #{ssd_detector_forward.5} parent=39 // pred_region
          %p262 = scmp.lt.s32.totalorder %s18, 1
          %s263 = scalar_select %p262, %s18, 1
          %s264 = smul.addr %s263, 20
          %s265 = smul.addr %s264, 4
          %s266 = scalar_lea.vmem %s0, %s265
        $region44: #{ssd_detector_forward.5} parent=39 // pred_fallthru
          _
      $region40: #{ssd_detector_forward.5} parent=5 // pred_fallthru
        _
      %p267 = scmp.le.s32.totalorder 1, %s18
      %p268 = scmp.lt.s32.totalorder %s18, 3
      %p269 = pnand %p267, %p268
      %p270 = pneg %p269
      // Predicated region
      $region45: #{ssd_detector_forward.5} parent=5 // pred_check
        _
      $region46: #{ssd_detector_forward.5} parent=5 // pred_check_branch
        %272 = sbr.rel (%p269) target = $region48
      $region47: #{ssd_detector_forward.5} parent=5 // pred_region
        %s273 = ssub.s32 %s18, 1
        %p274 = scmp.lt.s32.totalorder %s23, 1
        %s275 = scalar_select %p274, %s23, 1
        %s276 = smul.addr %s275, 20
        %s277 = smul.addr %s276, 4
        %s278 = scalar_lea.vmem %s0, %s277
        %p279 = pneg %p44
        %p280 = pneg %p41
        %p281 = pneg %p65
        %p282 = pneg %p62
        %p283 = pneg %p86
        %p284 = pneg %p83
        %p285 = pneg %p107
        %p286 = pneg %p104
        %p287 = pneg %p128
        %p288 = pneg %p125
        %p289 = pneg %p149
        %p290 = pneg %p146
        %p291 = pneg %p170
        %p292 = pneg %p167
        %p293 = pneg %p196
        %p294 = pneg %p193
        %s295 = sand.u32 %s183, 1
        %s296 = scalar_lea.sflag [#allocation4], %s295
        %s297 = sand.u32 %s183, 1
        %s298 = smul.addr %s297, 8
        %s299 = scalar_lea.vmem [#allocation3], %s298
        %p300 = pneg %p222
        %p301 = pneg %p219
        %p302 = scmp.lt.s32.totalorder %s23, 1
        %s303 = scalar_select %p302, %s23, 1
        %s304 = smul.addr %s303, 2
        %s305 = smul.addr %s304, 8
        %s306 = scalar_lea.vmem %s8, %s305
        %p307 = scmp.lt.s32.totalorder %s23, 1
        %s308 = scalar_select %p307, %s23, 1
        %s309 = smul.addr %s308, 20
        %s310 = smul.addr %s309, 4
        %s311 = scalar_lea.vmem %s0, %s310
        %p312 = scmp.lt.s32.totalorder %s23, 1
        %s313 = scalar_select %p312, %s23, 1
        %s314 = smul.addr %s313, 2
        %s315 = smul.addr %s314, 8
        %s316 = scalar_lea.vmem %s8, %s315
        %v317 = vld [vmem:[%s311] sm:$0x33]
        %v318 = vld [vmem:[%s311 + $0x8] sm:$0x33]
        %v319 = vld [vmem:[%s311 + $0x10] sm:$0x33]
        %v320 = vld [vmem:[%s311 + $0x18] sm:$0x33]
        %v321 = vld [vmem:[%s311 + $0x20] sm:$0x33]
        %v322 = vld [vmem:[%s311 + $0x28] sm:$0x33]
        %v323 = vld [vmem:[%s311 + $0x30] sm:$0x33]
        %v324 = vld [vmem:[%s311 + $0x38] sm:$0x33]
        %v333 = vrot.slane %v317, 2
        %v334 = vrot.slane %v318, 4
        %v335 = vrot.slane %v318, 6
        %v336 = vrot.slane %v319, 2
        %v337 = vrot.slane %v320, 4
        %v338 = vrot.slane %v320, 6
        %v339 = vrot.slane %v321, 2
        %v340 = vrot.slane %v322, 4
        %v341 = vrot.slane %v322, 6
        %v342 = vrot.slane %v323, 2
        %v343 = vrot.slane %v324, 4
        %v344 = vrot.slane %v324, 6
        %vm345 = vcmask 1041408
        %v348 = vsel %vm345, %v317, %v333
        %vm349 = vcmask 1045508
        %v352 = vsel %vm349, %v334, %v335
        %vm353 = vcmask 1043456
        %v354 = vsel %vm353, %v348, %v352
        %v357 = vsel %vm345, %v319, %v336
        %v360 = vsel %vm349, %v337, %v338
        %v361 = vsel %vm353, %v357, %v360
        %v364 = vsel %vm345, %v321, %v339
        %v367 = vsel %vm349, %v340, %v341
        %v368 = vsel %vm353, %v364, %v367
        %v371 = vsel %vm345, %v323, %v342
        %v374 = vsel %vm349, %v343, %v344
        %v375 = vsel %vm353, %v371, %v374
        %v376 = vld [vmem:[%s1] sm:$0xf]
        %v377 = vld [vmem:[%s1 + $0x4] sm:$0xf]
        %v378 = vld [vmem:[%s1 + $0x8] sm:$0xf]
        %v379 = vld [vmem:[%s1 + $0xc] sm:$0xf]
        %v380 = vld [vmem:[%s1 + $0x10] sm:$0xf]
        %v381 = vld [vmem:[%s1 + $0x14] sm:$0xf]
        %v382 = vld [vmem:[%s1 + $0x18] sm:$0xf]
        %v383 = vld [vmem:[%s1 + $0x1c] sm:$0xf]
        %v384 = vld [vmem:[%s1 + $0x20] sm:$0xf]
        %v385 = vld [vmem:[%s1 + $0x24] sm:$0xf]
        %v386 = vld [vmem:[%s1 + $0x28] sm:$0xf]
        %v387 = vld [vmem:[%s1 + $0x2c] sm:$0xf]
        %v388 = vld [vmem:[%s1 + $0x30] sm:$0xf]
        %v389 = vld [vmem:[%s1 + $0x34] sm:$0xf]
        %v390 = vld [vmem:[%s1 + $0x38] sm:$0xf]
        %v391 = vld [vmem:[%s1 + $0x3c] sm:$0xf]
        %v392 = vld [vmem:[%s1 + $0x40] sm:$0xf]
        %v393 = vld [vmem:[%s1 + $0x44] sm:$0xf]
        %v394 = vld [vmem:[%s1 + $0x48] sm:$0xf]
        %v395 = vld [vmem:[%s1 + $0x4c] sm:$0xf]
        %v396 = vld [vmem:[%s1 + $0x50] sm:$0xf]
        %v397 = vld [vmem:[%s1 + $0x54] sm:$0xf]
        %v398 = vld [vmem:[%s1 + $0x58] sm:$0xf]
        %v399 = vld [vmem:[%s1 + $0x5c] sm:$0xf]
        %v400 = vld [vmem:[%s1 + $0x60] sm:$0xf]
        %v401 = vld [vmem:[%s1 + $0x64] sm:$0xf]
        %v402 = vld [vmem:[%s1 + $0x68] sm:$0xf]
        %v403 = vld [vmem:[%s1 + $0x6c] sm:$0xf]
        %v404 = vld [vmem:[%s1 + $0x70] sm:$0xf]
        %v405 = vld [vmem:[%s1 + $0x74] sm:$0xf]
        %v406 = vld [vmem:[%s1 + $0x78] sm:$0xf]
        %v407 = vld [vmem:[%s1 + $0x7c] sm:$0xf]
        %v408 = vld [vmem:[%s1 + $0x80] sm:$0xf]
        %v409 = vld [vmem:[%s1 + $0x84] sm:$0xf]
        %v410 = vld [vmem:[%s1 + $0x88] sm:$0xf]
        %v411 = vld [vmem:[%s1 + $0x8c] sm:$0xf]
        %v412 = vld [vmem:[%s1 + $0x90] sm:$0xf]
        %v413 = vld [vmem:[%s1 + $0x94] sm:$0xf]
        %v414 = vld [vmem:[%s1 + $0x98] sm:$0xf]
        %v415 = vld [vmem:[%s1 + $0x9c] sm:$0xf]
        %v416 = vld [vmem:[%s1 + $0xa0] sm:$0xf]
        %v417 = vld [vmem:[%s1 + $0xa4] sm:$0xf]
        %v418 = vld [vmem:[%s1 + $0xa8] sm:$0xf]
        %v419 = vld [vmem:[%s1 + $0xac] sm:$0xf]
        %v420 = vld [vmem:[%s1 + $0xb0] sm:$0xf]
        %v421 = vld [vmem:[%s1 + $0xb4] sm:$0xf]
        %v422 = vld [vmem:[%s1 + $0xb8] sm:$0xf]
        %v423 = vld [vmem:[%s1 + $0xbc] sm:$0xf]
        %v424 = vld [vmem:[%s1 + $0xc0] sm:$0xf]
        %v425 = vld [vmem:[%s1 + $0xc4] sm:$0xf]
        %v426 = vld [vmem:[%s1 + $0xc8] sm:$0xf]
        %v427 = vld [vmem:[%s1 + $0xcc] sm:$0xf]
        %v428 = vld [vmem:[%s1 + $0xd0] sm:$0xf]
        %v429 = vld [vmem:[%s1 + $0xd4] sm:$0xf]
        %v430 = vld [vmem:[%s1 + $0xd8] sm:$0xf]
        %v431 = vld [vmem:[%s1 + $0xdc] sm:$0xf]
        %v432 = vld [vmem:[%s1 + $0xe0] sm:$0xf]
        %v433 = vld [vmem:[%s1 + $0xe4] sm:$0xf]
        %v434 = vld [vmem:[%s1 + $0xe8] sm:$0xf]
        %v435 = vld [vmem:[%s1 + $0xec] sm:$0xf]
        %v436 = vld [vmem:[%s1 + $0xf0] sm:$0xf]
        %v437 = vld [vmem:[%s1 + $0xf4] sm:$0xf]
        %v438 = vld [vmem:[%s1 + $0xf8] sm:$0xf]
        %v439 = vld [vmem:[%s1 + $0xfc] sm:$0xf]
        %v440 = vld [vmem:[%s311] sm:$0x77]
        %v441 = vld [vmem:[%s311 + $0x8] sm:$0x77]
        %v442 = vld [vmem:[%s311 + $0x10] sm:$0x77]
        %v443 = vld [vmem:[%s311 + $0x18] sm:$0x77]
        %v444 = vld [vmem:[%s311 + $0x20] sm:$0x77]
        %v445 = vld [vmem:[%s311 + $0x28] sm:$0x77]
        %v446 = vld [vmem:[%s311 + $0x30] sm:$0x77]
        %v447 = vld [vmem:[%s311 + $0x38] sm:$0x77]
        %v456 = vrot.slane %v440, 2
        %v457 = vrot.slane %v441, 4
        %v458 = vrot.slane %v441, 6
        %v459 = vrot.slane %v442, 2
        %v460 = vrot.slane %v443, 4
        %v461 = vrot.slane %v443, 6
        %v462 = vrot.slane %v444, 2
        %v463 = vrot.slane %v445, 4
        %v464 = vrot.slane %v445, 6
        %v465 = vrot.slane %v446, 2
        %v466 = vrot.slane %v447, 4
        %v467 = vrot.slane %v447, 6
        %v470 = vsel %vm345, %v440, %v456
        %v473 = vsel %vm349, %v457, %v458
        %v474 = vsel %vm353, %v470, %v473
        %vm475 = vcmask 1043458
        %v476 = vsel %vm475, %v440, %v456
        %vm477 = vcmask 1045504
        %v478 = vsel %vm477, %v458, %v457
        %vm479 = vcmask 1045506
        %v480 = vsel %vm479, %v476, %v478
        %v482 = vrot.slane %v480, 2
        %v485 = vsel %vm345, %v442, %v459
        %v488 = vsel %vm349, %v460, %v461
        %v489 = vsel %vm353, %v485, %v488
        %v490 = vsel %vm475, %v442, %v459
        %v491 = vsel %vm477, %v461, %v460
        %v492 = vsel %vm479, %v490, %v491
        %v494 = vrot.slane %v492, 2
        %v497 = vsel %vm345, %v444, %v462
        %v500 = vsel %vm349, %v463, %v464
        %v501 = vsel %vm353, %v497, %v500
        %v502 = vsel %vm475, %v444, %v462
        %v503 = vsel %vm477, %v464, %v463
        %v504 = vsel %vm479, %v502, %v503
        %v506 = vrot.slane %v504, 2
        %v509 = vsel %vm345, %v446, %v465
        %v512 = vsel %vm349, %v466, %v467
        %v513 = vsel %vm353, %v509, %v512
        %v514 = vsel %vm475, %v446, %v465
        %v515 = vsel %vm477, %v467, %v466
        %v516 = vsel %vm479, %v514, %v515
        %v518 = vrot.slane %v516, 2
        %vm519 = vsmask.f32 1280
        %vm520 = vsmask.f32 3336
        %vm521 = vmor %vm519, %vm520
        %vm522 = vsmask.f32 5392
        %vm523 = vmor %vm521, %vm522
        %vm524 = vsmask.f32 7448
        %vm525 = vmor %vm523, %vm524
        %v526 = vshrl.u32 %v474, 16
        %v528 = vrot.slane %v526, 6
        %v529 = vshll.u32 %v474, 16
        %v531 = vrot.slane %v529, 7
        %v532 = vor.u32 %v528, %v531
        %v533 = vrot.slane %v532, 2
        %v535 = vshll.u32 %v482, 16
        %v537 = vrot.slane %v535, 7
        %v538 = vsel %vm525, %v533, %v537
        %v539 = vshrl.u32 %v489, 16
        %v541 = vrot.slane %v539, 6
        %v542 = vshll.u32 %v489, 16
        %v544 = vrot.slane %v542, 7
        %v545 = vor.u32 %v541, %v544
        %v546 = vrot.slane %v545, 2
        %v548 = vshll.u32 %v494, 16
        %v550 = vrot.slane %v548, 7
        %v551 = vsel %vm525, %v546, %v550
        %v552 = vshrl.u32 %v501, 16
        %v554 = vrot.slane %v552, 6
        %v555 = vshll.u32 %v501, 16
        %v557 = vrot.slane %v555, 7
        %v558 = vor.u32 %v554, %v557
        %v559 = vrot.slane %v558, 2
        %v561 = vshll.u32 %v506, 16
        %v563 = vrot.slane %v561, 7
        %v564 = vsel %vm525, %v559, %v563
        %v565 = vshrl.u32 %v513, 16
        %v567 = vrot.slane %v565, 6
        %v568 = vshll.u32 %v513, 16
        %v570 = vrot.slane %v568, 7
        %v571 = vor.u32 %v567, %v570
        %v572 = vrot.slane %v571, 2
        %v574 = vshll.u32 %v518, 16
        %v576 = vrot.slane %v574, 7
        %v577 = vsel %vm525, %v572, %v576
        %s578 = scalar_lea.vmem %s1, 256
        %v579 = vld [vmem:[%s578] sm:$0xf]
        %v580 = vld [vmem:[%s578 + $0x4] sm:$0xf]
        %v581 = vld [vmem:[%s578 + $0x8] sm:$0xf]
        %v582 = vld [vmem:[%s578 + $0xc] sm:$0xf]
        %v583 = vld [vmem:[%s578 + $0x10] sm:$0xf]
        %v584 = vld [vmem:[%s578 + $0x14] sm:$0xf]
        %v585 = vld [vmem:[%s578 + $0x18] sm:$0xf]
        %v586 = vld [vmem:[%s578 + $0x1c] sm:$0xf]
        %v587 = vld [vmem:[%s578 + $0x20] sm:$0xf]
        %v588 = vld [vmem:[%s578 + $0x24] sm:$0xf]
        %v589 = vld [vmem:[%s578 + $0x28] sm:$0xf]
        %v590 = vld [vmem:[%s578 + $0x2c] sm:$0xf]
        %v591 = vld [vmem:[%s578 + $0x30] sm:$0xf]
        %v592 = vld [vmem:[%s578 + $0x34] sm:$0xf]
        %v593 = vld [vmem:[%s578 + $0x38] sm:$0xf]
        %v594 = vld [vmem:[%s578 + $0x3c] sm:$0xf]
        %v595 = vld [vmem:[%s578 + $0x40] sm:$0xf]
        %v596 = vld [vmem:[%s578 + $0x44] sm:$0xf]
        %v597 = vld [vmem:[%s578 + $0x48] sm:$0xf]
        %v598 = vld [vmem:[%s578 + $0x4c] sm:$0xf]
        %v599 = vld [vmem:[%s578 + $0x50] sm:$0xf]
        %v600 = vld [vmem:[%s578 + $0x54] sm:$0xf]
        %v601 = vld [vmem:[%s578 + $0x58] sm:$0xf]
        %v602 = vld [vmem:[%s578 + $0x5c] sm:$0xf]
        %v603 = vld [vmem:[%s578 + $0x60] sm:$0xf]
        %v604 = vld [vmem:[%s578 + $0x64] sm:$0xf]
        %v605 = vld [vmem:[%s578 + $0x68] sm:$0xf]
        %v606 = vld [vmem:[%s578 + $0x6c] sm:$0xf]
        %v607 = vld [vmem:[%s578 + $0x70] sm:$0xf]
        %v608 = vld [vmem:[%s578 + $0x74] sm:$0xf]
        %v609 = vld [vmem:[%s578 + $0x78] sm:$0xf]
        %v610 = vld [vmem:[%s578 + $0x7c] sm:$0xf]
        %v611 = vld [vmem:[%s578 + $0x80] sm:$0xf]
        %v612 = vld [vmem:[%s578 + $0x84] sm:$0xf]
        %v613 = vld [vmem:[%s578 + $0x88] sm:$0xf]
        %v614 = vld [vmem:[%s578 + $0x8c] sm:$0xf]
        %v615 = vld [vmem:[%s578 + $0x90] sm:$0xf]
        %v616 = vld [vmem:[%s578 + $0x94] sm:$0xf]
        %v617 = vld [vmem:[%s578 + $0x98] sm:$0xf]
        %v618 = vld [vmem:[%s578 + $0x9c] sm:$0xf]
        %v619 = vld [vmem:[%s578 + $0xa0] sm:$0xf]
        %v620 = vld [vmem:[%s578 + $0xa4] sm:$0xf]
        %v621 = vld [vmem:[%s578 + $0xa8] sm:$0xf]
        %v622 = vld [vmem:[%s578 + $0xac] sm:$0xf]
        %v623 = vld [vmem:[%s578 + $0xb0] sm:$0xf]
        %v624 = vld [vmem:[%s578 + $0xb4] sm:$0xf]
        %v625 = vld [vmem:[%s578 + $0xb8] sm:$0xf]
        %v626 = vld [vmem:[%s578 + $0xbc] sm:$0xf]
        %v627 = vld [vmem:[%s578 + $0xc0] sm:$0xf]
        %v628 = vld [vmem:[%s578 + $0xc4] sm:$0xf]
        %v629 = vld [vmem:[%s578 + $0xc8] sm:$0xf]
        %v630 = vld [vmem:[%s578 + $0xcc] sm:$0xf]
        %v631 = vld [vmem:[%s578 + $0xd0] sm:$0xf]
        %v632 = vld [vmem:[%s578 + $0xd4] sm:$0xf]
        %v633 = vld [vmem:[%s578 + $0xd8] sm:$0xf]
        %v634 = vld [vmem:[%s578 + $0xdc] sm:$0xf]
        %v635 = vld [vmem:[%s578 + $0xe0] sm:$0xf]
        %v636 = vld [vmem:[%s578 + $0xe4] sm:$0xf]
        %v637 = vld [vmem:[%s578 + $0xe8] sm:$0xf]
        %v638 = vld [vmem:[%s578 + $0xec] sm:$0xf]
        %v639 = vld [vmem:[%s578 + $0xf0] sm:$0xf]
        %v640 = vld [vmem:[%s578 + $0xf4] sm:$0xf]
        %v641 = vld [vmem:[%s578 + $0xf8] sm:$0xf]
        %v642 = vld [vmem:[%s578 + $0xfc] sm:$0xf]
        %644 = vst [vmem:[#allocation1] ss:$4 sm:$0xff] %v538
        %s646 = scalar_lea.vmem [#allocation1], 1
        %647 = vst [vmem:[%s646] ss:$4 sm:$0xff] %v551
        %s649 = scalar_lea.vmem [#allocation1], 2
        %650 = vst [vmem:[%s649] ss:$4 sm:$0xff] %v564
        %s652 = scalar_lea.vmem [#allocation1], 3
        %653 = vst [vmem:[%s652] ss:$4 sm:$0xff] %v577
        %v654 = vld.sshfl [vmem:[#allocation1] sm:$0xff pattern:$0x73625140]
        %v655 = vld.sshfl [vmem:[#allocation1 + $0x8] sm:$0xff pattern:$0x73625140]
        %v656 = vld.sshfl [vmem:[#allocation1 + $0x10] sm:$0xff pattern:$0x73625140]
        %v657 = vld.sshfl [vmem:[#allocation1 + $0x18] sm:$0xff pattern:$0x73625140]
        %v726 = vunpack.c.l.b16 %v579
        %v727 = vunpack.c.l.b16 %v580
        %v728 = vunpack.c.l.b16 %v581
        %v729 = vunpack.c.l.b16 %v582
        %v730 = vunpack.c.l.b16 %v583
        %v731 = vunpack.c.l.b16 %v584
        %v732 = vunpack.c.l.b16 %v585
        %v733 = vunpack.c.l.b16 %v586
        %v734 = vunpack.c.l.b16 %v587
        %v735 = vunpack.c.l.b16 %v588
        %v736 = vunpack.c.l.b16 %v589
        %v737 = vunpack.c.l.b16 %v590
        %v738 = vunpack.c.l.b16 %v591
        %v739 = vunpack.c.l.b16 %v592
        %v740 = vunpack.c.l.b16 %v593
        %v741 = vunpack.c.l.b16 %v594
        %v742 = vunpack.c.l.b16 %v595
        %v743 = vunpack.c.l.b16 %v596
        %v744 = vunpack.c.l.b16 %v597
        %v745 = vunpack.c.l.b16 %v598
        %v746 = vunpack.c.l.b16 %v599
        %v747 = vunpack.c.l.b16 %v600
        %v748 = vunpack.c.l.b16 %v601
        %v749 = vunpack.c.l.b16 %v602
        %v750 = vunpack.c.l.b16 %v603
        %v751 = vunpack.c.l.b16 %v604
        %v752 = vunpack.c.l.b16 %v605
        %v753 = vunpack.c.l.b16 %v606
        %v754 = vunpack.c.l.b16 %v607
        %v755 = vunpack.c.l.b16 %v608
        %v756 = vunpack.c.l.b16 %v609
        %v757 = vunpack.c.l.b16 %v610
        %v758 = vunpack.c.l.b16 %v611
        %v759 = vunpack.c.l.b16 %v612
        %v760 = vunpack.c.l.b16 %v613
        %v761 = vunpack.c.l.b16 %v614
        %v762 = vunpack.c.l.b16 %v615
        %v763 = vunpack.c.l.b16 %v616
        %v764 = vunpack.c.l.b16 %v617
        %v765 = vunpack.c.l.b16 %v618
        %v766 = vunpack.c.l.b16 %v619
        %v767 = vunpack.c.l.b16 %v620
        %v768 = vunpack.c.l.b16 %v621
        %v769 = vunpack.c.l.b16 %v622
        %v770 = vunpack.c.l.b16 %v623
        %v771 = vunpack.c.l.b16 %v624
        %v772 = vunpack.c.l.b16 %v625
        %v773 = vunpack.c.l.b16 %v626
        %v774 = vunpack.c.l.b16 %v627
        %v775 = vunpack.c.l.b16 %v628
        %v776 = vunpack.c.l.b16 %v629
        %v777 = vunpack.c.l.b16 %v630
        %v778 = vunpack.c.l.b16 %v631
        %v779 = vunpack.c.l.b16 %v632
        %v780 = vunpack.c.l.b16 %v633
        %v781 = vunpack.c.l.b16 %v634
        %v782 = vunpack.c.l.b16 %v635
        %v783 = vunpack.c.l.b16 %v636
        %v784 = vunpack.c.l.b16 %v637
        %v785 = vunpack.c.l.b16 %v638
        %v786 = vunpack.c.l.b16 %v639
        %v787 = vunpack.c.l.b16 %v640
        %v788 = vunpack.c.l.b16 %v641
        %v789 = vunpack.c.l.b16 %v642
        %v790 = vpack.c.b16 %v727, %v726
        %v791 = vpack.c.b16 %v729, %v728
        %v792 = vpack.c.b16 %v731, %v730
        %v793 = vpack.c.b16 %v733, %v732
        %v794 = vpack.c.b16 %v735, %v734
        %v795 = vpack.c.b16 %v737, %v736
        %v796 = vpack.c.b16 %v739, %v738
        %v797 = vpack.c.b16 %v741, %v740
        %v798 = vpack.c.b16 %v743, %v742
        %v799 = vpack.c.b16 %v745, %v744
        %v800 = vpack.c.b16 %v747, %v746
        %v801 = vpack.c.b16 %v749, %v748
        %v802 = vpack.c.b16 %v751, %v750
        %v803 = vpack.c.b16 %v753, %v752
        %v804 = vpack.c.b16 %v755, %v754
        %v805 = vpack.c.b16 %v757, %v756
        %v806 = vpack.c.b16 %v759, %v758
        %v807 = vpack.c.b16 %v761, %v760
        %v808 = vpack.c.b16 %v763, %v762
        %v809 = vpack.c.b16 %v765, %v764
        %v810 = vpack.c.b16 %v767, %v766
        %v811 = vpack.c.b16 %v769, %v768
        %v812 = vpack.c.b16 %v771, %v770
        %v813 = vpack.c.b16 %v773, %v772
        %v814 = vpack.c.b16 %v775, %v774
        %v815 = vpack.c.b16 %v777, %v776
        %v816 = vpack.c.b16 %v779, %v778
        %v817 = vpack.c.b16 %v781, %v780
        %v818 = vpack.c.b16 %v783, %v782
        %v819 = vpack.c.b16 %v785, %v784
        %v820 = vpack.c.b16 %v787, %v786
        %v821 = vpack.c.b16 %v789, %v788
        %854 = vmatpush.bf16.msra.mxu0 %v797
        %855 = vmatpush.bf16.msra.mxu0 %v796
        %856 = vmatpush.bf16.msra.mxu0 %v795
        %857 = vmatpush.bf16.msra.mxu0 %v794
        %858 = vmatpush.bf16.msra.mxu0 %v793
        %859 = vmatpush.bf16.msra.mxu0 %v792
        %860 = vmatpush.bf16.msra.mxu0 %v791
        %861 = vmatpush.bf16.msra.mxu0 %v790
        %862 = vmatmul.bf16.gmra.mxu0 %v654
        %v863 = vpop.f32.mrf.mxu0
        %v864 = vadd.f32 0.0, %v863
        %v865 = vpop.f32.mrf.mxu0
        %v866 = vadd.f32 0.0, %v865
        %867 = vdwg.mxu0
        %868 = vmatpush.bf16.msra.mxu0 %v805
        %869 = vmatpush.bf16.msra.mxu0 %v804
        %870 = vmatpush.bf16.msra.mxu0 %v803
        %871 = vmatpush.bf16.msra.mxu0 %v802
        %872 = vmatpush.bf16.msra.mxu0 %v801
        %873 = vmatpush.bf16.msra.mxu0 %v800
        %874 = vmatpush.bf16.msra.mxu0 %v799
        %875 = vmatpush.bf16.msra.mxu0 %v798
        %876 = vmatmul.bf16.gmra.mxu0 %v655
        %v877 = vpop.f32.mrf.mxu0
        %v878 = vadd.f32 %v864, %v877
        %v879 = vpop.f32.mrf.mxu0
        %v880 = vadd.f32 %v866, %v879
        %881 = vdwg.mxu0
        %882 = vmatpush.bf16.msra.mxu0 %v813
        %883 = vmatpush.bf16.msra.mxu0 %v812
        %884 = vmatpush.bf16.msra.mxu0 %v811
        %885 = vmatpush.bf16.msra.mxu0 %v810
        %886 = vmatpush.bf16.msra.mxu0 %v809
        %887 = vmatpush.bf16.msra.mxu0 %v808
        %888 = vmatpush.bf16.msra.mxu0 %v807
        %889 = vmatpush.bf16.msra.mxu0 %v806
        %890 = vmatmul.bf16.gmra.mxu0 %v656
        %v891 = vpop.f32.mrf.mxu0
        %v892 = vadd.f32 %v878, %v891
        %v893 = vpop.f32.mrf.mxu0
        %v894 = vadd.f32 %v880, %v893
        %895 = vdwg.mxu0
        %896 = vmatpush.bf16.msra.mxu0 %v821
        %897 = vmatpush.bf16.msra.mxu0 %v820
        %898 = vmatpush.bf16.msra.mxu0 %v819
        %899 = vmatpush.bf16.msra.mxu0 %v818
        %900 = vmatpush.bf16.msra.mxu0 %v817
        %901 = vmatpush.bf16.msra.mxu0 %v816
        %902 = vmatpush.bf16.msra.mxu0 %v815
        %903 = vmatpush.bf16.msra.mxu0 %v814
        %904 = vmatmul.bf16.gmra.mxu0 %v657
        %v905 = vpop.f32.mrf.mxu0
        %v906 = vadd.f32 %v892, %v905
        %v907 = vpop.f32.mrf.mxu0
        %v908 = vadd.f32 %v894, %v907
        %909 = vdwg.mxu0
        %910 = vst [vmem:[#allocation1] ss:$4 sm:$0xff] %v354
        %s911 = scalar_lea.vmem [#allocation1], 1
        %912 = vst [vmem:[%s911] ss:$4 sm:$0xff] %v361
        %s913 = scalar_lea.vmem [#allocation1], 2
        %914 = vst [vmem:[%s913] ss:$4 sm:$0xff] %v368
        %s915 = scalar_lea.vmem [#allocation1], 3
        %916 = vst [vmem:[%s915] ss:$4 sm:$0xff] %v375
        %v917 = vld.sshfl [vmem:[#allocation1] sm:$0xff pattern:$0x73625140]
        %v918 = vld.sshfl [vmem:[#allocation1 + $0x8] sm:$0xff pattern:$0x73625140]
        %v919 = vld.sshfl [vmem:[#allocation1 + $0x10] sm:$0xff pattern:$0x73625140]
        %v920 = vld.sshfl [vmem:[#allocation1 + $0x18] sm:$0xff pattern:$0x73625140]
        %v989 = vunpack.c.l.b16 %v376
        %v990 = vunpack.c.l.b16 %v377
        %v991 = vunpack.c.l.b16 %v378
        %v992 = vunpack.c.l.b16 %v379
        %v993 = vunpack.c.l.b16 %v380
        %v994 = vunpack.c.l.b16 %v381
        %v995 = vunpack.c.l.b16 %v382
        %v996 = vunpack.c.l.b16 %v383
        %v997 = vunpack.c.l.b16 %v384
        %v998 = vunpack.c.l.b16 %v385
        %v999 = vunpack.c.l.b16 %v386
        %v1000 = vunpack.c.l.b16 %v387
        %v1001 = vunpack.c.l.b16 %v388
        %v1002 = vunpack.c.l.b16 %v389
        %v1003 = vunpack.c.l.b16 %v390
        %v1004 = vunpack.c.l.b16 %v391
        %v1005 = vunpack.c.l.b16 %v392
        %v1006 = vunpack.c.l.b16 %v393
        %v1007 = vunpack.c.l.b16 %v394
        %v1008 = vunpack.c.l.b16 %v395
        %v1009 = vunpack.c.l.b16 %v396
        %v1010 = vunpack.c.l.b16 %v397
        %v1011 = vunpack.c.l.b16 %v398
        %v1012 = vunpack.c.l.b16 %v399
        %v1013 = vunpack.c.l.b16 %v400
        %v1014 = vunpack.c.l.b16 %v401
        %v1015 = vunpack.c.l.b16 %v402
        %v1016 = vunpack.c.l.b16 %v403
        %v1017 = vunpack.c.l.b16 %v404
        %v1018 = vunpack.c.l.b16 %v405
        %v1019 = vunpack.c.l.b16 %v406
        %v1020 = vunpack.c.l.b16 %v407
        %v1021 = vunpack.c.l.b16 %v408
        %v1022 = vunpack.c.l.b16 %v409
        %v1023 = vunpack.c.l.b16 %v410
        %v1024 = vunpack.c.l.b16 %v411
        %v1025 = vunpack.c.l.b16 %v412
        %v1026 = vunpack.c.l.b16 %v413
        %v1027 = vunpack.c.l.b16 %v414
        %v1028 = vunpack.c.l.b16 %v415
        %v1029 = vunpack.c.l.b16 %v416
        %v1030 = vunpack.c.l.b16 %v417
        %v1031 = vunpack.c.l.b16 %v418
        %v1032 = vunpack.c.l.b16 %v419
        %v1033 = vunpack.c.l.b16 %v420
        %v1034 = vunpack.c.l.b16 %v421
        %v1035 = vunpack.c.l.b16 %v422
        %v1036 = vunpack.c.l.b16 %v423
        %v1037 = vunpack.c.l.b16 %v424
        %v1038 = vunpack.c.l.b16 %v425
        %v1039 = vunpack.c.l.b16 %v426
        %v1040 = vunpack.c.l.b16 %v427
        %v1041 = vunpack.c.l.b16 %v428
        %v1042 = vunpack.c.l.b16 %v429
        %v1043 = vunpack.c.l.b16 %v430
        %v1044 = vunpack.c.l.b16 %v431
        %v1045 = vunpack.c.l.b16 %v432
        %v1046 = vunpack.c.l.b16 %v433
        %v1047 = vunpack.c.l.b16 %v434
        %v1048 = vunpack.c.l.b16 %v435
        %v1049 = vunpack.c.l.b16 %v436
        %v1050 = vunpack.c.l.b16 %v437
        %v1051 = vunpack.c.l.b16 %v438
        %v1052 = vunpack.c.l.b16 %v439
        %v1053 = vpack.c.b16 %v990, %v989
        %v1054 = vpack.c.b16 %v992, %v991
        %v1055 = vpack.c.b16 %v994, %v993
        %v1056 = vpack.c.b16 %v996, %v995
        %v1057 = vpack.c.b16 %v998, %v997
        %v1058 = vpack.c.b16 %v1000, %v999
        %v1059 = vpack.c.b16 %v1002, %v1001
        %v1060 = vpack.c.b16 %v1004, %v1003
        %v1061 = vpack.c.b16 %v1006, %v1005
        %v1062 = vpack.c.b16 %v1008, %v1007
        %v1063 = vpack.c.b16 %v1010, %v1009
        %v1064 = vpack.c.b16 %v1012, %v1011
        %v1065 = vpack.c.b16 %v1014, %v1013
        %v1066 = vpack.c.b16 %v1016, %v1015
        %v1067 = vpack.c.b16 %v1018, %v1017
        %v1068 = vpack.c.b16 %v1020, %v1019
        %v1069 = vpack.c.b16 %v1022, %v1021
        %v1070 = vpack.c.b16 %v1024, %v1023
        %v1071 = vpack.c.b16 %v1026, %v1025
        %v1072 = vpack.c.b16 %v1028, %v1027
        %v1073 = vpack.c.b16 %v1030, %v1029
        %v1074 = vpack.c.b16 %v1032, %v1031
        %v1075 = vpack.c.b16 %v1034, %v1033
        %v1076 = vpack.c.b16 %v1036, %v1035
        %v1077 = vpack.c.b16 %v1038, %v1037
        %v1078 = vpack.c.b16 %v1040, %v1039
        %v1079 = vpack.c.b16 %v1042, %v1041
        %v1080 = vpack.c.b16 %v1044, %v1043
        %v1081 = vpack.c.b16 %v1046, %v1045
        %v1082 = vpack.c.b16 %v1048, %v1047
        %v1083 = vpack.c.b16 %v1050, %v1049
        %v1084 = vpack.c.b16 %v1052, %v1051
        %1117 = vmatpush.bf16.msra.mxu0 %v1060
        %1118 = vmatpush.bf16.msra.mxu0 %v1059
        %1119 = vmatpush.bf16.msra.mxu0 %v1058
        %1120 = vmatpush.bf16.msra.mxu0 %v1057
        %1121 = vmatpush.bf16.msra.mxu0 %v1056
        %1122 = vmatpush.bf16.msra.mxu0 %v1055
        %1123 = vmatpush.bf16.msra.mxu0 %v1054
        %1124 = vmatpush.bf16.msra.mxu0 %v1053
        %1125 = vmatmul.bf16.gmra.mxu0 %v917
        %v1126 = vpop.f32.mrf.mxu0
        %v1127 = vadd.f32 %v906, %v1126
        %v1128 = vpop.f32.mrf.mxu0
        %v1129 = vadd.f32 %v908, %v1128
        %1130 = vdwg.mxu0
        %1131 = vmatpush.bf16.msra.mxu0 %v1068
        %1132 = vmatpush.bf16.msra.mxu0 %v1067
        %1133 = vmatpush.bf16.msra.mxu0 %v1066
        %1134 = vmatpush.bf16.msra.mxu0 %v1065
        %1135 = vmatpush.bf16.msra.mxu0 %v1064
        %1136 = vmatpush.bf16.msra.mxu0 %v1063
        %1137 = vmatpush.bf16.msra.mxu0 %v1062
        %1138 = vmatpush.bf16.msra.mxu0 %v1061
        %1139 = vmatmul.bf16.gmra.mxu0 %v918
        %v1140 = vpop.f32.mrf.mxu0
        %v1141 = vadd.f32 %v1127, %v1140
        %v1142 = vpop.f32.mrf.mxu0
        %v1143 = vadd.f32 %v1129, %v1142
        %1144 = vdwg.mxu0
        %1145 = vmatpush.bf16.msra.mxu0 %v1076
        %1146 = vmatpush.bf16.msra.mxu0 %v1075
        %1147 = vmatpush.bf16.msra.mxu0 %v1074
        %1148 = vmatpush.bf16.msra.mxu0 %v1073
        %1149 = vmatpush.bf16.msra.mxu0 %v1072
        %1150 = vmatpush.bf16.msra.mxu0 %v1071
        %1151 = vmatpush.bf16.msra.mxu0 %v1070
        %1152 = vmatpush.bf16.msra.mxu0 %v1069
        %1153 = vmatmul.bf16.gmra.mxu0 %v919
        %v1154 = vpop.f32.mrf.mxu0
        %v1155 = vadd.f32 %v1141, %v1154
        %v1156 = vpop.f32.mrf.mxu0
        %v1157 = vadd.f32 %v1143, %v1156
        %1158 = vdwg.mxu0
        %1159 = vmatpush.bf16.msra.mxu0 %v1084
        %1160 = vmatpush.bf16.msra.mxu0 %v1083
        %1161 = vmatpush.bf16.msra.mxu0 %v1082
        %1162 = vmatpush.bf16.msra.mxu0 %v1081
        %1163 = vmatpush.bf16.msra.mxu0 %v1080
        %1164 = vmatpush.bf16.msra.mxu0 %v1079
        %1165 = vmatpush.bf16.msra.mxu0 %v1078
        %1166 = vmatpush.bf16.msra.mxu0 %v1077
        %1167 = vmatmul.bf16.gmra.mxu0 %v920
        %v1168 = vpop.f32.mrf.mxu0
        %v1169 = vadd.f32 %v1155, %v1168
        %v1170 = vpop.f32.mrf.mxu0
        %v1171 = vadd.f32 %v1157, %v1170
        %1172 = vdwg.mxu0
        %s1173 = scalar_lea.vmem %s311, 16
        %v1174 = vld [vmem:[%s1173] sm:$0x33]
        %v1175 = vld [vmem:[%s1173 + $0x8] sm:$0x33]
        %v1176 = vld [vmem:[%s1173 + $0x10] sm:$0x33]
        %v1177 = vld [vmem:[%s1173 + $0x18] sm:$0x33]
        %v1178 = vld [vmem:[%s1173 + $0x20] sm:$0x33]
        %v1179 = vld [vmem:[%s1173 + $0x28] sm:$0x33]
        %v1180 = vld [vmem:[%s1173 + $0x30] sm:$0x33]
        %v1181 = vld [vmem:[%s1173 + $0x38] sm:$0x33]
        %v1190 = vrot.slane %v1174, 2
        %v1191 = vrot.slane %v1175, 4
        %v1192 = vrot.slane %v1175, 6
        %v1193 = vrot.slane %v1176, 2
        %v1194 = vrot.slane %v1177, 4
        %v1195 = vrot.slane %v1177, 6
        %v1196 = vrot.slane %v1178, 2
        %v1197 = vrot.slane %v1179, 4
        %v1198 = vrot.slane %v1179, 6
        %v1199 = vrot.slane %v1180, 2
        %v1200 = vrot.slane %v1181, 4
        %v1201 = vrot.slane %v1181, 6
        %v1204 = vsel %vm345, %v1174, %v1190
        %v1207 = vsel %vm349, %v1191, %v1192
        %v1208 = vsel %vm353, %v1204, %v1207
        %v1211 = vsel %vm345, %v1176, %v1193
        %v1214 = vsel %vm349, %v1194, %v1195
        %v1215 = vsel %vm353, %v1211, %v1214
        %v1218 = vsel %vm345, %v1178, %v1196
        %v1221 = vsel %vm349, %v1197, %v1198
        %v1222 = vsel %vm353, %v1218, %v1221
        %v1225 = vsel %vm345, %v1180, %v1199
        %v1228 = vsel %vm349, %v1200, %v1201
        %v1229 = vsel %vm353, %v1225, %v1228
        %s1230 = scalar_lea.vmem %s1, 512
        %v1231 = vld [vmem:[%s1230] sm:$0xf]
        %v1232 = vld [vmem:[%s1230 + $0x4] sm:$0xf]
        %v1233 = vld [vmem:[%s1230 + $0x8] sm:$0xf]
        %v1234 = vld [vmem:[%s1230 + $0xc] sm:$0xf]
        %v1235 = vld [vmem:[%s1230 + $0x10] sm:$0xf]
        %v1236 = vld [vmem:[%s1230 + $0x14] sm:$0xf]
        %v1237 = vld [vmem:[%s1230 + $0x18] sm:$0xf]
        %v1238 = vld [vmem:[%s1230 + $0x1c] sm:$0xf]
        %v1239 = vld [vmem:[%s1230 + $0x20] sm:$0xf]
        %v1240 = vld [vmem:[%s1230 + $0x24] sm:$0xf]
        %v1241 = vld [vmem:[%s1230 + $0x28] sm:$0xf]
        %v1242 = vld [vmem:[%s1230 + $0x2c] sm:$0xf]
        %v1243 = vld [vmem:[%s1230 + $0x30] sm:$0xf]
        %v1244 = vld [vmem:[%s1230 + $0x34] sm:$0xf]
        %v1245 = vld [vmem:[%s1230 + $0x38] sm:$0xf]
        %v1246 = vld [vmem:[%s1230 + $0x3c] sm:$0xf]
        %v1247 = vld [vmem:[%s1230 + $0x40] sm:$0xf]
        %v1248 = vld [vmem:[%s1230 + $0x44] sm:$0xf]
        %v1249 = vld [vmem:[%s1230 + $0x48] sm:$0xf]
        %v1250 = vld [vmem:[%s1230 + $0x4c] sm:$0xf]
        %v1251 = vld [vmem:[%s1230 + $0x50] sm:$0xf]
        %v1252 = vld [vmem:[%s1230 + $0x54] sm:$0xf]
        %v1253 = vld [vmem:[%s1230 + $0x58] sm:$0xf]
        %v1254 = vld [vmem:[%s1230 + $0x5c] sm:$0xf]
        %v1255 = vld [vmem:[%s1230 + $0x60] sm:$0xf]
        %v1256 = vld [vmem:[%s1230 + $0x64] sm:$0xf]
        %v1257 = vld [vmem:[%s1230 + $0x68] sm:$0xf]
        %v1258 = vld [vmem:[%s1230 + $0x6c] sm:$0xf]
        %v1259 = vld [vmem:[%s1230 + $0x70] sm:$0xf]
        %v1260 = vld [vmem:[%s1230 + $0x74] sm:$0xf]
        %v1261 = vld [vmem:[%s1230 + $0x78] sm:$0xf]
        %v1262 = vld [vmem:[%s1230 + $0x7c] sm:$0xf]
        %v1263 = vld [vmem:[%s1230 + $0x80] sm:$0xf]
        %v1264 = vld [vmem:[%s1230 + $0x84] sm:$0xf]
        %v1265 = vld [vmem:[%s1230 + $0x88] sm:$0xf]
        %v1266 = vld [vmem:[%s1230 + $0x8c] sm:$0xf]
        %v1267 = vld [vmem:[%s1230 + $0x90] sm:$0xf]
        %v1268 = vld [vmem:[%s1230 + $0x94] sm:$0xf]
        %v1269 = vld [vmem:[%s1230 + $0x98] sm:$0xf]
        %v1270 = vld [vmem:[%s1230 + $0x9c] sm:$0xf]
        %v1271 = vld [vmem:[%s1230 + $0xa0] sm:$0xf]
        %v1272 = vld [vmem:[%s1230 + $0xa4] sm:$0xf]
        %v1273 = vld [vmem:[%s1230 + $0xa8] sm:$0xf]
        %v1274 = vld [vmem:[%s1230 + $0xac] sm:$0xf]
        %v1275 = vld [vmem:[%s1230 + $0xb0] sm:$0xf]
        %v1276 = vld [vmem:[%s1230 + $0xb4] sm:$0xf]
        %v1277 = vld [vmem:[%s1230 + $0xb8] sm:$0xf]
        %v1278 = vld [vmem:[%s1230 + $0xbc] sm:$0xf]
        %v1279 = vld [vmem:[%s1230 + $0xc0] sm:$0xf]
        %v1280 = vld [vmem:[%s1230 + $0xc4] sm:$0xf]
        %v1281 = vld [vmem:[%s1230 + $0xc8] sm:$0xf]
        %v1282 = vld [vmem:[%s1230 + $0xcc] sm:$0xf]
        %v1283 = vld [vmem:[%s1230 + $0xd0] sm:$0xf]
        %v1284 = vld [vmem:[%s1230 + $0xd4] sm:$0xf]
        %v1285 = vld [vmem:[%s1230 + $0xd8] sm:$0xf]
        %v1286 = vld [vmem:[%s1230 + $0xdc] sm:$0xf]
        %v1287 = vld [vmem:[%s1230 + $0xe0] sm:$0xf]
        %v1288 = vld [vmem:[%s1230 + $0xe4] sm:$0xf]
        %v1289 = vld [vmem:[%s1230 + $0xe8] sm:$0xf]
        %v1290 = vld [vmem:[%s1230 + $0xec] sm:$0xf]
        %v1291 = vld [vmem:[%s1230 + $0xf0] sm:$0xf]
        %v1292 = vld [vmem:[%s1230 + $0xf4] sm:$0xf]
        %v1293 = vld [vmem:[%s1230 + $0xf8] sm:$0xf]
        %v1294 = vld [vmem:[%s1230 + $0xfc] sm:$0xf]
        %1295 = vst [vmem:[#allocation1] ss:$4 sm:$0xff] %v1208
        %s1296 = scalar_lea.vmem [#allocation1], 1
        %1297 = vst [vmem:[%s1296] ss:$4 sm:$0xff] %v1215
        %s1298 = scalar_lea.vmem [#allocation1], 2
        %1299 = vst [vmem:[%s1298] ss:$4 sm:$0xff] %v1222
        %s1300 = scalar_lea.vmem [#allocation1], 3
        %1301 = vst [vmem:[%s1300] ss:$4 sm:$0xff] %v1229
        %v1302 = vld.sshfl [vmem:[#allocation1] sm:$0xff pattern:$0x73625140]
        %v1303 = vld.sshfl [vmem:[#allocation1 + $0x8] sm:$0xff pattern:$0x73625140]
        %v1304 = vld.sshfl [vmem:[#allocation1 + $0x10] sm:$0xff pattern:$0x73625140]
        %v1305 = vld.sshfl [vmem:[#allocation1 + $0x18] sm:$0xff pattern:$0x73625140]
        %v1374 = vunpack.c.l.b16 %v1231
        %v1375 = vunpack.c.l.b16 %v1232
        %v1376 = vunpack.c.l.b16 %v1233
        %v1377 = vunpack.c.l.b16 %v1234
        %v1378 = vunpack.c.l.b16 %v1235
        %v1379 = vunpack.c.l.b16 %v1236
        %v1380 = vunpack.c.l.b16 %v1237
        %v1381 = vunpack.c.l.b16 %v1238
        %v1382 = vunpack.c.l.b16 %v1239
        %v1383 = vunpack.c.l.b16 %v1240
        %v1384 = vunpack.c.l.b16 %v1241
        %v1385 = vunpack.c.l.b16 %v1242
        %v1386 = vunpack.c.l.b16 %v1243
        %v1387 = vunpack.c.l.b16 %v1244
        %v1388 = vunpack.c.l.b16 %v1245
        %v1389 = vunpack.c.l.b16 %v1246
        %v1390 = vunpack.c.l.b16 %v1247
        %v1391 = vunpack.c.l.b16 %v1248
        %v1392 = vunpack.c.l.b16 %v1249
        %v1393 = vunpack.c.l.b16 %v1250
        %v1394 = vunpack.c.l.b16 %v1251
        %v1395 = vunpack.c.l.b16 %v1252
        %v1396 = vunpack.c.l.b16 %v1253
        %v1397 = vunpack.c.l.b16 %v1254
        %v1398 = vunpack.c.l.b16 %v1255
        %v1399 = vunpack.c.l.b16 %v1256
        %v1400 = vunpack.c.l.b16 %v1257
        %v1401 = vunpack.c.l.b16 %v1258
        %v1402 = vunpack.c.l.b16 %v1259
        %v1403 = vunpack.c.l.b16 %v1260
        %v1404 = vunpack.c.l.b16 %v1261
        %v1405 = vunpack.c.l.b16 %v1262
        %v1406 = vunpack.c.l.b16 %v1263
        %v1407 = vunpack.c.l.b16 %v1264
        %v1408 = vunpack.c.l.b16 %v1265
        %v1409 = vunpack.c.l.b16 %v1266
        %v1410 = vunpack.c.l.b16 %v1267
        %v1411 = vunpack.c.l.b16 %v1268
        %v1412 = vunpack.c.l.b16 %v1269
        %v1413 = vunpack.c.l.b16 %v1270
        %v1414 = vunpack.c.l.b16 %v1271
        %v1415 = vunpack.c.l.b16 %v1272
        %v1416 = vunpack.c.l.b16 %v1273
        %v1417 = vunpack.c.l.b16 %v1274
        %v1418 = vunpack.c.l.b16 %v1275
        %v1419 = vunpack.c.l.b16 %v1276
        %v1420 = vunpack.c.l.b16 %v1277
        %v1421 = vunpack.c.l.b16 %v1278
        %v1422 = vunpack.c.l.b16 %v1279
        %v1423 = vunpack.c.l.b16 %v1280
        %v1424 = vunpack.c.l.b16 %v1281
        %v1425 = vunpack.c.l.b16 %v1282
        %v1426 = vunpack.c.l.b16 %v1283
        %v1427 = vunpack.c.l.b16 %v1284
        %v1428 = vunpack.c.l.b16 %v1285
        %v1429 = vunpack.c.l.b16 %v1286
        %v1430 = vunpack.c.l.b16 %v1287
        %v1431 = vunpack.c.l.b16 %v1288
        %v1432 = vunpack.c.l.b16 %v1289
        %v1433 = vunpack.c.l.b16 %v1290
        %v1434 = vunpack.c.l.b16 %v1291
        %v1435 = vunpack.c.l.b16 %v1292
        %v1436 = vunpack.c.l.b16 %v1293
        %v1437 = vunpack.c.l.b16 %v1294
        %v1438 = vpack.c.b16 %v1375, %v1374
        %v1439 = vpack.c.b16 %v1377, %v1376
        %v1440 = vpack.c.b16 %v1379, %v1378
        %v1441 = vpack.c.b16 %v1381, %v1380
        %v1442 = vpack.c.b16 %v1383, %v1382
        %v1443 = vpack.c.b16 %v1385, %v1384
        %v1444 = vpack.c.b16 %v1387, %v1386
        %v1445 = vpack.c.b16 %v1389, %v1388
        %v1446 = vpack.c.b16 %v1391, %v1390
        %v1447 = vpack.c.b16 %v1393, %v1392
        %v1448 = vpack.c.b16 %v1395, %v1394
        %v1449 = vpack.c.b16 %v1397, %v1396
        %v1450 = vpack.c.b16 %v1399, %v1398
        %v1451 = vpack.c.b16 %v1401, %v1400
        %v1452 = vpack.c.b16 %v1403, %v1402
        %v1453 = vpack.c.b16 %v1405, %v1404
        %v1454 = vpack.c.b16 %v1407, %v1406
        %v1455 = vpack.c.b16 %v1409, %v1408
        %v1456 = vpack.c.b16 %v1411, %v1410
        %v1457 = vpack.c.b16 %v1413, %v1412
        %v1458 = vpack.c.b16 %v1415, %v1414
        %v1459 = vpack.c.b16 %v1417, %v1416
        %v1460 = vpack.c.b16 %v1419, %v1418
        %v1461 = vpack.c.b16 %v1421, %v1420
        %v1462 = vpack.c.b16 %v1423, %v1422
        %v1463 = vpack.c.b16 %v1425, %v1424
        %v1464 = vpack.c.b16 %v1427, %v1426
        %v1465 = vpack.c.b16 %v1429, %v1428
        %v1466 = vpack.c.b16 %v1431, %v1430
        %v1467 = vpack.c.b16 %v1433, %v1432
        %v1468 = vpack.c.b16 %v1435, %v1434
        %v1469 = vpack.c.b16 %v1437, %v1436
        %1502 = vmatpush.bf16.msra.mxu0 %v1445
        %1503 = vmatpush.bf16.msra.mxu0 %v1444
        %1504 = vmatpush.bf16.msra.mxu0 %v1443
        %1505 = vmatpush.bf16.msra.mxu0 %v1442
        %1506 = vmatpush.bf16.msra.mxu0 %v1441
        %1507 = vmatpush.bf16.msra.mxu0 %v1440
        %1508 = vmatpush.bf16.msra.mxu0 %v1439
        %1509 = vmatpush.bf16.msra.mxu0 %v1438
        %1510 = vmatmul.bf16.gmra.mxu0 %v1302
        %v1511 = vpop.f32.mrf.mxu0
        %v1512 = vadd.f32 0.0, %v1511
        %v1513 = vpop.f32.mrf.mxu0
        %v1514 = vadd.f32 0.0, %v1513
        %1515 = vdwg.mxu0
        %1516 = vmatpush.bf16.msra.mxu0 %v1453
        %1517 = vmatpush.bf16.msra.mxu0 %v1452
        %1518 = vmatpush.bf16.msra.mxu0 %v1451
        %1519 = vmatpush.bf16.msra.mxu0 %v1450
        %1520 = vmatpush.bf16.msra.mxu0 %v1449
        %1521 = vmatpush.bf16.msra.mxu0 %v1448
        %1522 = vmatpush.bf16.msra.mxu0 %v1447
        %1523 = vmatpush.bf16.msra.mxu0 %v1446
        %1524 = vmatmul.bf16.gmra.mxu0 %v1303
        %v1525 = vpop.f32.mrf.mxu0
        %v1526 = vadd.f32 %v1512, %v1525
        %v1527 = vpop.f32.mrf.mxu0
        %v1528 = vadd.f32 %v1514, %v1527
        %1529 = vdwg.mxu0
        %1530 = vmatpush.bf16.msra.mxu0 %v1461
        %1531 = vmatpush.bf16.msra.mxu0 %v1460
        %1532 = vmatpush.bf16.msra.mxu0 %v1459
        %1533 = vmatpush.bf16.msra.mxu0 %v1458
        %1534 = vmatpush.bf16.msra.mxu0 %v1457
        %1535 = vmatpush.bf16.msra.mxu0 %v1456
        %1536 = vmatpush.bf16.msra.mxu0 %v1455
        %1537 = vmatpush.bf16.msra.mxu0 %v1454
        %1538 = vmatmul.bf16.gmra.mxu0 %v1304
        %v1539 = vpop.f32.mrf.mxu0
        %v1540 = vadd.f32 %v1526, %v1539
        %v1541 = vpop.f32.mrf.mxu0
        %v1542 = vadd.f32 %v1528, %v1541
        %1543 = vdwg.mxu0
        %1544 = vmatpush.bf16.msra.mxu0 %v1469
        %1545 = vmatpush.bf16.msra.mxu0 %v1468
        %1546 = vmatpush.bf16.msra.mxu0 %v1467
        %1547 = vmatpush.bf16.msra.mxu0 %v1466
        %1548 = vmatpush.bf16.msra.mxu0 %v1465
        %1549 = vmatpush.bf16.msra.mxu0 %v1464
        %1550 = vmatpush.bf16.msra.mxu0 %v1463
        %1551 = vmatpush.bf16.msra.mxu0 %v1462
        %1552 = vmatmul.bf16.gmra.mxu0 %v1305
        %v1553 = vpop.f32.mrf.mxu0
        %v1554 = vadd.f32 %v1540, %v1553
        %v1555 = vpop.f32.mrf.mxu0
        %v1556 = vadd.f32 %v1542, %v1555
        %1557 = vdwg.mxu0
        %v1558 = vadd.f32 %v1169, %v1554
        %v1559 = vadd.f32 %v1171, %v1556
        %v1560 = vld [vmem:[%s1173] sm:$0x77]
        %v1561 = vld [vmem:[%s1173 + $0x8] sm:$0x77]
        %v1562 = vld [vmem:[%s1173 + $0x10] sm:$0x77]
        %v1563 = vld [vmem:[%s1173 + $0x18] sm:$0x77]
        %v1564 = vld [vmem:[%s1173 + $0x20] sm:$0x77]
        %v1565 = vld [vmem:[%s1173 + $0x28] sm:$0x77]
        %v1566 = vld [vmem:[%s1173 + $0x30] sm:$0x77]
        %v1567 = vld [vmem:[%s1173 + $0x38] sm:$0x77]
        %v1576 = vrot.slane %v1560, 2
        %v1577 = vrot.slane %v1561, 4
        %v1578 = vrot.slane %v1561, 6
        %v1579 = vrot.slane %v1562, 2
        %v1580 = vrot.slane %v1563, 4
        %v1581 = vrot.slane %v1563, 6
        %v1582 = vrot.slane %v1564, 2
        %v1583 = vrot.slane %v1565, 4
        %v1584 = vrot.slane %v1565, 6
        %v1585 = vrot.slane %v1566, 2
        %v1586 = vrot.slane %v1567, 4
        %v1587 = vrot.slane %v1567, 6
        %v1590 = vsel %vm345, %v1560, %v1576
        %v1593 = vsel %vm349, %v1577, %v1578
        %v1594 = vsel %vm353, %v1590, %v1593
        %v1595 = vsel %vm475, %v1560, %v1576
        %v1596 = vsel %vm477, %v1578, %v1577
        %v1597 = vsel %vm479, %v1595, %v1596
        %v1599 = vrot.slane %v1597, 2
        %v1602 = vsel %vm345, %v1562, %v1579
        %v1605 = vsel %vm349, %v1580, %v1581
        %v1606 = vsel %vm353, %v1602, %v1605
        %v1607 = vsel %vm475, %v1562, %v1579
        %v1608 = vsel %vm477, %v1581, %v1580
        %v1609 = vsel %vm479, %v1607, %v1608
        %v1611 = vrot.slane %v1609, 2
        %v1614 = vsel %vm345, %v1564, %v1582
        %v1617 = vsel %vm349, %v1583, %v1584
        %v1618 = vsel %vm353, %v1614, %v1617
        %v1619 = vsel %vm475, %v1564, %v1582
        %v1620 = vsel %vm477, %v1584, %v1583
        %v1621 = vsel %vm479, %v1619, %v1620
        %v1623 = vrot.slane %v1621, 2
        %v1626 = vsel %vm345, %v1566, %v1585
        %v1629 = vsel %vm349, %v1586, %v1587
        %v1630 = vsel %vm353, %v1626, %v1629
        %v1631 = vsel %vm475, %v1566, %v1585
        %v1632 = vsel %vm477, %v1587, %v1586
        %v1633 = vsel %vm479, %v1631, %v1632
        %v1635 = vrot.slane %v1633, 2
        %v1636 = vshrl.u32 %v1594, 16
        %v1638 = vrot.slane %v1636, 6
        %v1639 = vshll.u32 %v1594, 16
        %v1641 = vrot.slane %v1639, 7
        %v1642 = vor.u32 %v1638, %v1641
        %v1643 = vrot.slane %v1642, 2
        %v1645 = vshll.u32 %v1599, 16
        %v1647 = vrot.slane %v1645, 7
        %v1648 = vsel %vm525, %v1643, %v1647
        %v1649 = vshrl.u32 %v1606, 16
        %v1651 = vrot.slane %v1649, 6
        %v1652 = vshll.u32 %v1606, 16
        %v1654 = vrot.slane %v1652, 7
        %v1655 = vor.u32 %v1651, %v1654
        %v1656 = vrot.slane %v1655, 2
        %v1658 = vshll.u32 %v1611, 16
        %v1660 = vrot.slane %v1658, 7
        %v1661 = vsel %vm525, %v1656, %v1660
        %v1662 = vshrl.u32 %v1618, 16
        %v1664 = vrot.slane %v1662, 6
        %v1665 = vshll.u32 %v1618, 16
        %v1667 = vrot.slane %v1665, 7
        %v1668 = vor.u32 %v1664, %v1667
        %v1669 = vrot.slane %v1668, 2
        %v1671 = vshll.u32 %v1623, 16
        %v1673 = vrot.slane %v1671, 7
        %v1674 = vsel %vm525, %v1669, %v1673
        %v1675 = vshrl.u32 %v1630, 16
        %v1677 = vrot.slane %v1675, 6
        %v1678 = vshll.u32 %v1630, 16
        %v1680 = vrot.slane %v1678, 7
        %v1681 = vor.u32 %v1677, %v1680
        %v1682 = vrot.slane %v1681, 2
        %v1684 = vshll.u32 %v1635, 16
        %v1686 = vrot.slane %v1684, 7
        %v1687 = vsel %vm525, %v1682, %v1686
        %s1688 = scalar_lea.vmem %s1, 768
        %v1689 = vld [vmem:[%s1688] sm:$0xf]
        %v1690 = vld [vmem:[%s1688 + $0x4] sm:$0xf]
        %v1691 = vld [vmem:[%s1688 + $0x8] sm:$0xf]
        %v1692 = vld [vmem:[%s1688 + $0xc] sm:$0xf]
        %v1693 = vld [vmem:[%s1688 + $0x10] sm:$0xf]
        %v1694 = vld [vmem:[%s1688 + $0x14] sm:$0xf]
        %v1695 = vld [vmem:[%s1688 + $0x18] sm:$0xf]
        %v1696 = vld [vmem:[%s1688 + $0x1c] sm:$0xf]
        %v1697 = vld [vmem:[%s1688 + $0x20] sm:$0xf]
        %v1698 = vld [vmem:[%s1688 + $0x24] sm:$0xf]
        %v1699 = vld [vmem:[%s1688 + $0x28] sm:$0xf]
        %v1700 = vld [vmem:[%s1688 + $0x2c] sm:$0xf]
        %v1701 = vld [vmem:[%s1688 + $0x30] sm:$0xf]
        %v1702 = vld [vmem:[%s1688 + $0x34] sm:$0xf]
        %v1703 = vld [vmem:[%s1688 + $0x38] sm:$0xf]
        %v1704 = vld [vmem:[%s1688 + $0x3c] sm:$0xf]
        %v1705 = vld [vmem:[%s1688 + $0x40] sm:$0xf]
        %v1706 = vld [vmem:[%s1688 + $0x44] sm:$0xf]
        %v1707 = vld [vmem:[%s1688 + $0x48] sm:$0xf]
        %v1708 = vld [vmem:[%s1688 + $0x4c] sm:$0xf]
        %v1709 = vld [vmem:[%s1688 + $0x50] sm:$0xf]
        %v1710 = vld [vmem:[%s1688 + $0x54] sm:$0xf]
        %v1711 = vld [vmem:[%s1688 + $0x58] sm:$0xf]
        %v1712 = vld [vmem:[%s1688 + $0x5c] sm:$0xf]
        %v1713 = vld [vmem:[%s1688 + $0x60] sm:$0xf]
        %v1714 = vld [vmem:[%s1688 + $0x64] sm:$0xf]
        %v1715 = vld [vmem:[%s1688 + $0x68] sm:$0xf]
        %v1716 = vld [vmem:[%s1688 + $0x6c] sm:$0xf]
        %v1717 = vld [vmem:[%s1688 + $0x70] sm:$0xf]
        %v1718 = vld [vmem:[%s1688 + $0x74] sm:$0xf]
        %v1719 = vld [vmem:[%s1688 + $0x78] sm:$0xf]
        %v1720 = vld [vmem:[%s1688 + $0x7c] sm:$0xf]
        %v1721 = vld [vmem:[%s1688 + $0x80] sm:$0xf]
        %v1722 = vld [vmem:[%s1688 + $0x84] sm:$0xf]
        %v1723 = vld [vmem:[%s1688 + $0x88] sm:$0xf]
        %v1724 = vld [vmem:[%s1688 + $0x8c] sm:$0xf]
        %v1725 = vld [vmem:[%s1688 + $0x90] sm:$0xf]
        %v1726 = vld [vmem:[%s1688 + $0x94] sm:$0xf]
        %v1727 = vld [vmem:[%s1688 + $0x98] sm:$0xf]
        %v1728 = vld [vmem:[%s1688 + $0x9c] sm:$0xf]
        %v1729 = vld [vmem:[%s1688 + $0xa0] sm:$0xf]
        %v1730 = vld [vmem:[%s1688 + $0xa4] sm:$0xf]
        %v1731 = vld [vmem:[%s1688 + $0xa8] sm:$0xf]
        %v1732 = vld [vmem:[%s1688 + $0xac] sm:$0xf]
        %v1733 = vld [vmem:[%s1688 + $0xb0] sm:$0xf]
        %v1734 = vld [vmem:[%s1688 + $0xb4] sm:$0xf]
        %v1735 = vld [vmem:[%s1688 + $0xb8] sm:$0xf]
        %v1736 = vld [vmem:[%s1688 + $0xbc] sm:$0xf]
        %v1737 = vld [vmem:[%s1688 + $0xc0] sm:$0xf]
        %v1738 = vld [vmem:[%s1688 + $0xc4] sm:$0xf]
        %v1739 = vld [vmem:[%s1688 + $0xc8] sm:$0xf]
        %v1740 = vld [vmem:[%s1688 + $0xcc] sm:$0xf]
        %v1741 = vld [vmem:[%s1688 + $0xd0] sm:$0xf]
        %v1742 = vld [vmem:[%s1688 + $0xd4] sm:$0xf]
        %v1743 = vld [vmem:[%s1688 + $0xd8] sm:$0xf]
        %v1744 = vld [vmem:[%s1688 + $0xdc] sm:$0xf]
        %v1745 = vld [vmem:[%s1688 + $0xe0] sm:$0xf]
        %v1746 = vld [vmem:[%s1688 + $0xe4] sm:$0xf]
        %v1747 = vld [vmem:[%s1688 + $0xe8] sm:$0xf]
        %v1748 = vld [vmem:[%s1688 + $0xec] sm:$0xf]
        %v1749 = vld [vmem:[%s1688 + $0xf0] sm:$0xf]
        %v1750 = vld [vmem:[%s1688 + $0xf4] sm:$0xf]
        %v1751 = vld [vmem:[%s1688 + $0xf8] sm:$0xf]
        %v1752 = vld [vmem:[%s1688 + $0xfc] sm:$0xf]
        %1754 = vst [vmem:[#allocation1] ss:$4 sm:$0xff] %v1648
        %s1756 = scalar_lea.vmem [#allocation1], 1
        %1757 = vst [vmem:[%s1756] ss:$4 sm:$0xff] %v1661
        %s1759 = scalar_lea.vmem [#allocation1], 2
        %1760 = vst [vmem:[%s1759] ss:$4 sm:$0xff] %v1674
        %s1762 = scalar_lea.vmem [#allocation1], 3
        %1763 = vst [vmem:[%s1762] ss:$4 sm:$0xff] %v1687
        %v1764 = vld.sshfl [vmem:[#allocation1] sm:$0xff pattern:$0x73625140]
        %v1765 = vld.sshfl [vmem:[#allocation1 + $0x8] sm:$0xff pattern:$0x73625140]
        %v1766 = vld.sshfl [vmem:[#allocation1 + $0x10] sm:$0xff pattern:$0x73625140]
        %v1767 = vld.sshfl [vmem:[#allocation1 + $0x18] sm:$0xff pattern:$0x73625140]
        %v1836 = vunpack.c.l.b16 %v1689
        %v1837 = vunpack.c.l.b16 %v1690
        %v1838 = vunpack.c.l.b16 %v1691
        %v1839 = vunpack.c.l.b16 %v1692
        %v1840 = vunpack.c.l.b16 %v1693
        %v1841 = vunpack.c.l.b16 %v1694
        %v1842 = vunpack.c.l.b16 %v1695
        %v1843 = vunpack.c.l.b16 %v1696
        %v1844 = vunpack.c.l.b16 %v1697
        %v1845 = vunpack.c.l.b16 %v1698
        %v1846 = vunpack.c.l.b16 %v1699
        %v1847 = vunpack.c.l.b16 %v1700
        %v1848 = vunpack.c.l.b16 %v1701
        %v1849 = vunpack.c.l.b16 %v1702
        %v1850 = vunpack.c.l.b16 %v1703
        %v1851 = vunpack.c.l.b16 %v1704
        %v1852 = vunpack.c.l.b16 %v1705
        %v1853 = vunpack.c.l.b16 %v1706
        %v1854 = vunpack.c.l.b16 %v1707
        %v1855 = vunpack.c.l.b16 %v1708
        %v1856 = vunpack.c.l.b16 %v1709
        %v1857 = vunpack.c.l.b16 %v1710
        %v1858 = vunpack.c.l.b16 %v1711
        %v1859 = vunpack.c.l.b16 %v1712
        %v1860 = vunpack.c.l.b16 %v1713
        %v1861 = vunpack.c.l.b16 %v1714
        %v1862 = vunpack.c.l.b16 %v1715
        %v1863 = vunpack.c.l.b16 %v1716
        %v1864 = vunpack.c.l.b16 %v1717
        %v1865 = vunpack.c.l.b16 %v1718
        %v1866 = vunpack.c.l.b16 %v1719
        %v1867 = vunpack.c.l.b16 %v1720
        %v1868 = vunpack.c.l.b16 %v1721
        %v1869 = vunpack.c.l.b16 %v1722
        %v1870 = vunpack.c.l.b16 %v1723
        %v1871 = vunpack.c.l.b16 %v1724
        %v1872 = vunpack.c.l.b16 %v1725
        %v1873 = vunpack.c.l.b16 %v1726
        %v1874 = vunpack.c.l.b16 %v1727
        %v1875 = vunpack.c.l.b16 %v1728
        %v1876 = vunpack.c.l.b16 %v1729
        %v1877 = vunpack.c.l.b16 %v1730
        %v1878 = vunpack.c.l.b16 %v1731
        %v1879 = vunpack.c.l.b16 %v1732
        %v1880 = vunpack.c.l.b16 %v1733
        %v1881 = vunpack.c.l.b16 %v1734
        %v1882 = vunpack.c.l.b16 %v1735
        %v1883 = vunpack.c.l.b16 %v1736
        %v1884 = vunpack.c.l.b16 %v1737
        %v1885 = vunpack.c.l.b16 %v1738
        %v1886 = vunpack.c.l.b16 %v1739
        %v1887 = vunpack.c.l.b16 %v1740
        %v1888 = vunpack.c.l.b16 %v1741
        %v1889 = vunpack.c.l.b16 %v1742
        %v1890 = vunpack.c.l.b16 %v1743
        %v1891 = vunpack.c.l.b16 %v1744
        %v1892 = vunpack.c.l.b16 %v1745
        %v1893 = vunpack.c.l.b16 %v1746
        %v1894 = vunpack.c.l.b16 %v1747
        %v1895 = vunpack.c.l.b16 %v1748
        %v1896 = vunpack.c.l.b16 %v1749
        %v1897 = vunpack.c.l.b16 %v1750
        %v1898 = vunpack.c.l.b16 %v1751
        %v1899 = vunpack.c.l.b16 %v1752
        %v1900 = vpack.c.b16 %v1837, %v1836
        %v1901 = vpack.c.b16 %v1839, %v1838
        %v1902 = vpack.c.b16 %v1841, %v1840
        %v1903 = vpack.c.b16 %v1843, %v1842
        %v1904 = vpack.c.b16 %v1845, %v1844
        %v1905 = vpack.c.b16 %v1847, %v1846
        %v1906 = vpack.c.b16 %v1849, %v1848
        %v1907 = vpack.c.b16 %v1851, %v1850
        %v1908 = vpack.c.b16 %v1853, %v1852
        %v1909 = vpack.c.b16 %v1855, %v1854
        %v1910 = vpack.c.b16 %v1857, %v1856
        %v1911 = vpack.c.b16 %v1859, %v1858
        %v1912 = vpack.c.b16 %v1861, %v1860
        %v1913 = vpack.c.b16 %v1863, %v1862
        %v1914 = vpack.c.b16 %v1865, %v1864
        %v1915 = vpack.c.b16 %v1867, %v1866
        %v1916 = vpack.c.b16 %v1869, %v1868
        %v1917 = vpack.c.b16 %v1871, %v1870
        %v1918 = vpack.c.b16 %v1873, %v1872
        %v1919 = vpack.c.b16 %v1875, %v1874
        %v1920 = vpack.c.b16 %v1877, %v1876
        %v1921 = vpack.c.b16 %v1879, %v1878
        %v1922 = vpack.c.b16 %v1881, %v1880
        %v1923 = vpack.c.b16 %v1883, %v1882
        %v1924 = vpack.c.b16 %v1885, %v1884
        %v1925 = vpack.c.b16 %v1887, %v1886
        %v1926 = vpack.c.b16 %v1889, %v1888
        %v1927 = vpack.c.b16 %v1891, %v1890
        %v1928 = vpack.c.b16 %v1893, %v1892
        %v1929 = vpack.c.b16 %v1895, %v1894
        %v1930 = vpack.c.b16 %v1897, %v1896
        %v1931 = vpack.c.b16 %v1899, %v1898
        %1964 = vmatpush.bf16.msra.mxu0 %v1907
        %1965 = vmatpush.bf16.msra.mxu0 %v1906
        %1966 = vmatpush.bf16.msra.mxu0 %v1905
        %1967 = vmatpush.bf16.msra.mxu0 %v1904
        %1968 = vmatpush.bf16.msra.mxu0 %v1903
        %1969 = vmatpush.bf16.msra.mxu0 %v1902
        %1970 = vmatpush.bf16.msra.mxu0 %v1901
        %1971 = vmatpush.bf16.msra.mxu0 %v1900
        %1972 = vmatmul.bf16.gmra.mxu0 %v1764
        %v1973 = vpop.f32.mrf.mxu0
        %v1974 = vadd.f32 0.0, %v1973
        %v1975 = vpop.f32.mrf.mxu0
        %v1976 = vadd.f32 0.0, %v1975
        %1977 = vdwg.mxu0
        %1978 = vmatpush.bf16.msra.mxu0 %v1915
        %1979 = vmatpush.bf16.msra.mxu0 %v1914
        %1980 = vmatpush.bf16.msra.mxu0 %v1913
        %1981 = vmatpush.bf16.msra.mxu0 %v1912
        %1982 = vmatpush.bf16.msra.mxu0 %v1911
        %1983 = vmatpush.bf16.msra.mxu0 %v1910
        %1984 = vmatpush.bf16.msra.mxu0 %v1909
        %1985 = vmatpush.bf16.msra.mxu0 %v1908
        %1986 = vmatmul.bf16.gmra.mxu0 %v1765
        %v1987 = vpop.f32.mrf.mxu0
        %v1988 = vadd.f32 %v1974, %v1987
        %v1989 = vpop.f32.mrf.mxu0
        %v1990 = vadd.f32 %v1976, %v1989
        %1991 = vdwg.mxu0
        %1992 = vmatpush.bf16.msra.mxu0 %v1923
        %1993 = vmatpush.bf16.msra.mxu0 %v1922
        %1994 = vmatpush.bf16.msra.mxu0 %v1921
        %1995 = vmatpush.bf16.msra.mxu0 %v1920
        %1996 = vmatpush.bf16.msra.mxu0 %v1919
        %1997 = vmatpush.bf16.msra.mxu0 %v1918
        %1998 = vmatpush.bf16.msra.mxu0 %v1917
        %1999 = vmatpush.bf16.msra.mxu0 %v1916
        %2000 = vmatmul.bf16.gmra.mxu0 %v1766
        %v2001 = vpop.f32.mrf.mxu0
        %v2002 = vadd.f32 %v1988, %v2001
        %v2003 = vpop.f32.mrf.mxu0
        %v2004 = vadd.f32 %v1990, %v2003
        %2005 = vdwg.mxu0
        %2006 = vmatpush.bf16.msra.mxu0 %v1931
        %2007 = vmatpush.bf16.msra.mxu0 %v1930
        %2008 = vmatpush.bf16.msra.mxu0 %v1929
        %2009 = vmatpush.bf16.msra.mxu0 %v1928
        %2010 = vmatpush.bf16.msra.mxu0 %v1927
        %2011 = vmatpush.bf16.msra.mxu0 %v1926
        %2012 = vmatpush.bf16.msra.mxu0 %v1925
        %2013 = vmatpush.bf16.msra.mxu0 %v1924
        %2014 = vmatmul.bf16.gmra.mxu0 %v1767
        %v2015 = vpop.f32.mrf.mxu0
        %v2016 = vadd.f32 %v2002, %v2015
        %v2017 = vpop.f32.mrf.mxu0
        %v2018 = vadd.f32 %v2004, %v2017
        %2019 = vdwg.mxu0
        %v2020 = vadd.f32 %v1558, %v2016
        %v2021 = vadd.f32 %v1559, %v2018
        %v2022 = vld [vmem:[%s2] sm:$0x1]
        %v2024 = vperm.slane %v2022, 0
        %v2026 = vadd.f32 %v2020, %v2024
        %v2027 = vadd.f32 %v2021, %v2024
        %v2028 = vmax.f32 %v2026, 0.0
        %v2029 = vmax.f32 %v2027, 0.0
        %v2032 = vrot.slane %v2028, 4
        %v2033 = vrot.slane %v2029, 4
        %v2036 = vpack.c.bf16 %v2028, %v2028
        %v2037 = vpack.c.bf16 %v2032, %v2032
        %v2038 = vpack.c.bf16 %v2029, %v2029
        %v2039 = vpack.c.bf16 %v2033, %v2033
        %2040 = vst [vmem:[%s299] sm:$0x3] %v2036
        %2041 = vst [vmem:[%s299 + $0x2] sm:$0x3] %v2037
        %2042 = vst [vmem:[%s299 + $0x4] sm:$0x3] %v2038
        %2043 = vst [vmem:[%s299 + $0x6] sm:$0x3] %v2039
        %2044 = vst [vmem:[#allocation2] sm:$0x3f] 0.0
        %2045 = vst [vmem:[#allocation2 + $0x8] sm:$0x3f] 0.0
        %2046 = vst [vmem:[#allocation2 + $0x10] sm:$0x3f] 0.0
        %2047 = vst [vmem:[#allocation2 + $0x18] sm:$0x3f] 0.0
        %2048 = vst [vmem:[#allocation2 + $0x20] sm:$0x3f] 0.0
        %2049 = vst [vmem:[#allocation2 + $0x28] sm:$0x3f] 0.0
        %s2050 = scalar_lea.vmem [#allocation2], 8
        %2051 = vst [vmem:[%s2050 + $0x1] sm:$0xf] %v2028
        %2052 = vst [vmem:[%s2050 + $0x9] sm:$0xf] %v2032
        %2053 = vst [vmem:[%s2050 + $0x11] sm:$0xf] %v2029
        %2054 = vst [vmem:[%s2050 + $0x19] sm:$0xf] %v2033
        %v2055 = vld [vmem:[#allocation2] sm:$0xf]
        %v2056 = vld [vmem:[#allocation2 + $0x8] sm:$0xf]
        %v2057 = vld [vmem:[#allocation2 + $0x10] sm:$0xf]
        %v2058 = vld [vmem:[#allocation2 + $0x18] sm:$0xf]
        %v2059 = vld [vmem:[%s3] sm:$0x1]
        %v2060 = vperm.slane %v2059, 0
        %v2061 = vmul.f32 %v2055, %v2060
        %v2062 = vmul.f32 %v2056, %v2060
        %v2063 = vmul.f32 %v2057, %v2060
        %v2064 = vmul.f32 %v2058, %v2060
        %v2065 = vld [vmem:[%s3 + $0x9] sm:$0x1]
        %v2066 = vperm.slane %v2065, 0
        %v2067 = vmul.f32 %v2055, %v2066
        %v2068 = vmul.f32 %v2056, %v2066
        %v2069 = vmul.f32 %v2057, %v2066
        %v2070 = vmul.f32 %v2058, %v2066
        %v2071 = vld [vmem:[#allocation2 + $0x1] sm:$0xf]
        %v2072 = vld [vmem:[#allocation2 + $0x9] sm:$0xf]
        %v2073 = vld [vmem:[#allocation2 + $0x11] sm:$0xf]
        %v2074 = vld [vmem:[#allocation2 + $0x19] sm:$0xf]
        %v2075 = vld [vmem:[%s3 + $0x1] sm:$0x1]
        %v2076 = vperm.slane %v2075, 0
        %v2077 = vmul.f32 %v2071, %v2076
        %v2078 = vmul.f32 %v2072, %v2076
        %v2079 = vmul.f32 %v2073, %v2076
        %v2080 = vmul.f32 %v2074, %v2076
        %v2081 = vld [vmem:[%s3 + $0xa] sm:$0x1]
        %v2082 = vperm.slane %v2081, 0
        %v2083 = vmul.f32 %v2071, %v2082
        %v2084 = vmul.f32 %v2072, %v2082
        %v2085 = vmul.f32 %v2073, %v2082
        %v2086 = vmul.f32 %v2074, %v2082
        %v2087 = vadd.f32 %v2061, %v2077
        %v2088 = vadd.f32 %v2062, %v2078
        %v2089 = vadd.f32 %v2063, %v2079
        %v2090 = vadd.f32 %v2064, %v2080
        %v2091 = vadd.f32 %v2067, %v2083
        %v2092 = vadd.f32 %v2068, %v2084
        %v2093 = vadd.f32 %v2069, %v2085
        %v2094 = vadd.f32 %v2070, %v2086
        %v2095 = vld [vmem:[#allocation2 + $0x2] sm:$0xf]
        %v2096 = vld [vmem:[#allocation2 + $0xa] sm:$0xf]
        %v2097 = vld [vmem:[#allocation2 + $0x12] sm:$0xf]
        %v2098 = vld [vmem:[#allocation2 + $0x1a] sm:$0xf]
        %v2099 = vld [vmem:[%s3 + $0x2] sm:$0x1]
        %v2100 = vperm.slane %v2099, 0
        %v2101 = vmul.f32 %v2095, %v2100
        %v2102 = vmul.f32 %v2096, %v2100
        %v2103 = vmul.f32 %v2097, %v2100
        %v2104 = vmul.f32 %v2098, %v2100
        %v2105 = vld [vmem:[%s3 + $0xb] sm:$0x1]
        %v2106 = vperm.slane %v2105, 0
        %v2107 = vmul.f32 %v2095, %v2106
        %v2108 = vmul.f32 %v2096, %v2106
        %v2109 = vmul.f32 %v2097, %v2106
        %v2110 = vmul.f32 %v2098, %v2106
        %v2111 = vadd.f32 %v2087, %v2101
        %v2112 = vadd.f32 %v2088, %v2102
        %v2113 = vadd.f32 %v2089, %v2103
        %v2114 = vadd.f32 %v2090, %v2104
        %v2115 = vadd.f32 %v2091, %v2107
        %v2116 = vadd.f32 %v2092, %v2108
        %v2117 = vadd.f32 %v2093, %v2109
        %v2118 = vadd.f32 %v2094, %v2110
        %v2119 = vld [vmem:[%s2050] sm:$0xf]
        %v2120 = vld [vmem:[%s2050 + $0x8] sm:$0xf]
        %v2121 = vld [vmem:[%s2050 + $0x10] sm:$0xf]
        %v2122 = vld [vmem:[%s2050 + $0x18] sm:$0xf]
        %v2123 = vld [vmem:[%s3 + $0x3] sm:$0x1]
        %v2124 = vperm.slane %v2123, 0
        %v2125 = vmul.f32 %v2119, %v2124
        %v2126 = vmul.f32 %v2120, %v2124
        %v2127 = vmul.f32 %v2121, %v2124
        %v2128 = vmul.f32 %v2122, %v2124
        %v2129 = vld [vmem:[%s3 + $0xc] sm:$0x1]
        %v2130 = vperm.slane %v2129, 0
        %v2131 = vmul.f32 %v2119, %v2130
        %v2132 = vmul.f32 %v2120, %v2130
        %v2133 = vmul.f32 %v2121, %v2130
        %v2134 = vmul.f32 %v2122, %v2130
        %v2135 = vadd.f32 %v2111, %v2125
        %v2136 = vadd.f32 %v2112, %v2126
        %v2137 = vadd.f32 %v2113, %v2127
        %v2138 = vadd.f32 %v2114, %v2128
        %v2139 = vadd.f32 %v2115, %v2131
        %v2140 = vadd.f32 %v2116, %v2132
        %v2141 = vadd.f32 %v2117, %v2133
        %v2142 = vadd.f32 %v2118, %v2134
        %v2143 = vld [vmem:[%s2050 + $0x1] sm:$0xf]
        %v2144 = vld [vmem:[%s2050 + $0x9] sm:$0xf]
        %v2145 = vld [vmem:[%s2050 + $0x11] sm:$0xf]
        %v2146 = vld [vmem:[%s2050 + $0x19] sm:$0xf]
        %v2147 = vld [vmem:[%s3 + $0x4] sm:$0x1]
        %v2148 = vperm.slane %v2147, 0
        %v2149 = vmul.f32 %v2143, %v2148
        %v2150 = vmul.f32 %v2144, %v2148
        %v2151 = vmul.f32 %v2145, %v2148
        %v2152 = vmul.f32 %v2146, %v2148
        %v2153 = vld [vmem:[%s3 + $0xd] sm:$0x1]
        %v2154 = vperm.slane %v2153, 0
        %v2155 = vmul.f32 %v2143, %v2154
        %v2156 = vmul.f32 %v2144, %v2154
        %v2157 = vmul.f32 %v2145, %v2154
        %v2158 = vmul.f32 %v2146, %v2154
        %v2159 = vadd.f32 %v2135, %v2149
        %v2160 = vadd.f32 %v2136, %v2150
        %v2161 = vadd.f32 %v2137, %v2151
        %v2162 = vadd.f32 %v2138, %v2152
        %v2163 = vadd.f32 %v2139, %v2155
        %v2164 = vadd.f32 %v2140, %v2156
        %v2165 = vadd.f32 %v2141, %v2157
        %v2166 = vadd.f32 %v2142, %v2158
        %v2167 = vld [vmem:[%s2050 + $0x2] sm:$0xf]
        %v2168 = vld [vmem:[%s2050 + $0xa] sm:$0xf]
        %v2169 = vld [vmem:[%s2050 + $0x12] sm:$0xf]
        %v2170 = vld [vmem:[%s2050 + $0x1a] sm:$0xf]
        %v2171 = vld [vmem:[%s3 + $0x5] sm:$0x1]
        %v2172 = vperm.slane %v2171, 0
        %v2173 = vmul.f32 %v2167, %v2172
        %v2174 = vmul.f32 %v2168, %v2172
        %v2175 = vmul.f32 %v2169, %v2172
        %v2176 = vmul.f32 %v2170, %v2172
        %v2177 = vld [vmem:[%s3 + $0xe] sm:$0x1]
        %v2178 = vperm.slane %v2177, 0
        %v2179 = vmul.f32 %v2167, %v2178
        %v2180 = vmul.f32 %v2168, %v2178
        %v2181 = vmul.f32 %v2169, %v2178
        %v2182 = vmul.f32 %v2170, %v2178
        %v2183 = vadd.f32 %v2159, %v2173
        %v2184 = vadd.f32 %v2160, %v2174
        %v2185 = vadd.f32 %v2161, %v2175
        %v2186 = vadd.f32 %v2162, %v2176
        %v2187 = vadd.f32 %v2163, %v2179
        %v2188 = vadd.f32 %v2164, %v2180
        %v2189 = vadd.f32 %v2165, %v2181
        %v2190 = vadd.f32 %v2166, %v2182
        %s2191 = scalar_lea.vmem [#allocation2], 16
        %v2192 = vld [vmem:[%s2191] sm:$0xf]
        %v2193 = vld [vmem:[%s2191 + $0x8] sm:$0xf]
        %v2194 = vld [vmem:[%s2191 + $0x10] sm:$0xf]
        %v2195 = vld [vmem:[%s2191 + $0x18] sm:$0xf]
        %v2196 = vld [vmem:[%s3 + $0x6] sm:$0x1]
        %v2197 = vperm.slane %v2196, 0
        %v2198 = vmul.f32 %v2192, %v2197
        %v2199 = vmul.f32 %v2193, %v2197
        %v2200 = vmul.f32 %v2194, %v2197
        %v2201 = vmul.f32 %v2195, %v2197
        %v2202 = vld [vmem:[%s3 + $0xf] sm:$0x1]
        %v2203 = vperm.slane %v2202, 0
        %v2204 = vmul.f32 %v2192, %v2203
        %v2205 = vmul.f32 %v2193, %v2203
        %v2206 = vmul.f32 %v2194, %v2203
        %v2207 = vmul.f32 %v2195, %v2203
        %v2208 = vadd.f32 %v2183, %v2198
        %v2209 = vadd.f32 %v2184, %v2199
        %v2210 = vadd.f32 %v2185, %v2200
        %v2211 = vadd.f32 %v2186, %v2201
        %v2212 = vadd.f32 %v2187, %v2204
        %v2213 = vadd.f32 %v2188, %v2205
        %v2214 = vadd.f32 %v2189, %v2206
        %v2215 = vadd.f32 %v2190, %v2207
        %v2216 = vld [vmem:[%s2191 + $0x1] sm:$0xf]
        %v2217 = vld [vmem:[%s2191 + $0x9] sm:$0xf]
        %v2218 = vld [vmem:[%s2191 + $0x11] sm:$0xf]
        %v2219 = vld [vmem:[%s2191 + $0x19] sm:$0xf]
        %v2220 = vld [vmem:[%s3 + $0x7] sm:$0x1]
        %v2221 = vperm.slane %v2220, 0
        %v2222 = vmul.f32 %v2216, %v2221
        %v2223 = vmul.f32 %v2217, %v2221
        %v2224 = vmul.f32 %v2218, %v2221
        %v2225 = vmul.f32 %v2219, %v2221
        %v2226 = vld [vmem:[%s3 + $0x10] sm:$0x1]
        %v2227 = vperm.slane %v2226, 0
        %v2228 = vmul.f32 %v2216, %v2227
        %v2229 = vmul.f32 %v2217, %v2227
        %v2230 = vmul.f32 %v2218, %v2227
        %v2231 = vmul.f32 %v2219, %v2227
        %v2232 = vadd.f32 %v2208, %v2222
        %v2233 = vadd.f32 %v2209, %v2223
        %v2234 = vadd.f32 %v2210, %v2224
        %v2235 = vadd.f32 %v2211, %v2225
        %v2236 = vadd.f32 %v2212, %v2228
        %v2237 = vadd.f32 %v2213, %v2229
        %v2238 = vadd.f32 %v2214, %v2230
        %v2239 = vadd.f32 %v2215, %v2231
        %v2240 = vld [vmem:[%s2191 + $0x2] sm:$0xf]
        %v2241 = vld [vmem:[%s2191 + $0xa] sm:$0xf]
        %v2242 = vld [vmem:[%s2191 + $0x12] sm:$0xf]
        %v2243 = vld [vmem:[%s2191 + $0x1a] sm:$0xf]
        %v2244 = vld [vmem:[%s3 + $0x8] sm:$0x1]
        %v2245 = vperm.slane %v2244, 0
        %v2246 = vmul.f32 %v2240, %v2245
        %v2247 = vmul.f32 %v2241, %v2245
        %v2248 = vmul.f32 %v2242, %v2245
        %v2249 = vmul.f32 %v2243, %v2245
        %v2250 = vld [vmem:[%s3 + $0x11] sm:$0x1]
        %v2251 = vperm.slane %v2250, 0
        %v2252 = vmul.f32 %v2240, %v2251
        %v2253 = vmul.f32 %v2241, %v2251
        %v2254 = vmul.f32 %v2242, %v2251
        %v2255 = vmul.f32 %v2243, %v2251
        %v2256 = vadd.f32 %v2232, %v2246
        %v2257 = vadd.f32 %v2233, %v2247
        %v2258 = vadd.f32 %v2234, %v2248
        %v2259 = vadd.f32 %v2235, %v2249
        %v2260 = vadd.f32 %v2236, %v2252
        %v2261 = vadd.f32 %v2237, %v2253
        %v2262 = vadd.f32 %v2238, %v2254
        %v2263 = vadd.f32 %v2239, %v2255
        %v2264 = vld [vmem:[%s4] sm:$0x1]
        %v2265 = vperm.slane %v2264, 0
        %v2266 = vadd.f32 %v2256, %v2265
        %v2267 = vadd.f32 %v2257, %v2265
        %v2268 = vadd.f32 %v2258, %v2265
        %v2269 = vadd.f32 %v2259, %v2265
        %v2270 = vmax.f32 %v2266, 0.0
        %v2271 = vmax.f32 %v2267, 0.0
        %v2272 = vmax.f32 %v2268, 0.0
        %v2273 = vmax.f32 %v2269, 0.0
        %v2274 = vld [vmem:[%s4 + $0x1] sm:$0x1]
        %v2275 = vperm.slane %v2274, 0
        %v2276 = vadd.f32 %v2260, %v2275
        %v2277 = vadd.f32 %v2261, %v2275
        %v2278 = vadd.f32 %v2262, %v2275
        %v2279 = vadd.f32 %v2263, %v2275
        %v2280 = vmax.f32 %v2276, 0.0
        %v2281 = vmax.f32 %v2277, 0.0
        %v2282 = vmax.f32 %v2278, 0.0
        %v2283 = vmax.f32 %v2279, 0.0
        %2288 = vst [vmem:[#allocation1] ss:$2 sm:$0xff] %v2270
        %s2289 = scalar_lea.vmem [#allocation1], 1
        %2290 = vst [vmem:[%s2289] ss:$2 sm:$0xff] %v2271
        %s2291 = scalar_lea.vmem [#allocation1], 16
        %2292 = vst [vmem:[%s2291] ss:$2 sm:$0xff] %v2272
        %s2293 = scalar_lea.vmem [#allocation1], 17
        %2294 = vst [vmem:[%s2293] ss:$2 sm:$0xff] %v2273
        %v2295 = vld.sshfl [vmem:[#allocation1] sm:$0xff pattern:$0x75316420]
        %v2296 = vld.sshfl [vmem:[#allocation1 + $0x10] sm:$0xff pattern:$0x75316420]
        %v2299 = vpack.c.bf16 %v2296, %v2295
        %v2300 = vld [vmem:[%s5] sm:$0xf]
        %v2301 = vld [vmem:[%s5 + $0x4] sm:$0xf]
        %v2302 = vld [vmem:[%s5 + $0x8] sm:$0xf]
        %v2303 = vld [vmem:[%s5 + $0xc] sm:$0xf]
        %v2304 = vld [vmem:[%s5 + $0x10] sm:$0xf]
        %v2305 = vld [vmem:[%s5 + $0x14] sm:$0xf]
        %v2306 = vld [vmem:[%s5 + $0x18] sm:$0xf]
        %v2307 = vld [vmem:[%s5 + $0x1c] sm:$0xf]
        %v2308 = vld [vmem:[%s5 + $0x20] sm:$0xf]
        %v2309 = vld [vmem:[%s5 + $0x24] sm:$0xf]
        %v2310 = vld [vmem:[%s5 + $0x28] sm:$0xf]
        %v2311 = vld [vmem:[%s5 + $0x2c] sm:$0xf]
        %v2312 = vld [vmem:[%s5 + $0x30] sm:$0xf]
        %v2313 = vld [vmem:[%s5 + $0x34] sm:$0xf]
        %v2314 = vld [vmem:[%s5 + $0x38] sm:$0xf]
        %v2315 = vld [vmem:[%s5 + $0x3c] sm:$0xf]
        %2320 = vst [vmem:[#allocation1] ss:$2 sm:$0xff] %v2280
        %s2321 = scalar_lea.vmem [#allocation1], 1
        %2322 = vst [vmem:[%s2321] ss:$2 sm:$0xff] %v2281
        %s2323 = scalar_lea.vmem [#allocation1], 16
        %2324 = vst [vmem:[%s2323] ss:$2 sm:$0xff] %v2282
        %s2325 = scalar_lea.vmem [#allocation1], 17
        %2326 = vst [vmem:[%s2325] ss:$2 sm:$0xff] %v2283
        %v2327 = vld.sshfl [vmem:[#allocation1] sm:$0xff pattern:$0x75316420]
        %v2328 = vld.sshfl [vmem:[#allocation1 + $0x10] sm:$0xff pattern:$0x75316420]
        %v2331 = vpack.c.bf16 %v2328, %v2327
        %s2332 = scalar_lea.vmem %s5, 64
        %v2333 = vld [vmem:[%s2332] sm:$0xf]
        %v2334 = vld [vmem:[%s2332 + $0x4] sm:$0xf]
        %v2335 = vld [vmem:[%s2332 + $0x8] sm:$0xf]
        %v2336 = vld [vmem:[%s2332 + $0xc] sm:$0xf]
        %v2337 = vld [vmem:[%s2332 + $0x10] sm:$0xf]
        %v2338 = vld [vmem:[%s2332 + $0x14] sm:$0xf]
        %v2339 = vld [vmem:[%s2332 + $0x18] sm:$0xf]
        %v2340 = vld [vmem:[%s2332 + $0x1c] sm:$0xf]
        %v2341 = vld [vmem:[%s2332 + $0x20] sm:$0xf]
        %v2342 = vld [vmem:[%s2332 + $0x24] sm:$0xf]
        %v2343 = vld [vmem:[%s2332 + $0x28] sm:$0xf]
        %v2344 = vld [vmem:[%s2332 + $0x2c] sm:$0xf]
        %v2345 = vld [vmem:[%s2332 + $0x30] sm:$0xf]
        %v2346 = vld [vmem:[%s2332 + $0x34] sm:$0xf]
        %v2347 = vld [vmem:[%s2332 + $0x38] sm:$0xf]
        %v2348 = vld [vmem:[%s2332 + $0x3c] sm:$0xf]
        %v2365 = vunpack.c.l.b16 %v2333
        %v2366 = vunpack.c.l.b16 %v2334
        %v2367 = vunpack.c.l.b16 %v2335
        %v2368 = vunpack.c.l.b16 %v2336
        %v2369 = vunpack.c.l.b16 %v2337
        %v2370 = vunpack.c.l.b16 %v2338
        %v2371 = vunpack.c.l.b16 %v2339
        %v2372 = vunpack.c.l.b16 %v2340
        %v2373 = vunpack.c.l.b16 %v2341
        %v2374 = vunpack.c.l.b16 %v2342
        %v2375 = vunpack.c.l.b16 %v2343
        %v2376 = vunpack.c.l.b16 %v2344
        %v2377 = vunpack.c.l.b16 %v2345
        %v2378 = vunpack.c.l.b16 %v2346
        %v2379 = vunpack.c.l.b16 %v2347
        %v2380 = vunpack.c.l.b16 %v2348
        %v2381 = vpack.c.b16 %v2366, %v2365
        %v2382 = vpack.c.b16 %v2368, %v2367
        %v2383 = vpack.c.b16 %v2370, %v2369
        %v2384 = vpack.c.b16 %v2372, %v2371
        %v2385 = vpack.c.b16 %v2374, %v2373
        %v2386 = vpack.c.b16 %v2376, %v2375
        %v2387 = vpack.c.b16 %v2378, %v2377
        %v2388 = vpack.c.b16 %v2380, %v2379
        %2397 = vmatpush.bf16.msra.mxu0 %v2388
        %2398 = vmatpush.bf16.msra.mxu0 %v2387
        %2399 = vmatpush.bf16.msra.mxu0 %v2386
        %2400 = vmatpush.bf16.msra.mxu0 %v2385
        %2401 = vmatpush.bf16.msra.mxu0 %v2384
        %2402 = vmatpush.bf16.msra.mxu0 %v2383
        %2403 = vmatpush.bf16.msra.mxu0 %v2382
        %2404 = vmatpush.bf16.msra.mxu0 %v2381
        %2405 = vmatmul.bf16.gmra.mxu0 %v2331
        %v2406 = vpop.f32.mrf.mxu0
        %v2407 = vadd.f32 0.0, %v2406
        %v2408 = vpop.f32.mrf.mxu0
        %v2409 = vadd.f32 0.0, %v2408
        %2410 = vdwg.mxu0
        %v2427 = vunpack.c.l.b16 %v2300
        %v2428 = vunpack.c.l.b16 %v2301
        %v2429 = vunpack.c.l.b16 %v2302
        %v2430 = vunpack.c.l.b16 %v2303
        %v2431 = vunpack.c.l.b16 %v2304
        %v2432 = vunpack.c.l.b16 %v2305
        %v2433 = vunpack.c.l.b16 %v2306
        %v2434 = vunpack.c.l.b16 %v2307
        %v2435 = vunpack.c.l.b16 %v2308
        %v2436 = vunpack.c.l.b16 %v2309
        %v2437 = vunpack.c.l.b16 %v2310
        %v2438 = vunpack.c.l.b16 %v2311
        %v2439 = vunpack.c.l.b16 %v2312
        %v2440 = vunpack.c.l.b16 %v2313
        %v2441 = vunpack.c.l.b16 %v2314
        %v2442 = vunpack.c.l.b16 %v2315
        %v2443 = vpack.c.b16 %v2428, %v2427
        %v2444 = vpack.c.b16 %v2430, %v2429
        %v2445 = vpack.c.b16 %v2432, %v2431
        %v2446 = vpack.c.b16 %v2434, %v2433
        %v2447 = vpack.c.b16 %v2436, %v2435
        %v2448 = vpack.c.b16 %v2438, %v2437
        %v2449 = vpack.c.b16 %v2440, %v2439
        %v2450 = vpack.c.b16 %v2442, %v2441
        %2459 = vmatpush.bf16.msra.mxu0 %v2450
        %2460 = vmatpush.bf16.msra.mxu0 %v2449
        %2461 = vmatpush.bf16.msra.mxu0 %v2448
        %2462 = vmatpush.bf16.msra.mxu0 %v2447
        %2463 = vmatpush.bf16.msra.mxu0 %v2446
        %2464 = vmatpush.bf16.msra.mxu0 %v2445
        %2465 = vmatpush.bf16.msra.mxu0 %v2444
        %2466 = vmatpush.bf16.msra.mxu0 %v2443
        %2467 = vmatmul.bf16.gmra.mxu0 %v2299
        %v2468 = vpop.f32.mrf.mxu0
        %v2469 = vadd.f32 %v2407, %v2468
        %v2470 = vpop.f32.mrf.mxu0
        %v2471 = vadd.f32 %v2409, %v2470
        %2472 = vdwg.mxu0
        %v2473 = vld [vmem:[%s6] sm:$0x1]
        %v2475 = vperm.slane %v2473, 0
        %v2477 = vadd.f32 %v2469, %v2475
        %v2478 = vadd.f32 %v2471, %v2475
        %2479 = vst [vmem:[%s316] sm:$0xff] %v2477
        %2480 = vst [vmem:[%s316 + $0x8] sm:$0xff] %v2478
        %s2481 = sand.u32 %s183, 1
        %s2482 = scalar_lea.sflag [#allocation4], %s2481
        %s2483 = sand.u32 %s183, 1
        %s2484 = smul.addr %s2483, 8
        %s2485 = scalar_lea.vmem [#allocation3], %s2484
        %p2486 = scmp.lt.s32.totalorder %s23, 1
        %s2487 = scalar_select %p2486, %s23, 1
        %s2488 = smul.addr %s2487, 2
        %s2489 = smul.addr %s2488, 8
        %s2490 = scalar_lea.vmem %s8, %s2489
        // Predicated region
        $region49: #{ssd_detector_forward.5} parent=47 // pred_check
          %p2491 = pneg %p193
        $region50: #{ssd_detector_forward.5} parent=47 // pred_check_branch
          %2493 = sbr.rel (%p2491) target = $region52
        $region51: #{ssd_detector_forward.5} parent=47 // pred_region
          %2495 = vsyncadd %s2482, 0
          %s2496 = smul.addr %s23, 4
          %s2497 = smul.addr %s2496, 2
          %s2498 = scalar_lea.hbm %s7, %s2497
          %s2499 = sshll.u32 %s2485, 4
          %s2500 = int_to_ptr.vmem [resolvable:$true] %s2499
          %s2501 = sshll.u32 %s2498, 4
          %s2502 = int_to_ptr.hbm [resolvable:$true] %s2501
          %2507 = dma.vmem_to_hbm [thread:$0]  %s2500, 128, %s2502, %s2482, 32, 32, 2
        $region52: #{ssd_detector_forward.5} parent=47 // pred_fallthru
          _
        // Predicated region
        $region53: #{ssd_detector_forward.5} parent=47 // pred_check
          %p2508 = pneg %p219
        $region54: #{ssd_detector_forward.5} parent=47 // pred_check_branch
          %2510 = sbr.rel (%p2508) target = $region56
        $region55: #{ssd_detector_forward.5} parent=47 // pred_region
          _
        $region56: #{ssd_detector_forward.5} parent=47 // pred_fallthru
          _
      $region48: #{ssd_detector_forward.5} parent=5 // pred_fallthru
        _
      %p2511 = scmp.le.s32.totalorder 2, %s18
      // Predicated region
      $region57: #{ssd_detector_forward.5} parent=5 // pred_check
        %p2512 = pneg %p2511
      $region58: #{ssd_detector_forward.5} parent=5 // pred_check_branch
        %2514 = sbr.rel (%p2512) target = $region60
      $region59: #{ssd_detector_forward.5} parent=5 // pred_region
        %s2515 = ssub.s32 %s18, 2
        // Predicated region
        $region61: #{ssd_detector_forward.5} parent=59 // pred_check
          %p2516 = pneg %p199
        $region62: #{ssd_detector_forward.5} parent=59 // pred_check_branch
          %2518 = sbr.rel (%p2516) target = $region64
        $region63: #{ssd_detector_forward.5} parent=59 // pred_region
          %s2519 = sand.u32 %s184, 1
          %s2520 = scalar_lea.sflag [#allocation4], %s2519
          %s2521 = sand.u32 %s184, 1
          %s2522 = smul.addr %s2521, 8
          %s2523 = scalar_lea.vmem [#allocation3], %s2522
          %2525 = dma.done %s2520, 128
        $region64: #{ssd_detector_forward.5} parent=59 // pred_fallthru
          _
        // Predicated region
        $region65: #{ssd_detector_forward.5} parent=59 // pred_check
          %p2526 = pneg %p225
        $region66: #{ssd_detector_forward.5} parent=59 // pred_check_branch
          %2528 = sbr.rel (%p2526) target = $region68
        $region67: #{ssd_detector_forward.5} parent=59 // pred_region
          %p2529 = scmp.lt.s32.totalorder %s24, 1
          %s2530 = scalar_select %p2529, %s24, 1
          %s2531 = smul.addr %s2530, 2
          %s2532 = smul.addr %s2531, 8
          %s2533 = scalar_lea.vmem %s8, %s2532
        $region68: #{ssd_detector_forward.5} parent=59 // pred_fallthru
          _
      $region60: #{ssd_detector_forward.5} parent=5 // pred_fallthru
        _
    $region6: #{ssd_detector_forward.5} parent=1 // loop_footer
      %s22 = sadd.s32 1, %s18
    $region7: #{ssd_detector_forward.5} parent=1 // loop_footer_branch
      %17 = sbr.rel target = $region3
    $region8: #{ssd_detector_forward.5} parent=1 // loop_exit
      _
    %2534 = vsyncpa [#allocation4], 1
    %s2535 = scalar_lea.sflag [#allocation4], 1
    %2536 = vsyncpa %s2535, 1

</llo_original>
